<compile_context>
chip_gen: v5e
topology: v5e:2x2
jax: 0.10.0
libtpu: 0.0.40
codegen_flags: <defaults>
</compile_context>

<pallas_src>
import jax
import jax.numpy as jnp
from jax.experimental import pallas as pl
from jax.experimental.pallas import tpu as pltpu

PLANE = 25          # valid rows per 5x5 within-phase plane
BLK = 32            # rows allocated per plane (25 valid + 7 pad)
CH = 32             # conv output channels (fixed by the module)

# lane-group order inside a paired activation block: [eo, oo, oe, ee]
# (row parity, col parity) of the stride-2 phase each 32-lane group holds.
G_ORDER = ((0, 1), (1, 1), (1, 0), (0, 0))
# conv weight row order matching the 288-wide staging columns
TAP_ORDER = [(1, 2), (2, 2), (2, 1), (1, 1),      # self block  (lanes   0:128)
             (1, 0), (2, 0),                      # left block  (lanes 128:192)
             (0, 2), (0, 1),                      # up block    (lanes 192:256)
             (0, 0)]                              # upleft      (lanes 256:288)


# ----------------------------------------------------------------------------
# Small in-kernel helpers: within-plane shifts for border taps (VPU only).
# plane row j = u*5 + v;  "v-shift": j -> j-1, zero where v==0;
#                         "u-shift": j -> j-5, zero where u==0.
# ----------------------------------------------------------------------------
def _vshift(x):
    w = x.shape[1]
    s = jnp.concatenate([jnp.zeros((1, w), x.dtype), x[:-1, :]], axis=0)
    j = jax.lax.broadcasted_iota(jnp.int32, s.shape, 0)
    return jnp.where(j % 5 == 0, 0.0, s)


def _ushift(x):
    w = x.shape[1]
    return jnp.concatenate([jnp.zeros((5, w), x.dtype), x[:-5, :]], axis=0)


def _uvshift(x):
    w = x.shape[1]
    s = jnp.concatenate([jnp.zeros((6, w), x.dtype), x[:-6, :]], axis=0)
    j = jax.lax.broadcasted_iota(jnp.int32, s.shape, 0)
    return jnp.where(j % 5 == 0, 0.0, s)


# ----------------------------------------------------------------------------
# Fused forward kernel (one grid step == one batch sample)
# ----------------------------------------------------------------------------
def _make_kernel(hidden, num_actions):
    n_gates = 3 * hidden
    n_ac = num_actions + 1
    out_w = hidden + n_ac

    def kernel(pat_ref, w1_ref, wc_ref, wbf_ref, whh_ref, wac_ref, small_ref,
               h0_ref, out_ref, act1_ref, act2_ref, act3_ref, stg_ref):
        f32 = jnp.float32

        def repack_store(res, out_act, k):
            # 4 consecutive 32-row output chunks -> 4 lane groups of the next
            # layer's paired activation block (one lane-dense (32,128) store).
            out_act[k * BLK:(k + 1) * BLK, :] = jnp.concatenate(
                [res[0:BLK], res[BLK:2 * BLK],
                 res[2 * BLK:3 * BLK], res[3 * BLK:4 * BLK]], axis=1)

        # -------- layer 1: wrapper-built im2col patches -> paired act1 -------
        b1 = small_ref[0:1, 0:CH]
        for k in range(16):
            lhs = pat_ref[k * 4 * BLK:(k + 1) * 4 * BLK, :]          # (128, 36)
            res = jnp.maximum(
                jnp.dot(lhs, w1_ref[...], preferred_element_type=f32) + b1, 0.0)
            repack_store(res, act1_ref, k)

        # -------- layers 2..4: stride-2 3x3 conv on paired activations -------
        def conv_paired(in_ref, m, w_off, bias, out_act):
            # dst blocks are computed in an order grouped by the NEXT layer's
            # parity class, so the repack above is a pure lane concat.
            if m == 1:
                order = [(0, 0)]
            else:
                mp = m // 2
                order = [(2 * pp + py, 2 * qp + px)
                         for pp in range(mp) for qp in range(mp)
                         for (py, px) in G_ORDER]
            # build the (nblk*32, 288) im2col staging (one store per block)
            for t, (P, Q) in enumerate(order):
                s0 = (P * m + Q) * BLK
                blk_self = in_ref[s0:s0 + BLK, :]                    # (32,128)
                lq = Q - 1 if Q > 0 else m - 1
                l0 = (P * m + lq) * BLK
                left = in_ref[l0:l0 + BLK, 0:2 * CH]                 # (32, 64)
                if Q == 0:
                    left = _vshift(left)
                pu = P - 1 if P > 0 else m - 1
                u0 = (pu * m + Q) * BLK
                up = in_ref[u0:u0 + BLK, CH:3 * CH]                  # (32, 64)
                if P == 0:
                    up = _ushift(up)
                c0 = (pu * m + lq) * BLK
                ul = in_ref[c0:c0 + BLK, CH:2 * CH]                  # (32, 32)
                if P == 0 and Q == 0:
                    ul = _uvshift(ul)
                elif P == 0:
                    ul = _ushift(ul)
                elif Q == 0:
                    ul = _vshift(ul)
                stg_ref[t * BLK:(t + 1) * BLK, :] = jnp.concatenate(
                    [blk_self, left, up, ul], axis=1)                # (32,288)

            if m == 1:   # layer 4: single block, keep result in registers
                return jnp.maximum(
                    jnp.dot(stg_ref[0:BLK, :],
                            wc_ref[w_off:w_off + 9 * CH, :],
                            preferred_element_type=f32) + bias, 0.0)
            for k in range(m * m // 4):
                lhs = stg_ref[k * 4 * BLK:(k + 1) * 4 * BLK, :]      # (128,288)
                res = jnp.maximum(
                    jnp.dot(lhs, wc_ref[w_off:w_off + 9 * CH, :],
                            preferred_element_type=f32) + bias, 0.0)
                repack_store(res, out_act, k)
            return None

        conv_paired(act1_ref, 4, 0 * 9 * CH, small_ref[1:2, 0:CH], act2_ref)
        conv_paired(act2_ref, 2, 1 * 9 * CH, small_ref[2:3, 0:CH], act3_ref)
        acc4 = conv_paired(act3_ref, 1, 2 * 9 * CH, small_ref[3:4, 0:CH], None)

        # -------- GRU input projection: lane-pack (32,32) -> (8,128) ---------
        feat8 = jnp.concatenate(
            [acc4[0:8, :], acc4[8:16, :], acc4[16:24, :], acc4[24:32, :]],
            axis=1)                                                  # (8, 128)
        gi = small_ref[4:5, 0:n_gates]                               # bias_ih
        for r in range(8):
            gi = gi + jnp.dot(feat8[r:r + 1, :],
                              wbf_ref[r * 128:(r + 1) * 128, :],
                              preferred_element_type=f32)

        # -------- GRUCell (PyTorch gate order r, z, n) ------------------------
        h0 = h0_ref[...].reshape(1, hidden)
        gh = jnp.dot(h0, whh_ref[...], preferred_element_type=f32) \
            + small_ref[5:6, 0:n_gates]
        r_g = jax.nn.sigmoid(gi[:, 0:hidden] + gh[:, 0:hidden])
        z_g = jax.nn.sigmoid(gi[:, hidden:2 * hidden] + gh[:, hidden:2 * hidden])
        n_g = jnp.tanh(gi[:, 2 * hidden:3 * hidden]
                       + r_g * gh[:, 2 * hidden:3 * hidden])
        h_new = (1.0 - z_g) * n_g + z_g * h0

        # -------- actor + critic in one matmul --------------------------------
        ac = jnp.dot(h_new, wac_ref[...], preferred_element_type=f32) \
            + small_ref[6:7, 0:n_ac]
        out_ref[...] = jnp.concatenate([h_new, ac], axis=1).reshape(1, 1, out_w)

    return kernel


# ----------------------------------------------------------------------------
# Wrapper-side prep
# ----------------------------------------------------------------------------
def _build_l1_patches(x_nchw):
    """3x3 s2 p1 im2col of the input, emitted in the phase-grouped block order
    the kernel expects: rows = (sample, P', Q', lane-group, plane row j),
    features = (ky, kx, cin).  Blocks span full rows so the HBM DMA per sample
    is one contiguous region."""
    n, c, h, w = x_nchw.shape
    x = jnp.transpose(x_nchw, (0, 2, 3, 1)).astype(jnp.float32)       # NHWC
    xp = jnp.pad(x, ((0, 0), (1, 1), (1, 1), (0, 0)))
    cols = [xp[:, ky:ky + h:2, kx:kx + w:2, :]
            for ky in range(3) for kx in range(3)]
    pat = jnp.stack(cols, axis=3).reshape(n, 40, 40, 9 * c)           # (n,r,c,f)
    pat = pat.reshape(n, 5, 8, 5, 8, 9 * c)                           # n,u,p,v,q,f
    pat = jnp.transpose(pat, (0, 2, 4, 1, 3, 5))                      # n,p,q,u,v,f
    pat = pat.reshape(n, 4, 2, 4, 2, 5, 5, 9 * c)                     # n,P',py,Q',px,u,v,f
    pat = jnp.transpose(pat, (0, 1, 3, 2, 4, 5, 6, 7))                # n,P',Q',py,px,u,v,f
    pat = pat.reshape(n, 4, 4, 4, PLANE, 9 * c)
    pat = jnp.take(pat, jnp.array([1, 3, 2, 0]), axis=3)              # [eo,oo,oe,ee]
    pat = jnp.pad(pat, ((0, 0), (0, 0), (0, 0), (0, 0),
                        (0, BLK - PLANE), (0, 0)))
    return pat.reshape(n * 16 * 4 * BLK, 9 * c)                       # (n*2048, 36)


def _fold_bn(p, eps=1e-5):
    scale = p["gamma"] / jnp.sqrt(p["var"] + eps)
    w_eff = p["w"] * scale                     # (3,3,Cin,Cout)
    b_eff = (p["b"] - p["mean"]) * scale + p["beta"]
    return w_eff, b_eff


def prepare_params(params):
    """One-time: fold BN, re-layout conv weights for the paired/tap-concat
    staging, permute + pad the GRU input weights for the lane-packed feature
    layout, concat actor/critic weights, pack all small biases into one array."""
    prep = {}
    w_eff, b_eff = _fold_bn(params["conv"][0])
    cin = w_eff.shape[2]
    prep["w1"] = w_eff.reshape(9 * cin, CH)                    # (36, 32)
    biases = [b_eff]
    wcs = []
    for i in (1, 2, 3):
        w_eff, b_eff = _fold_bn(params["conv"][i])
        wcs.append(jnp.concatenate([w_eff[ky, kx] for (ky, kx) in TAP_ORDER],
                                   axis=0))                    # (288, 32)
        biases.append(b_eff)
    prep["wc"] = jnp.concatenate(wcs, axis=0)                  # (864, 32)

    g = params["gru"]
    hidden = g["whh"].shape[1]
    na1 = params["actor"]["w"].shape[0] + 1
    width = max(128, 3 * hidden, na1)
    small = jnp.zeros((8, width), jnp.float32)
    for i in range(4):
        small = small.at[i, 0:CH].set(biases[i])
    small = small.at[4, 0:3 * hidden].set(g["bih"])
    small = small.at[5, 0:3 * hidden].set(g["bhh"])
    small = small.at[6, 0:na1].set(
        jnp.concatenate([params["actor"]["b"], params["critic"]["b"]]))
    prep["small"] = small

    # GRU input weights: flattened for feat8[r, 32*g + c] = act4[j=8g+r, c];
    # rows for pad planes j>=25 are zero (kills pad-row garbage).
    wih = g["wih"].reshape(3 * hidden, CH, PLANE)              # (3h, c, j)
    w_jch = jnp.transpose(wih, (2, 1, 0))                      # (j, c, 3h)
    w_jch = jnp.pad(w_jch, ((0, BLK - PLANE), (0, 0), (0, 0))) # (32, 32, 3h)
    w_grc = w_jch.reshape(4, 8, CH, 3 * hidden)                # (g, r, c, 3h)
    prep["wbf"] = jnp.transpose(w_grc, (1, 0, 2, 3)).reshape(1024, 3 * hidden)
    prep["whh_t"] = g["whh"].T
    prep["wac"] = jnp.concatenate([params["actor"]["w"].T,
                                   params["critic"]["w"].T], axis=1)
    return prep


def a3c_forward(prep, x_nchw, gru_h):
    n, c, h, w = x_nchw.shape
    assert h == 80 and w == 80, "GRU input 32*5*5 implies an 80x80 input"
    hidden = gru_h.shape[1]
    num_actions = prep["wac"].shape[1] - 1
    out_w = hidden + num_actions + 1

    patches = _build_l1_patches(x_nchw)                        # (n*2048, 9c)
    h0 = gru_h.astype(jnp.float32).reshape(n, 1, hidden)
    rows_per = 16 * 4 * BLK                                    # 2048

    args = (patches, prep["w1"], prep["wc"], prep["wbf"], prep["whh_t"],
            prep["wac"], prep["small"], h0)

    def full(a):
        return pl.BlockSpec(a.shape, lambda b, _nd=a.ndim: (0,) * _nd)

    in_specs = [
        pl.BlockSpec((rows_per, patches.shape[1]), lambda b: (b, 0)),
        full(prep["w1"]), full(prep["wc"]), full(prep["wbf"]),
        full(prep["whh_t"]), full(prep["wac"]), full(prep["small"]),
        pl.BlockSpec((1, 1, hidden), lambda b: (b, 0, 0)),
    ]

    out = pl.pallas_call(
        _make_kernel(hidden, num_actions),
        out_shape=jax.ShapeDtypeStruct((n, 1, out_w), jnp.float32),
        grid=(n,),
        in_specs=in_specs,
        out_specs=pl.BlockSpec((1, 1, out_w), lambda b: (b, 0, 0)),
        scratch_shapes=[
            pltpu.VMEM((16 * BLK, 4 * CH), jnp.float32),   # act1 (paired)
            pltpu.VMEM((4 * BLK, 4 * CH), jnp.float32),    # act2 (paired)
            pltpu.VMEM((BLK, 4 * CH), jnp.float32),        # act3 (paired)
            pltpu.VMEM((16 * BLK, 9 * CH), jnp.float32),   # im2col staging
        ],
        compiler_params=pltpu.CompilerParams(
            dimension_semantics=("parallel",)),
    )(*args)

    out = out.reshape(n, out_w)
    h_new = out[:, 0:hidden]
    actor = out[:, hidden:hidden + num_actions]
    critic = out[:, hidden + num_actions:hidden + num_actions + 1]
    return actor, critic, h_new


# ----------------------------------------------------------------------------
# Parameter init (PyTorch-like) and pure-JAX reference for validation
# ----------------------------------------------------------------------------
def init_params(key, channels, hidden, num_actions):
    keys = iter(jax.random.split(key, 32))
    conv = []
    cin = channels
    for _ in range(4):
        fan_in = cin * 9
        bound = 1.0 / float(jnp.sqrt(fan_in))
        conv.append(dict(
            w=jax.random.uniform(next(keys), (3, 3, cin, CH), jnp.float32,
                                 -bound, bound),
            b=jax.random.uniform(next(keys), (CH,), jnp.float32, -bound, bound),
            gamma=1.0 + 0.1 * jax.random.normal(next(keys), (CH,), jnp.float32),
            beta=0.1 * jax.random.normal(next(keys), (CH,), jnp.float32),
            mean=0.1 * jax.random.normal(next(keys), (CH,), jnp.float32),
            var=jnp.abs(jax.random.normal(next(keys), (CH,), jnp.float32)) + 0.5,
        ))
        cin = CH

    gru_in = CH * 5 * 5
    gb = 1.0 / float(jnp.sqrt(hidden))
    gru = dict(
        wih=jax.random.uniform(next(keys), (3 * hidden, gru_in), jnp.float32, -gb, gb),
        whh=jax.random.uniform(next(keys), (3 * hidden, hidden), jnp.float32, -gb, gb),
        bih=jax.random.uniform(next(keys), (3 * hidden,), jnp.float32, -gb, gb),
        bhh=jax.random.uniform(next(keys), (3 * hidden,), jnp.float32, -gb, gb),
    )
    lb = 1.0 / float(jnp.sqrt(hidden))
    actor = dict(
        w=jax.random.uniform(next(keys), (num_actions, hidden), jnp.float32, -lb, lb),
        b=jax.random.uniform(next(keys), (num_actions,), jnp.float32, -lb, lb),
    )
    critic = dict(
        w=jax.random.uniform(next(keys), (1, hidden), jnp.float32, -lb, lb),
        b=jax.random.uniform(next(keys), (1,), jnp.float32, -lb, lb),
    )
    return dict(conv=conv, gru=gru, actor=actor, critic=critic)


def a3c_forward_reference(params, x_nchw, gru_h):
    hp = jax.lax.Precision.HIGHEST
    x = jnp.transpose(x_nchw, (0, 2, 3, 1))
    for p in params["conv"]:
        w_eff, b_eff = _fold_bn(p)
        x = jax.lax.conv_general_dilated(
            x, w_eff, window_strides=(2, 2), padding=((1, 1), (1, 1)),
            dimension_numbers=("NHWC", "HWIO", "NHWC"), precision=hp)
        x = jnp.maximum(x + b_eff, 0.0)
    n, ho, wo, c = x.shape
    feat = jnp.transpose(x, (0, 3, 1, 2)).reshape(n, c * ho * wo)
    g = params["gru"]
    hidden = gru_h.shape[1]
    gi = jnp.dot(feat, g["wih"].T, precision=hp) + g["bih"]
    gh = jnp.dot(gru_h, g["whh"].T, precision=hp) + g["bhh"]
    r = jax.nn.sigmoid(gi[:, :hidden] + gh[:, :hidden])
    z = jax.nn.sigmoid(gi[:, hidden:2 * hidden] + gh[:, hidden:2 * hidden])
    nn_ = jnp.tanh(gi[:, 2 * hidden:] + r * gh[:, 2 * hidden:])
    h_new = (1.0 - z) * nn_ + z * gru_h
    actor = jnp.dot(h_new, params["actor"]["w"].T, precision=hp) + params["actor"]["b"]
    critic = jnp.dot(h_new, params["critic"]["w"].T, precision=hp) + params["critic"]["b"]
    return actor, critic, h_new


# ----------------------------------------------------------------------------
if __name__ == "__main__":
    # 32*5*5 GRU input hard-coded in the module => 4 stride-2 convs from 80x80.
    BATCH, CHANNELS, SPATIAL = 2, 4, 80
    HIDDEN, NUM_ACTIONS = 32, 4

    key = jax.random.PRNGKey(0)
    k_param, k_x, k_h = jax.random.split(key, 3)
    params = init_params(k_param, CHANNELS, HIDDEN, NUM_ACTIONS)
    prep = prepare_params(params)   # one-time: BN fold + weight re-layout

    x = jax.random.normal(k_x, (BATCH, CHANNELS, SPATIAL, SPATIAL), jnp.float32)
    gru_x = jax.random.normal(k_h, (BATCH, HIDDEN), jnp.float32)

    fwd = jax.jit(a3c_forward)
    actor, critic, h_new = jax.block_until_ready(fwd(prep, x, gru_x))

    assert actor.shape == (BATCH, NUM_ACTIONS)
    assert critic.shape == (BATCH, 1)
    assert h_new.shape == (BATCH, HIDDEN)

    a_ref, c_ref, h_ref = jax.block_until_ready(
        jax.jit(a3c_forward_reference)(params, x, gru_x))
    assert jnp.allclose(actor, a_ref, atol=5e-3, rtol=5e-3)
    assert jnp.allclose(critic, c_ref, atol=5e-3, rtol=5e-3)
    assert jnp.allclose(h_new, h_ref, atol=5e-3, rtol=5e-3)

    print("KERNEL_OK")
</pallas_src>

<mosaic_0001>
module attributes {stable_mosaic.version = 11 : i64} {
  func.func @kernel(%arg0: i32, %arg1: memref<2048x36xf32, #tpu.memory_space<vmem>>, %arg2: memref<36x32xf32, #tpu.memory_space<vmem>>, %arg3: memref<864x32xf32, #tpu.memory_space<vmem>>, %arg4: memref<1024x96xf32, #tpu.memory_space<vmem>>, %arg5: memref<32x96xf32, #tpu.memory_space<vmem>>, %arg6: memref<32x5xf32, #tpu.memory_space<vmem>>, %arg7: memref<8x128xf32, #tpu.memory_space<vmem>>, %arg8: memref<1x1x32xf32, #tpu.memory_space<vmem>>, %arg9: memref<1x1x37xf32, #tpu.memory_space<vmem>>, %arg10: memref<512x128xf32, #tpu.memory_space<vmem>>, %arg11: memref<128x128xf32, #tpu.memory_space<vmem>>, %arg12: memref<32x128xf32, #tpu.memory_space<vmem>>, %arg13: memref<512x288xf32, #tpu.memory_space<vmem>>) attributes {dimension_semantics = [#tpu.dimension_semantics<parallel>], iteration_bounds = array<i64: 2>, scalar_prefetch = 0 : i64, scratch_operands = 4 : i64, tpu.core_type = #tpu.core_type<tc>, window_params = [{transform_indices = @transform_0, window_bounds = array<i64: 2048, 36>}, {pipeline_mode = #tpu.pipeline_mode<synchronous>, transform_indices = @transform_1, window_bounds = array<i64: 36, 32>}, {pipeline_mode = #tpu.pipeline_mode<synchronous>, transform_indices = @transform_2, window_bounds = array<i64: 864, 32>}, {pipeline_mode = #tpu.pipeline_mode<synchronous>, transform_indices = @transform_3, window_bounds = array<i64: 1024, 96>}, {pipeline_mode = #tpu.pipeline_mode<synchronous>, transform_indices = @transform_4, window_bounds = array<i64: 32, 96>}, {pipeline_mode = #tpu.pipeline_mode<synchronous>, transform_indices = @transform_5, window_bounds = array<i64: 32, 5>}, {pipeline_mode = #tpu.pipeline_mode<synchronous>, transform_indices = @transform_6, window_bounds = array<i64: 8, 128>}, {transform_indices = @transform_7, window_bounds = array<i64: 1, 1, 32>}, {transform_indices = @transform_8, window_bounds = array<i64: 1, 1, 37>}]} {
    %c0 = arith.constant 0 : index
    %c0_0 = arith.constant 0 : index
    %0 = vector.load %arg7[%c0, %c0_0] : memref<8x128xf32, #tpu.memory_space<vmem>>, vector<1x32xf32>
    %c0_1 = arith.constant 0 : index
    %c0_2 = arith.constant 0 : index
    %1 = vector.load %arg1[%c0_1, %c0_2] : memref<2048x36xf32, #tpu.memory_space<vmem>>, vector<128x36xf32>
    %c0_3 = arith.constant 0 : index
    %c0_4 = arith.constant 0 : index
    %2 = vector.load %arg2[%c0_3, %c0_4] : memref<36x32xf32, #tpu.memory_space<vmem>>, vector<36x32xf32>
    %cst = arith.constant dense<0.000000e+00> : vector<128x32xf32>
    %3 = tpu.matmul %1, %2, %cst {dimension_numbers = #tpu.dot_dimension_numbers<[1], [0], [0], [1], [0, 0, 1, 1], [], []>} : vector<128x36xf32>, vector<36x32xf32>, vector<128x32xf32> -> vector<128x32xf32>
    %4 = vector.broadcast %0 : vector<1x32xf32> to vector<128x32xf32>
    %5 = arith.addf %3, %4 : vector<128x32xf32>
    %cst_5 = arith.constant 0.000000e+00 : f32
    %6 = vector.broadcast %cst_5 : f32 to vector<128x32xf32>
    %7 = arith.maximumf %5, %6 : vector<128x32xf32>
    %8 = vector.extract_strided_slice %7 {offsets = [0, 0], sizes = [32, 32], strides = [1, 1]} : vector<128x32xf32> to vector<32x32xf32>
    %9 = vector.extract_strided_slice %7 {offsets = [32, 0], sizes = [32, 32], strides = [1, 1]} : vector<128x32xf32> to vector<32x32xf32>
    %10 = vector.extract_strided_slice %7 {offsets = [64, 0], sizes = [32, 32], strides = [1, 1]} : vector<128x32xf32> to vector<32x32xf32>
    %11 = vector.extract_strided_slice %7 {offsets = [96, 0], sizes = [32, 32], strides = [1, 1]} : vector<128x32xf32> to vector<32x32xf32>
    %12 = tpu.concatenate %8, %9, %10, %11 in 1 : vector<32x32xf32>, vector<32x32xf32>, vector<32x32xf32>, vector<32x32xf32> -> vector<32x128xf32>
    %c0_6 = arith.constant 0 : index
    %c0_7 = arith.constant 0 : index
    %13 = vector.load %arg10[%c0_6, %c0_7] : memref<512x128xf32, #tpu.memory_space<vmem>>, vector<32x128xf32>
    tpu.vector_store %arg10[%c0_6, %c0_7], %12 {strides = array<i32>} : memref<512x128xf32, #tpu.memory_space<vmem>>, vector<32x128xf32>,
    %c128 = arith.constant 128 : index
    %c0_8 = arith.constant 0 : index
    %14 = vector.load %arg1[%c128, %c0_8] : memref<2048x36xf32, #tpu.memory_space<vmem>>, vector<128x36xf32>
    %c0_9 = arith.constant 0 : index
    %c0_10 = arith.constant 0 : index
    %15 = vector.load %arg2[%c0_9, %c0_10] : memref<36x32xf32, #tpu.memory_space<vmem>>, vector<36x32xf32>
    %cst_11 = arith.constant dense<0.000000e+00> : vector<128x32xf32>
    %16 = tpu.matmul %14, %15, %cst_11 {dimension_numbers = #tpu.dot_dimension_numbers<[1], [0], [0], [1], [0, 0, 1, 1], [], []>} : vector<128x36xf32>, vector<36x32xf32>, vector<128x32xf32> -> vector<128x32xf32>
    %17 = vector.broadcast %0 : vector<1x32xf32> to vector<128x32xf32>
    %18 = arith.addf %16, %17 : vector<128x32xf32>
    %cst_12 = arith.constant 0.000000e+00 : f32
    %19 = vector.broadcast %cst_12 : f32 to vector<128x32xf32>
    %20 = arith.maximumf %18, %19 : vector<128x32xf32>
    %21 = vector.extract_strided_slice %20 {offsets = [0, 0], sizes = [32, 32], strides = [1, 1]} : vector<128x32xf32> to vector<32x32xf32>
    %22 = vector.extract_strided_slice %20 {offsets = [32, 0], sizes = [32, 32], strides = [1, 1]} : vector<128x32xf32> to vector<32x32xf32>
    %23 = vector.extract_strided_slice %20 {offsets = [64, 0], sizes = [32, 32], strides = [1, 1]} : vector<128x32xf32> to vector<32x32xf32>
    %24 = vector.extract_strided_slice %20 {offsets = [96, 0], sizes = [32, 32], strides = [1, 1]} : vector<128x32xf32> to vector<32x32xf32>
    %25 = tpu.concatenate %21, %22, %23, %24 in 1 : vector<32x32xf32>, vector<32x32xf32>, vector<32x32xf32>, vector<32x32xf32> -> vector<32x128xf32>
    %c32 = arith.constant 32 : index
    %c0_13 = arith.constant 0 : index
    %26 = vector.load %arg10[%c32, %c0_13] : memref<512x128xf32, #tpu.memory_space<vmem>>, vector<32x128xf32>
    tpu.vector_store %arg10[%c32, %c0_13], %25 {strides = array<i32>} : memref<512x128xf32, #tpu.memory_space<vmem>>, vector<32x128xf32>,
    %c256 = arith.constant 256 : index
    %c0_14 = arith.constant 0 : index
    %27 = vector.load %arg1[%c256, %c0_14] : memref<2048x36xf32, #tpu.memory_space<vmem>>, vector<128x36xf32>
    %c0_15 = arith.constant 0 : index
    %c0_16 = arith.constant 0 : index
    %28 = vector.load %arg2[%c0_15, %c0_16] : memref<36x32xf32, #tpu.memory_space<vmem>>, vector<36x32xf32>
    %cst_17 = arith.constant dense<0.000000e+00> : vector<128x32xf32>
    %29 = tpu.matmul %27, %28, %cst_17 {dimension_numbers = #tpu.dot_dimension_numbers<[1], [0], [0], [1], [0, 0, 1, 1], [], []>} : vector<128x36xf32>, vector<36x32xf32>, vector<128x32xf32> -> vector<128x32xf32>
    %30 = vector.broadcast %0 : vector<1x32xf32> to vector<128x32xf32>
    %31 = arith.addf %29, %30 : vector<128x32xf32>
    %cst_18 = arith.constant 0.000000e+00 : f32
    %32 = vector.broadcast %cst_18 : f32 to vector<128x32xf32>
    %33 = arith.maximumf %31, %32 : vector<128x32xf32>
    %34 = vector.extract_strided_slice %33 {offsets = [0, 0], sizes = [32, 32], strides = [1, 1]} : vector<128x32xf32> to vector<32x32xf32>
    %35 = vector.extract_strided_slice %33 {offsets = [32, 0], sizes = [32, 32], strides = [1, 1]} : vector<128x32xf32> to vector<32x32xf32>
    %36 = vector.extract_strided_slice %33 {offsets = [64, 0], sizes = [32, 32], strides = [1, 1]} : vector<128x32xf32> to vector<32x32xf32>
    %37 = vector.extract_strided_slice %33 {offsets = [96, 0], sizes = [32, 32], strides = [1, 1]} : vector<128x32xf32> to vector<32x32xf32>
    %38 = tpu.concatenate %34, %35, %36, %37 in 1 : vector<32x32xf32>, vector<32x32xf32>, vector<32x32xf32>, vector<32x32xf32> -> vector<32x128xf32>
    %c64 = arith.constant 64 : index
    %c0_19 = arith.constant 0 : index
    %39 = vector.load %arg10[%c64, %c0_19] : memref<512x128xf32, #tpu.memory_space<vmem>>, vector<32x128xf32>
    tpu.vector_store %arg10[%c64, %c0_19], %38 {strides = array<i32>} : memref<512x128xf32, #tpu.memory_space<vmem>>, vector<32x128xf32>,
    %c384 = arith.constant 384 : index
    %c0_20 = arith.constant 0 : index
    %40 = vector.load %arg1[%c384, %c0_20] : memref<2048x36xf32, #tpu.memory_space<vmem>>, vector<128x36xf32>
    %c0_21 = arith.constant 0 : index
    %c0_22 = arith.constant 0 : index
    %41 = vector.load %arg2[%c0_21, %c0_22] : memref<36x32xf32, #tpu.memory_space<vmem>>, vector<36x32xf32>
    %cst_23 = arith.constant dense<0.000000e+00> : vector<128x32xf32>
    %42 = tpu.matmul %40, %41, %cst_23 {dimension_numbers = #tpu.dot_dimension_numbers<[1], [0], [0], [1], [0, 0, 1, 1], [], []>} : vector<128x36xf32>, vector<36x32xf32>, vector<128x32xf32> -> vector<128x32xf32>
    %43 = vector.broadcast %0 : vector<1x32xf32> to vector<128x32xf32>
    %44 = arith.addf %42, %43 : vector<128x32xf32>
    %cst_24 = arith.constant 0.000000e+00 : f32
    %45 = vector.broadcast %cst_24 : f32 to vector<128x32xf32>
    %46 = arith.maximumf %44, %45 : vector<128x32xf32>
    %47 = vector.extract_strided_slice %46 {offsets = [0, 0], sizes = [32, 32], strides = [1, 1]} : vector<128x32xf32> to vector<32x32xf32>
    %48 = vector.extract_strided_slice %46 {offsets = [32, 0], sizes = [32, 32], strides = [1, 1]} : vector<128x32xf32> to vector<32x32xf32>
    %49 = vector.extract_strided_slice %46 {offsets = [64, 0], sizes = [32, 32], strides = [1, 1]} : vector<128x32xf32> to vector<32x32xf32>
    %50 = vector.extract_strided_slice %46 {offsets = [96, 0], sizes = [32, 32], strides = [1, 1]} : vector<128x32xf32> to vector<32x32xf32>
    %51 = tpu.concatenate %47, %48, %49, %50 in 1 : vector<32x32xf32>, vector<32x32xf32>, vector<32x32xf32>, vector<32x32xf32> -> vector<32x128xf32>
    %c96 = arith.constant 96 : index
    %c0_25 = arith.constant 0 : index
    %52 = vector.load %arg10[%c96, %c0_25] : memref<512x128xf32, #tpu.memory_space<vmem>>, vector<32x128xf32>
    tpu.vector_store %arg10[%c96, %c0_25], %51 {strides = array<i32>} : memref<512x128xf32, #tpu.memory_space<vmem>>, vector<32x128xf32>,
    %c512 = arith.constant 512 : index
    %c0_26 = arith.constant 0 : index
    %53 = vector.load %arg1[%c512, %c0_26] : memref<2048x36xf32, #tpu.memory_space<vmem>>, vector<128x36xf32>
    %c0_27 = arith.constant 0 : index
    %c0_28 = arith.constant 0 : index
    %54 = vector.load %arg2[%c0_27, %c0_28] : memref<36x32xf32, #tpu.memory_space<vmem>>, vector<36x32xf32>
    %cst_29 = arith.constant dense<0.000000e+00> : vector<128x32xf32>
    %55 = tpu.matmul %53, %54, %cst_29 {dimension_numbers = #tpu.dot_dimension_numbers<[1], [0], [0], [1], [0, 0, 1, 1], [], []>} : vector<128x36xf32>, vector<36x32xf32>, vector<128x32xf32> -> vector<128x32xf32>
    %56 = vector.broadcast %0 : vector<1x32xf32> to vector<128x32xf32>
    %57 = arith.addf %55, %56 : vector<128x32xf32>
    %cst_30 = arith.constant 0.000000e+00 : f32
    %58 = vector.broadcast %cst_30 : f32 to vector<128x32xf32>
    %59 = arith.maximumf %57, %58 : vector<128x32xf32>
    %60 = vector.extract_strided_slice %59 {offsets = [0, 0], sizes = [32, 32], strides = [1, 1]} : vector<128x32xf32> to vector<32x32xf32>
    %61 = vector.extract_strided_slice %59 {offsets = [32, 0], sizes = [32, 32], strides = [1, 1]} : vector<128x32xf32> to vector<32x32xf32>
    %62 = vector.extract_strided_slice %59 {offsets = [64, 0], sizes = [32, 32], strides = [1, 1]} : vector<128x32xf32> to vector<32x32xf32>
    %63 = vector.extract_strided_slice %59 {offsets = [96, 0], sizes = [32, 32], strides = [1, 1]} : vector<128x32xf32> to vector<32x32xf32>
    %64 = tpu.concatenate %60, %61, %62, %63 in 1 : vector<32x32xf32>, vector<32x32xf32>, vector<32x32xf32>, vector<32x32xf32> -> vector<32x128xf32>
    %c128_31 = arith.constant 128 : index
    %c0_32 = arith.constant 0 : index
    %65 = vector.load %arg10[%c128_31, %c0_32] : memref<512x128xf32, #tpu.memory_space<vmem>>, vector<32x128xf32>
    tpu.vector_store %arg10[%c128_31, %c0_32], %64 {strides = array<i32>} : memref<512x128xf32, #tpu.memory_space<vmem>>, vector<32x128xf32>,
    %c640 = arith.constant 640 : index
    %c0_33 = arith.constant 0 : index
    %66 = vector.load %arg1[%c640, %c0_33] : memref<2048x36xf32, #tpu.memory_space<vmem>>, vector<128x36xf32>
    %c0_34 = arith.constant 0 : index
    %c0_35 = arith.constant 0 : index
    %67 = vector.load %arg2[%c0_34, %c0_35] : memref<36x32xf32, #tpu.memory_space<vmem>>, vector<36x32xf32>
    %cst_36 = arith.constant dense<0.000000e+00> : vector<128x32xf32>
    %68 = tpu.matmul %66, %67, %cst_36 {dimension_numbers = #tpu.dot_dimension_numbers<[1], [0], [0], [1], [0, 0, 1, 1], [], []>} : vector<128x36xf32>, vector<36x32xf32>, vector<128x32xf32> -> vector<128x32xf32>
    %69 = vector.broadcast %0 : vector<1x32xf32> to vector<128x32xf32>
    %70 = arith.addf %68, %69 : vector<128x32xf32>
    %cst_37 = arith.constant 0.000000e+00 : f32
    %71 = vector.broadcast %cst_37 : f32 to vector<128x32xf32>
    %72 = arith.maximumf %70, %71 : vector<128x32xf32>
    %73 = vector.extract_strided_slice %72 {offsets = [0, 0], sizes = [32, 32], strides = [1, 1]} : vector<128x32xf32> to vector<32x32xf32>
    %74 = vector.extract_strided_slice %72 {offsets = [32, 0], sizes = [32, 32], strides = [1, 1]} : vector<128x32xf32> to vector<32x32xf32>
    %75 = vector.extract_strided_slice %72 {offsets = [64, 0], sizes = [32, 32], strides = [1, 1]} : vector<128x32xf32> to vector<32x32xf32>
    %76 = vector.extract_strided_slice %72 {offsets = [96, 0], sizes = [32, 32], strides = [1, 1]} : vector<128x32xf32> to vector<32x32xf32>
    %77 = tpu.concatenate %73, %74, %75, %76 in 1 : vector<32x32xf32>, vector<32x32xf32>, vector<32x32xf32>, vector<32x32xf32> -> vector<32x128xf32>
    %c160 = arith.constant 160 : index
    %c0_38 = arith.constant 0 : index
    %78 = vector.load %arg10[%c160, %c0_38] : memref<512x128xf32, #tpu.memory_space<vmem>>, vector<32x128xf32>
    tpu.vector_store %arg10[%c160, %c0_38], %77 {strides = array<i32>} : memref<512x128xf32, #tpu.memory_space<vmem>>, vector<32x128xf32>,
    %c768 = arith.constant 768 : index
    %c0_39 = arith.constant 0 : index
    %79 = vector.load %arg1[%c768, %c0_39] : memref<2048x36xf32, #tpu.memory_space<vmem>>, vector<128x36xf32>
    %c0_40 = arith.constant 0 : index
    %c0_41 = arith.constant 0 : index
    %80 = vector.load %arg2[%c0_40, %c0_41] : memref<36x32xf32, #tpu.memory_space<vmem>>, vector<36x32xf32>
    %cst_42 = arith.constant dense<0.000000e+00> : vector<128x32xf32>
    %81 = tpu.matmul %79, %80, %cst_42 {dimension_numbers = #tpu.dot_dimension_numbers<[1], [0], [0], [1], [0, 0, 1, 1], [], []>} : vector<128x36xf32>, vector<36x32xf32>, vector<128x32xf32> -> vector<128x32xf32>
    %82 = vector.broadcast %0 : vector<1x32xf32> to vector<128x32xf32>
    %83 = arith.addf %81, %82 : vector<128x32xf32>
    %cst_43 = arith.constant 0.000000e+00 : f32
    %84 = vector.broadcast %cst_43 : f32 to vector<128x32xf32>
    %85 = arith.maximumf %83, %84 : vector<128x32xf32>
    %86 = vector.extract_strided_slice %85 {offsets = [0, 0], sizes = [32, 32], strides = [1, 1]} : vector<128x32xf32> to vector<32x32xf32>
    %87 = vector.extract_strided_slice %85 {offsets = [32, 0], sizes = [32, 32], strides = [1, 1]} : vector<128x32xf32> to vector<32x32xf32>
    %88 = vector.extract_strided_slice %85 {offsets = [64, 0], sizes = [32, 32], strides = [1, 1]} : vector<128x32xf32> to vector<32x32xf32>
    %89 = vector.extract_strided_slice %85 {offsets = [96, 0], sizes = [32, 32], strides = [1, 1]} : vector<128x32xf32> to vector<32x32xf32>
    %90 = tpu.concatenate %86, %87, %88, %89 in 1 : vector<32x32xf32>, vector<32x32xf32>, vector<32x32xf32>, vector<32x32xf32> -> vector<32x128xf32>
    %c192 = arith.constant 192 : index
    %c0_44 = arith.constant 0 : index
    %91 = vector.load %arg10[%c192, %c0_44] : memref<512x128xf32, #tpu.memory_space<vmem>>, vector<32x128xf32>
    tpu.vector_store %arg10[%c192, %c0_44], %90 {strides = array<i32>} : memref<512x128xf32, #tpu.memory_space<vmem>>, vector<32x128xf32>,
    %c896 = arith.constant 896 : index
    %c0_45 = arith.constant 0 : index
    %92 = vector.load %arg1[%c896, %c0_45] : memref<2048x36xf32, #tpu.memory_space<vmem>>, vector<128x36xf32>
    %c0_46 = arith.constant 0 : index
    %c0_47 = arith.constant 0 : index
    %93 = vector.load %arg2[%c0_46, %c0_47] : memref<36x32xf32, #tpu.memory_space<vmem>>, vector<36x32xf32>
    %cst_48 = arith.constant dense<0.000000e+00> : vector<128x32xf32>
    %94 = tpu.matmul %92, %93, %cst_48 {dimension_numbers = #tpu.dot_dimension_numbers<[1], [0], [0], [1], [0, 0, 1, 1], [], []>} : vector<128x36xf32>, vector<36x32xf32>, vector<128x32xf32> -> vector<128x32xf32>
    %95 = vector.broadcast %0 : vector<1x32xf32> to vector<128x32xf32>
    %96 = arith.addf %94, %95 : vector<128x32xf32>
    %cst_49 = arith.constant 0.000000e+00 : f32
    %97 = vector.broadcast %cst_49 : f32 to vector<128x32xf32>
    %98 = arith.maximumf %96, %97 : vector<128x32xf32>
    %99 = vector.extract_strided_slice %98 {offsets = [0, 0], sizes = [32, 32], strides = [1, 1]} : vector<128x32xf32> to vector<32x32xf32>
    %100 = vector.extract_strided_slice %98 {offsets = [32, 0], sizes = [32, 32], strides = [1, 1]} : vector<128x32xf32> to vector<32x32xf32>
    %101 = vector.extract_strided_slice %98 {offsets = [64, 0], sizes = [32, 32], strides = [1, 1]} : vector<128x32xf32> to vector<32x32xf32>
    %102 = vector.extract_strided_slice %98 {offsets = [96, 0], sizes = [32, 32], strides = [1, 1]} : vector<128x32xf32> to vector<32x32xf32>
    %103 = tpu.concatenate %99, %100, %101, %102 in 1 : vector<32x32xf32>, vector<32x32xf32>, vector<32x32xf32>, vector<32x32xf32> -> vector<32x128xf32>
    %c224 = arith.constant 224 : index
    %c0_50 = arith.constant 0 : index
    %104 = vector.load %arg10[%c224, %c0_50] : memref<512x128xf32, #tpu.memory_space<vmem>>, vector<32x128xf32>
    tpu.vector_store %arg10[%c224, %c0_50], %103 {strides = array<i32>} : memref<512x128xf32, #tpu.memory_space<vmem>>, vector<32x128xf32>,
    %c1024 = arith.constant 1024 : index
    %c0_51 = arith.constant 0 : index
    %105 = vector.load %arg1[%c1024, %c0_51] : memref<2048x36xf32, #tpu.memory_space<vmem>>, vector<128x36xf32>
    %c0_52 = arith.constant 0 : index
    %c0_53 = arith.constant 0 : index
    %106 = vector.load %arg2[%c0_52, %c0_53] : memref<36x32xf32, #tpu.memory_space<vmem>>, vector<36x32xf32>
    %cst_54 = arith.constant dense<0.000000e+00> : vector<128x32xf32>
    %107 = tpu.matmul %105, %106, %cst_54 {dimension_numbers = #tpu.dot_dimension_numbers<[1], [0], [0], [1], [0, 0, 1, 1], [], []>} : vector<128x36xf32>, vector<36x32xf32>, vector<128x32xf32> -> vector<128x32xf32>
    %108 = vector.broadcast %0 : vector<1x32xf32> to vector<128x32xf32>
    %109 = arith.addf %107, %108 : vector<128x32xf32>
    %cst_55 = arith.constant 0.000000e+00 : f32
    %110 = vector.broadcast %cst_55 : f32 to vector<128x32xf32>
    %111 = arith.maximumf %109, %110 : vector<128x32xf32>
    %112 = vector.extract_strided_slice %111 {offsets = [0, 0], sizes = [32, 32], strides = [1, 1]} : vector<128x32xf32> to vector<32x32xf32>
    %113 = vector.extract_strided_slice %111 {offsets = [32, 0], sizes = [32, 32], strides = [1, 1]} : vector<128x32xf32> to vector<32x32xf32>
    %114 = vector.extract_strided_slice %111 {offsets = [64, 0], sizes = [32, 32], strides = [1, 1]} : vector<128x32xf32> to vector<32x32xf32>
    %115 = vector.extract_strided_slice %111 {offsets = [96, 0], sizes = [32, 32], strides = [1, 1]} : vector<128x32xf32> to vector<32x32xf32>
    %116 = tpu.concatenate %112, %113, %114, %115 in 1 : vector<32x32xf32>, vector<32x32xf32>, vector<32x32xf32>, vector<32x32xf32> -> vector<32x128xf32>
    %c256_56 = arith.constant 256 : index
    %c0_57 = arith.constant 0 : index
    %117 = vector.load %arg10[%c256_56, %c0_57] : memref<512x128xf32, #tpu.memory_space<vmem>>, vector<32x128xf32>
    tpu.vector_store %arg10[%c256_56, %c0_57], %116 {strides = array<i32>} : memref<512x128xf32, #tpu.memory_space<vmem>>, vector<32x128xf32>,
    %c1152 = arith.constant 1152 : index
    %c0_58 = arith.constant 0 : index
    %118 = vector.load %arg1[%c1152, %c0_58] : memref<2048x36xf32, #tpu.memory_space<vmem>>, vector<128x36xf32>
    %c0_59 = arith.constant 0 : index
    %c0_60 = arith.constant 0 : index
    %119 = vector.load %arg2[%c0_59, %c0_60] : memref<36x32xf32, #tpu.memory_space<vmem>>, vector<36x32xf32>
    %cst_61 = arith.constant dense<0.000000e+00> : vector<128x32xf32>
    %120 = tpu.matmul %118, %119, %cst_61 {dimension_numbers = #tpu.dot_dimension_numbers<[1], [0], [0], [1], [0, 0, 1, 1], [], []>} : vector<128x36xf32>, vector<36x32xf32>, vector<128x32xf32> -> vector<128x32xf32>
    %121 = vector.broadcast %0 : vector<1x32xf32> to vector<128x32xf32>
    %122 = arith.addf %120, %121 : vector<128x32xf32>
    %cst_62 = arith.constant 0.000000e+00 : f32
    %123 = vector.broadcast %cst_62 : f32 to vector<128x32xf32>
    %124 = arith.maximumf %122, %123 : vector<128x32xf32>
    %125 = vector.extract_strided_slice %124 {offsets = [0, 0], sizes = [32, 32], strides = [1, 1]} : vector<128x32xf32> to vector<32x32xf32>
    %126 = vector.extract_strided_slice %124 {offsets = [32, 0], sizes = [32, 32], strides = [1, 1]} : vector<128x32xf32> to vector<32x32xf32>
    %127 = vector.extract_strided_slice %124 {offsets = [64, 0], sizes = [32, 32], strides = [1, 1]} : vector<128x32xf32> to vector<32x32xf32>
    %128 = vector.extract_strided_slice %124 {offsets = [96, 0], sizes = [32, 32], strides = [1, 1]} : vector<128x32xf32> to vector<32x32xf32>
    %129 = tpu.concatenate %125, %126, %127, %128 in 1 : vector<32x32xf32>, vector<32x32xf32>, vector<32x32xf32>, vector<32x32xf32> -> vector<32x128xf32>
    %c288 = arith.constant 288 : index
    %c0_63 = arith.constant 0 : index
    %130 = vector.load %arg10[%c288, %c0_63] : memref<512x128xf32, #tpu.memory_space<vmem>>, vector<32x128xf32>
    tpu.vector_store %arg10[%c288, %c0_63], %129 {strides = array<i32>} : memref<512x128xf32, #tpu.memory_space<vmem>>, vector<32x128xf32>,
    %c1280 = arith.constant 1280 : index
    %c0_64 = arith.constant 0 : index
    %131 = vector.load %arg1[%c1280, %c0_64] : memref<2048x36xf32, #tpu.memory_space<vmem>>, vector<128x36xf32>
    %c0_65 = arith.constant 0 : index
    %c0_66 = arith.constant 0 : index
    %132 = vector.load %arg2[%c0_65, %c0_66] : memref<36x32xf32, #tpu.memory_space<vmem>>, vector<36x32xf32>
    %cst_67 = arith.constant dense<0.000000e+00> : vector<128x32xf32>
    %133 = tpu.matmul %131, %132, %cst_67 {dimension_numbers = #tpu.dot_dimension_numbers<[1], [0], [0], [1], [0, 0, 1, 1], [], []>} : vector<128x36xf32>, vector<36x32xf32>, vector<128x32xf32> -> vector<128x32xf32>
    %134 = vector.broadcast %0 : vector<1x32xf32> to vector<128x32xf32>
    %135 = arith.addf %133, %134 : vector<128x32xf32>
    %cst_68 = arith.constant 0.000000e+00 : f32
    %136 = vector.broadcast %cst_68 : f32 to vector<128x32xf32>
    %137 = arith.maximumf %135, %136 : vector<128x32xf32>
    %138 = vector.extract_strided_slice %137 {offsets = [0, 0], sizes = [32, 32], strides = [1, 1]} : vector<128x32xf32> to vector<32x32xf32>
    %139 = vector.extract_strided_slice %137 {offsets = [32, 0], sizes = [32, 32], strides = [1, 1]} : vector<128x32xf32> to vector<32x32xf32>
    %140 = vector.extract_strided_slice %137 {offsets = [64, 0], sizes = [32, 32], strides = [1, 1]} : vector<128x32xf32> to vector<32x32xf32>
    %141 = vector.extract_strided_slice %137 {offsets = [96, 0], sizes = [32, 32], strides = [1, 1]} : vector<128x32xf32> to vector<32x32xf32>
    %142 = tpu.concatenate %138, %139, %140, %141 in 1 : vector<32x32xf32>, vector<32x32xf32>, vector<32x32xf32>, vector<32x32xf32> -> vector<32x128xf32>
    %c320 = arith.constant 320 : index
    %c0_69 = arith.constant 0 : index
    %143 = vector.load %arg10[%c320, %c0_69] : memref<512x128xf32, #tpu.memory_space<vmem>>, vector<32x128xf32>
    tpu.vector_store %arg10[%c320, %c0_69], %142 {strides = array<i32>} : memref<512x128xf32, #tpu.memory_space<vmem>>, vector<32x128xf32>,
    %c1408 = arith.constant 1408 : index
    %c0_70 = arith.constant 0 : index
    %144 = vector.load %arg1[%c1408, %c0_70] : memref<2048x36xf32, #tpu.memory_space<vmem>>, vector<128x36xf32>
    %c0_71 = arith.constant 0 : index
    %c0_72 = arith.constant 0 : index
    %145 = vector.load %arg2[%c0_71, %c0_72] : memref<36x32xf32, #tpu.memory_space<vmem>>, vector<36x32xf32>
    %cst_73 = arith.constant dense<0.000000e+00> : vector<128x32xf32>
    %146 = tpu.matmul %144, %145, %cst_73 {dimension_numbers = #tpu.dot_dimension_numbers<[1], [0], [0], [1], [0, 0, 1, 1], [], []>} : vector<128x36xf32>, vector<36x32xf32>, vector<128x32xf32> -> vector<128x32xf32>
    %147 = vector.broadcast %0 : vector<1x32xf32> to vector<128x32xf32>
    %148 = arith.addf %146, %147 : vector<128x32xf32>
    %cst_74 = arith.constant 0.000000e+00 : f32
    %149 = vector.broadcast %cst_74 : f32 to vector<128x32xf32>
    %150 = arith.maximumf %148, %149 : vector<128x32xf32>
    %151 = vector.extract_strided_slice %150 {offsets = [0, 0], sizes = [32, 32], strides = [1, 1]} : vector<128x32xf32> to vector<32x32xf32>
    %152 = vector.extract_strided_slice %150 {offsets = [32, 0], sizes = [32, 32], strides = [1, 1]} : vector<128x32xf32> to vector<32x32xf32>
    %153 = vector.extract_strided_slice %150 {offsets = [64, 0], sizes = [32, 32], strides = [1, 1]} : vector<128x32xf32> to vector<32x32xf32>
    %154 = vector.extract_strided_slice %150 {offsets = [96, 0], sizes = [32, 32], strides = [1, 1]} : vector<128x32xf32> to vector<32x32xf32>
    %155 = tpu.concatenate %151, %152, %153, %154 in 1 : vector<32x32xf32>, vector<32x32xf32>, vector<32x32xf32>, vector<32x32xf32> -> vector<32x128xf32>
    %c352 = arith.constant 352 : index
    %c0_75 = arith.constant 0 : index
    %156 = vector.load %arg10[%c352, %c0_75] : memref<512x128xf32, #tpu.memory_space<vmem>>, vector<32x128xf32>
    tpu.vector_store %arg10[%c352, %c0_75], %155 {strides = array<i32>} : memref<512x128xf32, #tpu.memory_space<vmem>>, vector<32x128xf32>,
    %c1536 = arith.constant 1536 : index
    %c0_76 = arith.constant 0 : index
    %157 = vector.load %arg1[%c1536, %c0_76] : memref<2048x36xf32, #tpu.memory_space<vmem>>, vector<128x36xf32>
    %c0_77 = arith.constant 0 : index
    %c0_78 = arith.constant 0 : index
    %158 = vector.load %arg2[%c0_77, %c0_78] : memref<36x32xf32, #tpu.memory_space<vmem>>, vector<36x32xf32>
    %cst_79 = arith.constant dense<0.000000e+00> : vector<128x32xf32>
    %159 = tpu.matmul %157, %158, %cst_79 {dimension_numbers = #tpu.dot_dimension_numbers<[1], [0], [0], [1], [0, 0, 1, 1], [], []>} : vector<128x36xf32>, vector<36x32xf32>, vector<128x32xf32> -> vector<128x32xf32>
    %160 = vector.broadcast %0 : vector<1x32xf32> to vector<128x32xf32>
    %161 = arith.addf %159, %160 : vector<128x32xf32>
    %cst_80 = arith.constant 0.000000e+00 : f32
    %162 = vector.broadcast %cst_80 : f32 to vector<128x32xf32>
    %163 = arith.maximumf %161, %162 : vector<128x32xf32>
    %164 = vector.extract_strided_slice %163 {offsets = [0, 0], sizes = [32, 32], strides = [1, 1]} : vector<128x32xf32> to vector<32x32xf32>
    %165 = vector.extract_strided_slice %163 {offsets = [32, 0], sizes = [32, 32], strides = [1, 1]} : vector<128x32xf32> to vector<32x32xf32>
    %166 = vector.extract_strided_slice %163 {offsets = [64, 0], sizes = [32, 32], strides = [1, 1]} : vector<128x32xf32> to vector<32x32xf32>
    %167 = vector.extract_strided_slice %163 {offsets = [96, 0], sizes = [32, 32], strides = [1, 1]} : vector<128x32xf32> to vector<32x32xf32>
    %168 = tpu.concatenate %164, %165, %166, %167 in 1 : vector<32x32xf32>, vector<32x32xf32>, vector<32x32xf32>, vector<32x32xf32> -> vector<32x128xf32>
    %c384_81 = arith.constant 384 : index
    %c0_82 = arith.constant 0 : index
    %169 = vector.load %arg10[%c384_81, %c0_82] : memref<512x128xf32, #tpu.memory_space<vmem>>, vector<32x128xf32>
    tpu.vector_store %arg10[%c384_81, %c0_82], %168 {strides = array<i32>} : memref<512x128xf32, #tpu.memory_space<vmem>>, vector<32x128xf32>,
    %c1664 = arith.constant 1664 : index
    %c0_83 = arith.constant 0 : index
    %170 = vector.load %arg1[%c1664, %c0_83] : memref<2048x36xf32, #tpu.memory_space<vmem>>, vector<128x36xf32>
    %c0_84 = arith.constant 0 : index
    %c0_85 = arith.constant 0 : index
    %171 = vector.load %arg2[%c0_84, %c0_85] : memref<36x32xf32, #tpu.memory_space<vmem>>, vector<36x32xf32>
    %cst_86 = arith.constant dense<0.000000e+00> : vector<128x32xf32>
    %172 = tpu.matmul %170, %171, %cst_86 {dimension_numbers = #tpu.dot_dimension_numbers<[1], [0], [0], [1], [0, 0, 1, 1], [], []>} : vector<128x36xf32>, vector<36x32xf32>, vector<128x32xf32> -> vector<128x32xf32>
    %173 = vector.broadcast %0 : vector<1x32xf32> to vector<128x32xf32>
    %174 = arith.addf %172, %173 : vector<128x32xf32>
    %cst_87 = arith.constant 0.000000e+00 : f32
    %175 = vector.broadcast %cst_87 : f32 to vector<128x32xf32>
    %176 = arith.maximumf %174, %175 : vector<128x32xf32>
    %177 = vector.extract_strided_slice %176 {offsets = [0, 0], sizes = [32, 32], strides = [1, 1]} : vector<128x32xf32> to vector<32x32xf32>
    %178 = vector.extract_strided_slice %176 {offsets = [32, 0], sizes = [32, 32], strides = [1, 1]} : vector<128x32xf32> to vector<32x32xf32>
    %179 = vector.extract_strided_slice %176 {offsets = [64, 0], sizes = [32, 32], strides = [1, 1]} : vector<128x32xf32> to vector<32x32xf32>
    %180 = vector.extract_strided_slice %176 {offsets = [96, 0], sizes = [32, 32], strides = [1, 1]} : vector<128x32xf32> to vector<32x32xf32>
    %181 = tpu.concatenate %177, %178, %179, %180 in 1 : vector<32x32xf32>, vector<32x32xf32>, vector<32x32xf32>, vector<32x32xf32> -> vector<32x128xf32>
    %c416 = arith.constant 416 : index
    %c0_88 = arith.constant 0 : index
    %182 = vector.load %arg10[%c416, %c0_88] : memref<512x128xf32, #tpu.memory_space<vmem>>, vector<32x128xf32>
    tpu.vector_store %arg10[%c416, %c0_88], %181 {strides = array<i32>} : memref<512x128xf32, #tpu.memory_space<vmem>>, vector<32x128xf32>,
    %c1792 = arith.constant 1792 : index
    %c0_89 = arith.constant 0 : index
    %183 = vector.load %arg1[%c1792, %c0_89] : memref<2048x36xf32, #tpu.memory_space<vmem>>, vector<128x36xf32>
    %c0_90 = arith.constant 0 : index
    %c0_91 = arith.constant 0 : index
    %184 = vector.load %arg2[%c0_90, %c0_91] : memref<36x32xf32, #tpu.memory_space<vmem>>, vector<36x32xf32>
    %cst_92 = arith.constant dense<0.000000e+00> : vector<128x32xf32>
    %185 = tpu.matmul %183, %184, %cst_92 {dimension_numbers = #tpu.dot_dimension_numbers<[1], [0], [0], [1], [0, 0, 1, 1], [], []>} : vector<128x36xf32>, vector<36x32xf32>, vector<128x32xf32> -> vector<128x32xf32>
    %186 = vector.broadcast %0 : vector<1x32xf32> to vector<128x32xf32>
    %187 = arith.addf %185, %186 : vector<128x32xf32>
    %cst_93 = arith.constant 0.000000e+00 : f32
    %188 = vector.broadcast %cst_93 : f32 to vector<128x32xf32>
    %189 = arith.maximumf %187, %188 : vector<128x32xf32>
    %190 = vector.extract_strided_slice %189 {offsets = [0, 0], sizes = [32, 32], strides = [1, 1]} : vector<128x32xf32> to vector<32x32xf32>
    %191 = vector.extract_strided_slice %189 {offsets = [32, 0], sizes = [32, 32], strides = [1, 1]} : vector<128x32xf32> to vector<32x32xf32>
    %192 = vector.extract_strided_slice %189 {offsets = [64, 0], sizes = [32, 32], strides = [1, 1]} : vector<128x32xf32> to vector<32x32xf32>
    %193 = vector.extract_strided_slice %189 {offsets = [96, 0], sizes = [32, 32], strides = [1, 1]} : vector<128x32xf32> to vector<32x32xf32>
    %194 = tpu.concatenate %190, %191, %192, %193 in 1 : vector<32x32xf32>, vector<32x32xf32>, vector<32x32xf32>, vector<32x32xf32> -> vector<32x128xf32>
    %c448 = arith.constant 448 : index
    %c0_94 = arith.constant 0 : index
    %195 = vector.load %arg10[%c448, %c0_94] : memref<512x128xf32, #tpu.memory_space<vmem>>, vector<32x128xf32>
    tpu.vector_store %arg10[%c448, %c0_94], %194 {strides = array<i32>} : memref<512x128xf32, #tpu.memory_space<vmem>>, vector<32x128xf32>,
    %c1920 = arith.constant 1920 : index
    %c0_95 = arith.constant 0 : index
    %196 = vector.load %arg1[%c1920, %c0_95] : memref<2048x36xf32, #tpu.memory_space<vmem>>, vector<128x36xf32>
    %c0_96 = arith.constant 0 : index
    %c0_97 = arith.constant 0 : index
    %197 = vector.load %arg2[%c0_96, %c0_97] : memref<36x32xf32, #tpu.memory_space<vmem>>, vector<36x32xf32>
    %cst_98 = arith.constant dense<0.000000e+00> : vector<128x32xf32>
    %198 = tpu.matmul %196, %197, %cst_98 {dimension_numbers = #tpu.dot_dimension_numbers<[1], [0], [0], [1], [0, 0, 1, 1], [], []>} : vector<128x36xf32>, vector<36x32xf32>, vector<128x32xf32> -> vector<128x32xf32>
    %199 = vector.broadcast %0 : vector<1x32xf32> to vector<128x32xf32>
    %200 = arith.addf %198, %199 : vector<128x32xf32>
    %cst_99 = arith.constant 0.000000e+00 : f32
    %201 = vector.broadcast %cst_99 : f32 to vector<128x32xf32>
    %202 = arith.maximumf %200, %201 : vector<128x32xf32>
    %203 = vector.extract_strided_slice %202 {offsets = [0, 0], sizes = [32, 32], strides = [1, 1]} : vector<128x32xf32> to vector<32x32xf32>
    %204 = vector.extract_strided_slice %202 {offsets = [32, 0], sizes = [32, 32], strides = [1, 1]} : vector<128x32xf32> to vector<32x32xf32>
    %205 = vector.extract_strided_slice %202 {offsets = [64, 0], sizes = [32, 32], strides = [1, 1]} : vector<128x32xf32> to vector<32x32xf32>
    %206 = vector.extract_strided_slice %202 {offsets = [96, 0], sizes = [32, 32], strides = [1, 1]} : vector<128x32xf32> to vector<32x32xf32>
    %207 = tpu.concatenate %203, %204, %205, %206 in 1 : vector<32x32xf32>, vector<32x32xf32>, vector<32x32xf32>, vector<32x32xf32> -> vector<32x128xf32>
    %c480 = arith.constant 480 : index
    %c0_100 = arith.constant 0 : index
    %208 = vector.load %arg10[%c480, %c0_100] : memref<512x128xf32, #tpu.memory_space<vmem>>, vector<32x128xf32>
    tpu.vector_store %arg10[%c480, %c0_100], %207 {strides = array<i32>} : memref<512x128xf32, #tpu.memory_space<vmem>>, vector<32x128xf32>,
    %c1 = arith.constant 1 : index
    %c0_101 = arith.constant 0 : index
    %209 = vector.load %arg7[%c1, %c0_101] : memref<8x128xf32, #tpu.memory_space<vmem>>, vector<1x32xf32>
    %c32_102 = arith.constant 32 : index
    %c0_103 = arith.constant 0 : index
    %210 = vector.load %arg10[%c32_102, %c0_103] : memref<512x128xf32, #tpu.memory_space<vmem>>, vector<32x128xf32>
    %c0_104 = arith.constant 0 : index
    %c0_105 = arith.constant 0 : index
    %211 = vector.load %arg10[%c0_104, %c0_105] : memref<512x128xf32, #tpu.memory_space<vmem>>, vector<32x64xf32>
    %c416_106 = arith.constant 416 : index
    %c32_107 = arith.constant 32 : index
    %212 = vector.load %arg10[%c416_106, %c32_107] : memref<512x128xf32, #tpu.memory_space<vmem>>, vector<32x64xf32>
    %cst_108 = arith.constant 0.000000e+00 : f32
    %213 = vector.broadcast %cst_108 : f32 to vector<5x64xf32>
    %214 = vector.extract_strided_slice %212 {offsets = [0, 0], sizes = [27, 64], strides = [1, 1]} : vector<32x64xf32> to vector<27x64xf32>
    %215 = tpu.concatenate %213, %214 in 0 : vector<5x64xf32>, vector<27x64xf32> -> vector<32x64xf32>
    %c384_109 = arith.constant 384 : index
    %c32_110 = arith.constant 32 : index
    %216 = vector.load %arg10[%c384_109, %c32_110] : memref<512x128xf32, #tpu.memory_space<vmem>>, vector<32x32xf32>
    %cst_111 = arith.constant 0.000000e+00 : f32
    %217 = vector.broadcast %cst_111 : f32 to vector<5x32xf32>
    %218 = vector.extract_strided_slice %216 {offsets = [0, 0], sizes = [27, 32], strides = [1, 1]} : vector<32x32xf32> to vector<27x32xf32>
    %219 = tpu.concatenate %217, %218 in 0 : vector<5x32xf32>, vector<27x32xf32> -> vector<32x32xf32>
    %220 = tpu.concatenate %210, %211, %215, %219 in 1 : vector<32x128xf32>, vector<32x64xf32>, vector<32x64xf32>, vector<32x32xf32> -> vector<32x288xf32>
    %c0_112 = arith.constant 0 : index
    %c0_113 = arith.constant 0 : index
    %221 = vector.load %arg13[%c0_112, %c0_113] : memref<512x288xf32, #tpu.memory_space<vmem>>, vector<32x288xf32>
    tpu.vector_store %arg13[%c0_112, %c0_113], %220 {strides = array<i32>} : memref<512x288xf32, #tpu.memory_space<vmem>>, vector<32x288xf32>,
    %c160_114 = arith.constant 160 : index
    %c0_115 = arith.constant 0 : index
    %222 = vector.load %arg10[%c160_114, %c0_115] : memref<512x128xf32, #tpu.memory_space<vmem>>, vector<32x128xf32>
    %c128_116 = arith.constant 128 : index
    %c0_117 = arith.constant 0 : index
    %223 = vector.load %arg10[%c128_116, %c0_117] : memref<512x128xf32, #tpu.memory_space<vmem>>, vector<32x64xf32>
    %c32_118 = arith.constant 32 : index
    %c32_119 = arith.constant 32 : index
    %224 = vector.load %arg10[%c32_118, %c32_119] : memref<512x128xf32, #tpu.memory_space<vmem>>, vector<32x64xf32>
    %c0_120 = arith.constant 0 : index
    %c32_121 = arith.constant 32 : index
    %225 = vector.load %arg10[%c0_120, %c32_121] : memref<512x128xf32, #tpu.memory_space<vmem>>, vector<32x32xf32>
    %226 = tpu.concatenate %222, %223, %224, %225 in 1 : vector<32x128xf32>, vector<32x64xf32>, vector<32x64xf32>, vector<32x32xf32> -> vector<32x288xf32>
    %c32_122 = arith.constant 32 : index
    %c0_123 = arith.constant 0 : index
    %227 = vector.load %arg13[%c32_122, %c0_123] : memref<512x288xf32, #tpu.memory_space<vmem>>, vector<32x288xf32>
    tpu.vector_store %arg13[%c32_122, %c0_123], %226 {strides = array<i32>} : memref<512x288xf32, #tpu.memory_space<vmem>>, vector<32x288xf32>,
    %c128_124 = arith.constant 128 : index
    %c0_125 = arith.constant 0 : index
    %228 = vector.load %arg10[%c128_124, %c0_125] : memref<512x128xf32, #tpu.memory_space<vmem>>, vector<32x128xf32>
    %c224_126 = arith.constant 224 : index
    %c0_127 = arith.constant 0 : index
    %229 = vector.load %arg10[%c224_126, %c0_127] : memref<512x128xf32, #tpu.memory_space<vmem>>, vector<32x64xf32>
    %cst_128 = arith.constant 0.000000e+00 : f32
    %230 = vector.broadcast %cst_128 : f32 to vector<1x64xf32>
    %231 = vector.extract_strided_slice %229 {offsets = [0, 0], sizes = [31, 64], strides = [1, 1]} : vector<32x64xf32> to vector<31x64xf32>
    %232 = tpu.concatenate %230, %231 in 0 : vector<1x64xf32>, vector<31x64xf32> -> vector<32x64xf32>
    %233 = tpu.iota {dimensions = array<i32: 0>} : vector<32x64xi32>
    %c5_i32 = arith.constant 5 : i32
    %c0_i32 = arith.constant 0 : i32
    %234 = arith.cmpi eq, %c5_i32, %c0_i32 : i32
    %c1_i32 = arith.constant 1 : i32
    %235 = arith.select %234, %c1_i32, %c5_i32 : i32
    %236 = vector.broadcast %235 : i32 to vector<32x64xi32>
    %237 = arith.remsi %233, %236 : vector<32x64xi32>
    %c0_i32_129 = arith.constant 0 : i32
    %238 = vector.broadcast %c0_i32_129 : i32 to vector<32x64xi32>
    %239 = arith.cmpi ne, %237, %238 : vector<32x64xi32>
    %c0_i32_130 = arith.constant 0 : i32
    %240 = vector.broadcast %c0_i32_130 : i32 to vector<32x64xi32>
    %241 = arith.cmpi slt, %237, %240 : vector<32x64xi32>
    %c0_i32_131 = arith.constant 0 : i32
    %242 = arith.cmpi slt, %235, %c0_i32_131 : i32
    %243 = vector.broadcast %242 : i1 to vector<32x64xi1>
    %244 = vector.broadcast %243 : vector<32x64xi1> to vector<32x64xi1>
    %245 = arith.xori %241, %244 : vector<32x64xi1>
    %246 = arith.andi %245, %239 : vector<32x64xi1>
    %247 = vector.broadcast %235 : i32 to vector<32x64xi32>
    %248 = arith.addi %237, %247 : vector<32x64xi32>
    %249 = arith.select %246, %248, %237 : vector<32x64xi1>, vector<32x64xi32>
    %c0_i32_132 = arith.constant 0 : i32
    %250 = vector.broadcast %c0_i32_132 : i32 to vector<32x64xi32>
    %251 = arith.cmpi eq, %249, %250 : vector<32x64xi32>
    %cst_133 = arith.constant 0.000000e+00 : f32
    %252 = vector.broadcast %cst_133 : f32 to vector<32x64xf32>
    %253 = arith.select %251, %252, %232 : vector<32x64xi1>, vector<32x64xf32>
    %c0_134 = arith.constant 0 : index
    %c32_135 = arith.constant 32 : index
    %254 = vector.load %arg10[%c0_134, %c32_135] : memref<512x128xf32, #tpu.memory_space<vmem>>, vector<32x64xf32>
    %c96_136 = arith.constant 96 : index
    %c32_137 = arith.constant 32 : index
    %255 = vector.load %arg10[%c96_136, %c32_137] : memref<512x128xf32, #tpu.memory_space<vmem>>, vector<32x32xf32>
    %cst_138 = arith.constant 0.000000e+00 : f32
    %256 = vector.broadcast %cst_138 : f32 to vector<1x32xf32>
    %257 = vector.extract_strided_slice %255 {offsets = [0, 0], sizes = [31, 32], strides = [1, 1]} : vector<32x32xf32> to vector<31x32xf32>
    %258 = tpu.concatenate %256, %257 in 0 : vector<1x32xf32>, vector<31x32xf32> -> vector<32x32xf32>
    %259 = tpu.iota {dimensions = array<i32: 0>} : vector<32x32xi32>
    %c5_i32_139 = arith.constant 5 : i32
    %c0_i32_140 = arith.constant 0 : i32
    %260 = arith.cmpi eq, %c5_i32_139, %c0_i32_140 : i32
    %c1_i32_141 = arith.constant 1 : i32
    %261 = arith.select %260, %c1_i32_141, %c5_i32_139 : i32
    %262 = vector.broadcast %261 : i32 to vector<32x32xi32>
    %263 = arith.remsi %259, %262 : vector<32x32xi32>
    %c0_i32_142 = arith.constant 0 : i32
    %264 = vector.broadcast %c0_i32_142 : i32 to vector<32x32xi32>
    %265 = arith.cmpi ne, %263, %264 : vector<32x32xi32>
    %c0_i32_143 = arith.constant 0 : i32
    %266 = vector.broadcast %c0_i32_143 : i32 to vector<32x32xi32>
    %267 = arith.cmpi slt, %263, %266 : vector<32x32xi32>
    %c0_i32_144 = arith.constant 0 : i32
    %268 = arith.cmpi slt, %261, %c0_i32_144 : i32
    %269 = vector.broadcast %268 : i1 to vector<32x32xi1>
    %270 = vector.broadcast %269 : vector<32x32xi1> to vector<32x32xi1>
    %271 = arith.xori %267, %270 : vector<32x32xi1>
    %272 = arith.andi %271, %265 : vector<32x32xi1>
    %273 = vector.broadcast %261 : i32 to vector<32x32xi32>
    %274 = arith.addi %263, %273 : vector<32x32xi32>
    %275 = arith.select %272, %274, %263 : vector<32x32xi1>, vector<32x32xi32>
    %c0_i32_145 = arith.constant 0 : i32
    %276 = vector.broadcast %c0_i32_145 : i32 to vector<32x32xi32>
    %277 = arith.cmpi eq, %275, %276 : vector<32x32xi32>
    %cst_146 = arith.constant 0.000000e+00 : f32
    %278 = vector.broadcast %cst_146 : f32 to vector<32x32xf32>
    %279 = arith.select %277, %278, %258 : vector<32x32xi1>, vector<32x32xf32>
    %280 = tpu.concatenate %228, %253, %254, %279 in 1 : vector<32x128xf32>, vector<32x64xf32>, vector<32x64xf32>, vector<32x32xf32> -> vector<32x288xf32>
    %c64_147 = arith.constant 64 : index
    %c0_148 = arith.constant 0 : index
    %281 = vector.load %arg13[%c64_147, %c0_148] : memref<512x288xf32, #tpu.memory_space<vmem>>, vector<32x288xf32>
    tpu.vector_store %arg13[%c64_147, %c0_148], %280 {strides = array<i32>} : memref<512x288xf32, #tpu.memory_space<vmem>>, vector<32x288xf32>,
    %c0_149 = arith.constant 0 : index
    %c0_150 = arith.constant 0 : index
    %282 = vector.load %arg10[%c0_149, %c0_150] : memref<512x128xf32, #tpu.memory_space<vmem>>, vector<32x128xf32>
    %c96_151 = arith.constant 96 : index
    %c0_152 = arith.constant 0 : index
    %283 = vector.load %arg10[%c96_151, %c0_152] : memref<512x128xf32, #tpu.memory_space<vmem>>, vector<32x64xf32>
    %cst_153 = arith.constant 0.000000e+00 : f32
    %284 = vector.broadcast %cst_153 : f32 to vector<1x64xf32>
    %285 = vector.extract_strided_slice %283 {offsets = [0, 0], sizes = [31, 64], strides = [1, 1]} : vector<32x64xf32> to vector<31x64xf32>
    %286 = tpu.concatenate %284, %285 in 0 : vector<1x64xf32>, vector<31x64xf32> -> vector<32x64xf32>
    %287 = tpu.iota {dimensions = array<i32: 0>} : vector<32x64xi32>
    %c5_i32_154 = arith.constant 5 : i32
    %c0_i32_155 = arith.constant 0 : i32
    %288 = arith.cmpi eq, %c5_i32_154, %c0_i32_155 : i32
    %c1_i32_156 = arith.constant 1 : i32
    %289 = arith.select %288, %c1_i32_156, %c5_i32_154 : i32
    %290 = vector.broadcast %289 : i32 to vector<32x64xi32>
    %291 = arith.remsi %287, %290 : vector<32x64xi32>
    %c0_i32_157 = arith.constant 0 : i32
    %292 = vector.broadcast %c0_i32_157 : i32 to vector<32x64xi32>
    %293 = arith.cmpi ne, %291, %292 : vector<32x64xi32>
    %c0_i32_158 = arith.constant 0 : i32
    %294 = vector.broadcast %c0_i32_158 : i32 to vector<32x64xi32>
    %295 = arith.cmpi slt, %291, %294 : vector<32x64xi32>
    %c0_i32_159 = arith.constant 0 : i32
    %296 = arith.cmpi slt, %289, %c0_i32_159 : i32
    %297 = vector.broadcast %296 : i1 to vector<32x64xi1>
    %298 = vector.broadcast %297 : vector<32x64xi1> to vector<32x64xi1>
    %299 = arith.xori %295, %298 : vector<32x64xi1>
    %300 = arith.andi %299, %293 : vector<32x64xi1>
    %301 = vector.broadcast %289 : i32 to vector<32x64xi32>
    %302 = arith.addi %291, %301 : vector<32x64xi32>
    %303 = arith.select %300, %302, %291 : vector<32x64xi1>, vector<32x64xi32>
    %c0_i32_160 = arith.constant 0 : i32
    %304 = vector.broadcast %c0_i32_160 : i32 to vector<32x64xi32>
    %305 = arith.cmpi eq, %303, %304 : vector<32x64xi32>
    %cst_161 = arith.constant 0.000000e+00 : f32
    %306 = vector.broadcast %cst_161 : f32 to vector<32x64xf32>
    %307 = arith.select %305, %306, %286 : vector<32x64xi1>, vector<32x64xf32>
    %c384_162 = arith.constant 384 : index
    %c32_163 = arith.constant 32 : index
    %308 = vector.load %arg10[%c384_162, %c32_163] : memref<512x128xf32, #tpu.memory_space<vmem>>, vector<32x64xf32>
    %cst_164 = arith.constant 0.000000e+00 : f32
    %309 = vector.broadcast %cst_164 : f32 to vector<5x64xf32>
    %310 = vector.extract_strided_slice %308 {offsets = [0, 0], sizes = [27, 64], strides = [1, 1]} : vector<32x64xf32> to vector<27x64xf32>
    %311 = tpu.concatenate %309, %310 in 0 : vector<5x64xf32>, vector<27x64xf32> -> vector<32x64xf32>
    %c480_165 = arith.constant 480 : index
    %c32_166 = arith.constant 32 : index
    %312 = vector.load %arg10[%c480_165, %c32_166] : memref<512x128xf32, #tpu.memory_space<vmem>>, vector<32x32xf32>
    %cst_167 = arith.constant 0.000000e+00 : f32
    %313 = vector.broadcast %cst_167 : f32 to vector<6x32xf32>
    %314 = vector.extract_strided_slice %312 {offsets = [0, 0], sizes = [26, 32], strides = [1, 1]} : vector<32x32xf32> to vector<26x32xf32>
    %315 = tpu.concatenate %313, %314 in 0 : vector<6x32xf32>, vector<26x32xf32> -> vector<32x32xf32>
    %316 = tpu.iota {dimensions = array<i32: 0>} : vector<32x32xi32>
    %c5_i32_168 = arith.constant 5 : i32
    %c0_i32_169 = arith.constant 0 : i32
    %317 = arith.cmpi eq, %c5_i32_168, %c0_i32_169 : i32
    %c1_i32_170 = arith.constant 1 : i32
    %318 = arith.select %317, %c1_i32_170, %c5_i32_168 : i32
    %319 = vector.broadcast %318 : i32 to vector<32x32xi32>
    %320 = arith.remsi %316, %319 : vector<32x32xi32>
    %c0_i32_171 = arith.constant 0 : i32
    %321 = vector.broadcast %c0_i32_171 : i32 to vector<32x32xi32>
    %322 = arith.cmpi ne, %320, %321 : vector<32x32xi32>
    %c0_i32_172 = arith.constant 0 : i32
    %323 = vector.broadcast %c0_i32_172 : i32 to vector<32x32xi32>
    %324 = arith.cmpi slt, %320, %323 : vector<32x32xi32>
    %c0_i32_173 = arith.constant 0 : i32
    %325 = arith.cmpi slt, %318, %c0_i32_173 : i32
    %326 = vector.broadcast %325 : i1 to vector<32x32xi1>
    %327 = vector.broadcast %326 : vector<32x32xi1> to vector<32x32xi1>
    %328 = arith.xori %324, %327 : vector<32x32xi1>
    %329 = arith.andi %328, %322 : vector<32x32xi1>
    %330 = vector.broadcast %318 : i32 to vector<32x32xi32>
    %331 = arith.addi %320, %330 : vector<32x32xi32>
    %332 = arith.select %329, %331, %320 : vector<32x32xi1>, vector<32x32xi32>
    %c0_i32_174 = arith.constant 0 : i32
    %333 = vector.broadcast %c0_i32_174 : i32 to vector<32x32xi32>
    %334 = arith.cmpi eq, %332, %333 : vector<32x32xi32>
    %cst_175 = arith.constant 0.000000e+00 : f32
    %335 = vector.broadcast %cst_175 : f32 to vector<32x32xf32>
    %336 = arith.select %334, %335, %315 : vector<32x32xi1>, vector<32x32xf32>
    %337 = tpu.concatenate %282, %307, %311, %336 in 1 : vector<32x128xf32>, vector<32x64xf32>, vector<32x64xf32>, vector<32x32xf32> -> vector<32x288xf32>
    %c96_176 = arith.constant 96 : index
    %c0_177 = arith.constant 0 : index
    %338 = vector.load %arg13[%c96_176, %c0_177] : memref<512x288xf32, #tpu.memory_space<vmem>>, vector<32x288xf32>
    tpu.vector_store %arg13[%c96_176, %c0_177], %337 {strides = array<i32>} : memref<512x288xf32, #tpu.memory_space<vmem>>, vector<32x288xf32>,
    %c96_178 = arith.constant 96 : index
    %c0_179 = arith.constant 0 : index
    %339 = vector.load %arg10[%c96_178, %c0_179] : memref<512x128xf32, #tpu.memory_space<vmem>>, vector<32x128xf32>
    %c64_180 = arith.constant 64 : index
    %c0_181 = arith.constant 0 : index
    %340 = vector.load %arg10[%c64_180, %c0_181] : memref<512x128xf32, #tpu.memory_space<vmem>>, vector<32x64xf32>
    %c480_182 = arith.constant 480 : index
    %c32_183 = arith.constant 32 : index
    %341 = vector.load %arg10[%c480_182, %c32_183] : memref<512x128xf32, #tpu.memory_space<vmem>>, vector<32x64xf32>
    %cst_184 = arith.constant 0.000000e+00 : f32
    %342 = vector.broadcast %cst_184 : f32 to vector<5x64xf32>
    %343 = vector.extract_strided_slice %341 {offsets = [0, 0], sizes = [27, 64], strides = [1, 1]} : vector<32x64xf32> to vector<27x64xf32>
    %344 = tpu.concatenate %342, %343 in 0 : vector<5x64xf32>, vector<27x64xf32> -> vector<32x64xf32>
    %c448_185 = arith.constant 448 : index
    %c32_186 = arith.constant 32 : index
    %345 = vector.load %arg10[%c448_185, %c32_186] : memref<512x128xf32, #tpu.memory_space<vmem>>, vector<32x32xf32>
    %cst_187 = arith.constant 0.000000e+00 : f32
    %346 = vector.broadcast %cst_187 : f32 to vector<5x32xf32>
    %347 = vector.extract_strided_slice %345 {offsets = [0, 0], sizes = [27, 32], strides = [1, 1]} : vector<32x32xf32> to vector<27x32xf32>
    %348 = tpu.concatenate %346, %347 in 0 : vector<5x32xf32>, vector<27x32xf32> -> vector<32x32xf32>
    %349 = tpu.concatenate %339, %340, %344, %348 in 1 : vector<32x128xf32>, vector<32x64xf32>, vector<32x64xf32>, vector<32x32xf32> -> vector<32x288xf32>
    %c128_188 = arith.constant 128 : index
    %c0_189 = arith.constant 0 : index
    %350 = vector.load %arg13[%c128_188, %c0_189] : memref<512x288xf32, #tpu.memory_space<vmem>>, vector<32x288xf32>
    tpu.vector_store %arg13[%c128_188, %c0_189], %349 {strides = array<i32>} : memref<512x288xf32, #tpu.memory_space<vmem>>, vector<32x288xf32>,
    %c224_190 = arith.constant 224 : index
    %c0_191 = arith.constant 0 : index
    %351 = vector.load %arg10[%c224_190, %c0_191] : memref<512x128xf32, #tpu.memory_space<vmem>>, vector<32x128xf32>
    %c192_192 = arith.constant 192 : index
    %c0_193 = arith.constant 0 : index
    %352 = vector.load %arg10[%c192_192, %c0_193] : memref<512x128xf32, #tpu.memory_space<vmem>>, vector<32x64xf32>
    %c96_194 = arith.constant 96 : index
    %c32_195 = arith.constant 32 : index
    %353 = vector.load %arg10[%c96_194, %c32_195] : memref<512x128xf32, #tpu.memory_space<vmem>>, vector<32x64xf32>
    %c64_196 = arith.constant 64 : index
    %c32_197 = arith.constant 32 : index
    %354 = vector.load %arg10[%c64_196, %c32_197] : memref<512x128xf32, #tpu.memory_space<vmem>>, vector<32x32xf32>
    %355 = tpu.concatenate %351, %352, %353, %354 in 1 : vector<32x128xf32>, vector<32x64xf32>, vector<32x64xf32>, vector<32x32xf32> -> vector<32x288xf32>
    %c160_198 = arith.constant 160 : index
    %c0_199 = arith.constant 0 : index
    %356 = vector.load %arg13[%c160_198, %c0_199] : memref<512x288xf32, #tpu.memory_space<vmem>>, vector<32x288xf32>
    tpu.vector_store %arg13[%c160_198, %c0_199], %355 {strides = array<i32>} : memref<512x288xf32, #tpu.memory_space<vmem>>, vector<32x288xf32>,
    %c192_200 = arith.constant 192 : index
    %c0_201 = arith.constant 0 : index
    %357 = vector.load %arg10[%c192_200, %c0_201] : memref<512x128xf32, #tpu.memory_space<vmem>>, vector<32x128xf32>
    %c160_202 = arith.constant 160 : index
    %c0_203 = arith.constant 0 : index
    %358 = vector.load %arg10[%c160_202, %c0_203] : memref<512x128xf32, #tpu.memory_space<vmem>>, vector<32x64xf32>
    %c64_204 = arith.constant 64 : index
    %c32_205 = arith.constant 32 : index
    %359 = vector.load %arg10[%c64_204, %c32_205] : memref<512x128xf32, #tpu.memory_space<vmem>>, vector<32x64xf32>
    %c32_206 = arith.constant 32 : index
    %c32_207 = arith.constant 32 : index
    %360 = vector.load %arg10[%c32_206, %c32_207] : memref<512x128xf32, #tpu.memory_space<vmem>>, vector<32x32xf32>
    %361 = tpu.concatenate %357, %358, %359, %360 in 1 : vector<32x128xf32>, vector<32x64xf32>, vector<32x64xf32>, vector<32x32xf32> -> vector<32x288xf32>
    %c192_208 = arith.constant 192 : index
    %c0_209 = arith.constant 0 : index
    %362 = vector.load %arg13[%c192_208, %c0_209] : memref<512x288xf32, #tpu.memory_space<vmem>>, vector<32x288xf32>
    tpu.vector_store %arg13[%c192_208, %c0_209], %361 {strides = array<i32>} : memref<512x288xf32, #tpu.memory_space<vmem>>, vector<32x288xf32>,
    %c64_210 = arith.constant 64 : index
    %c0_211 = arith.constant 0 : index
    %363 = vector.load %arg10[%c64_210, %c0_211] : memref<512x128xf32, #tpu.memory_space<vmem>>, vector<32x128xf32>
    %c32_212 = arith.constant 32 : index
    %c0_213 = arith.constant 0 : index
    %364 = vector.load %arg10[%c32_212, %c0_213] : memref<512x128xf32, #tpu.memory_space<vmem>>, vector<32x64xf32>
    %c448_214 = arith.constant 448 : index
    %c32_215 = arith.constant 32 : index
    %365 = vector.load %arg10[%c448_214, %c32_215] : memref<512x128xf32, #tpu.memory_space<vmem>>, vector<32x64xf32>
    %cst_216 = arith.constant 0.000000e+00 : f32
    %366 = vector.broadcast %cst_216 : f32 to vector<5x64xf32>
    %367 = vector.extract_strided_slice %365 {offsets = [0, 0], sizes = [27, 64], strides = [1, 1]} : vector<32x64xf32> to vector<27x64xf32>
    %368 = tpu.concatenate %366, %367 in 0 : vector<5x64xf32>, vector<27x64xf32> -> vector<32x64xf32>
    %c416_217 = arith.constant 416 : index
    %c32_218 = arith.constant 32 : index
    %369 = vector.load %arg10[%c416_217, %c32_218] : memref<512x128xf32, #tpu.memory_space<vmem>>, vector<32x32xf32>
    %cst_219 = arith.constant 0.000000e+00 : f32
    %370 = vector.broadcast %cst_219 : f32 to vector<5x32xf32>
    %371 = vector.extract_strided_slice %369 {offsets = [0, 0], sizes = [27, 32], strides = [1, 1]} : vector<32x32xf32> to vector<27x32xf32>
    %372 = tpu.concatenate %370, %371 in 0 : vector<5x32xf32>, vector<27x32xf32> -> vector<32x32xf32>
    %373 = tpu.concatenate %363, %364, %368, %372 in 1 : vector<32x128xf32>, vector<32x64xf32>, vector<32x64xf32>, vector<32x32xf32> -> vector<32x288xf32>
    %c224_220 = arith.constant 224 : index
    %c0_221 = arith.constant 0 : index
    %374 = vector.load %arg13[%c224_220, %c0_221] : memref<512x288xf32, #tpu.memory_space<vmem>>, vector<32x288xf32>
    tpu.vector_store %arg13[%c224_220, %c0_221], %373 {strides = array<i32>} : memref<512x288xf32, #tpu.memory_space<vmem>>, vector<32x288xf32>,
    %c288_222 = arith.constant 288 : index
    %c0_223 = arith.constant 0 : index
    %375 = vector.load %arg10[%c288_222, %c0_223] : memref<512x128xf32, #tpu.memory_space<vmem>>, vector<32x128xf32>
    %c256_224 = arith.constant 256 : index
    %c0_225 = arith.constant 0 : index
    %376 = vector.load %arg10[%c256_224, %c0_225] : memref<512x128xf32, #tpu.memory_space<vmem>>, vector<32x64xf32>
    %c160_226 = arith.constant 160 : index
    %c32_227 = arith.constant 32 : index
    %377 = vector.load %arg10[%c160_226, %c32_227] : memref<512x128xf32, #tpu.memory_space<vmem>>, vector<32x64xf32>
    %c128_228 = arith.constant 128 : index
    %c32_229 = arith.constant 32 : index
    %378 = vector.load %arg10[%c128_228, %c32_229] : memref<512x128xf32, #tpu.memory_space<vmem>>, vector<32x32xf32>
    %379 = tpu.concatenate %375, %376, %377, %378 in 1 : vector<32x128xf32>, vector<32x64xf32>, vector<32x64xf32>, vector<32x32xf32> -> vector<32x288xf32>
    %c256_230 = arith.constant 256 : index
    %c0_231 = arith.constant 0 : index
    %380 = vector.load %arg13[%c256_230, %c0_231] : memref<512x288xf32, #tpu.memory_space<vmem>>, vector<32x288xf32>
    tpu.vector_store %arg13[%c256_230, %c0_231], %379 {strides = array<i32>} : memref<512x288xf32, #tpu.memory_space<vmem>>, vector<32x288xf32>,
    %c416_232 = arith.constant 416 : index
    %c0_233 = arith.constant 0 : index
    %381 = vector.load %arg10[%c416_232, %c0_233] : memref<512x128xf32, #tpu.memory_space<vmem>>, vector<32x128xf32>
    %c384_234 = arith.constant 384 : index
    %c0_235 = arith.constant 0 : index
    %382 = vector.load %arg10[%c384_234, %c0_235] : memref<512x128xf32, #tpu.memory_space<vmem>>, vector<32x64xf32>
    %c288_236 = arith.constant 288 : index
    %c32_237 = arith.constant 32 : index
    %383 = vector.load %arg10[%c288_236, %c32_237] : memref<512x128xf32, #tpu.memory_space<vmem>>, vector<32x64xf32>
    %c256_238 = arith.constant 256 : index
    %c32_239 = arith.constant 32 : index
    %384 = vector.load %arg10[%c256_238, %c32_239] : memref<512x128xf32, #tpu.memory_space<vmem>>, vector<32x32xf32>
    %385 = tpu.concatenate %381, %382, %383, %384 in 1 : vector<32x128xf32>, vector<32x64xf32>, vector<32x64xf32>, vector<32x32xf32> -> vector<32x288xf32>
    %c288_240 = arith.constant 288 : index
    %c0_241 = arith.constant 0 : index
    %386 = vector.load %arg13[%c288_240, %c0_241] : memref<512x288xf32, #tpu.memory_space<vmem>>, vector<32x288xf32>
    tpu.vector_store %arg13[%c288_240, %c0_241], %385 {strides = array<i32>} : memref<512x288xf32, #tpu.memory_space<vmem>>, vector<32x288xf32>,
    %c384_242 = arith.constant 384 : index
    %c0_243 = arith.constant 0 : index
    %387 = vector.load %arg10[%c384_242, %c0_243] : memref<512x128xf32, #tpu.memory_space<vmem>>, vector<32x128xf32>
    %c480_244 = arith.constant 480 : index
    %c0_245 = arith.constant 0 : index
    %388 = vector.load %arg10[%c480_244, %c0_245] : memref<512x128xf32, #tpu.memory_space<vmem>>, vector<32x64xf32>
    %cst_246 = arith.constant 0.000000e+00 : f32
    %389 = vector.broadcast %cst_246 : f32 to vector<1x64xf32>
    %390 = vector.extract_strided_slice %388 {offsets = [0, 0], sizes = [31, 64], strides = [1, 1]} : vector<32x64xf32> to vector<31x64xf32>
    %391 = tpu.concatenate %389, %390 in 0 : vector<1x64xf32>, vector<31x64xf32> -> vector<32x64xf32>
    %392 = tpu.iota {dimensions = array<i32: 0>} : vector<32x64xi32>
    %c5_i32_247 = arith.constant 5 : i32
    %c0_i32_248 = arith.constant 0 : i32
    %393 = arith.cmpi eq, %c5_i32_247, %c0_i32_248 : i32
    %c1_i32_249 = arith.constant 1 : i32
    %394 = arith.select %393, %c1_i32_249, %c5_i32_247 : i32
    %395 = vector.broadcast %394 : i32 to vector<32x64xi32>
    %396 = arith.remsi %392, %395 : vector<32x64xi32>
    %c0_i32_250 = arith.constant 0 : i32
    %397 = vector.broadcast %c0_i32_250 : i32 to vector<32x64xi32>
    %398 = arith.cmpi ne, %396, %397 : vector<32x64xi32>
    %c0_i32_251 = arith.constant 0 : i32
    %399 = vector.broadcast %c0_i32_251 : i32 to vector<32x64xi32>
    %400 = arith.cmpi slt, %396, %399 : vector<32x64xi32>
    %c0_i32_252 = arith.constant 0 : i32
    %401 = arith.cmpi slt, %394, %c0_i32_252 : i32
    %402 = vector.broadcast %401 : i1 to vector<32x64xi1>
    %403 = vector.broadcast %402 : vector<32x64xi1> to vector<32x64xi1>
    %404 = arith.xori %400, %403 : vector<32x64xi1>
    %405 = arith.andi %404, %398 : vector<32x64xi1>
    %406 = vector.broadcast %394 : i32 to vector<32x64xi32>
    %407 = arith.addi %396, %406 : vector<32x64xi32>
    %408 = arith.select %405, %407, %396 : vector<32x64xi1>, vector<32x64xi32>
    %c0_i32_253 = arith.constant 0 : i32
    %409 = vector.broadcast %c0_i32_253 : i32 to vector<32x64xi32>
    %410 = arith.cmpi eq, %408, %409 : vector<32x64xi32>
    %cst_254 = arith.constant 0.000000e+00 : f32
    %411 = vector.broadcast %cst_254 : f32 to vector<32x64xf32>
    %412 = arith.select %410, %411, %391 : vector<32x64xi1>, vector<32x64xf32>
    %c256_255 = arith.constant 256 : index
    %c32_256 = arith.constant 32 : index
    %413 = vector.load %arg10[%c256_255, %c32_256] : memref<512x128xf32, #tpu.memory_space<vmem>>, vector<32x64xf32>
    %c352_257 = arith.constant 352 : index
    %c32_258 = arith.constant 32 : index
    %414 = vector.load %arg10[%c352_257, %c32_258] : memref<512x128xf32, #tpu.memory_space<vmem>>, vector<32x32xf32>
    %cst_259 = arith.constant 0.000000e+00 : f32
    %415 = vector.broadcast %cst_259 : f32 to vector<1x32xf32>
    %416 = vector.extract_strided_slice %414 {offsets = [0, 0], sizes = [31, 32], strides = [1, 1]} : vector<32x32xf32> to vector<31x32xf32>
    %417 = tpu.concatenate %415, %416 in 0 : vector<1x32xf32>, vector<31x32xf32> -> vector<32x32xf32>
    %418 = tpu.iota {dimensions = array<i32: 0>} : vector<32x32xi32>
    %c5_i32_260 = arith.constant 5 : i32
    %c0_i32_261 = arith.constant 0 : i32
    %419 = arith.cmpi eq, %c5_i32_260, %c0_i32_261 : i32
    %c1_i32_262 = arith.constant 1 : i32
    %420 = arith.select %419, %c1_i32_262, %c5_i32_260 : i32
    %421 = vector.broadcast %420 : i32 to vector<32x32xi32>
    %422 = arith.remsi %418, %421 : vector<32x32xi32>
    %c0_i32_263 = arith.constant 0 : i32
    %423 = vector.broadcast %c0_i32_263 : i32 to vector<32x32xi32>
    %424 = arith.cmpi ne, %422, %423 : vector<32x32xi32>
    %c0_i32_264 = arith.constant 0 : i32
    %425 = vector.broadcast %c0_i32_264 : i32 to vector<32x32xi32>
    %426 = arith.cmpi slt, %422, %425 : vector<32x32xi32>
    %c0_i32_265 = arith.constant 0 : i32
    %427 = arith.cmpi slt, %420, %c0_i32_265 : i32
    %428 = vector.broadcast %427 : i1 to vector<32x32xi1>
    %429 = vector.broadcast %428 : vector<32x32xi1> to vector<32x32xi1>
    %430 = arith.xori %426, %429 : vector<32x32xi1>
    %431 = arith.andi %430, %424 : vector<32x32xi1>
    %432 = vector.broadcast %420 : i32 to vector<32x32xi32>
    %433 = arith.addi %422, %432 : vector<32x32xi32>
    %434 = arith.select %431, %433, %422 : vector<32x32xi1>, vector<32x32xi32>
    %c0_i32_266 = arith.constant 0 : i32
    %435 = vector.broadcast %c0_i32_266 : i32 to vector<32x32xi32>
    %436 = arith.cmpi eq, %434, %435 : vector<32x32xi32>
    %cst_267 = arith.constant 0.000000e+00 : f32
    %437 = vector.broadcast %cst_267 : f32 to vector<32x32xf32>
    %438 = arith.select %436, %437, %417 : vector<32x32xi1>, vector<32x32xf32>
    %439 = tpu.concatenate %387, %412, %413, %438 in 1 : vector<32x128xf32>, vector<32x64xf32>, vector<32x64xf32>, vector<32x32xf32> -> vector<32x288xf32>
    %c320_268 = arith.constant 320 : index
    %c0_269 = arith.constant 0 : index
    %440 = vector.load %arg13[%c320_268, %c0_269] : memref<512x288xf32, #tpu.memory_space<vmem>>, vector<32x288xf32>
    tpu.vector_store %arg13[%c320_268, %c0_269], %439 {strides = array<i32>} : memref<512x288xf32, #tpu.memory_space<vmem>>, vector<32x288xf32>,
    %c256_270 = arith.constant 256 : index
    %c0_271 = arith.constant 0 : index
    %441 = vector.load %arg10[%c256_270, %c0_271] : memref<512x128xf32, #tpu.memory_space<vmem>>, vector<32x128xf32>
    %c352_272 = arith.constant 352 : index
    %c0_273 = arith.constant 0 : index
    %442 = vector.load %arg10[%c352_272, %c0_273] : memref<512x128xf32, #tpu.memory_space<vmem>>, vector<32x64xf32>
    %cst_274 = arith.constant 0.000000e+00 : f32
    %443 = vector.broadcast %cst_274 : f32 to vector<1x64xf32>
    %444 = vector.extract_strided_slice %442 {offsets = [0, 0], sizes = [31, 64], strides = [1, 1]} : vector<32x64xf32> to vector<31x64xf32>
    %445 = tpu.concatenate %443, %444 in 0 : vector<1x64xf32>, vector<31x64xf32> -> vector<32x64xf32>
    %446 = tpu.iota {dimensions = array<i32: 0>} : vector<32x64xi32>
    %c5_i32_275 = arith.constant 5 : i32
    %c0_i32_276 = arith.constant 0 : i32
    %447 = arith.cmpi eq, %c5_i32_275, %c0_i32_276 : i32
    %c1_i32_277 = arith.constant 1 : i32
    %448 = arith.select %447, %c1_i32_277, %c5_i32_275 : i32
    %449 = vector.broadcast %448 : i32 to vector<32x64xi32>
    %450 = arith.remsi %446, %449 : vector<32x64xi32>
    %c0_i32_278 = arith.constant 0 : i32
    %451 = vector.broadcast %c0_i32_278 : i32 to vector<32x64xi32>
    %452 = arith.cmpi ne, %450, %451 : vector<32x64xi32>
    %c0_i32_279 = arith.constant 0 : i32
    %453 = vector.broadcast %c0_i32_279 : i32 to vector<32x64xi32>
    %454 = arith.cmpi slt, %450, %453 : vector<32x64xi32>
    %c0_i32_280 = arith.constant 0 : i32
    %455 = arith.cmpi slt, %448, %c0_i32_280 : i32
    %456 = vector.broadcast %455 : i1 to vector<32x64xi1>
    %457 = vector.broadcast %456 : vector<32x64xi1> to vector<32x64xi1>
    %458 = arith.xori %454, %457 : vector<32x64xi1>
    %459 = arith.andi %458, %452 : vector<32x64xi1>
    %460 = vector.broadcast %448 : i32 to vector<32x64xi32>
    %461 = arith.addi %450, %460 : vector<32x64xi32>
    %462 = arith.select %459, %461, %450 : vector<32x64xi1>, vector<32x64xi32>
    %c0_i32_281 = arith.constant 0 : i32
    %463 = vector.broadcast %c0_i32_281 : i32 to vector<32x64xi32>
    %464 = arith.cmpi eq, %462, %463 : vector<32x64xi32>
    %cst_282 = arith.constant 0.000000e+00 : f32
    %465 = vector.broadcast %cst_282 : f32 to vector<32x64xf32>
    %466 = arith.select %464, %465, %445 : vector<32x64xi1>, vector<32x64xf32>
    %c128_283 = arith.constant 128 : index
    %c32_284 = arith.constant 32 : index
    %467 = vector.load %arg10[%c128_283, %c32_284] : memref<512x128xf32, #tpu.memory_space<vmem>>, vector<32x64xf32>
    %c224_285 = arith.constant 224 : index
    %c32_286 = arith.constant 32 : index
    %468 = vector.load %arg10[%c224_285, %c32_286] : memref<512x128xf32, #tpu.memory_space<vmem>>, vector<32x32xf32>
    %cst_287 = arith.constant 0.000000e+00 : f32
    %469 = vector.broadcast %cst_287 : f32 to vector<1x32xf32>
    %470 = vector.extract_strided_slice %468 {offsets = [0, 0], sizes = [31, 32], strides = [1, 1]} : vector<32x32xf32> to vector<31x32xf32>
    %471 = tpu.concatenate %469, %470 in 0 : vector<1x32xf32>, vector<31x32xf32> -> vector<32x32xf32>
    %472 = tpu.iota {dimensions = array<i32: 0>} : vector<32x32xi32>
    %c5_i32_288 = arith.constant 5 : i32
    %c0_i32_289 = arith.constant 0 : i32
    %473 = arith.cmpi eq, %c5_i32_288, %c0_i32_289 : i32
    %c1_i32_290 = arith.constant 1 : i32
    %474 = arith.select %473, %c1_i32_290, %c5_i32_288 : i32
    %475 = vector.broadcast %474 : i32 to vector<32x32xi32>
    %476 = arith.remsi %472, %475 : vector<32x32xi32>
    %c0_i32_291 = arith.constant 0 : i32
    %477 = vector.broadcast %c0_i32_291 : i32 to vector<32x32xi32>
    %478 = arith.cmpi ne, %476, %477 : vector<32x32xi32>
    %c0_i32_292 = arith.constant 0 : i32
    %479 = vector.broadcast %c0_i32_292 : i32 to vector<32x32xi32>
    %480 = arith.cmpi slt, %476, %479 : vector<32x32xi32>
    %c0_i32_293 = arith.constant 0 : i32
    %481 = arith.cmpi slt, %474, %c0_i32_293 : i32
    %482 = vector.broadcast %481 : i1 to vector<32x32xi1>
    %483 = vector.broadcast %482 : vector<32x32xi1> to vector<32x32xi1>
    %484 = arith.xori %480, %483 : vector<32x32xi1>
    %485 = arith.andi %484, %478 : vector<32x32xi1>
    %486 = vector.broadcast %474 : i32 to vector<32x32xi32>
    %487 = arith.addi %476, %486 : vector<32x32xi32>
    %488 = arith.select %485, %487, %476 : vector<32x32xi1>, vector<32x32xi32>
    %c0_i32_294 = arith.constant 0 : i32
    %489 = vector.broadcast %c0_i32_294 : i32 to vector<32x32xi32>
    %490 = arith.cmpi eq, %488, %489 : vector<32x32xi32>
    %cst_295 = arith.constant 0.000000e+00 : f32
    %491 = vector.broadcast %cst_295 : f32 to vector<32x32xf32>
    %492 = arith.select %490, %491, %471 : vector<32x32xi1>, vector<32x32xf32>
    %493 = tpu.concatenate %441, %466, %467, %492 in 1 : vector<32x128xf32>, vector<32x64xf32>, vector<32x64xf32>, vector<32x32xf32> -> vector<32x288xf32>
    %c352_296 = arith.constant 352 : index
    %c0_297 = arith.constant 0 : index
    %494 = vector.load %arg13[%c352_296, %c0_297] : memref<512x288xf32, #tpu.memory_space<vmem>>, vector<32x288xf32>
    tpu.vector_store %arg13[%c352_296, %c0_297], %493 {strides = array<i32>} : memref<512x288xf32, #tpu.memory_space<vmem>>, vector<32x288xf32>,
    %c352_298 = arith.constant 352 : index
    %c0_299 = arith.constant 0 : index
    %495 = vector.load %arg10[%c352_298, %c0_299] : memref<512x128xf32, #tpu.memory_space<vmem>>, vector<32x128xf32>
    %c320_300 = arith.constant 320 : index
    %c0_301 = arith.constant 0 : index
    %496 = vector.load %arg10[%c320_300, %c0_301] : memref<512x128xf32, #tpu.memory_space<vmem>>, vector<32x64xf32>
    %c224_302 = arith.constant 224 : index
    %c32_303 = arith.constant 32 : index
    %497 = vector.load %arg10[%c224_302, %c32_303] : memref<512x128xf32, #tpu.memory_space<vmem>>, vector<32x64xf32>
    %c192_304 = arith.constant 192 : index
    %c32_305 = arith.constant 32 : index
    %498 = vector.load %arg10[%c192_304, %c32_305] : memref<512x128xf32, #tpu.memory_space<vmem>>, vector<32x32xf32>
    %499 = tpu.concatenate %495, %496, %497, %498 in 1 : vector<32x128xf32>, vector<32x64xf32>, vector<32x64xf32>, vector<32x32xf32> -> vector<32x288xf32>
    %c384_306 = arith.constant 384 : index
    %c0_307 = arith.constant 0 : index
    %500 = vector.load %arg13[%c384_306, %c0_307] : memref<512x288xf32, #tpu.memory_space<vmem>>, vector<32x288xf32>
    tpu.vector_store %arg13[%c384_306, %c0_307], %499 {strides = array<i32>} : memref<512x288xf32, #tpu.memory_space<vmem>>, vector<32x288xf32>,
    %c480_308 = arith.constant 480 : index
    %c0_309 = arith.constant 0 : index
    %501 = vector.load %arg10[%c480_308, %c0_309] : memref<512x128xf32, #tpu.memory_space<vmem>>, vector<32x128xf32>
    %c448_310 = arith.constant 448 : index
    %c0_311 = arith.constant 0 : index
    %502 = vector.load %arg10[%c448_310, %c0_311] : memref<512x128xf32, #tpu.memory_space<vmem>>, vector<32x64xf32>
    %c352_312 = arith.constant 352 : index
    %c32_313 = arith.constant 32 : index
    %503 = vector.load %arg10[%c352_312, %c32_313] : memref<512x128xf32, #tpu.memory_space<vmem>>, vector<32x64xf32>
    %c320_314 = arith.constant 320 : index
    %c32_315 = arith.constant 32 : index
    %504 = vector.load %arg10[%c320_314, %c32_315] : memref<512x128xf32, #tpu.memory_space<vmem>>, vector<32x32xf32>
    %505 = tpu.concatenate %501, %502, %503, %504 in 1 : vector<32x128xf32>, vector<32x64xf32>, vector<32x64xf32>, vector<32x32xf32> -> vector<32x288xf32>
    %c416_316 = arith.constant 416 : index
    %c0_317 = arith.constant 0 : index
    %506 = vector.load %arg13[%c416_316, %c0_317] : memref<512x288xf32, #tpu.memory_space<vmem>>, vector<32x288xf32>
    tpu.vector_store %arg13[%c416_316, %c0_317], %505 {strides = array<i32>} : memref<512x288xf32, #tpu.memory_space<vmem>>, vector<32x288xf32>,
    %c448_318 = arith.constant 448 : index
    %c0_319 = arith.constant 0 : index
    %507 = vector.load %arg10[%c448_318, %c0_319] : memref<512x128xf32, #tpu.memory_space<vmem>>, vector<32x128xf32>
    %c416_320 = arith.constant 416 : index
    %c0_321 = arith.constant 0 : index
    %508 = vector.load %arg10[%c416_320, %c0_321] : memref<512x128xf32, #tpu.memory_space<vmem>>, vector<32x64xf32>
    %c320_322 = arith.constant 320 : index
    %c32_323 = arith.constant 32 : index
    %509 = vector.load %arg10[%c320_322, %c32_323] : memref<512x128xf32, #tpu.memory_space<vmem>>, vector<32x64xf32>
    %c288_324 = arith.constant 288 : index
    %c32_325 = arith.constant 32 : index
    %510 = vector.load %arg10[%c288_324, %c32_325] : memref<512x128xf32, #tpu.memory_space<vmem>>, vector<32x32xf32>
    %511 = tpu.concatenate %507, %508, %509, %510 in 1 : vector<32x128xf32>, vector<32x64xf32>, vector<32x64xf32>, vector<32x32xf32> -> vector<32x288xf32>
    %c448_326 = arith.constant 448 : index
    %c0_327 = arith.constant 0 : index
    %512 = vector.load %arg13[%c448_326, %c0_327] : memref<512x288xf32, #tpu.memory_space<vmem>>, vector<32x288xf32>
    tpu.vector_store %arg13[%c448_326, %c0_327], %511 {strides = array<i32>} : memref<512x288xf32, #tpu.memory_space<vmem>>, vector<32x288xf32>,
    %c320_328 = arith.constant 320 : index
    %c0_329 = arith.constant 0 : index
    %513 = vector.load %arg10[%c320_328, %c0_329] : memref<512x128xf32, #tpu.memory_space<vmem>>, vector<32x128xf32>
    %c288_330 = arith.constant 288 : index
    %c0_331 = arith.constant 0 : index
    %514 = vector.load %arg10[%c288_330, %c0_331] : memref<512x128xf32, #tpu.memory_space<vmem>>, vector<32x64xf32>
    %c192_332 = arith.constant 192 : index
    %c32_333 = arith.constant 32 : index
    %515 = vector.load %arg10[%c192_332, %c32_333] : memref<512x128xf32, #tpu.memory_space<vmem>>, vector<32x64xf32>
    %c160_334 = arith.constant 160 : index
    %c32_335 = arith.constant 32 : index
    %516 = vector.load %arg10[%c160_334, %c32_335] : memref<512x128xf32, #tpu.memory_space<vmem>>, vector<32x32xf32>
    %517 = tpu.concatenate %513, %514, %515, %516 in 1 : vector<32x128xf32>, vector<32x64xf32>, vector<32x64xf32>, vector<32x32xf32> -> vector<32x288xf32>
    %c480_336 = arith.constant 480 : index
    %c0_337 = arith.constant 0 : index
    %518 = vector.load %arg13[%c480_336, %c0_337] : memref<512x288xf32, #tpu.memory_space<vmem>>, vector<32x288xf32>
    tpu.vector_store %arg13[%c480_336, %c0_337], %517 {strides = array<i32>} : memref<512x288xf32, #tpu.memory_space<vmem>>, vector<32x288xf32>,
    %c0_338 = arith.constant 0 : index
    %c0_339 = arith.constant 0 : index
    %519 = vector.load %arg13[%c0_338, %c0_339] : memref<512x288xf32, #tpu.memory_space<vmem>>, vector<128x288xf32>
    %c0_340 = arith.constant 0 : index
    %c0_341 = arith.constant 0 : index
    %520 = vector.load %arg3[%c0_340, %c0_341] : memref<864x32xf32, #tpu.memory_space<vmem>>, vector<288x32xf32>
    %cst_342 = arith.constant dense<0.000000e+00> : vector<128x32xf32>
    %521 = tpu.matmul %519, %520, %cst_342 {dimension_numbers = #tpu.dot_dimension_numbers<[1], [0], [0], [1], [0, 0, 1, 1], [], []>} : vector<128x288xf32>, vector<288x32xf32>, vector<128x32xf32> -> vector<128x32xf32>
    %522 = vector.broadcast %209 : vector<1x32xf32> to vector<128x32xf32>
    %523 = arith.addf %521, %522 : vector<128x32xf32>
    %cst_343 = arith.constant 0.000000e+00 : f32
    %524 = vector.broadcast %cst_343 : f32 to vector<128x32xf32>
    %525 = arith.maximumf %523, %524 : vector<128x32xf32>
    %526 = vector.extract_strided_slice %525 {offsets = [0, 0], sizes = [32, 32], strides = [1, 1]} : vector<128x32xf32> to vector<32x32xf32>
    %527 = vector.extract_strided_slice %525 {offsets = [32, 0], sizes = [32, 32], strides = [1, 1]} : vector<128x32xf32> to vector<32x32xf32>
    %528 = vector.extract_strided_slice %525 {offsets = [64, 0], sizes = [32, 32], strides = [1, 1]} : vector<128x32xf32> to vector<32x32xf32>
    %529 = vector.extract_strided_slice %525 {offsets = [96, 0], sizes = [32, 32], strides = [1, 1]} : vector<128x32xf32> to vector<32x32xf32>
    %530 = tpu.concatenate %526, %527, %528, %529 in 1 : vector<32x32xf32>, vector<32x32xf32>, vector<32x32xf32>, vector<32x32xf32> -> vector<32x128xf32>
    %c0_344 = arith.constant 0 : index
    %c0_345 = arith.constant 0 : index
    %531 = vector.load %arg11[%c0_344, %c0_345] : memref<128x128xf32, #tpu.memory_space<vmem>>, vector<32x128xf32>
    tpu.vector_store %arg11[%c0_344, %c0_345], %530 {strides = array<i32>} : memref<128x128xf32, #tpu.memory_space<vmem>>, vector<32x128xf32>,
    %c128_346 = arith.constant 128 : index
    %c0_347 = arith.constant 0 : index
    %532 = vector.load %arg13[%c128_346, %c0_347] : memref<512x288xf32, #tpu.memory_space<vmem>>, vector<128x288xf32>
    %c0_348 = arith.constant 0 : index
    %c0_349 = arith.constant 0 : index
    %533 = vector.load %arg3[%c0_348, %c0_349] : memref<864x32xf32, #tpu.memory_space<vmem>>, vector<288x32xf32>
    %cst_350 = arith.constant dense<0.000000e+00> : vector<128x32xf32>
    %534 = tpu.matmul %532, %533, %cst_350 {dimension_numbers = #tpu.dot_dimension_numbers<[1], [0], [0], [1], [0, 0, 1, 1], [], []>} : vector<128x288xf32>, vector<288x32xf32>, vector<128x32xf32> -> vector<128x32xf32>
    %535 = vector.broadcast %209 : vector<1x32xf32> to vector<128x32xf32>
    %536 = arith.addf %534, %535 : vector<128x32xf32>
    %cst_351 = arith.constant 0.000000e+00 : f32
    %537 = vector.broadcast %cst_351 : f32 to vector<128x32xf32>
    %538 = arith.maximumf %536, %537 : vector<128x32xf32>
    %539 = vector.extract_strided_slice %538 {offsets = [0, 0], sizes = [32, 32], strides = [1, 1]} : vector<128x32xf32> to vector<32x32xf32>
    %540 = vector.extract_strided_slice %538 {offsets = [32, 0], sizes = [32, 32], strides = [1, 1]} : vector<128x32xf32> to vector<32x32xf32>
    %541 = vector.extract_strided_slice %538 {offsets = [64, 0], sizes = [32, 32], strides = [1, 1]} : vector<128x32xf32> to vector<32x32xf32>
    %542 = vector.extract_strided_slice %538 {offsets = [96, 0], sizes = [32, 32], strides = [1, 1]} : vector<128x32xf32> to vector<32x32xf32>
    %543 = tpu.concatenate %539, %540, %541, %542 in 1 : vector<32x32xf32>, vector<32x32xf32>, vector<32x32xf32>, vector<32x32xf32> -> vector<32x128xf32>
    %c32_352 = arith.constant 32 : index
    %c0_353 = arith.constant 0 : index
    %544 = vector.load %arg11[%c32_352, %c0_353] : memref<128x128xf32, #tpu.memory_space<vmem>>, vector<32x128xf32>
    tpu.vector_store %arg11[%c32_352, %c0_353], %543 {strides = array<i32>} : memref<128x128xf32, #tpu.memory_space<vmem>>, vector<32x128xf32>,
    %c256_354 = arith.constant 256 : index
    %c0_355 = arith.constant 0 : index
    %545 = vector.load %arg13[%c256_354, %c0_355] : memref<512x288xf32, #tpu.memory_space<vmem>>, vector<128x288xf32>
    %c0_356 = arith.constant 0 : index
    %c0_357 = arith.constant 0 : index
    %546 = vector.load %arg3[%c0_356, %c0_357] : memref<864x32xf32, #tpu.memory_space<vmem>>, vector<288x32xf32>
    %cst_358 = arith.constant dense<0.000000e+00> : vector<128x32xf32>
    %547 = tpu.matmul %545, %546, %cst_358 {dimension_numbers = #tpu.dot_dimension_numbers<[1], [0], [0], [1], [0, 0, 1, 1], [], []>} : vector<128x288xf32>, vector<288x32xf32>, vector<128x32xf32> -> vector<128x32xf32>
    %548 = vector.broadcast %209 : vector<1x32xf32> to vector<128x32xf32>
    %549 = arith.addf %547, %548 : vector<128x32xf32>
    %cst_359 = arith.constant 0.000000e+00 : f32
    %550 = vector.broadcast %cst_359 : f32 to vector<128x32xf32>
    %551 = arith.maximumf %549, %550 : vector<128x32xf32>
    %552 = vector.extract_strided_slice %551 {offsets = [0, 0], sizes = [32, 32], strides = [1, 1]} : vector<128x32xf32> to vector<32x32xf32>
    %553 = vector.extract_strided_slice %551 {offsets = [32, 0], sizes = [32, 32], strides = [1, 1]} : vector<128x32xf32> to vector<32x32xf32>
    %554 = vector.extract_strided_slice %551 {offsets = [64, 0], sizes = [32, 32], strides = [1, 1]} : vector<128x32xf32> to vector<32x32xf32>
    %555 = vector.extract_strided_slice %551 {offsets = [96, 0], sizes = [32, 32], strides = [1, 1]} : vector<128x32xf32> to vector<32x32xf32>
    %556 = tpu.concatenate %552, %553, %554, %555 in 1 : vector<32x32xf32>, vector<32x32xf32>, vector<32x32xf32>, vector<32x32xf32> -> vector<32x128xf32>
    %c64_360 = arith.constant 64 : index
    %c0_361 = arith.constant 0 : index
    %557 = vector.load %arg11[%c64_360, %c0_361] : memref<128x128xf32, #tpu.memory_space<vmem>>, vector<32x128xf32>
    tpu.vector_store %arg11[%c64_360, %c0_361], %556 {strides = array<i32>} : memref<128x128xf32, #tpu.memory_space<vmem>>, vector<32x128xf32>,
    %c384_362 = arith.constant 384 : index
    %c0_363 = arith.constant 0 : index
    %558 = vector.load %arg13[%c384_362, %c0_363] : memref<512x288xf32, #tpu.memory_space<vmem>>, vector<128x288xf32>
    %c0_364 = arith.constant 0 : index
    %c0_365 = arith.constant 0 : index
    %559 = vector.load %arg3[%c0_364, %c0_365] : memref<864x32xf32, #tpu.memory_space<vmem>>, vector<288x32xf32>
    %cst_366 = arith.constant dense<0.000000e+00> : vector<128x32xf32>
    %560 = tpu.matmul %558, %559, %cst_366 {dimension_numbers = #tpu.dot_dimension_numbers<[1], [0], [0], [1], [0, 0, 1, 1], [], []>} : vector<128x288xf32>, vector<288x32xf32>, vector<128x32xf32> -> vector<128x32xf32>
    %561 = vector.broadcast %209 : vector<1x32xf32> to vector<128x32xf32>
    %562 = arith.addf %560, %561 : vector<128x32xf32>
    %cst_367 = arith.constant 0.000000e+00 : f32
    %563 = vector.broadcast %cst_367 : f32 to vector<128x32xf32>
    %564 = arith.maximumf %562, %563 : vector<128x32xf32>
    %565 = vector.extract_strided_slice %564 {offsets = [0, 0], sizes = [32, 32], strides = [1, 1]} : vector<128x32xf32> to vector<32x32xf32>
    %566 = vector.extract_strided_slice %564 {offsets = [32, 0], sizes = [32, 32], strides = [1, 1]} : vector<128x32xf32> to vector<32x32xf32>
    %567 = vector.extract_strided_slice %564 {offsets = [64, 0], sizes = [32, 32], strides = [1, 1]} : vector<128x32xf32> to vector<32x32xf32>
    %568 = vector.extract_strided_slice %564 {offsets = [96, 0], sizes = [32, 32], strides = [1, 1]} : vector<128x32xf32> to vector<32x32xf32>
    %569 = tpu.concatenate %565, %566, %567, %568 in 1 : vector<32x32xf32>, vector<32x32xf32>, vector<32x32xf32>, vector<32x32xf32> -> vector<32x128xf32>
    %c96_368 = arith.constant 96 : index
    %c0_369 = arith.constant 0 : index
    %570 = vector.load %arg11[%c96_368, %c0_369] : memref<128x128xf32, #tpu.memory_space<vmem>>, vector<32x128xf32>
    tpu.vector_store %arg11[%c96_368, %c0_369], %569 {strides = array<i32>} : memref<128x128xf32, #tpu.memory_space<vmem>>, vector<32x128xf32>,
    %c2 = arith.constant 2 : index
    %c0_370 = arith.constant 0 : index
    %571 = vector.load %arg7[%c2, %c0_370] : memref<8x128xf32, #tpu.memory_space<vmem>>, vector<1x32xf32>
    %c32_371 = arith.constant 32 : index
    %c0_372 = arith.constant 0 : index
    %572 = vector.load %arg11[%c32_371, %c0_372] : memref<128x128xf32, #tpu.memory_space<vmem>>, vector<32x128xf32>
    %c0_373 = arith.constant 0 : index
    %c0_374 = arith.constant 0 : index
    %573 = vector.load %arg11[%c0_373, %c0_374] : memref<128x128xf32, #tpu.memory_space<vmem>>, vector<32x64xf32>
    %c96_375 = arith.constant 96 : index
    %c32_376 = arith.constant 32 : index
    %574 = vector.load %arg11[%c96_375, %c32_376] : memref<128x128xf32, #tpu.memory_space<vmem>>, vector<32x64xf32>
    %cst_377 = arith.constant 0.000000e+00 : f32
    %575 = vector.broadcast %cst_377 : f32 to vector<5x64xf32>
    %576 = vector.extract_strided_slice %574 {offsets = [0, 0], sizes = [27, 64], strides = [1, 1]} : vector<32x64xf32> to vector<27x64xf32>
    %577 = tpu.concatenate %575, %576 in 0 : vector<5x64xf32>, vector<27x64xf32> -> vector<32x64xf32>
    %c64_378 = arith.constant 64 : index
    %c32_379 = arith.constant 32 : index
    %578 = vector.load %arg11[%c64_378, %c32_379] : memref<128x128xf32, #tpu.memory_space<vmem>>, vector<32x32xf32>
    %cst_380 = arith.constant 0.000000e+00 : f32
    %579 = vector.broadcast %cst_380 : f32 to vector<5x32xf32>
    %580 = vector.extract_strided_slice %578 {offsets = [0, 0], sizes = [27, 32], strides = [1, 1]} : vector<32x32xf32> to vector<27x32xf32>
    %581 = tpu.concatenate %579, %580 in 0 : vector<5x32xf32>, vector<27x32xf32> -> vector<32x32xf32>
    %582 = tpu.concatenate %572, %573, %577, %581 in 1 : vector<32x128xf32>, vector<32x64xf32>, vector<32x64xf32>, vector<32x32xf32> -> vector<32x288xf32>
    %c0_381 = arith.constant 0 : index
    %c0_382 = arith.constant 0 : index
    %583 = vector.load %arg13[%c0_381, %c0_382] : memref<512x288xf32, #tpu.memory_space<vmem>>, vector<32x288xf32>
    tpu.vector_store %arg13[%c0_381, %c0_382], %582 {strides = array<i32>} : memref<512x288xf32, #tpu.memory_space<vmem>>, vector<32x288xf32>,
    %c96_383 = arith.constant 96 : index
    %c0_384 = arith.constant 0 : index
    %584 = vector.load %arg11[%c96_383, %c0_384] : memref<128x128xf32, #tpu.memory_space<vmem>>, vector<32x128xf32>
    %c64_385 = arith.constant 64 : index
    %c0_386 = arith.constant 0 : index
    %585 = vector.load %arg11[%c64_385, %c0_386] : memref<128x128xf32, #tpu.memory_space<vmem>>, vector<32x64xf32>
    %c32_387 = arith.constant 32 : index
    %c32_388 = arith.constant 32 : index
    %586 = vector.load %arg11[%c32_387, %c32_388] : memref<128x128xf32, #tpu.memory_space<vmem>>, vector<32x64xf32>
    %c0_389 = arith.constant 0 : index
    %c32_390 = arith.constant 32 : index
    %587 = vector.load %arg11[%c0_389, %c32_390] : memref<128x128xf32, #tpu.memory_space<vmem>>, vector<32x32xf32>
    %588 = tpu.concatenate %584, %585, %586, %587 in 1 : vector<32x128xf32>, vector<32x64xf32>, vector<32x64xf32>, vector<32x32xf32> -> vector<32x288xf32>
    %c32_391 = arith.constant 32 : index
    %c0_392 = arith.constant 0 : index
    %589 = vector.load %arg13[%c32_391, %c0_392] : memref<512x288xf32, #tpu.memory_space<vmem>>, vector<32x288xf32>
    tpu.vector_store %arg13[%c32_391, %c0_392], %588 {strides = array<i32>} : memref<512x288xf32, #tpu.memory_space<vmem>>, vector<32x288xf32>,
    %c64_393 = arith.constant 64 : index
    %c0_394 = arith.constant 0 : index
    %590 = vector.load %arg11[%c64_393, %c0_394] : memref<128x128xf32, #tpu.memory_space<vmem>>, vector<32x128xf32>
    %c96_395 = arith.constant 96 : index
    %c0_396 = arith.constant 0 : index
    %591 = vector.load %arg11[%c96_395, %c0_396] : memref<128x128xf32, #tpu.memory_space<vmem>>, vector<32x64xf32>
    %cst_397 = arith.constant 0.000000e+00 : f32
    %592 = vector.broadcast %cst_397 : f32 to vector<1x64xf32>
    %593 = vector.extract_strided_slice %591 {offsets = [0, 0], sizes = [31, 64], strides = [1, 1]} : vector<32x64xf32> to vector<31x64xf32>
    %594 = tpu.concatenate %592, %593 in 0 : vector<1x64xf32>, vector<31x64xf32> -> vector<32x64xf32>
    %595 = tpu.iota {dimensions = array<i32: 0>} : vector<32x64xi32>
    %c5_i32_398 = arith.constant 5 : i32
    %c0_i32_399 = arith.constant 0 : i32
    %596 = arith.cmpi eq, %c5_i32_398, %c0_i32_399 : i32
    %c1_i32_400 = arith.constant 1 : i32
    %597 = arith.select %596, %c1_i32_400, %c5_i32_398 : i32
    %598 = vector.broadcast %597 : i32 to vector<32x64xi32>
    %599 = arith.remsi %595, %598 : vector<32x64xi32>
    %c0_i32_401 = arith.constant 0 : i32
    %600 = vector.broadcast %c0_i32_401 : i32 to vector<32x64xi32>
    %601 = arith.cmpi ne, %599, %600 : vector<32x64xi32>
    %c0_i32_402 = arith.constant 0 : i32
    %602 = vector.broadcast %c0_i32_402 : i32 to vector<32x64xi32>
    %603 = arith.cmpi slt, %599, %602 : vector<32x64xi32>
    %c0_i32_403 = arith.constant 0 : i32
    %604 = arith.cmpi slt, %597, %c0_i32_403 : i32
    %605 = vector.broadcast %604 : i1 to vector<32x64xi1>
    %606 = vector.broadcast %605 : vector<32x64xi1> to vector<32x64xi1>
    %607 = arith.xori %603, %606 : vector<32x64xi1>
    %608 = arith.andi %607, %601 : vector<32x64xi1>
    %609 = vector.broadcast %597 : i32 to vector<32x64xi32>
    %610 = arith.addi %599, %609 : vector<32x64xi32>
    %611 = arith.select %608, %610, %599 : vector<32x64xi1>, vector<32x64xi32>
    %c0_i32_404 = arith.constant 0 : i32
    %612 = vector.broadcast %c0_i32_404 : i32 to vector<32x64xi32>
    %613 = arith.cmpi eq, %611, %612 : vector<32x64xi32>
    %cst_405 = arith.constant 0.000000e+00 : f32
    %614 = vector.broadcast %cst_405 : f32 to vector<32x64xf32>
    %615 = arith.select %613, %614, %594 : vector<32x64xi1>, vector<32x64xf32>
    %c0_406 = arith.constant 0 : index
    %c32_407 = arith.constant 32 : index
    %616 = vector.load %arg11[%c0_406, %c32_407] : memref<128x128xf32, #tpu.memory_space<vmem>>, vector<32x64xf32>
    %c32_408 = arith.constant 32 : index
    %c32_409 = arith.constant 32 : index
    %617 = vector.load %arg11[%c32_408, %c32_409] : memref<128x128xf32, #tpu.memory_space<vmem>>, vector<32x32xf32>
    %cst_410 = arith.constant 0.000000e+00 : f32
    %618 = vector.broadcast %cst_410 : f32 to vector<1x32xf32>
    %619 = vector.extract_strided_slice %617 {offsets = [0, 0], sizes = [31, 32], strides = [1, 1]} : vector<32x32xf32> to vector<31x32xf32>
    %620 = tpu.concatenate %618, %619 in 0 : vector<1x32xf32>, vector<31x32xf32> -> vector<32x32xf32>
    %621 = tpu.iota {dimensions = array<i32: 0>} : vector<32x32xi32>
    %c5_i32_411 = arith.constant 5 : i32
    %c0_i32_412 = arith.constant 0 : i32
    %622 = arith.cmpi eq, %c5_i32_411, %c0_i32_412 : i32
    %c1_i32_413 = arith.constant 1 : i32
    %623 = arith.select %622, %c1_i32_413, %c5_i32_411 : i32
    %624 = vector.broadcast %623 : i32 to vector<32x32xi32>
    %625 = arith.remsi %621, %624 : vector<32x32xi32>
    %c0_i32_414 = arith.constant 0 : i32
    %626 = vector.broadcast %c0_i32_414 : i32 to vector<32x32xi32>
    %627 = arith.cmpi ne, %625, %626 : vector<32x32xi32>
    %c0_i32_415 = arith.constant 0 : i32
    %628 = vector.broadcast %c0_i32_415 : i32 to vector<32x32xi32>
    %629 = arith.cmpi slt, %625, %628 : vector<32x32xi32>
    %c0_i32_416 = arith.constant 0 : i32
    %630 = arith.cmpi slt, %623, %c0_i32_416 : i32
    %631 = vector.broadcast %630 : i1 to vector<32x32xi1>
    %632 = vector.broadcast %631 : vector<32x32xi1> to vector<32x32xi1>
    %633 = arith.xori %629, %632 : vector<32x32xi1>
    %634 = arith.andi %633, %627 : vector<32x32xi1>
    %635 = vector.broadcast %623 : i32 to vector<32x32xi32>
    %636 = arith.addi %625, %635 : vector<32x32xi32>
    %637 = arith.select %634, %636, %625 : vector<32x32xi1>, vector<32x32xi32>
    %c0_i32_417 = arith.constant 0 : i32
    %638 = vector.broadcast %c0_i32_417 : i32 to vector<32x32xi32>
    %639 = arith.cmpi eq, %637, %638 : vector<32x32xi32>
    %cst_418 = arith.constant 0.000000e+00 : f32
    %640 = vector.broadcast %cst_418 : f32 to vector<32x32xf32>
    %641 = arith.select %639, %640, %620 : vector<32x32xi1>, vector<32x32xf32>
    %642 = tpu.concatenate %590, %615, %616, %641 in 1 : vector<32x128xf32>, vector<32x64xf32>, vector<32x64xf32>, vector<32x32xf32> -> vector<32x288xf32>
    %c64_419 = arith.constant 64 : index
    %c0_420 = arith.constant 0 : index
    %643 = vector.load %arg13[%c64_419, %c0_420] : memref<512x288xf32, #tpu.memory_space<vmem>>, vector<32x288xf32>
    tpu.vector_store %arg13[%c64_419, %c0_420], %642 {strides = array<i32>} : memref<512x288xf32, #tpu.memory_space<vmem>>, vector<32x288xf32>,
    %c0_421 = arith.constant 0 : index
    %c0_422 = arith.constant 0 : index
    %644 = vector.load %arg11[%c0_421, %c0_422] : memref<128x128xf32, #tpu.memory_space<vmem>>, vector<32x128xf32>
    %c32_423 = arith.constant 32 : index
    %c0_424 = arith.constant 0 : index
    %645 = vector.load %arg11[%c32_423, %c0_424] : memref<128x128xf32, #tpu.memory_space<vmem>>, vector<32x64xf32>
    %cst_425 = arith.constant 0.000000e+00 : f32
    %646 = vector.broadcast %cst_425 : f32 to vector<1x64xf32>
    %647 = vector.extract_strided_slice %645 {offsets = [0, 0], sizes = [31, 64], strides = [1, 1]} : vector<32x64xf32> to vector<31x64xf32>
    %648 = tpu.concatenate %646, %647 in 0 : vector<1x64xf32>, vector<31x64xf32> -> vector<32x64xf32>
    %649 = tpu.iota {dimensions = array<i32: 0>} : vector<32x64xi32>
    %c5_i32_426 = arith.constant 5 : i32
    %c0_i32_427 = arith.constant 0 : i32
    %650 = arith.cmpi eq, %c5_i32_426, %c0_i32_427 : i32
    %c1_i32_428 = arith.constant 1 : i32
    %651 = arith.select %650, %c1_i32_428, %c5_i32_426 : i32
    %652 = vector.broadcast %651 : i32 to vector<32x64xi32>
    %653 = arith.remsi %649, %652 : vector<32x64xi32>
    %c0_i32_429 = arith.constant 0 : i32
    %654 = vector.broadcast %c0_i32_429 : i32 to vector<32x64xi32>
    %655 = arith.cmpi ne, %653, %654 : vector<32x64xi32>
    %c0_i32_430 = arith.constant 0 : i32
    %656 = vector.broadcast %c0_i32_430 : i32 to vector<32x64xi32>
    %657 = arith.cmpi slt, %653, %656 : vector<32x64xi32>
    %c0_i32_431 = arith.constant 0 : i32
    %658 = arith.cmpi slt, %651, %c0_i32_431 : i32
    %659 = vector.broadcast %658 : i1 to vector<32x64xi1>
    %660 = vector.broadcast %659 : vector<32x64xi1> to vector<32x64xi1>
    %661 = arith.xori %657, %660 : vector<32x64xi1>
    %662 = arith.andi %661, %655 : vector<32x64xi1>
    %663 = vector.broadcast %651 : i32 to vector<32x64xi32>
    %664 = arith.addi %653, %663 : vector<32x64xi32>
    %665 = arith.select %662, %664, %653 : vector<32x64xi1>, vector<32x64xi32>
    %c0_i32_432 = arith.constant 0 : i32
    %666 = vector.broadcast %c0_i32_432 : i32 to vector<32x64xi32>
    %667 = arith.cmpi eq, %665, %666 : vector<32x64xi32>
    %cst_433 = arith.constant 0.000000e+00 : f32
    %668 = vector.broadcast %cst_433 : f32 to vector<32x64xf32>
    %669 = arith.select %667, %668, %648 : vector<32x64xi1>, vector<32x64xf32>
    %c64_434 = arith.constant 64 : index
    %c32_435 = arith.constant 32 : index
    %670 = vector.load %arg11[%c64_434, %c32_435] : memref<128x128xf32, #tpu.memory_space<vmem>>, vector<32x64xf32>
    %cst_436 = arith.constant 0.000000e+00 : f32
    %671 = vector.broadcast %cst_436 : f32 to vector<5x64xf32>
    %672 = vector.extract_strided_slice %670 {offsets = [0, 0], sizes = [27, 64], strides = [1, 1]} : vector<32x64xf32> to vector<27x64xf32>
    %673 = tpu.concatenate %671, %672 in 0 : vector<5x64xf32>, vector<27x64xf32> -> vector<32x64xf32>
    %c96_437 = arith.constant 96 : index
    %c32_438 = arith.constant 32 : index
    %674 = vector.load %arg11[%c96_437, %c32_438] : memref<128x128xf32, #tpu.memory_space<vmem>>, vector<32x32xf32>
    %cst_439 = arith.constant 0.000000e+00 : f32
    %675 = vector.broadcast %cst_439 : f32 to vector<6x32xf32>
    %676 = vector.extract_strided_slice %674 {offsets = [0, 0], sizes = [26, 32], strides = [1, 1]} : vector<32x32xf32> to vector<26x32xf32>
    %677 = tpu.concatenate %675, %676 in 0 : vector<6x32xf32>, vector<26x32xf32> -> vector<32x32xf32>
    %678 = tpu.iota {dimensions = array<i32: 0>} : vector<32x32xi32>
    %c5_i32_440 = arith.constant 5 : i32
    %c0_i32_441 = arith.constant 0 : i32
    %679 = arith.cmpi eq, %c5_i32_440, %c0_i32_441 : i32
    %c1_i32_442 = arith.constant 1 : i32
    %680 = arith.select %679, %c1_i32_442, %c5_i32_440 : i32
    %681 = vector.broadcast %680 : i32 to vector<32x32xi32>
    %682 = arith.remsi %678, %681 : vector<32x32xi32>
    %c0_i32_443 = arith.constant 0 : i32
    %683 = vector.broadcast %c0_i32_443 : i32 to vector<32x32xi32>
    %684 = arith.cmpi ne, %682, %683 : vector<32x32xi32>
    %c0_i32_444 = arith.constant 0 : i32
    %685 = vector.broadcast %c0_i32_444 : i32 to vector<32x32xi32>
    %686 = arith.cmpi slt, %682, %685 : vector<32x32xi32>
    %c0_i32_445 = arith.constant 0 : i32
    %687 = arith.cmpi slt, %680, %c0_i32_445 : i32
    %688 = vector.broadcast %687 : i1 to vector<32x32xi1>
    %689 = vector.broadcast %688 : vector<32x32xi1> to vector<32x32xi1>
    %690 = arith.xori %686, %689 : vector<32x32xi1>
    %691 = arith.andi %690, %684 : vector<32x32xi1>
    %692 = vector.broadcast %680 : i32 to vector<32x32xi32>
    %693 = arith.addi %682, %692 : vector<32x32xi32>
    %694 = arith.select %691, %693, %682 : vector<32x32xi1>, vector<32x32xi32>
    %c0_i32_446 = arith.constant 0 : i32
    %695 = vector.broadcast %c0_i32_446 : i32 to vector<32x32xi32>
    %696 = arith.cmpi eq, %694, %695 : vector<32x32xi32>
    %cst_447 = arith.constant 0.000000e+00 : f32
    %697 = vector.broadcast %cst_447 : f32 to vector<32x32xf32>
    %698 = arith.select %696, %697, %677 : vector<32x32xi1>, vector<32x32xf32>
    %699 = tpu.concatenate %644, %669, %673, %698 in 1 : vector<32x128xf32>, vector<32x64xf32>, vector<32x64xf32>, vector<32x32xf32> -> vector<32x288xf32>
    %c96_448 = arith.constant 96 : index
    %c0_449 = arith.constant 0 : index
    %700 = vector.load %arg13[%c96_448, %c0_449] : memref<512x288xf32, #tpu.memory_space<vmem>>, vector<32x288xf32>
    tpu.vector_store %arg13[%c96_448, %c0_449], %699 {strides = array<i32>} : memref<512x288xf32, #tpu.memory_space<vmem>>, vector<32x288xf32>,
    %c0_450 = arith.constant 0 : index
    %c0_451 = arith.constant 0 : index
    %701 = vector.load %arg13[%c0_450, %c0_451] : memref<512x288xf32, #tpu.memory_space<vmem>>, vector<128x288xf32>
    %c288_452 = arith.constant 288 : index
    %c0_453 = arith.constant 0 : index
    %702 = vector.load %arg3[%c288_452, %c0_453] : memref<864x32xf32, #tpu.memory_space<vmem>>, vector<288x32xf32>
    %cst_454 = arith.constant dense<0.000000e+00> : vector<128x32xf32>
    %703 = tpu.matmul %701, %702, %cst_454 {dimension_numbers = #tpu.dot_dimension_numbers<[1], [0], [0], [1], [0, 0, 1, 1], [], []>} : vector<128x288xf32>, vector<288x32xf32>, vector<128x32xf32> -> vector<128x32xf32>
    %704 = vector.broadcast %571 : vector<1x32xf32> to vector<128x32xf32>
    %705 = arith.addf %703, %704 : vector<128x32xf32>
    %cst_455 = arith.constant 0.000000e+00 : f32
    %706 = vector.broadcast %cst_455 : f32 to vector<128x32xf32>
    %707 = arith.maximumf %705, %706 : vector<128x32xf32>
    %708 = vector.extract_strided_slice %707 {offsets = [0, 0], sizes = [32, 32], strides = [1, 1]} : vector<128x32xf32> to vector<32x32xf32>
    %709 = vector.extract_strided_slice %707 {offsets = [32, 0], sizes = [32, 32], strides = [1, 1]} : vector<128x32xf32> to vector<32x32xf32>
    %710 = vector.extract_strided_slice %707 {offsets = [64, 0], sizes = [32, 32], strides = [1, 1]} : vector<128x32xf32> to vector<32x32xf32>
    %711 = vector.extract_strided_slice %707 {offsets = [96, 0], sizes = [32, 32], strides = [1, 1]} : vector<128x32xf32> to vector<32x32xf32>
    %712 = tpu.concatenate %708, %709, %710, %711 in 1 : vector<32x32xf32>, vector<32x32xf32>, vector<32x32xf32>, vector<32x32xf32> -> vector<32x128xf32>
    %c0_456 = arith.constant 0 : index
    %c0_457 = arith.constant 0 : index
    %713 = vector.load %arg12[%c0_456, %c0_457] : memref<32x128xf32, #tpu.memory_space<vmem>>, vector<32x128xf32>
    tpu.vector_store %arg12[%c0_456, %c0_457], %712 {strides = array<i32>} : memref<32x128xf32, #tpu.memory_space<vmem>>, vector<32x128xf32>,
    %c3 = arith.constant 3 : index
    %c0_458 = arith.constant 0 : index
    %714 = vector.load %arg7[%c3, %c0_458] : memref<8x128xf32, #tpu.memory_space<vmem>>, vector<1x32xf32>
    %c0_459 = arith.constant 0 : index
    %c0_460 = arith.constant 0 : index
    %715 = vector.load %arg12[%c0_459, %c0_460] : memref<32x128xf32, #tpu.memory_space<vmem>>, vector<32x128xf32>
    %c0_461 = arith.constant 0 : index
    %c0_462 = arith.constant 0 : index
    %716 = vector.load %arg12[%c0_461, %c0_462] : memref<32x128xf32, #tpu.memory_space<vmem>>, vector<32x64xf32>
    %cst_463 = arith.constant 0.000000e+00 : f32
    %717 = vector.broadcast %cst_463 : f32 to vector<1x64xf32>
    %718 = vector.extract_strided_slice %716 {offsets = [0, 0], sizes = [31, 64], strides = [1, 1]} : vector<32x64xf32> to vector<31x64xf32>
    %719 = tpu.concatenate %717, %718 in 0 : vector<1x64xf32>, vector<31x64xf32> -> vector<32x64xf32>
    %720 = tpu.iota {dimensions = array<i32: 0>} : vector<32x64xi32>
    %c5_i32_464 = arith.constant 5 : i32
    %c0_i32_465 = arith.constant 0 : i32
    %721 = arith.cmpi eq, %c5_i32_464, %c0_i32_465 : i32
    %c1_i32_466 = arith.constant 1 : i32
    %722 = arith.select %721, %c1_i32_466, %c5_i32_464 : i32
    %723 = vector.broadcast %722 : i32 to vector<32x64xi32>
    %724 = arith.remsi %720, %723 : vector<32x64xi32>
    %c0_i32_467 = arith.constant 0 : i32
    %725 = vector.broadcast %c0_i32_467 : i32 to vector<32x64xi32>
    %726 = arith.cmpi ne, %724, %725 : vector<32x64xi32>
    %c0_i32_468 = arith.constant 0 : i32
    %727 = vector.broadcast %c0_i32_468 : i32 to vector<32x64xi32>
    %728 = arith.cmpi slt, %724, %727 : vector<32x64xi32>
    %c0_i32_469 = arith.constant 0 : i32
    %729 = arith.cmpi slt, %722, %c0_i32_469 : i32
    %730 = vector.broadcast %729 : i1 to vector<32x64xi1>
    %731 = vector.broadcast %730 : vector<32x64xi1> to vector<32x64xi1>
    %732 = arith.xori %728, %731 : vector<32x64xi1>
    %733 = arith.andi %732, %726 : vector<32x64xi1>
    %734 = vector.broadcast %722 : i32 to vector<32x64xi32>
    %735 = arith.addi %724, %734 : vector<32x64xi32>
    %736 = arith.select %733, %735, %724 : vector<32x64xi1>, vector<32x64xi32>
    %c0_i32_470 = arith.constant 0 : i32
    %737 = vector.broadcast %c0_i32_470 : i32 to vector<32x64xi32>
    %738 = arith.cmpi eq, %736, %737 : vector<32x64xi32>
    %cst_471 = arith.constant 0.000000e+00 : f32
    %739 = vector.broadcast %cst_471 : f32 to vector<32x64xf32>
    %740 = arith.select %738, %739, %719 : vector<32x64xi1>, vector<32x64xf32>
    %c0_472 = arith.constant 0 : index
    %c32_473 = arith.constant 32 : index
    %741 = vector.load %arg12[%c0_472, %c32_473] : memref<32x128xf32, #tpu.memory_space<vmem>>, vector<32x64xf32>
    %cst_474 = arith.constant 0.000000e+00 : f32
    %742 = vector.broadcast %cst_474 : f32 to vector<5x64xf32>
    %743 = vector.extract_strided_slice %741 {offsets = [0, 0], sizes = [27, 64], strides = [1, 1]} : vector<32x64xf32> to vector<27x64xf32>
    %744 = tpu.concatenate %742, %743 in 0 : vector<5x64xf32>, vector<27x64xf32> -> vector<32x64xf32>
    %c0_475 = arith.constant 0 : index
    %c32_476 = arith.constant 32 : index
    %745 = vector.load %arg12[%c0_475, %c32_476] : memref<32x128xf32, #tpu.memory_space<vmem>>, vector<32x32xf32>
    %cst_477 = arith.constant 0.000000e+00 : f32
    %746 = vector.broadcast %cst_477 : f32 to vector<6x32xf32>
    %747 = vector.extract_strided_slice %745 {offsets = [0, 0], sizes = [26, 32], strides = [1, 1]} : vector<32x32xf32> to vector<26x32xf32>
    %748 = tpu.concatenate %746, %747 in 0 : vector<6x32xf32>, vector<26x32xf32> -> vector<32x32xf32>
    %749 = tpu.iota {dimensions = array<i32: 0>} : vector<32x32xi32>
    %c5_i32_478 = arith.constant 5 : i32
    %c0_i32_479 = arith.constant 0 : i32
    %750 = arith.cmpi eq, %c5_i32_478, %c0_i32_479 : i32
    %c1_i32_480 = arith.constant 1 : i32
    %751 = arith.select %750, %c1_i32_480, %c5_i32_478 : i32
    %752 = vector.broadcast %751 : i32 to vector<32x32xi32>
    %753 = arith.remsi %749, %752 : vector<32x32xi32>
    %c0_i32_481 = arith.constant 0 : i32
    %754 = vector.broadcast %c0_i32_481 : i32 to vector<32x32xi32>
    %755 = arith.cmpi ne, %753, %754 : vector<32x32xi32>
    %c0_i32_482 = arith.constant 0 : i32
    %756 = vector.broadcast %c0_i32_482 : i32 to vector<32x32xi32>
    %757 = arith.cmpi slt, %753, %756 : vector<32x32xi32>
    %c0_i32_483 = arith.constant 0 : i32
    %758 = arith.cmpi slt, %751, %c0_i32_483 : i32
    %759 = vector.broadcast %758 : i1 to vector<32x32xi1>
    %760 = vector.broadcast %759 : vector<32x32xi1> to vector<32x32xi1>
    %761 = arith.xori %757, %760 : vector<32x32xi1>
    %762 = arith.andi %761, %755 : vector<32x32xi1>
    %763 = vector.broadcast %751 : i32 to vector<32x32xi32>
    %764 = arith.addi %753, %763 : vector<32x32xi32>
    %765 = arith.select %762, %764, %753 : vector<32x32xi1>, vector<32x32xi32>
    %c0_i32_484 = arith.constant 0 : i32
    %766 = vector.broadcast %c0_i32_484 : i32 to vector<32x32xi32>
    %767 = arith.cmpi eq, %765, %766 : vector<32x32xi32>
    %cst_485 = arith.constant 0.000000e+00 : f32
    %768 = vector.broadcast %cst_485 : f32 to vector<32x32xf32>
    %769 = arith.select %767, %768, %748 : vector<32x32xi1>, vector<32x32xf32>
    %770 = tpu.concatenate %715, %740, %744, %769 in 1 : vector<32x128xf32>, vector<32x64xf32>, vector<32x64xf32>, vector<32x32xf32> -> vector<32x288xf32>
    %c0_486 = arith.constant 0 : index
    %c0_487 = arith.constant 0 : index
    %771 = vector.load %arg13[%c0_486, %c0_487] : memref<512x288xf32, #tpu.memory_space<vmem>>, vector<32x288xf32>
    tpu.vector_store %arg13[%c0_486, %c0_487], %770 {strides = array<i32>} : memref<512x288xf32, #tpu.memory_space<vmem>>, vector<32x288xf32>,
    %c0_488 = arith.constant 0 : index
    %c0_489 = arith.constant 0 : index
    %772 = vector.load %arg13[%c0_488, %c0_489] : memref<512x288xf32, #tpu.memory_space<vmem>>, vector<32x288xf32>
    %c576 = arith.constant 576 : index
    %c0_490 = arith.constant 0 : index
    %773 = vector.load %arg3[%c576, %c0_490] : memref<864x32xf32, #tpu.memory_space<vmem>>, vector<288x32xf32>
    %cst_491 = arith.constant dense<0.000000e+00> : vector<32x32xf32>
    %774 = tpu.matmul %772, %773, %cst_491 {dimension_numbers = #tpu.dot_dimension_numbers<[1], [0], [0], [1], [0, 0, 1, 1], [], []>} : vector<32x288xf32>, vector<288x32xf32>, vector<32x32xf32> -> vector<32x32xf32>
    %775 = vector.broadcast %714 : vector<1x32xf32> to vector<32x32xf32>
    %776 = arith.addf %774, %775 : vector<32x32xf32>
    %cst_492 = arith.constant 0.000000e+00 : f32
    %777 = vector.broadcast %cst_492 : f32 to vector<32x32xf32>
    %778 = arith.maximumf %776, %777 : vector<32x32xf32>
    %779 = vector.extract_strided_slice %778 {offsets = [0, 0], sizes = [8, 32], strides = [1, 1]} : vector<32x32xf32> to vector<8x32xf32>
    %780 = vector.extract_strided_slice %778 {offsets = [8, 0], sizes = [8, 32], strides = [1, 1]} : vector<32x32xf32> to vector<8x32xf32>
    %781 = vector.extract_strided_slice %778 {offsets = [16, 0], sizes = [8, 32], strides = [1, 1]} : vector<32x32xf32> to vector<8x32xf32>
    %782 = vector.extract_strided_slice %778 {offsets = [24, 0], sizes = [8, 32], strides = [1, 1]} : vector<32x32xf32> to vector<8x32xf32>
    %783 = tpu.concatenate %779, %780, %781, %782 in 1 : vector<8x32xf32>, vector<8x32xf32>, vector<8x32xf32>, vector<8x32xf32> -> vector<8x128xf32>
    %c4 = arith.constant 4 : index
    %c0_493 = arith.constant 0 : index
    %784 = vector.load %arg7[%c4, %c0_493] : memref<8x128xf32, #tpu.memory_space<vmem>>, vector<1x96xf32>
    %785 = vector.extract_strided_slice %783 {offsets = [0, 0], sizes = [1, 128], strides = [1, 1]} : vector<8x128xf32> to vector<1x128xf32>
    %c0_494 = arith.constant 0 : index
    %c0_495 = arith.constant 0 : index
    %786 = vector.load %arg4[%c0_494, %c0_495] : memref<1024x96xf32, #tpu.memory_space<vmem>>, vector<128x96xf32>
    %cst_496 = arith.constant dense<0.000000e+00> : vector<1x96xf32>
    %787 = tpu.matmul %785, %786, %cst_496 {dimension_numbers = #tpu.dot_dimension_numbers<[1], [0], [0], [1], [0, 0, 1, 1], [], []>} : vector<1x128xf32>, vector<128x96xf32>, vector<1x96xf32> -> vector<1x96xf32>
    %788 = arith.addf %784, %787 : vector<1x96xf32>
    %789 = vector.extract_strided_slice %783 {offsets = [1, 0], sizes = [1, 128], strides = [1, 1]} : vector<8x128xf32> to vector<1x128xf32>
    %c128_497 = arith.constant 128 : index
    %c0_498 = arith.constant 0 : index
    %790 = vector.load %arg4[%c128_497, %c0_498] : memref<1024x96xf32, #tpu.memory_space<vmem>>, vector<128x96xf32>
    %cst_499 = arith.constant dense<0.000000e+00> : vector<1x96xf32>
    %791 = tpu.matmul %789, %790, %cst_499 {dimension_numbers = #tpu.dot_dimension_numbers<[1], [0], [0], [1], [0, 0, 1, 1], [], []>} : vector<1x128xf32>, vector<128x96xf32>, vector<1x96xf32> -> vector<1x96xf32>
    %792 = arith.addf %788, %791 : vector<1x96xf32>
    %793 = vector.extract_strided_slice %783 {offsets = [2, 0], sizes = [1, 128], strides = [1, 1]} : vector<8x128xf32> to vector<1x128xf32>
    %c256_500 = arith.constant 256 : index
    %c0_501 = arith.constant 0 : index
    %794 = vector.load %arg4[%c256_500, %c0_501] : memref<1024x96xf32, #tpu.memory_space<vmem>>, vector<128x96xf32>
    %cst_502 = arith.constant dense<0.000000e+00> : vector<1x96xf32>
    %795 = tpu.matmul %793, %794, %cst_502 {dimension_numbers = #tpu.dot_dimension_numbers<[1], [0], [0], [1], [0, 0, 1, 1], [], []>} : vector<1x128xf32>, vector<128x96xf32>, vector<1x96xf32> -> vector<1x96xf32>
    %796 = arith.addf %792, %795 : vector<1x96xf32>
    %797 = vector.extract_strided_slice %783 {offsets = [3, 0], sizes = [1, 128], strides = [1, 1]} : vector<8x128xf32> to vector<1x128xf32>
    %c384_503 = arith.constant 384 : index
    %c0_504 = arith.constant 0 : index
    %798 = vector.load %arg4[%c384_503, %c0_504] : memref<1024x96xf32, #tpu.memory_space<vmem>>, vector<128x96xf32>
    %cst_505 = arith.constant dense<0.000000e+00> : vector<1x96xf32>
    %799 = tpu.matmul %797, %798, %cst_505 {dimension_numbers = #tpu.dot_dimension_numbers<[1], [0], [0], [1], [0, 0, 1, 1], [], []>} : vector<1x128xf32>, vector<128x96xf32>, vector<1x96xf32> -> vector<1x96xf32>
    %800 = arith.addf %796, %799 : vector<1x96xf32>
    %801 = vector.extract_strided_slice %783 {offsets = [4, 0], sizes = [1, 128], strides = [1, 1]} : vector<8x128xf32> to vector<1x128xf32>
    %c512_506 = arith.constant 512 : index
    %c0_507 = arith.constant 0 : index
    %802 = vector.load %arg4[%c512_506, %c0_507] : memref<1024x96xf32, #tpu.memory_space<vmem>>, vector<128x96xf32>
    %cst_508 = arith.constant dense<0.000000e+00> : vector<1x96xf32>
    %803 = tpu.matmul %801, %802, %cst_508 {dimension_numbers = #tpu.dot_dimension_numbers<[1], [0], [0], [1], [0, 0, 1, 1], [], []>} : vector<1x128xf32>, vector<128x96xf32>, vector<1x96xf32> -> vector<1x96xf32>
    %804 = arith.addf %800, %803 : vector<1x96xf32>
    %805 = vector.extract_strided_slice %783 {offsets = [5, 0], sizes = [1, 128], strides = [1, 1]} : vector<8x128xf32> to vector<1x128xf32>
    %c640_509 = arith.constant 640 : index
    %c0_510 = arith.constant 0 : index
    %806 = vector.load %arg4[%c640_509, %c0_510] : memref<1024x96xf32, #tpu.memory_space<vmem>>, vector<128x96xf32>
    %cst_511 = arith.constant dense<0.000000e+00> : vector<1x96xf32>
    %807 = tpu.matmul %805, %806, %cst_511 {dimension_numbers = #tpu.dot_dimension_numbers<[1], [0], [0], [1], [0, 0, 1, 1], [], []>} : vector<1x128xf32>, vector<128x96xf32>, vector<1x96xf32> -> vector<1x96xf32>
    %808 = arith.addf %804, %807 : vector<1x96xf32>
    %809 = vector.extract_strided_slice %783 {offsets = [6, 0], sizes = [1, 128], strides = [1, 1]} : vector<8x128xf32> to vector<1x128xf32>
    %c768_512 = arith.constant 768 : index
    %c0_513 = arith.constant 0 : index
    %810 = vector.load %arg4[%c768_512, %c0_513] : memref<1024x96xf32, #tpu.memory_space<vmem>>, vector<128x96xf32>
    %cst_514 = arith.constant dense<0.000000e+00> : vector<1x96xf32>
    %811 = tpu.matmul %809, %810, %cst_514 {dimension_numbers = #tpu.dot_dimension_numbers<[1], [0], [0], [1], [0, 0, 1, 1], [], []>} : vector<1x128xf32>, vector<128x96xf32>, vector<1x96xf32> -> vector<1x96xf32>
    %812 = arith.addf %808, %811 : vector<1x96xf32>
    %813 = vector.extract_strided_slice %783 {offsets = [7, 0], sizes = [1, 128], strides = [1, 1]} : vector<8x128xf32> to vector<1x128xf32>
    %c896_515 = arith.constant 896 : index
    %c0_516 = arith.constant 0 : index
    %814 = vector.load %arg4[%c896_515, %c0_516] : memref<1024x96xf32, #tpu.memory_space<vmem>>, vector<128x96xf32>
    %cst_517 = arith.constant dense<0.000000e+00> : vector<1x96xf32>
    %815 = tpu.matmul %813, %814, %cst_517 {dimension_numbers = #tpu.dot_dimension_numbers<[1], [0], [0], [1], [0, 0, 1, 1], [], []>} : vector<1x128xf32>, vector<128x96xf32>, vector<1x96xf32> -> vector<1x96xf32>
    %816 = arith.addf %812, %815 : vector<1x96xf32>
    %c0_518 = arith.constant 0 : index
    %c0_519 = arith.constant 0 : index
    %c0_520 = arith.constant 0 : index
    %817 = vector.load %arg8[%c0_518, %c0_519, %c0_520] : memref<1x1x32xf32, #tpu.memory_space<vmem>>, vector<1x1x32xf32>
    %818 = vector.shape_cast %817 : vector<1x1x32xf32> to vector<1x32xf32>
    %c0_521 = arith.constant 0 : index
    %c0_522 = arith.constant 0 : index
    %819 = vector.load %arg5[%c0_521, %c0_522] : memref<32x96xf32, #tpu.memory_space<vmem>>, vector<32x96xf32>
    %cst_523 = arith.constant dense<0.000000e+00> : vector<1x96xf32>
    %820 = tpu.matmul %818, %819, %cst_523 {dimension_numbers = #tpu.dot_dimension_numbers<[1], [0], [0], [1], [0, 0, 1, 1], [], []>} : vector<1x32xf32>, vector<32x96xf32>, vector<1x96xf32> -> vector<1x96xf32>
    %c5 = arith.constant 5 : index
    %c0_524 = arith.constant 0 : index
    %821 = vector.load %arg7[%c5, %c0_524] : memref<8x128xf32, #tpu.memory_space<vmem>>, vector<1x96xf32>
    %822 = arith.addf %820, %821 : vector<1x96xf32>
    %823 = vector.extract_strided_slice %816 {offsets = [0, 0], sizes = [1, 32], strides = [1, 1]} : vector<1x96xf32> to vector<1x32xf32>
    %824 = vector.extract_strided_slice %822 {offsets = [0, 0], sizes = [1, 32], strides = [1, 1]} : vector<1x96xf32> to vector<1x32xf32>
    %825 = arith.addf %823, %824 : vector<1x32xf32>
    %826 = arith.negf %825 : vector<1x32xf32>
    %827 = math.exp %826 : vector<1x32xf32>
    %cst_525 = arith.constant 1.000000e+00 : f32
    %828 = vector.broadcast %cst_525 : f32 to vector<1x32xf32>
    %829 = arith.addf %828, %827 : vector<1x32xf32>
    %830 = arith.divf %828, %829 : vector<1x32xf32>
    %831 = vector.extract_strided_slice %816 {offsets = [0, 32], sizes = [1, 32], strides = [1, 1]} : vector<1x96xf32> to vector<1x32xf32>
    %832 = vector.extract_strided_slice %822 {offsets = [0, 32], sizes = [1, 32], strides = [1, 1]} : vector<1x96xf32> to vector<1x32xf32>
    %833 = arith.addf %831, %832 : vector<1x32xf32>
    %834 = arith.negf %833 : vector<1x32xf32>
    %835 = math.exp %834 : vector<1x32xf32>
    %cst_526 = arith.constant 1.000000e+00 : f32
    %836 = vector.broadcast %cst_526 : f32 to vector<1x32xf32>
    %837 = arith.addf %836, %835 : vector<1x32xf32>
    %838 = arith.divf %836, %837 : vector<1x32xf32>
    %839 = vector.extract_strided_slice %816 {offsets = [0, 64], sizes = [1, 32], strides = [1, 1]} : vector<1x96xf32> to vector<1x32xf32>
    %840 = vector.extract_strided_slice %822 {offsets = [0, 64], sizes = [1, 32], strides = [1, 1]} : vector<1x96xf32> to vector<1x32xf32>
    %841 = arith.mulf %830, %840 : vector<1x32xf32>
    %842 = arith.addf %839, %841 : vector<1x32xf32>
    %843 = math.tanh %842 : vector<1x32xf32>
    %cst_527 = arith.constant 1.000000e+00 : f32
    %844 = vector.broadcast %cst_527 : f32 to vector<1x32xf32>
    %845 = arith.subf %844, %838 : vector<1x32xf32>
    %846 = arith.mulf %845, %843 : vector<1x32xf32>
    %847 = arith.mulf %838, %818 : vector<1x32xf32>
    %848 = arith.addf %846, %847 : vector<1x32xf32>
    %c0_528 = arith.constant 0 : index
    %c0_529 = arith.constant 0 : index
    %849 = vector.load %arg6[%c0_528, %c0_529] : memref<32x5xf32, #tpu.memory_space<vmem>>, vector<32x5xf32>
    %cst_530 = arith.constant dense<0.000000e+00> : vector<1x5xf32>
    %850 = tpu.matmul %848, %849, %cst_530 {dimension_numbers = #tpu.dot_dimension_numbers<[1], [0], [0], [1], [0, 0, 1, 1], [], []>} : vector<1x32xf32>, vector<32x5xf32>, vector<1x5xf32> -> vector<1x5xf32>
    %c6 = arith.constant 6 : index
    %c0_531 = arith.constant 0 : index
    %851 = vector.load %arg7[%c6, %c0_531] : memref<8x128xf32, #tpu.memory_space<vmem>>, vector<1x5xf32>
    %852 = arith.addf %850, %851 : vector<1x5xf32>
    %853 = tpu.concatenate %848, %852 in 1 : vector<1x32xf32>, vector<1x5xf32> -> vector<1x37xf32>
    %854 = vector.shape_cast %853 : vector<1x37xf32> to vector<1x1x37xf32>
    %c0_532 = arith.constant 0 : index
    %c0_533 = arith.constant 0 : index
    %c0_534 = arith.constant 0 : index
    %855 = vector.load %arg9[%c0_532, %c0_533, %c0_534] : memref<1x1x37xf32, #tpu.memory_space<vmem>>, vector<1x1x37xf32>
    tpu.vector_store %arg9[%c0_532, %c0_533, %c0_534], %854 {strides = array<i32>} : memref<1x1x37xf32, #tpu.memory_space<vmem>>, vector<1x1x37xf32>,
    return
  }
  func.func @transform_0(%arg0: i32) -> (i32, i32) {
    %c0_i32 = arith.constant 0 : i32
    %c0_i32_0 = arith.constant 0 : i32
    return %arg0, %c0_i32 : i32, i32
  }
  func.func @transform_1(%arg0: i32) -> (i32, i32) {
    %c0_i32 = arith.constant 0 : i32
    %c0_i32_0 = arith.constant 0 : i32
    %c0_i32_1 = arith.constant 0 : i32
    return %c0_i32, %c0_i32_0 : i32, i32
  }
  func.func @transform_2(%arg0: i32) -> (i32, i32) {
    %c0_i32 = arith.constant 0 : i32
    %c0_i32_0 = arith.constant 0 : i32
    %c0_i32_1 = arith.constant 0 : i32
    return %c0_i32, %c0_i32_0 : i32, i32
  }
  func.func @transform_3(%arg0: i32) -> (i32, i32) {
    %c0_i32 = arith.constant 0 : i32
    %c0_i32_0 = arith.constant 0 : i32
    %c0_i32_1 = arith.constant 0 : i32
    return %c0_i32, %c0_i32_0 : i32, i32
  }
  func.func @transform_4(%arg0: i32) -> (i32, i32) {
    %c0_i32 = arith.constant 0 : i32
    %c0_i32_0 = arith.constant 0 : i32
    %c0_i32_1 = arith.constant 0 : i32
    return %c0_i32, %c0_i32_0 : i32, i32
  }
  func.func @transform_5(%arg0: i32) -> (i32, i32) {
    %c0_i32 = arith.constant 0 : i32
    %c0_i32_0 = arith.constant 0 : i32
    %c0_i32_1 = arith.constant 0 : i32
    return %c0_i32, %c0_i32_0 : i32, i32
  }
  func.func @transform_6(%arg0: i32) -> (i32, i32) {
    %c0_i32 = arith.constant 0 : i32
    %c0_i32_0 = arith.constant 0 : i32
    %c0_i32_1 = arith.constant 0 : i32
    return %c0_i32, %c0_i32_0 : i32, i32
  }
  func.func @transform_7(%arg0: i32) -> (i32, i32, i32) {
    %c0_i32 = arith.constant 0 : i32
    %c0_i32_0 = arith.constant 0 : i32
    %c0_i32_1 = arith.constant 0 : i32
    return %arg0, %c0_i32, %c0_i32_0 : i32, i32, i32
  }
  func.func @transform_8(%arg0: i32) -> (i32, i32, i32) {
    %c0_i32 = arith.constant 0 : i32
    %c0_i32_0 = arith.constant 0 : i32
    %c0_i32_1 = arith.constant 0 : i32
    return %arg0, %c0_i32, %c0_i32_0 : i32, i32, i32
  }
}

</mosaic_0001>

<llo_original>
// kernel: a3c_forward.1
$region0: #{a3c_forward.1}
  #allocation0 [shape = 'u32[]', space=smem, size = 0x4, offset = 0x4, fixed_abs, tag = 'smem constant byte address 0x4 - core index']
  #allocation1 [shape = 'u32[72,128]{1,0:T(1,128)}', space=vmem, size = 0x9000, scoped, tag = 'internal scratch']
  #allocation2 [shape = 'f32[512,128]{1,0:T(8,128)}', space=vmem, size = 0x40000, scoped, tag = 'scratch operand']
  #allocation3 [shape = 'f32[128,128]{1,0:T(8,128)}', space=vmem, size = 0x10000, scoped, tag = 'scratch operand']
  #allocation4 [shape = 'f32[32,128]{1,0:T(8,128)}', space=vmem, size = 0x4000, scoped, tag = 'scratch operand']
  #allocation5 [shape = 'f32[512,288]{1,0:T(8,128)}', space=vmem, size = 0xc0000, scoped, tag = 'scratch operand']
  %s0 = inlined_call_operand.vmem [shape: f32[4096,36], index: 0, kind: input, shape index: {}]
  %s1 = inlined_call_operand.vmem [shape: f32[36,32], index: 1, kind: input, shape index: {}]
  %s2 = inlined_call_operand.vmem [shape: f32[864,32], index: 2, kind: input, shape index: {}]
  %s3 = inlined_call_operand.vmem [shape: f32[1024,96], index: 3, kind: input, shape index: {}]
  %s4 = inlined_call_operand.vmem [shape: f32[32,96], index: 4, kind: input, shape index: {}]
  %s5 = inlined_call_operand.vmem [shape: f32[32,5], index: 5, kind: input, shape index: {}]
  %s6 = inlined_call_operand.vmem [shape: f32[8,128], index: 6, kind: input, shape index: {}]
  %s7 = inlined_call_operand.vmem [shape: f32[2,1,32], index: 7, kind: input, shape index: {}]
  %s8 = inlined_call_operand.vmem [shape: f32[2,1,37], index: 8, kind: output, shape index: {}]
  %s9 = sld [smem:[#allocation0]]
  $region65: #{a3c_forward.1} parent=0
    _
  %s11 = ssub.s32 1, %s9
  %s12 = scalar_select 0, %s11, %s9
  loop: start=0, step=1, limit=4
  $region2: #{a3c_forward.1} parent=0 // loop_pre_header
    _
  $region3: #{a3c_forward.1} parent=0 // loop_header
    %s14 = sphi 0, %s18
    %p15 = scmp.ge.s32.totalorder %s14, 4
    %s24 = sphi 0, %s26
    %s27 = sphi 0, %s24
    %s28 = sphi 0, %s27
    %s44 = sphi 0, %s28
    %s48 = sphi 0, %s48
    %s50 = sphi 0, %s48
    %s51 = sphi 0, %s50
    %s65 = sphi 0, %s51
    %s69 = sphi 0, %s69
    %s71 = sphi 0, %s69
    %s72 = sphi 0, %s71
    %s86 = sphi 0, %s72
    %s90 = sphi 0, %s90
    %s92 = sphi 0, %s90
    %s93 = sphi 0, %s92
    %s107 = sphi 0, %s93
    %s111 = sphi 0, %s111
    %s113 = sphi 0, %s111
    %s114 = sphi 0, %s113
    %s128 = sphi 0, %s114
    %s132 = sphi 0, %s132
    %s134 = sphi 0, %s132
    %s135 = sphi 0, %s134
    %s149 = sphi 0, %s135
    %s153 = sphi 0, %s153
    %s155 = sphi 0, %s153
    %s156 = sphi 0, %s155
    %s170 = sphi 0, %s156
    %s176 = sphi 0, %s178
    %s179 = sphi 0, %s176
    %s180 = sphi 0, %s179
    %s196 = sphi 0, %s180
    %s202 = sphi 0, %s204
    %s205 = sphi 0, %s202
    %s206 = sphi 0, %s205
    %s222 = sphi 0, %s206
  $region4: #{a3c_forward.1} parent=0 // loop_header_branch
    %17 = sbr.rel (%p15) target = $region8
  $region5: #{a3c_forward.1} parent=0 // loop_body
    %s19 = ssub.s32 %s14, 1
    %s20 = ssub.s32 %s14, 2
    %s21 = sadd.s32 %s14, 1
    %s22 = ssub.s32 %s14, %s21
    %p23 = scmp.eq.s32.totalorder %s22, 0
    %s25 = sadd.s32 %s24, 1
    %s26 = scalar_select %p23, %s24, %s25
    %p29 = pneg %p23
    %p30 = scmp.eq.s32.totalorder %s14, 1
    %p31 = por %p29, %p30
    %p32 = scmp.ne.s32.totalorder %s24, %s27
    %p33 = scmp.eq.s32.totalorder %s14, 0
    %p34 = por %p32, %p33
    %p35 = scmp.ne.s32.totalorder %s24, %s27
    %p36 = scmp.eq.s32.totalorder %s19, 1
    %p37 = por %p35, %p36
    %p38 = scmp.ne.s32.totalorder %s27, %s28
    %p39 = scmp.eq.s32.totalorder %s19, 0
    %p40 = por %p38, %p39
    %p41 = scmp.ne.s32.totalorder %s27, %s28
    %p42 = scmp.eq.s32.totalorder %s20, 1
    %p43 = por %p41, %p42
    %p45 = scmp.ne.s32.totalorder %s28, %s44
    %p46 = scmp.eq.s32.totalorder %s20, 0
    %p47 = por %p45, %p46
    %s49 = sadd.s32 %s48, 1
    %p52 = scmp.eq.s32.totalorder %s14, 1
    %p53 = scmp.ne.s32.totalorder %s48, %s50
    %p54 = scmp.eq.s32.totalorder %s14, 0
    %p55 = por %p53, %p54
    %p56 = scmp.ne.s32.totalorder %s48, %s50
    %p57 = scmp.eq.s32.totalorder %s19, 1
    %p58 = por %p56, %p57
    %p59 = scmp.ne.s32.totalorder %s50, %s51
    %p60 = scmp.eq.s32.totalorder %s19, 0
    %p61 = por %p59, %p60
    %p62 = scmp.ne.s32.totalorder %s50, %s51
    %p63 = scmp.eq.s32.totalorder %s20, 1
    %p64 = por %p62, %p63
    %p66 = scmp.ne.s32.totalorder %s51, %s65
    %p67 = scmp.eq.s32.totalorder %s20, 0
    %p68 = por %p66, %p67
    %s70 = sadd.s32 %s69, 1
    %p73 = scmp.eq.s32.totalorder %s14, 1
    %p74 = scmp.ne.s32.totalorder %s69, %s71
    %p75 = scmp.eq.s32.totalorder %s14, 0
    %p76 = por %p74, %p75
    %p77 = scmp.ne.s32.totalorder %s69, %s71
    %p78 = scmp.eq.s32.totalorder %s19, 1
    %p79 = por %p77, %p78
    %p80 = scmp.ne.s32.totalorder %s71, %s72
    %p81 = scmp.eq.s32.totalorder %s19, 0
    %p82 = por %p80, %p81
    %p83 = scmp.ne.s32.totalorder %s71, %s72
    %p84 = scmp.eq.s32.totalorder %s20, 1
    %p85 = por %p83, %p84
    %p87 = scmp.ne.s32.totalorder %s72, %s86
    %p88 = scmp.eq.s32.totalorder %s20, 0
    %p89 = por %p87, %p88
    %s91 = sadd.s32 %s90, 1
    %p94 = scmp.eq.s32.totalorder %s14, 1
    %p95 = scmp.ne.s32.totalorder %s90, %s92
    %p96 = scmp.eq.s32.totalorder %s14, 0
    %p97 = por %p95, %p96
    %p98 = scmp.ne.s32.totalorder %s90, %s92
    %p99 = scmp.eq.s32.totalorder %s19, 1
    %p100 = por %p98, %p99
    %p101 = scmp.ne.s32.totalorder %s92, %s93
    %p102 = scmp.eq.s32.totalorder %s19, 0
    %p103 = por %p101, %p102
    %p104 = scmp.ne.s32.totalorder %s92, %s93
    %p105 = scmp.eq.s32.totalorder %s20, 1
    %p106 = por %p104, %p105
    %p108 = scmp.ne.s32.totalorder %s93, %s107
    %p109 = scmp.eq.s32.totalorder %s20, 0
    %p110 = por %p108, %p109
    %s112 = sadd.s32 %s111, 1
    %p115 = scmp.eq.s32.totalorder %s14, 1
    %p116 = scmp.ne.s32.totalorder %s111, %s113
    %p117 = scmp.eq.s32.totalorder %s14, 0
    %p118 = por %p116, %p117
    %p119 = scmp.ne.s32.totalorder %s111, %s113
    %p120 = scmp.eq.s32.totalorder %s19, 1
    %p121 = por %p119, %p120
    %p122 = scmp.ne.s32.totalorder %s113, %s114
    %p123 = scmp.eq.s32.totalorder %s19, 0
    %p124 = por %p122, %p123
    %p125 = scmp.ne.s32.totalorder %s113, %s114
    %p126 = scmp.eq.s32.totalorder %s20, 1
    %p127 = por %p125, %p126
    %p129 = scmp.ne.s32.totalorder %s114, %s128
    %p130 = scmp.eq.s32.totalorder %s20, 0
    %p131 = por %p129, %p130
    %s133 = sadd.s32 %s132, 1
    %p136 = scmp.eq.s32.totalorder %s14, 1
    %p137 = scmp.ne.s32.totalorder %s132, %s134
    %p138 = scmp.eq.s32.totalorder %s14, 0
    %p139 = por %p137, %p138
    %p140 = scmp.ne.s32.totalorder %s132, %s134
    %p141 = scmp.eq.s32.totalorder %s19, 1
    %p142 = por %p140, %p141
    %p143 = scmp.ne.s32.totalorder %s134, %s135
    %p144 = scmp.eq.s32.totalorder %s19, 0
    %p145 = por %p143, %p144
    %p146 = scmp.ne.s32.totalorder %s134, %s135
    %p147 = scmp.eq.s32.totalorder %s20, 1
    %p148 = por %p146, %p147
    %p150 = scmp.ne.s32.totalorder %s135, %s149
    %p151 = scmp.eq.s32.totalorder %s20, 0
    %p152 = por %p150, %p151
    %s154 = sadd.s32 %s153, 1
    %p157 = scmp.eq.s32.totalorder %s14, 1
    %p158 = scmp.ne.s32.totalorder %s153, %s155
    %p159 = scmp.eq.s32.totalorder %s14, 0
    %p160 = por %p158, %p159
    %p161 = scmp.ne.s32.totalorder %s153, %s155
    %p162 = scmp.eq.s32.totalorder %s19, 1
    %p163 = por %p161, %p162
    %p164 = scmp.ne.s32.totalorder %s155, %s156
    %p165 = scmp.eq.s32.totalorder %s19, 0
    %p166 = por %p164, %p165
    %p167 = scmp.ne.s32.totalorder %s155, %s156
    %p168 = scmp.eq.s32.totalorder %s20, 1
    %p169 = por %p167, %p168
    %p171 = scmp.ne.s32.totalorder %s156, %s170
    %p172 = scmp.eq.s32.totalorder %s20, 0
    %p173 = por %p171, %p172
    %s174 = ssub.s32 %s14, %s21
    %p175 = scmp.eq.s32.totalorder %s174, 0
    %s177 = sadd.s32 %s176, 1
    %s178 = scalar_select %p175, %s176, %s177
    %p181 = pneg %p175
    %p182 = scmp.eq.s32.totalorder %s14, 1
    %p183 = por %p181, %p182
    %p184 = scmp.ne.s32.totalorder %s176, %s179
    %p185 = scmp.eq.s32.totalorder %s14, 0
    %p186 = por %p184, %p185
    %p187 = scmp.ne.s32.totalorder %s176, %s179
    %p188 = scmp.eq.s32.totalorder %s19, 1
    %p189 = por %p187, %p188
    %p190 = scmp.ne.s32.totalorder %s179, %s180
    %p191 = scmp.eq.s32.totalorder %s19, 0
    %p192 = por %p190, %p191
    %p193 = scmp.ne.s32.totalorder %s179, %s180
    %p194 = scmp.eq.s32.totalorder %s20, 1
    %p195 = por %p193, %p194
    %p197 = scmp.ne.s32.totalorder %s180, %s196
    %p198 = scmp.eq.s32.totalorder %s20, 0
    %p199 = por %p197, %p198
    %s200 = ssub.s32 %s14, %s21
    %p201 = scmp.eq.s32.totalorder %s200, 0
    %s203 = sadd.s32 %s202, 1
    %s204 = scalar_select %p201, %s202, %s203
    %p207 = pneg %p201
    %p208 = scmp.eq.s32.totalorder %s14, 1
    %p209 = por %p207, %p208
    %p210 = scmp.ne.s32.totalorder %s202, %s205
    %p211 = scmp.eq.s32.totalorder %s14, 0
    %p212 = por %p210, %p211
    %p213 = scmp.ne.s32.totalorder %s202, %s205
    %p214 = scmp.eq.s32.totalorder %s19, 1
    %p215 = por %p213, %p214
    %p216 = scmp.ne.s32.totalorder %s205, %s206
    %p217 = scmp.eq.s32.totalorder %s19, 0
    %p218 = por %p216, %p217
    %p219 = scmp.ne.s32.totalorder %s205, %s206
    %p220 = scmp.eq.s32.totalorder %s20, 1
    %p221 = por %p219, %p220
    %p223 = scmp.ne.s32.totalorder %s206, %s222
    %p224 = scmp.eq.s32.totalorder %s20, 0
    %p225 = por %p223, %p224
    %p226 = scmp.le.s32.totalorder 1, %s14
    %p227 = scmp.lt.s32.totalorder %s14, 3
    %p228 = pnand %p226, %p227
    %p229 = pneg %p228
    // Predicated region
    $region9: #{a3c_forward.1} parent=5 // pred_check
      _
    $region10: #{a3c_forward.1} parent=5 // pred_check_branch
      %231 = sbr.rel (%p228) target = $region12
    $region11: #{a3c_forward.1} parent=5 // pred_region
      %s232 = ssub.s32 %s14, 1
      // Predicated region
      $region13: #{a3c_forward.1} parent=11 // pred_check
        %p233 = pneg %p61
      $region14: #{a3c_forward.1} parent=11 // pred_check_branch
        %235 = sbr.rel (%p233) target = $region16
      $region15: #{a3c_forward.1} parent=11 // pred_region
        _
      $region16: #{a3c_forward.1} parent=11 // pred_fallthru
        _
      // Predicated region
      $region17: #{a3c_forward.1} parent=11 // pred_check
        %p236 = pneg %p82
      $region18: #{a3c_forward.1} parent=11 // pred_check_branch
        %238 = sbr.rel (%p236) target = $region20
      $region19: #{a3c_forward.1} parent=11 // pred_region
        _
      $region20: #{a3c_forward.1} parent=11 // pred_fallthru
        _
      // Predicated region
      $region21: #{a3c_forward.1} parent=11 // pred_check
        %p239 = pneg %p103
      $region22: #{a3c_forward.1} parent=11 // pred_check_branch
        %241 = sbr.rel (%p239) target = $region24
      $region23: #{a3c_forward.1} parent=11 // pred_region
        _
      $region24: #{a3c_forward.1} parent=11 // pred_fallthru
        _
      // Predicated region
      $region25: #{a3c_forward.1} parent=11 // pred_check
        %p242 = pneg %p124
      $region26: #{a3c_forward.1} parent=11 // pred_check_branch
        %244 = sbr.rel (%p242) target = $region28
      $region27: #{a3c_forward.1} parent=11 // pred_region
        _
      $region28: #{a3c_forward.1} parent=11 // pred_fallthru
        _
      // Predicated region
      $region29: #{a3c_forward.1} parent=11 // pred_check
        %p245 = pneg %p145
      $region30: #{a3c_forward.1} parent=11 // pred_check_branch
        %247 = sbr.rel (%p245) target = $region32
      $region31: #{a3c_forward.1} parent=11 // pred_region
        _
      $region32: #{a3c_forward.1} parent=11 // pred_fallthru
        _
      // Predicated region
      $region33: #{a3c_forward.1} parent=11 // pred_check
        %p248 = pneg %p166
      $region34: #{a3c_forward.1} parent=11 // pred_check_branch
        %250 = sbr.rel (%p248) target = $region36
      $region35: #{a3c_forward.1} parent=11 // pred_region
        _
      $region36: #{a3c_forward.1} parent=11 // pred_fallthru
        _
    $region12: #{a3c_forward.1} parent=5 // pred_fallthru
      _
    %p251 = scmp.lt.s32.totalorder %s14, 2
    // Predicated region
    $region37: #{a3c_forward.1} parent=5 // pred_check
      %p252 = pneg %p251
    $region38: #{a3c_forward.1} parent=5 // pred_check_branch
      %254 = sbr.rel (%p252) target = $region40
    $region39: #{a3c_forward.1} parent=5 // pred_region
      // Predicated region
      $region41: #{a3c_forward.1} parent=39 // pred_check
        %p255 = pneg %p34
      $region42: #{a3c_forward.1} parent=39 // pred_check_branch
        %257 = sbr.rel (%p255) target = $region44
      $region43: #{a3c_forward.1} parent=39 // pred_region
        %s258 = smul.u32 256, %s14
        %p259 = scmp.lt.s32.totalorder %s258, 511
        %s260 = scalar_select %p259, %s258, 511
        %s261 = smul.addr %s260, 8
        %s262 = scalar_lea.vmem %s0, %s261
        %s263 = smul.u32 256, %s14
      $region44: #{a3c_forward.1} parent=39 // pred_fallthru
        _
      // Predicated region
      $region45: #{a3c_forward.1} parent=39 // pred_check
        %p264 = pneg %p186
      $region46: #{a3c_forward.1} parent=39 // pred_check_branch
        %266 = sbr.rel (%p264) target = $region48
      $region47: #{a3c_forward.1} parent=39 // pred_region
        %p267 = scmp.lt.s32.totalorder %s14, 1
        %s268 = scalar_select %p267, %s14, 1
        %s269 = scalar_lea.vmem %s7, %s268
      $region48: #{a3c_forward.1} parent=39 // pred_fallthru
        _
    $region40: #{a3c_forward.1} parent=5 // pred_fallthru
      _
    %p270 = scmp.le.s32.totalorder 1, %s14
    %p271 = scmp.lt.s32.totalorder %s14, 3
    %p272 = pnand %p270, %p271
    %p273 = pneg %p272
    // Predicated region
    $region49: #{a3c_forward.1} parent=5 // pred_check
      _
    $region50: #{a3c_forward.1} parent=5 // pred_check_branch
      %275 = sbr.rel (%p272) target = $region52
    $region51: #{a3c_forward.1} parent=5 // pred_region
      %s276 = ssub.s32 %s14, 1
      %s277 = smul.u32 256, %s19
      %p278 = scmp.lt.s32.totalorder %s277, 511
      %s279 = scalar_select %p278, %s277, 511
      %s280 = smul.addr %s279, 8
      %s281 = scalar_lea.vmem %s0, %s280
      %p282 = pneg %p40
      %p283 = pneg %p37
      %p284 = pneg %p61
      %p285 = pneg %p58
      %p286 = pneg %p82
      %p287 = pneg %p79
      %p288 = pneg %p103
      %p289 = pneg %p100
      %p290 = pneg %p124
      %p291 = pneg %p121
      %p292 = pneg %p145
      %p293 = pneg %p142
      %p294 = pneg %p166
      %p295 = pneg %p163
      %p296 = scmp.lt.s32.totalorder %s19, 1
      %s297 = scalar_select %p296, %s19, 1
      %s298 = scalar_lea.vmem %s7, %s297
      %p299 = pneg %p192
      %p300 = pneg %p189
      %p301 = pneg %p218
      %p302 = pneg %p215
      %p303 = scmp.lt.s32.totalorder %s19, 1
      %s304 = scalar_select %p303, %s19, 1
      %s305 = scalar_lea.vmem %s8, %s304
      %s306 = smul.u32 256, %s19
      %p307 = scmp.lt.s32.totalorder %s306, 511
      %s308 = scalar_select %p307, %s306, 511
      %s309 = smul.addr %s308, 8
      %s310 = scalar_lea.vmem %s0, %s309
      %s311 = smul.u32 256, %s19
      %p312 = scmp.lt.s32.totalorder %s19, 1
      %s313 = scalar_select %p312, %s19, 1
      %s314 = scalar_lea.vmem %s7, %s313
      %p315 = scmp.lt.s32.totalorder %s19, 1
      %s316 = scalar_select %p315, %s19, 1
      %s317 = scalar_lea.vmem %s8, %s316
      %v318 = vld [vmem:[%s6] sm:$0x1]
      %v319 = vld [vmem:[%s310] sm:$0xff]
      %v320 = vld [vmem:[%s310 + $0x8] sm:$0xff]
      %v321 = vld [vmem:[%s310 + $0x10] sm:$0xff]
      %v322 = vld [vmem:[%s310 + $0x18] sm:$0xff]
      %v323 = vld [vmem:[%s310 + $0x20] sm:$0xff]
      %v324 = vld [vmem:[%s310 + $0x28] sm:$0xff]
      %v325 = vld [vmem:[%s310 + $0x30] sm:$0xff]
      %v326 = vld [vmem:[%s310 + $0x38] sm:$0xff]
      %v327 = vld [vmem:[%s310 + $0x40] sm:$0xff]
      %v328 = vld [vmem:[%s310 + $0x48] sm:$0xff]
      %v329 = vld [vmem:[%s310 + $0x50] sm:$0xff]
      %v330 = vld [vmem:[%s310 + $0x58] sm:$0xff]
      %v331 = vld [vmem:[%s310 + $0x60] sm:$0xff]
      %v332 = vld [vmem:[%s310 + $0x68] sm:$0xff]
      %v333 = vld [vmem:[%s310 + $0x70] sm:$0xff]
      %v334 = vld [vmem:[%s310 + $0x78] sm:$0xff]
      %v335 = vld [vmem:[%s1] sm:$0xff]
      %v336 = vld [vmem:[%s1 + $0x8] sm:$0xff]
      %v337 = vld [vmem:[%s1 + $0x10] sm:$0xff]
      %v338 = vld [vmem:[%s1 + $0x18] sm:$0xff]
      %v339 = vld [vmem:[%s1 + $0x20] sm:$0xf]
      %v340 = vperm.slane %v318, 0
      %vm341 = vcmask 293888
      %v343 = vsel %vm341, %v319, 0
      %v346 = vsel %vm341, %v320, 0
      %v349 = vsel %vm341, %v321, 0
      %v352 = vsel %vm341, %v322, 0
      %v355 = vsel %vm341, %v323, 0
      %v358 = vsel %vm341, %v324, 0
      %v361 = vsel %vm341, %v325, 0
      %v364 = vsel %vm341, %v326, 0
      %v367 = vsel %vm341, %v327, 0
      %v370 = vsel %vm341, %v328, 0
      %v373 = vsel %vm341, %v329, 0
      %v376 = vsel %vm341, %v330, 0
      %v379 = vsel %vm341, %v331, 0
      %v382 = vsel %vm341, %v332, 0
      %v385 = vsel %vm341, %v333, 0
      %v388 = vsel %vm341, %v334, 0
      %vm390 = vcmask 1043456
      %v392 = vsel %vm390, %v339, 0
      %394 = vmatpush.msra.mxu0 0.0
      %395 = vmatpush.msra.mxu0 0.0
      %396 = vmatpush.msra.mxu0 0.0
      %397 = vmatpush.msra.mxu0 0.0
      %398 = vmatpush.msra.mxu0 0.0
      %399 = vmatpush.msra.mxu0 0.0
      %400 = vmatpush.msra.mxu0 0.0
      %401 = vmatpush.msra.mxu0 0.0
      %402 = vmatpush.msra.mxu0 0.0
      %403 = vmatpush.msra.mxu0 0.0
      %404 = vmatpush.msra.mxu0 0.0
      %405 = vmatpush.msra.mxu0 %v392
      %406 = vmatpush.msra.mxu0 %v338
      %407 = vmatpush.msra.mxu0 %v337
      %408 = vmatpush.msra.mxu0 %v336
      %409 = vmatpush.msra.mxu0 %v335
      %410 = vmatmul.f32.gmra.mxu0 %v343
      %v411 = vpop.f32.mrf.mxu0
      %v412 = vadd.f32 %v340, %v411
      %413 = vmatmul.f32.gmra.mxu0 %v346
      %v414 = vpop.f32.mrf.mxu0
      %v415 = vadd.f32 %v340, %v414
      %416 = vmatmul.f32.gmra.mxu0 %v349
      %v417 = vpop.f32.mrf.mxu0
      %v418 = vadd.f32 %v340, %v417
      %419 = vmatmul.f32.gmra.mxu0 %v352
      %v420 = vpop.f32.mrf.mxu0
      %v421 = vadd.f32 %v340, %v420
      %422 = vmatmul.f32.gmra.mxu0 %v355
      %v423 = vpop.f32.mrf.mxu0
      %v424 = vadd.f32 %v340, %v423
      %425 = vmatmul.f32.gmra.mxu0 %v358
      %v426 = vpop.f32.mrf.mxu0
      %v427 = vadd.f32 %v340, %v426
      %428 = vmatmul.f32.gmra.mxu0 %v361
      %v429 = vpop.f32.mrf.mxu0
      %v430 = vadd.f32 %v340, %v429
      %431 = vmatmul.f32.gmra.mxu0 %v364
      %v432 = vpop.f32.mrf.mxu0
      %v433 = vadd.f32 %v340, %v432
      %434 = vmatmul.f32.gmra.mxu0 %v367
      %v435 = vpop.f32.mrf.mxu0
      %v436 = vadd.f32 %v340, %v435
      %437 = vmatmul.f32.gmra.mxu0 %v370
      %v438 = vpop.f32.mrf.mxu0
      %v439 = vadd.f32 %v340, %v438
      %440 = vmatmul.f32.gmra.mxu0 %v373
      %v441 = vpop.f32.mrf.mxu0
      %v442 = vadd.f32 %v340, %v441
      %443 = vmatmul.f32.gmra.mxu0 %v376
      %v444 = vpop.f32.mrf.mxu0
      %v445 = vadd.f32 %v340, %v444
      %446 = vmatmul.f32.gmra.mxu0 %v379
      %v447 = vpop.f32.mrf.mxu0
      %v448 = vadd.f32 %v340, %v447
      %449 = vmatmul.f32.gmra.mxu0 %v382
      %v450 = vpop.f32.mrf.mxu0
      %v451 = vadd.f32 %v340, %v450
      %452 = vmatmul.f32.gmra.mxu0 %v385
      %v453 = vpop.f32.mrf.mxu0
      %v454 = vadd.f32 %v340, %v453
      %455 = vmatmul.f32.gmra.mxu0 %v388
      %v456 = vpop.f32.mrf.mxu0
      %v457 = vadd.f32 %v340, %v456
      %458 = vdwg.mxu0
      %v459 = vmax.f32 %v412, 0.0
      %v460 = vmax.f32 %v415, 0.0
      %v461 = vmax.f32 %v418, 0.0
      %v462 = vmax.f32 %v421, 0.0
      %v463 = vmax.f32 %v424, 0.0
      %v464 = vmax.f32 %v427, 0.0
      %v465 = vmax.f32 %v430, 0.0
      %v466 = vmax.f32 %v433, 0.0
      %v467 = vmax.f32 %v436, 0.0
      %v468 = vmax.f32 %v439, 0.0
      %v469 = vmax.f32 %v442, 0.0
      %v470 = vmax.f32 %v445, 0.0
      %v471 = vmax.f32 %v448, 0.0
      %v472 = vmax.f32 %v451, 0.0
      %v473 = vmax.f32 %v454, 0.0
      %v474 = vmax.f32 %v457, 0.0
      %479 = vrot.lane.b32.xlu0 %v463, 32
      %v480 = vpop.permute.xlu0 %479
      %481 = vrot.lane.b32.xlu0 %v464, 32
      %v482 = vpop.permute.xlu0 %481
      %483 = vrot.lane.b32.xlu0 %v465, 32
      %v484 = vpop.permute.xlu0 %483
      %485 = vrot.lane.b32.xlu0 %v466, 32
      %v486 = vpop.permute.xlu0 %485
      %495 = vrot.lane.b32.xlu0 %v467, 64
      %v496 = vpop.permute.xlu0 %495
      %497 = vrot.lane.b32.xlu0 %v468, 64
      %v498 = vpop.permute.xlu0 %497
      %499 = vrot.lane.b32.xlu0 %v469, 64
      %v500 = vpop.permute.xlu0 %499
      %501 = vrot.lane.b32.xlu0 %v470, 64
      %v502 = vpop.permute.xlu0 %501
      %511 = vrot.lane.b32.xlu0 %v471, 96
      %v512 = vpop.permute.xlu0 %511
      %513 = vrot.lane.b32.xlu0 %v472, 96
      %v514 = vpop.permute.xlu0 %513
      %515 = vrot.lane.b32.xlu0 %v473, 96
      %v516 = vpop.permute.xlu0 %515
      %517 = vrot.lane.b32.xlu0 %v474, 96
      %v518 = vpop.permute.xlu0 %517
      %vm523 = vcmask 261120
      %v524 = vsel %vm523, %v459, %v480
      %v525 = vsel %vm523, %v460, %v482
      %v526 = vsel %vm523, %v461, %v484
      %v527 = vsel %vm523, %v462, %v486
      %vm528 = vcmask 523264
      %v529 = vsel %vm528, %v524, %v496
      %v530 = vsel %vm528, %v525, %v498
      %v531 = vsel %vm528, %v526, %v500
      %v532 = vsel %vm528, %v527, %v502
      %vm533 = vcmask 785408
      %v534 = vsel %vm533, %v529, %v512
      %v535 = vsel %vm533, %v530, %v514
      %v536 = vsel %vm533, %v531, %v516
      %v537 = vsel %vm533, %v532, %v518
      %538 = vst [vmem:[#allocation2] sm:$0xff] %v534
      %539 = vst [vmem:[#allocation2 + $0x8] sm:$0xff] %v535
      %540 = vst [vmem:[#allocation2 + $0x10] sm:$0xff] %v536
      %541 = vst [vmem:[#allocation2 + $0x18] sm:$0xff] %v537
      %v542 = vld [vmem:[%s310 + $0x80] sm:$0xff]
      %v543 = vld [vmem:[%s310 + $0x88] sm:$0xff]
      %v544 = vld [vmem:[%s310 + $0x90] sm:$0xff]
      %v545 = vld [vmem:[%s310 + $0x98] sm:$0xff]
      %v546 = vld [vmem:[%s310 + $0xa0] sm:$0xff]
      %v547 = vld [vmem:[%s310 + $0xa8] sm:$0xff]
      %v548 = vld [vmem:[%s310 + $0xb0] sm:$0xff]
      %v549 = vld [vmem:[%s310 + $0xb8] sm:$0xff]
      %v550 = vld [vmem:[%s310 + $0xc0] sm:$0xff]
      %v551 = vld [vmem:[%s310 + $0xc8] sm:$0xff]
      %v552 = vld [vmem:[%s310 + $0xd0] sm:$0xff]
      %v553 = vld [vmem:[%s310 + $0xd8] sm:$0xff]
      %v554 = vld [vmem:[%s310 + $0xe0] sm:$0xff]
      %v555 = vld [vmem:[%s310 + $0xe8] sm:$0xff]
      %v556 = vld [vmem:[%s310 + $0xf0] sm:$0xff]
      %v557 = vld [vmem:[%s310 + $0xf8] sm:$0xff]
      %v558 = vld [vmem:[%s1] sm:$0xff]
      %v559 = vld [vmem:[%s1 + $0x8] sm:$0xff]
      %v560 = vld [vmem:[%s1 + $0x10] sm:$0xff]
      %v561 = vld [vmem:[%s1 + $0x18] sm:$0xff]
      %v562 = vld [vmem:[%s1 + $0x20] sm:$0xf]
      %v564 = vsel %vm341, %v542, 0
      %v567 = vsel %vm341, %v543, 0
      %v570 = vsel %vm341, %v544, 0
      %v573 = vsel %vm341, %v545, 0
      %v576 = vsel %vm341, %v546, 0
      %v579 = vsel %vm341, %v547, 0
      %v582 = vsel %vm341, %v548, 0
      %v585 = vsel %vm341, %v549, 0
      %v588 = vsel %vm341, %v550, 0
      %v591 = vsel %vm341, %v551, 0
      %v594 = vsel %vm341, %v552, 0
      %v597 = vsel %vm341, %v553, 0
      %v600 = vsel %vm341, %v554, 0
      %v603 = vsel %vm341, %v555, 0
      %v606 = vsel %vm341, %v556, 0
      %v609 = vsel %vm341, %v557, 0
      %v612 = vsel %vm390, %v562, 0
      %614 = vmatpush.msra.mxu0 0.0
      %615 = vmatpush.msra.mxu0 0.0
      %616 = vmatpush.msra.mxu0 0.0
      %617 = vmatpush.msra.mxu0 0.0
      %618 = vmatpush.msra.mxu0 0.0
      %619 = vmatpush.msra.mxu0 0.0
      %620 = vmatpush.msra.mxu0 0.0
      %621 = vmatpush.msra.mxu0 0.0
      %622 = vmatpush.msra.mxu0 0.0
      %623 = vmatpush.msra.mxu0 0.0
      %624 = vmatpush.msra.mxu0 0.0
      %625 = vmatpush.msra.mxu0 %v612
      %626 = vmatpush.msra.mxu0 %v561
      %627 = vmatpush.msra.mxu0 %v560
      %628 = vmatpush.msra.mxu0 %v559
      %629 = vmatpush.msra.mxu0 %v558
      %630 = vmatmul.f32.gmra.mxu0 %v564
      %v631 = vpop.f32.mrf.mxu0
      %v632 = vadd.f32 %v340, %v631
      %633 = vmatmul.f32.gmra.mxu0 %v567
      %v634 = vpop.f32.mrf.mxu0
      %v635 = vadd.f32 %v340, %v634
      %636 = vmatmul.f32.gmra.mxu0 %v570
      %v637 = vpop.f32.mrf.mxu0
      %v638 = vadd.f32 %v340, %v637
      %639 = vmatmul.f32.gmra.mxu0 %v573
      %v640 = vpop.f32.mrf.mxu0
      %v641 = vadd.f32 %v340, %v640
      %642 = vmatmul.f32.gmra.mxu0 %v576
      %v643 = vpop.f32.mrf.mxu0
      %v644 = vadd.f32 %v340, %v643
      %645 = vmatmul.f32.gmra.mxu0 %v579
      %v646 = vpop.f32.mrf.mxu0
      %v647 = vadd.f32 %v340, %v646
      %648 = vmatmul.f32.gmra.mxu0 %v582
      %v649 = vpop.f32.mrf.mxu0
      %v650 = vadd.f32 %v340, %v649
      %651 = vmatmul.f32.gmra.mxu0 %v585
      %v652 = vpop.f32.mrf.mxu0
      %v653 = vadd.f32 %v340, %v652
      %654 = vmatmul.f32.gmra.mxu0 %v588
      %v655 = vpop.f32.mrf.mxu0
      %v656 = vadd.f32 %v340, %v655
      %657 = vmatmul.f32.gmra.mxu0 %v591
      %v658 = vpop.f32.mrf.mxu0
      %v659 = vadd.f32 %v340, %v658
      %660 = vmatmul.f32.gmra.mxu0 %v594
      %v661 = vpop.f32.mrf.mxu0
      %v662 = vadd.f32 %v340, %v661
      %663 = vmatmul.f32.gmra.mxu0 %v597
      %v664 = vpop.f32.mrf.mxu0
      %v665 = vadd.f32 %v340, %v664
      %666 = vmatmul.f32.gmra.mxu0 %v600
      %v667 = vpop.f32.mrf.mxu0
      %v668 = vadd.f32 %v340, %v667
      %669 = vmatmul.f32.gmra.mxu0 %v603
      %v670 = vpop.f32.mrf.mxu0
      %v671 = vadd.f32 %v340, %v670
      %672 = vmatmul.f32.gmra.mxu0 %v606
      %v673 = vpop.f32.mrf.mxu0
      %v674 = vadd.f32 %v340, %v673
      %675 = vmatmul.f32.gmra.mxu0 %v609
      %v676 = vpop.f32.mrf.mxu0
      %v677 = vadd.f32 %v340, %v676
      %678 = vdwg.mxu0
      %v679 = vmax.f32 %v632, 0.0
      %v680 = vmax.f32 %v635, 0.0
      %v681 = vmax.f32 %v638, 0.0
      %v682 = vmax.f32 %v641, 0.0
      %v683 = vmax.f32 %v644, 0.0
      %v684 = vmax.f32 %v647, 0.0
      %v685 = vmax.f32 %v650, 0.0
      %v686 = vmax.f32 %v653, 0.0
      %v687 = vmax.f32 %v656, 0.0
      %v688 = vmax.f32 %v659, 0.0
      %v689 = vmax.f32 %v662, 0.0
      %v690 = vmax.f32 %v665, 0.0
      %v691 = vmax.f32 %v668, 0.0
      %v692 = vmax.f32 %v671, 0.0
      %v693 = vmax.f32 %v674, 0.0
      %v694 = vmax.f32 %v677, 0.0
      %699 = vrot.lane.b32.xlu0 %v683, 32
      %v700 = vpop.permute.xlu0 %699
      %701 = vrot.lane.b32.xlu0 %v684, 32
      %v702 = vpop.permute.xlu0 %701
      %703 = vrot.lane.b32.xlu0 %v685, 32
      %v704 = vpop.permute.xlu0 %703
      %705 = vrot.lane.b32.xlu0 %v686, 32
      %v706 = vpop.permute.xlu0 %705
      %715 = vrot.lane.b32.xlu0 %v687, 64
      %v716 = vpop.permute.xlu0 %715
      %717 = vrot.lane.b32.xlu0 %v688, 64
      %v718 = vpop.permute.xlu0 %717
      %719 = vrot.lane.b32.xlu0 %v689, 64
      %v720 = vpop.permute.xlu0 %719
      %721 = vrot.lane.b32.xlu0 %v690, 64
      %v722 = vpop.permute.xlu0 %721
      %731 = vrot.lane.b32.xlu0 %v691, 96
      %v732 = vpop.permute.xlu0 %731
      %733 = vrot.lane.b32.xlu0 %v692, 96
      %v734 = vpop.permute.xlu0 %733
      %735 = vrot.lane.b32.xlu0 %v693, 96
      %v736 = vpop.permute.xlu0 %735
      %737 = vrot.lane.b32.xlu0 %v694, 96
      %v738 = vpop.permute.xlu0 %737
      %v743 = vsel %vm523, %v679, %v700
      %v744 = vsel %vm523, %v680, %v702
      %v745 = vsel %vm523, %v681, %v704
      %v746 = vsel %vm523, %v682, %v706
      %v747 = vsel %vm528, %v743, %v716
      %v748 = vsel %vm528, %v744, %v718
      %v749 = vsel %vm528, %v745, %v720
      %v750 = vsel %vm528, %v746, %v722
      %v751 = vsel %vm533, %v747, %v732
      %v752 = vsel %vm533, %v748, %v734
      %v753 = vsel %vm533, %v749, %v736
      %v754 = vsel %vm533, %v750, %v738
      %755 = vst [vmem:[#allocation2 + $0x20] sm:$0xff] %v751
      %756 = vst [vmem:[#allocation2 + $0x28] sm:$0xff] %v752
      %757 = vst [vmem:[#allocation2 + $0x30] sm:$0xff] %v753
      %758 = vst [vmem:[#allocation2 + $0x38] sm:$0xff] %v754
      %v759 = vld [vmem:[%s310 + $0x100] sm:$0xff]
      %v760 = vld [vmem:[%s310 + $0x108] sm:$0xff]
      %v761 = vld [vmem:[%s310 + $0x110] sm:$0xff]
      %v762 = vld [vmem:[%s310 + $0x118] sm:$0xff]
      %v763 = vld [vmem:[%s310 + $0x120] sm:$0xff]
      %v764 = vld [vmem:[%s310 + $0x128] sm:$0xff]
      %v765 = vld [vmem:[%s310 + $0x130] sm:$0xff]
      %v766 = vld [vmem:[%s310 + $0x138] sm:$0xff]
      %v767 = vld [vmem:[%s310 + $0x140] sm:$0xff]
      %v768 = vld [vmem:[%s310 + $0x148] sm:$0xff]
      %v769 = vld [vmem:[%s310 + $0x150] sm:$0xff]
      %v770 = vld [vmem:[%s310 + $0x158] sm:$0xff]
      %v771 = vld [vmem:[%s310 + $0x160] sm:$0xff]
      %v772 = vld [vmem:[%s310 + $0x168] sm:$0xff]
      %v773 = vld [vmem:[%s310 + $0x170] sm:$0xff]
      %v774 = vld [vmem:[%s310 + $0x178] sm:$0xff]
      %v775 = vld [vmem:[%s1] sm:$0xff]
      %v776 = vld [vmem:[%s1 + $0x8] sm:$0xff]
      %v777 = vld [vmem:[%s1 + $0x10] sm:$0xff]
      %v778 = vld [vmem:[%s1 + $0x18] sm:$0xff]
      %v779 = vld [vmem:[%s1 + $0x20] sm:$0xf]
      %v781 = vsel %vm341, %v759, 0
      %v784 = vsel %vm341, %v760, 0
      %v787 = vsel %vm341, %v761, 0
      %v790 = vsel %vm341, %v762, 0
      %v793 = vsel %vm341, %v763, 0
      %v796 = vsel %vm341, %v764, 0
      %v799 = vsel %vm341, %v765, 0
      %v802 = vsel %vm341, %v766, 0
      %v805 = vsel %vm341, %v767, 0
      %v808 = vsel %vm341, %v768, 0
      %v811 = vsel %vm341, %v769, 0
      %v814 = vsel %vm341, %v770, 0
      %v817 = vsel %vm341, %v771, 0
      %v820 = vsel %vm341, %v772, 0
      %v823 = vsel %vm341, %v773, 0
      %v826 = vsel %vm341, %v774, 0
      %v829 = vsel %vm390, %v779, 0
      %831 = vmatpush.msra.mxu0 0.0
      %832 = vmatpush.msra.mxu0 0.0
      %833 = vmatpush.msra.mxu0 0.0
      %834 = vmatpush.msra.mxu0 0.0
      %835 = vmatpush.msra.mxu0 0.0
      %836 = vmatpush.msra.mxu0 0.0
      %837 = vmatpush.msra.mxu0 0.0
      %838 = vmatpush.msra.mxu0 0.0
      %839 = vmatpush.msra.mxu0 0.0
      %840 = vmatpush.msra.mxu0 0.0
      %841 = vmatpush.msra.mxu0 0.0
      %842 = vmatpush.msra.mxu0 %v829
      %843 = vmatpush.msra.mxu0 %v778
      %844 = vmatpush.msra.mxu0 %v777
      %845 = vmatpush.msra.mxu0 %v776
      %846 = vmatpush.msra.mxu0 %v775
      %847 = vmatmul.f32.gmra.mxu0 %v781
      %v848 = vpop.f32.mrf.mxu0
      %v849 = vadd.f32 %v340, %v848
      %850 = vmatmul.f32.gmra.mxu0 %v784
      %v851 = vpop.f32.mrf.mxu0
      %v852 = vadd.f32 %v340, %v851
      %853 = vmatmul.f32.gmra.mxu0 %v787
      %v854 = vpop.f32.mrf.mxu0
      %v855 = vadd.f32 %v340, %v854
      %856 = vmatmul.f32.gmra.mxu0 %v790
      %v857 = vpop.f32.mrf.mxu0
      %v858 = vadd.f32 %v340, %v857
      %859 = vmatmul.f32.gmra.mxu0 %v793
      %v860 = vpop.f32.mrf.mxu0
      %v861 = vadd.f32 %v340, %v860
      %862 = vmatmul.f32.gmra.mxu0 %v796
      %v863 = vpop.f32.mrf.mxu0
      %v864 = vadd.f32 %v340, %v863
      %865 = vmatmul.f32.gmra.mxu0 %v799
      %v866 = vpop.f32.mrf.mxu0
      %v867 = vadd.f32 %v340, %v866
      %868 = vmatmul.f32.gmra.mxu0 %v802
      %v869 = vpop.f32.mrf.mxu0
      %v870 = vadd.f32 %v340, %v869
      %871 = vmatmul.f32.gmra.mxu0 %v805
      %v872 = vpop.f32.mrf.mxu0
      %v873 = vadd.f32 %v340, %v872
      %874 = vmatmul.f32.gmra.mxu0 %v808
      %v875 = vpop.f32.mrf.mxu0
      %v876 = vadd.f32 %v340, %v875
      %877 = vmatmul.f32.gmra.mxu0 %v811
      %v878 = vpop.f32.mrf.mxu0
      %v879 = vadd.f32 %v340, %v878
      %880 = vmatmul.f32.gmra.mxu0 %v814
      %v881 = vpop.f32.mrf.mxu0
      %v882 = vadd.f32 %v340, %v881
      %883 = vmatmul.f32.gmra.mxu0 %v817
      %v884 = vpop.f32.mrf.mxu0
      %v885 = vadd.f32 %v340, %v884
      %886 = vmatmul.f32.gmra.mxu0 %v820
      %v887 = vpop.f32.mrf.mxu0
      %v888 = vadd.f32 %v340, %v887
      %889 = vmatmul.f32.gmra.mxu0 %v823
      %v890 = vpop.f32.mrf.mxu0
      %v891 = vadd.f32 %v340, %v890
      %892 = vmatmul.f32.gmra.mxu0 %v826
      %v893 = vpop.f32.mrf.mxu0
      %v894 = vadd.f32 %v340, %v893
      %895 = vdwg.mxu0
      %v896 = vmax.f32 %v849, 0.0
      %v897 = vmax.f32 %v852, 0.0
      %v898 = vmax.f32 %v855, 0.0
      %v899 = vmax.f32 %v858, 0.0
      %v900 = vmax.f32 %v861, 0.0
      %v901 = vmax.f32 %v864, 0.0
      %v902 = vmax.f32 %v867, 0.0
      %v903 = vmax.f32 %v870, 0.0
      %v904 = vmax.f32 %v873, 0.0
      %v905 = vmax.f32 %v876, 0.0
      %v906 = vmax.f32 %v879, 0.0
      %v907 = vmax.f32 %v882, 0.0
      %v908 = vmax.f32 %v885, 0.0
      %v909 = vmax.f32 %v888, 0.0
      %v910 = vmax.f32 %v891, 0.0
      %v911 = vmax.f32 %v894, 0.0
      %916 = vrot.lane.b32.xlu0 %v900, 32
      %v917 = vpop.permute.xlu0 %916
      %918 = vrot.lane.b32.xlu0 %v901, 32
      %v919 = vpop.permute.xlu0 %918
      %920 = vrot.lane.b32.xlu0 %v902, 32
      %v921 = vpop.permute.xlu0 %920
      %922 = vrot.lane.b32.xlu0 %v903, 32
      %v923 = vpop.permute.xlu0 %922
      %932 = vrot.lane.b32.xlu0 %v904, 64
      %v933 = vpop.permute.xlu0 %932
      %934 = vrot.lane.b32.xlu0 %v905, 64
      %v935 = vpop.permute.xlu0 %934
      %936 = vrot.lane.b32.xlu0 %v906, 64
      %v937 = vpop.permute.xlu0 %936
      %938 = vrot.lane.b32.xlu0 %v907, 64
      %v939 = vpop.permute.xlu0 %938
      %948 = vrot.lane.b32.xlu0 %v908, 96
      %v949 = vpop.permute.xlu0 %948
      %950 = vrot.lane.b32.xlu0 %v909, 96
      %v951 = vpop.permute.xlu0 %950
      %952 = vrot.lane.b32.xlu0 %v910, 96
      %v953 = vpop.permute.xlu0 %952
      %954 = vrot.lane.b32.xlu0 %v911, 96
      %v955 = vpop.permute.xlu0 %954
      %v960 = vsel %vm523, %v896, %v917
      %v961 = vsel %vm523, %v897, %v919
      %v962 = vsel %vm523, %v898, %v921
      %v963 = vsel %vm523, %v899, %v923
      %v964 = vsel %vm528, %v960, %v933
      %v965 = vsel %vm528, %v961, %v935
      %v966 = vsel %vm528, %v962, %v937
      %v967 = vsel %vm528, %v963, %v939
      %v968 = vsel %vm533, %v964, %v949
      %v969 = vsel %vm533, %v965, %v951
      %v970 = vsel %vm533, %v966, %v953
      %v971 = vsel %vm533, %v967, %v955
      %972 = vst [vmem:[#allocation2 + $0x40] sm:$0xff] %v968
      %973 = vst [vmem:[#allocation2 + $0x48] sm:$0xff] %v969
      %974 = vst [vmem:[#allocation2 + $0x50] sm:$0xff] %v970
      %975 = vst [vmem:[#allocation2 + $0x58] sm:$0xff] %v971
      %v976 = vld [vmem:[%s310 + $0x180] sm:$0xff]
      %v977 = vld [vmem:[%s310 + $0x188] sm:$0xff]
      %v978 = vld [vmem:[%s310 + $0x190] sm:$0xff]
      %v979 = vld [vmem:[%s310 + $0x198] sm:$0xff]
      %v980 = vld [vmem:[%s310 + $0x1a0] sm:$0xff]
      %v981 = vld [vmem:[%s310 + $0x1a8] sm:$0xff]
      %v982 = vld [vmem:[%s310 + $0x1b0] sm:$0xff]
      %v983 = vld [vmem:[%s310 + $0x1b8] sm:$0xff]
      %v984 = vld [vmem:[%s310 + $0x1c0] sm:$0xff]
      %v985 = vld [vmem:[%s310 + $0x1c8] sm:$0xff]
      %v986 = vld [vmem:[%s310 + $0x1d0] sm:$0xff]
      %v987 = vld [vmem:[%s310 + $0x1d8] sm:$0xff]
      %v988 = vld [vmem:[%s310 + $0x1e0] sm:$0xff]
      %v989 = vld [vmem:[%s310 + $0x1e8] sm:$0xff]
      %v990 = vld [vmem:[%s310 + $0x1f0] sm:$0xff]
      %v991 = vld [vmem:[%s310 + $0x1f8] sm:$0xff]
      %v992 = vld [vmem:[%s1] sm:$0xff]
      %v993 = vld [vmem:[%s1 + $0x8] sm:$0xff]
      %v994 = vld [vmem:[%s1 + $0x10] sm:$0xff]
      %v995 = vld [vmem:[%s1 + $0x18] sm:$0xff]
      %v996 = vld [vmem:[%s1 + $0x20] sm:$0xf]
      %v998 = vsel %vm341, %v976, 0
      %v1001 = vsel %vm341, %v977, 0
      %v1004 = vsel %vm341, %v978, 0
      %v1007 = vsel %vm341, %v979, 0
      %v1010 = vsel %vm341, %v980, 0
      %v1013 = vsel %vm341, %v981, 0
      %v1016 = vsel %vm341, %v982, 0
      %v1019 = vsel %vm341, %v983, 0
      %v1022 = vsel %vm341, %v984, 0
      %v1025 = vsel %vm341, %v985, 0
      %v1028 = vsel %vm341, %v986, 0
      %v1031 = vsel %vm341, %v987, 0
      %v1034 = vsel %vm341, %v988, 0
      %v1037 = vsel %vm341, %v989, 0
      %v1040 = vsel %vm341, %v990, 0
      %v1043 = vsel %vm341, %v991, 0
      %v1046 = vsel %vm390, %v996, 0
      %1048 = vmatpush.msra.mxu0 0.0
      %1049 = vmatpush.msra.mxu0 0.0
      %1050 = vmatpush.msra.mxu0 0.0
      %1051 = vmatpush.msra.mxu0 0.0
      %1052 = vmatpush.msra.mxu0 0.0
      %1053 = vmatpush.msra.mxu0 0.0
      %1054 = vmatpush.msra.mxu0 0.0
      %1055 = vmatpush.msra.mxu0 0.0
      %1056 = vmatpush.msra.mxu0 0.0
      %1057 = vmatpush.msra.mxu0 0.0
      %1058 = vmatpush.msra.mxu0 0.0
      %1059 = vmatpush.msra.mxu0 %v1046
      %1060 = vmatpush.msra.mxu0 %v995
      %1061 = vmatpush.msra.mxu0 %v994
      %1062 = vmatpush.msra.mxu0 %v993
      %1063 = vmatpush.msra.mxu0 %v992
      %1064 = vmatmul.f32.gmra.mxu0 %v998
      %v1065 = vpop.f32.mrf.mxu0
      %v1066 = vadd.f32 %v340, %v1065
      %1067 = vmatmul.f32.gmra.mxu0 %v1001
      %v1068 = vpop.f32.mrf.mxu0
      %v1069 = vadd.f32 %v340, %v1068
      %1070 = vmatmul.f32.gmra.mxu0 %v1004
      %v1071 = vpop.f32.mrf.mxu0
      %v1072 = vadd.f32 %v340, %v1071
      %1073 = vmatmul.f32.gmra.mxu0 %v1007
      %v1074 = vpop.f32.mrf.mxu0
      %v1075 = vadd.f32 %v340, %v1074
      %1076 = vmatmul.f32.gmra.mxu0 %v1010
      %v1077 = vpop.f32.mrf.mxu0
      %v1078 = vadd.f32 %v340, %v1077
      %1079 = vmatmul.f32.gmra.mxu0 %v1013
      %v1080 = vpop.f32.mrf.mxu0
      %v1081 = vadd.f32 %v340, %v1080
      %1082 = vmatmul.f32.gmra.mxu0 %v1016
      %v1083 = vpop.f32.mrf.mxu0
      %v1084 = vadd.f32 %v340, %v1083
      %1085 = vmatmul.f32.gmra.mxu0 %v1019
      %v1086 = vpop.f32.mrf.mxu0
      %v1087 = vadd.f32 %v340, %v1086
      %1088 = vmatmul.f32.gmra.mxu0 %v1022
      %v1089 = vpop.f32.mrf.mxu0
      %v1090 = vadd.f32 %v340, %v1089
      %1091 = vmatmul.f32.gmra.mxu0 %v1025
      %v1092 = vpop.f32.mrf.mxu0
      %v1093 = vadd.f32 %v340, %v1092
      %1094 = vmatmul.f32.gmra.mxu0 %v1028
      %v1095 = vpop.f32.mrf.mxu0
      %v1096 = vadd.f32 %v340, %v1095
      %1097 = vmatmul.f32.gmra.mxu0 %v1031
      %v1098 = vpop.f32.mrf.mxu0
      %v1099 = vadd.f32 %v340, %v1098
      %1100 = vmatmul.f32.gmra.mxu0 %v1034
      %v1101 = vpop.f32.mrf.mxu0
      %v1102 = vadd.f32 %v340, %v1101
      %1103 = vmatmul.f32.gmra.mxu0 %v1037
      %v1104 = vpop.f32.mrf.mxu0
      %v1105 = vadd.f32 %v340, %v1104
      %1106 = vmatmul.f32.gmra.mxu0 %v1040
      %v1107 = vpop.f32.mrf.mxu0
      %v1108 = vadd.f32 %v340, %v1107
      %1109 = vmatmul.f32.gmra.mxu0 %v1043
      %v1110 = vpop.f32.mrf.mxu0
      %v1111 = vadd.f32 %v340, %v1110
      %1112 = vdwg.mxu0
      %v1113 = vmax.f32 %v1066, 0.0
      %v1114 = vmax.f32 %v1069, 0.0
      %v1115 = vmax.f32 %v1072, 0.0
      %v1116 = vmax.f32 %v1075, 0.0
      %v1117 = vmax.f32 %v1078, 0.0
      %v1118 = vmax.f32 %v1081, 0.0
      %v1119 = vmax.f32 %v1084, 0.0
      %v1120 = vmax.f32 %v1087, 0.0
      %v1121 = vmax.f32 %v1090, 0.0
      %v1122 = vmax.f32 %v1093, 0.0
      %v1123 = vmax.f32 %v1096, 0.0
      %v1124 = vmax.f32 %v1099, 0.0
      %v1125 = vmax.f32 %v1102, 0.0
      %v1126 = vmax.f32 %v1105, 0.0
      %v1127 = vmax.f32 %v1108, 0.0
      %v1128 = vmax.f32 %v1111, 0.0
      %1133 = vrot.lane.b32.xlu0 %v1117, 32
      %v1134 = vpop.permute.xlu0 %1133
      %1135 = vrot.lane.b32.xlu0 %v1118, 32
      %v1136 = vpop.permute.xlu0 %1135
      %1137 = vrot.lane.b32.xlu0 %v1119, 32
      %v1138 = vpop.permute.xlu0 %1137
      %1139 = vrot.lane.b32.xlu0 %v1120, 32
      %v1140 = vpop.permute.xlu0 %1139
      %1149 = vrot.lane.b32.xlu0 %v1121, 64
      %v1150 = vpop.permute.xlu0 %1149
      %1151 = vrot.lane.b32.xlu0 %v1122, 64
      %v1152 = vpop.permute.xlu0 %1151
      %1153 = vrot.lane.b32.xlu0 %v1123, 64
      %v1154 = vpop.permute.xlu0 %1153
      %1155 = vrot.lane.b32.xlu0 %v1124, 64
      %v1156 = vpop.permute.xlu0 %1155
      %1165 = vrot.lane.b32.xlu0 %v1125, 96
      %v1166 = vpop.permute.xlu0 %1165
      %1167 = vrot.lane.b32.xlu0 %v1126, 96
      %v1168 = vpop.permute.xlu0 %1167
      %1169 = vrot.lane.b32.xlu0 %v1127, 96
      %v1170 = vpop.permute.xlu0 %1169
      %1171 = vrot.lane.b32.xlu0 %v1128, 96
      %v1172 = vpop.permute.xlu0 %1171
      %v1177 = vsel %vm523, %v1113, %v1134
      %v1178 = vsel %vm523, %v1114, %v1136
      %v1179 = vsel %vm523, %v1115, %v1138
      %v1180 = vsel %vm523, %v1116, %v1140
      %v1181 = vsel %vm528, %v1177, %v1150
      %v1182 = vsel %vm528, %v1178, %v1152
      %v1183 = vsel %vm528, %v1179, %v1154
      %v1184 = vsel %vm528, %v1180, %v1156
      %v1185 = vsel %vm533, %v1181, %v1166
      %v1186 = vsel %vm533, %v1182, %v1168
      %v1187 = vsel %vm533, %v1183, %v1170
      %v1188 = vsel %vm533, %v1184, %v1172
      %1189 = vst [vmem:[#allocation2 + $0x60] sm:$0xff] %v1185
      %1190 = vst [vmem:[#allocation2 + $0x68] sm:$0xff] %v1186
      %1191 = vst [vmem:[#allocation2 + $0x70] sm:$0xff] %v1187
      %1192 = vst [vmem:[#allocation2 + $0x78] sm:$0xff] %v1188
      %v1193 = vld [vmem:[%s310 + $0x200] sm:$0xff]
      %v1194 = vld [vmem:[%s310 + $0x208] sm:$0xff]
      %v1195 = vld [vmem:[%s310 + $0x210] sm:$0xff]
      %v1196 = vld [vmem:[%s310 + $0x218] sm:$0xff]
      %v1197 = vld [vmem:[%s310 + $0x220] sm:$0xff]
      %v1198 = vld [vmem:[%s310 + $0x228] sm:$0xff]
      %v1199 = vld [vmem:[%s310 + $0x230] sm:$0xff]
      %v1200 = vld [vmem:[%s310 + $0x238] sm:$0xff]
      %v1201 = vld [vmem:[%s310 + $0x240] sm:$0xff]
      %v1202 = vld [vmem:[%s310 + $0x248] sm:$0xff]
      %v1203 = vld [vmem:[%s310 + $0x250] sm:$0xff]
      %v1204 = vld [vmem:[%s310 + $0x258] sm:$0xff]
      %v1205 = vld [vmem:[%s310 + $0x260] sm:$0xff]
      %v1206 = vld [vmem:[%s310 + $0x268] sm:$0xff]
      %v1207 = vld [vmem:[%s310 + $0x270] sm:$0xff]
      %v1208 = vld [vmem:[%s310 + $0x278] sm:$0xff]
      %v1209 = vld [vmem:[%s1] sm:$0xff]
      %v1210 = vld [vmem:[%s1 + $0x8] sm:$0xff]
      %v1211 = vld [vmem:[%s1 + $0x10] sm:$0xff]
      %v1212 = vld [vmem:[%s1 + $0x18] sm:$0xff]
      %v1213 = vld [vmem:[%s1 + $0x20] sm:$0xf]
      %v1215 = vsel %vm341, %v1193, 0
      %v1218 = vsel %vm341, %v1194, 0
      %v1221 = vsel %vm341, %v1195, 0
      %v1224 = vsel %vm341, %v1196, 0
      %v1227 = vsel %vm341, %v1197, 0
      %v1230 = vsel %vm341, %v1198, 0
      %v1233 = vsel %vm341, %v1199, 0
      %v1236 = vsel %vm341, %v1200, 0
      %v1239 = vsel %vm341, %v1201, 0
      %v1242 = vsel %vm341, %v1202, 0
      %v1245 = vsel %vm341, %v1203, 0
      %v1248 = vsel %vm341, %v1204, 0
      %v1251 = vsel %vm341, %v1205, 0
      %v1254 = vsel %vm341, %v1206, 0
      %v1257 = vsel %vm341, %v1207, 0
      %v1260 = vsel %vm341, %v1208, 0
      %v1263 = vsel %vm390, %v1213, 0
      %1265 = vmatpush.msra.mxu0 0.0
      %1266 = vmatpush.msra.mxu0 0.0
      %1267 = vmatpush.msra.mxu0 0.0
      %1268 = vmatpush.msra.mxu0 0.0
      %1269 = vmatpush.msra.mxu0 0.0
      %1270 = vmatpush.msra.mxu0 0.0
      %1271 = vmatpush.msra.mxu0 0.0
      %1272 = vmatpush.msra.mxu0 0.0
      %1273 = vmatpush.msra.mxu0 0.0
      %1274 = vmatpush.msra.mxu0 0.0
      %1275 = vmatpush.msra.mxu0 0.0
      %1276 = vmatpush.msra.mxu0 %v1263
      %1277 = vmatpush.msra.mxu0 %v1212
      %1278 = vmatpush.msra.mxu0 %v1211
      %1279 = vmatpush.msra.mxu0 %v1210
      %1280 = vmatpush.msra.mxu0 %v1209
      %1281 = vmatmul.f32.gmra.mxu0 %v1215
      %v1282 = vpop.f32.mrf.mxu0
      %v1283 = vadd.f32 %v340, %v1282
      %1284 = vmatmul.f32.gmra.mxu0 %v1218
      %v1285 = vpop.f32.mrf.mxu0
      %v1286 = vadd.f32 %v340, %v1285
      %1287 = vmatmul.f32.gmra.mxu0 %v1221
      %v1288 = vpop.f32.mrf.mxu0
      %v1289 = vadd.f32 %v340, %v1288
      %1290 = vmatmul.f32.gmra.mxu0 %v1224
      %v1291 = vpop.f32.mrf.mxu0
      %v1292 = vadd.f32 %v340, %v1291
      %1293 = vmatmul.f32.gmra.mxu0 %v1227
      %v1294 = vpop.f32.mrf.mxu0
      %v1295 = vadd.f32 %v340, %v1294
      %1296 = vmatmul.f32.gmra.mxu0 %v1230
      %v1297 = vpop.f32.mrf.mxu0
      %v1298 = vadd.f32 %v340, %v1297
      %1299 = vmatmul.f32.gmra.mxu0 %v1233
      %v1300 = vpop.f32.mrf.mxu0
      %v1301 = vadd.f32 %v340, %v1300
      %1302 = vmatmul.f32.gmra.mxu0 %v1236
      %v1303 = vpop.f32.mrf.mxu0
      %v1304 = vadd.f32 %v340, %v1303
      %1305 = vmatmul.f32.gmra.mxu0 %v1239
      %v1306 = vpop.f32.mrf.mxu0
      %v1307 = vadd.f32 %v340, %v1306
      %1308 = vmatmul.f32.gmra.mxu0 %v1242
      %v1309 = vpop.f32.mrf.mxu0
      %v1310 = vadd.f32 %v340, %v1309
      %1311 = vmatmul.f32.gmra.mxu0 %v1245
      %v1312 = vpop.f32.mrf.mxu0
      %v1313 = vadd.f32 %v340, %v1312
      %1314 = vmatmul.f32.gmra.mxu0 %v1248
      %v1315 = vpop.f32.mrf.mxu0
      %v1316 = vadd.f32 %v340, %v1315
      %1317 = vmatmul.f32.gmra.mxu0 %v1251
      %v1318 = vpop.f32.mrf.mxu0
      %v1319 = vadd.f32 %v340, %v1318
      %1320 = vmatmul.f32.gmra.mxu0 %v1254
      %v1321 = vpop.f32.mrf.mxu0
      %v1322 = vadd.f32 %v340, %v1321
      %1323 = vmatmul.f32.gmra.mxu0 %v1257
      %v1324 = vpop.f32.mrf.mxu0
      %v1325 = vadd.f32 %v340, %v1324
      %1326 = vmatmul.f32.gmra.mxu0 %v1260
      %v1327 = vpop.f32.mrf.mxu0
      %v1328 = vadd.f32 %v340, %v1327
      %1329 = vdwg.mxu0
      %v1330 = vmax.f32 %v1283, 0.0
      %v1331 = vmax.f32 %v1286, 0.0
      %v1332 = vmax.f32 %v1289, 0.0
      %v1333 = vmax.f32 %v1292, 0.0
      %v1334 = vmax.f32 %v1295, 0.0
      %v1335 = vmax.f32 %v1298, 0.0
      %v1336 = vmax.f32 %v1301, 0.0
      %v1337 = vmax.f32 %v1304, 0.0
      %v1338 = vmax.f32 %v1307, 0.0
      %v1339 = vmax.f32 %v1310, 0.0
      %v1340 = vmax.f32 %v1313, 0.0
      %v1341 = vmax.f32 %v1316, 0.0
      %v1342 = vmax.f32 %v1319, 0.0
      %v1343 = vmax.f32 %v1322, 0.0
      %v1344 = vmax.f32 %v1325, 0.0
      %v1345 = vmax.f32 %v1328, 0.0
      %1350 = vrot.lane.b32.xlu0 %v1334, 32
      %v1351 = vpop.permute.xlu0 %1350
      %1352 = vrot.lane.b32.xlu0 %v1335, 32
      %v1353 = vpop.permute.xlu0 %1352
      %1354 = vrot.lane.b32.xlu0 %v1336, 32
      %v1355 = vpop.permute.xlu0 %1354
      %1356 = vrot.lane.b32.xlu0 %v1337, 32
      %v1357 = vpop.permute.xlu0 %1356
      %1366 = vrot.lane.b32.xlu0 %v1338, 64
      %v1367 = vpop.permute.xlu0 %1366
      %1368 = vrot.lane.b32.xlu0 %v1339, 64
      %v1369 = vpop.permute.xlu0 %1368
      %1370 = vrot.lane.b32.xlu0 %v1340, 64
      %v1371 = vpop.permute.xlu0 %1370
      %1372 = vrot.lane.b32.xlu0 %v1341, 64
      %v1373 = vpop.permute.xlu0 %1372
      %1382 = vrot.lane.b32.xlu0 %v1342, 96
      %v1383 = vpop.permute.xlu0 %1382
      %1384 = vrot.lane.b32.xlu0 %v1343, 96
      %v1385 = vpop.permute.xlu0 %1384
      %1386 = vrot.lane.b32.xlu0 %v1344, 96
      %v1387 = vpop.permute.xlu0 %1386
      %1388 = vrot.lane.b32.xlu0 %v1345, 96
      %v1389 = vpop.permute.xlu0 %1388
      %v1394 = vsel %vm523, %v1330, %v1351
      %v1395 = vsel %vm523, %v1331, %v1353
      %v1396 = vsel %vm523, %v1332, %v1355
      %v1397 = vsel %vm523, %v1333, %v1357
      %v1398 = vsel %vm528, %v1394, %v1367
      %v1399 = vsel %vm528, %v1395, %v1369
      %v1400 = vsel %vm528, %v1396, %v1371
      %v1401 = vsel %vm528, %v1397, %v1373
      %v1402 = vsel %vm533, %v1398, %v1383
      %v1403 = vsel %vm533, %v1399, %v1385
      %v1404 = vsel %vm533, %v1400, %v1387
      %v1405 = vsel %vm533, %v1401, %v1389
      %1406 = vst [vmem:[#allocation2 + $0x80] sm:$0xff] %v1402
      %1407 = vst [vmem:[#allocation2 + $0x88] sm:$0xff] %v1403
      %1408 = vst [vmem:[#allocation2 + $0x90] sm:$0xff] %v1404
      %1409 = vst [vmem:[#allocation2 + $0x98] sm:$0xff] %v1405
      %v1410 = vld [vmem:[%s310 + $0x280] sm:$0xff]
      %v1411 = vld [vmem:[%s310 + $0x288] sm:$0xff]
      %v1412 = vld [vmem:[%s310 + $0x290] sm:$0xff]
      %v1413 = vld [vmem:[%s310 + $0x298] sm:$0xff]
      %v1414 = vld [vmem:[%s310 + $0x2a0] sm:$0xff]
      %v1415 = vld [vmem:[%s310 + $0x2a8] sm:$0xff]
      %v1416 = vld [vmem:[%s310 + $0x2b0] sm:$0xff]
      %v1417 = vld [vmem:[%s310 + $0x2b8] sm:$0xff]
      %v1418 = vld [vmem:[%s310 + $0x2c0] sm:$0xff]
      %v1419 = vld [vmem:[%s310 + $0x2c8] sm:$0xff]
      %v1420 = vld [vmem:[%s310 + $0x2d0] sm:$0xff]
      %v1421 = vld [vmem:[%s310 + $0x2d8] sm:$0xff]
      %v1422 = vld [vmem:[%s310 + $0x2e0] sm:$0xff]
      %v1423 = vld [vmem:[%s310 + $0x2e8] sm:$0xff]
      %v1424 = vld [vmem:[%s310 + $0x2f0] sm:$0xff]
      %v1425 = vld [vmem:[%s310 + $0x2f8] sm:$0xff]
      %v1426 = vld [vmem:[%s1] sm:$0xff]
      %v1427 = vld [vmem:[%s1 + $0x8] sm:$0xff]
      %v1428 = vld [vmem:[%s1 + $0x10] sm:$0xff]
      %v1429 = vld [vmem:[%s1 + $0x18] sm:$0xff]
      %v1430 = vld [vmem:[%s1 + $0x20] sm:$0xf]
      %v1432 = vsel %vm341, %v1410, 0
      %v1435 = vsel %vm341, %v1411, 0
      %v1438 = vsel %vm341, %v1412, 0
      %v1441 = vsel %vm341, %v1413, 0
      %v1444 = vsel %vm341, %v1414, 0
      %v1447 = vsel %vm341, %v1415, 0
      %v1450 = vsel %vm341, %v1416, 0
      %v1453 = vsel %vm341, %v1417, 0
      %v1456 = vsel %vm341, %v1418, 0
      %v1459 = vsel %vm341, %v1419, 0
      %v1462 = vsel %vm341, %v1420, 0
      %v1465 = vsel %vm341, %v1421, 0
      %v1468 = vsel %vm341, %v1422, 0
      %v1471 = vsel %vm341, %v1423, 0
      %v1474 = vsel %vm341, %v1424, 0
      %v1477 = vsel %vm341, %v1425, 0
      %v1480 = vsel %vm390, %v1430, 0
      %1482 = vmatpush.msra.mxu0 0.0
      %1483 = vmatpush.msra.mxu0 0.0
      %1484 = vmatpush.msra.mxu0 0.0
      %1485 = vmatpush.msra.mxu0 0.0
      %1486 = vmatpush.msra.mxu0 0.0
      %1487 = vmatpush.msra.mxu0 0.0
      %1488 = vmatpush.msra.mxu0 0.0
      %1489 = vmatpush.msra.mxu0 0.0
      %1490 = vmatpush.msra.mxu0 0.0
      %1491 = vmatpush.msra.mxu0 0.0
      %1492 = vmatpush.msra.mxu0 0.0
      %1493 = vmatpush.msra.mxu0 %v1480
      %1494 = vmatpush.msra.mxu0 %v1429
      %1495 = vmatpush.msra.mxu0 %v1428
      %1496 = vmatpush.msra.mxu0 %v1427
      %1497 = vmatpush.msra.mxu0 %v1426
      %1498 = vmatmul.f32.gmra.mxu0 %v1432
      %v1499 = vpop.f32.mrf.mxu0
      %v1500 = vadd.f32 %v340, %v1499
      %1501 = vmatmul.f32.gmra.mxu0 %v1435
      %v1502 = vpop.f32.mrf.mxu0
      %v1503 = vadd.f32 %v340, %v1502
      %1504 = vmatmul.f32.gmra.mxu0 %v1438
      %v1505 = vpop.f32.mrf.mxu0
      %v1506 = vadd.f32 %v340, %v1505
      %1507 = vmatmul.f32.gmra.mxu0 %v1441
      %v1508 = vpop.f32.mrf.mxu0
      %v1509 = vadd.f32 %v340, %v1508
      %1510 = vmatmul.f32.gmra.mxu0 %v1444
      %v1511 = vpop.f32.mrf.mxu0
      %v1512 = vadd.f32 %v340, %v1511
      %1513 = vmatmul.f32.gmra.mxu0 %v1447
      %v1514 = vpop.f32.mrf.mxu0
      %v1515 = vadd.f32 %v340, %v1514
      %1516 = vmatmul.f32.gmra.mxu0 %v1450
      %v1517 = vpop.f32.mrf.mxu0
      %v1518 = vadd.f32 %v340, %v1517
      %1519 = vmatmul.f32.gmra.mxu0 %v1453
      %v1520 = vpop.f32.mrf.mxu0
      %v1521 = vadd.f32 %v340, %v1520
      %1522 = vmatmul.f32.gmra.mxu0 %v1456
      %v1523 = vpop.f32.mrf.mxu0
      %v1524 = vadd.f32 %v340, %v1523
      %1525 = vmatmul.f32.gmra.mxu0 %v1459
      %v1526 = vpop.f32.mrf.mxu0
      %v1527 = vadd.f32 %v340, %v1526
      %1528 = vmatmul.f32.gmra.mxu0 %v1462
      %v1529 = vpop.f32.mrf.mxu0
      %v1530 = vadd.f32 %v340, %v1529
      %1531 = vmatmul.f32.gmra.mxu0 %v1465
      %v1532 = vpop.f32.mrf.mxu0
      %v1533 = vadd.f32 %v340, %v1532
      %1534 = vmatmul.f32.gmra.mxu0 %v1468
      %v1535 = vpop.f32.mrf.mxu0
      %v1536 = vadd.f32 %v340, %v1535
      %1537 = vmatmul.f32.gmra.mxu0 %v1471
      %v1538 = vpop.f32.mrf.mxu0
      %v1539 = vadd.f32 %v340, %v1538
      %1540 = vmatmul.f32.gmra.mxu0 %v1474
      %v1541 = vpop.f32.mrf.mxu0
      %v1542 = vadd.f32 %v340, %v1541
      %1543 = vmatmul.f32.gmra.mxu0 %v1477
      %v1544 = vpop.f32.mrf.mxu0
      %v1545 = vadd.f32 %v340, %v1544
      %1546 = vdwg.mxu0
      %v1547 = vmax.f32 %v1500, 0.0
      %v1548 = vmax.f32 %v1503, 0.0
      %v1549 = vmax.f32 %v1506, 0.0
      %v1550 = vmax.f32 %v1509, 0.0
      %v1551 = vmax.f32 %v1512, 0.0
      %v1552 = vmax.f32 %v1515, 0.0
      %v1553 = vmax.f32 %v1518, 0.0
      %v1554 = vmax.f32 %v1521, 0.0
      %v1555 = vmax.f32 %v1524, 0.0
      %v1556 = vmax.f32 %v1527, 0.0
      %v1557 = vmax.f32 %v1530, 0.0
      %v1558 = vmax.f32 %v1533, 0.0
      %v1559 = vmax.f32 %v1536, 0.0
      %v1560 = vmax.f32 %v1539, 0.0
      %v1561 = vmax.f32 %v1542, 0.0
      %v1562 = vmax.f32 %v1545, 0.0
      %1567 = vrot.lane.b32.xlu0 %v1551, 32
      %v1568 = vpop.permute.xlu0 %1567
      %1569 = vrot.lane.b32.xlu0 %v1552, 32
      %v1570 = vpop.permute.xlu0 %1569
      %1571 = vrot.lane.b32.xlu0 %v1553, 32
      %v1572 = vpop.permute.xlu0 %1571
      %1573 = vrot.lane.b32.xlu0 %v1554, 32
      %v1574 = vpop.permute.xlu0 %1573
      %1583 = vrot.lane.b32.xlu0 %v1555, 64
      %v1584 = vpop.permute.xlu0 %1583
      %1585 = vrot.lane.b32.xlu0 %v1556, 64
      %v1586 = vpop.permute.xlu0 %1585
      %1587 = vrot.lane.b32.xlu0 %v1557, 64
      %v1588 = vpop.permute.xlu0 %1587
      %1589 = vrot.lane.b32.xlu0 %v1558, 64
      %v1590 = vpop.permute.xlu0 %1589
      %1599 = vrot.lane.b32.xlu0 %v1559, 96
      %v1600 = vpop.permute.xlu0 %1599
      %1601 = vrot.lane.b32.xlu0 %v1560, 96
      %v1602 = vpop.permute.xlu0 %1601
      %1603 = vrot.lane.b32.xlu0 %v1561, 96
      %v1604 = vpop.permute.xlu0 %1603
      %1605 = vrot.lane.b32.xlu0 %v1562, 96
      %v1606 = vpop.permute.xlu0 %1605
      %v1611 = vsel %vm523, %v1547, %v1568
      %v1612 = vsel %vm523, %v1548, %v1570
      %v1613 = vsel %vm523, %v1549, %v1572
      %v1614 = vsel %vm523, %v1550, %v1574
      %v1615 = vsel %vm528, %v1611, %v1584
      %v1616 = vsel %vm528, %v1612, %v1586
      %v1617 = vsel %vm528, %v1613, %v1588
      %v1618 = vsel %vm528, %v1614, %v1590
      %v1619 = vsel %vm533, %v1615, %v1600
      %v1620 = vsel %vm533, %v1616, %v1602
      %v1621 = vsel %vm533, %v1617, %v1604
      %v1622 = vsel %vm533, %v1618, %v1606
      %1623 = vst [vmem:[#allocation2 + $0xa0] sm:$0xff] %v1619
      %1624 = vst [vmem:[#allocation2 + $0xa8] sm:$0xff] %v1620
      %1625 = vst [vmem:[#allocation2 + $0xb0] sm:$0xff] %v1621
      %1626 = vst [vmem:[#allocation2 + $0xb8] sm:$0xff] %v1622
      %v1627 = vld [vmem:[%s310 + $0x300] sm:$0xff]
      %v1628 = vld [vmem:[%s310 + $0x308] sm:$0xff]
      %v1629 = vld [vmem:[%s310 + $0x310] sm:$0xff]
      %v1630 = vld [vmem:[%s310 + $0x318] sm:$0xff]
      %v1631 = vld [vmem:[%s310 + $0x320] sm:$0xff]
      %v1632 = vld [vmem:[%s310 + $0x328] sm:$0xff]
      %v1633 = vld [vmem:[%s310 + $0x330] sm:$0xff]
      %v1634 = vld [vmem:[%s310 + $0x338] sm:$0xff]
      %v1635 = vld [vmem:[%s310 + $0x340] sm:$0xff]
      %v1636 = vld [vmem:[%s310 + $0x348] sm:$0xff]
      %v1637 = vld [vmem:[%s310 + $0x350] sm:$0xff]
      %v1638 = vld [vmem:[%s310 + $0x358] sm:$0xff]
      %v1639 = vld [vmem:[%s310 + $0x360] sm:$0xff]
      %v1640 = vld [vmem:[%s310 + $0x368] sm:$0xff]
      %v1641 = vld [vmem:[%s310 + $0x370] sm:$0xff]
      %v1642 = vld [vmem:[%s310 + $0x378] sm:$0xff]
      %v1643 = vld [vmem:[%s1] sm:$0xff]
      %v1644 = vld [vmem:[%s1 + $0x8] sm:$0xff]
      %v1645 = vld [vmem:[%s1 + $0x10] sm:$0xff]
      %v1646 = vld [vmem:[%s1 + $0x18] sm:$0xff]
      %v1647 = vld [vmem:[%s1 + $0x20] sm:$0xf]
      %v1649 = vsel %vm341, %v1627, 0
      %v1652 = vsel %vm341, %v1628, 0
      %v1655 = vsel %vm341, %v1629, 0
      %v1658 = vsel %vm341, %v1630, 0
      %v1661 = vsel %vm341, %v1631, 0
      %v1664 = vsel %vm341, %v1632, 0
      %v1667 = vsel %vm341, %v1633, 0
      %v1670 = vsel %vm341, %v1634, 0
      %v1673 = vsel %vm341, %v1635, 0
      %v1676 = vsel %vm341, %v1636, 0
      %v1679 = vsel %vm341, %v1637, 0
      %v1682 = vsel %vm341, %v1638, 0
      %v1685 = vsel %vm341, %v1639, 0
      %v1688 = vsel %vm341, %v1640, 0
      %v1691 = vsel %vm341, %v1641, 0
      %v1694 = vsel %vm341, %v1642, 0
      %v1697 = vsel %vm390, %v1647, 0
      %1699 = vmatpush.msra.mxu0 0.0
      %1700 = vmatpush.msra.mxu0 0.0
      %1701 = vmatpush.msra.mxu0 0.0
      %1702 = vmatpush.msra.mxu0 0.0
      %1703 = vmatpush.msra.mxu0 0.0
      %1704 = vmatpush.msra.mxu0 0.0
      %1705 = vmatpush.msra.mxu0 0.0
      %1706 = vmatpush.msra.mxu0 0.0
      %1707 = vmatpush.msra.mxu0 0.0
      %1708 = vmatpush.msra.mxu0 0.0
      %1709 = vmatpush.msra.mxu0 0.0
      %1710 = vmatpush.msra.mxu0 %v1697
      %1711 = vmatpush.msra.mxu0 %v1646
      %1712 = vmatpush.msra.mxu0 %v1645
      %1713 = vmatpush.msra.mxu0 %v1644
      %1714 = vmatpush.msra.mxu0 %v1643
      %1715 = vmatmul.f32.gmra.mxu0 %v1649
      %v1716 = vpop.f32.mrf.mxu0
      %v1717 = vadd.f32 %v340, %v1716
      %1718 = vmatmul.f32.gmra.mxu0 %v1652
      %v1719 = vpop.f32.mrf.mxu0
      %v1720 = vadd.f32 %v340, %v1719
      %1721 = vmatmul.f32.gmra.mxu0 %v1655
      %v1722 = vpop.f32.mrf.mxu0
      %v1723 = vadd.f32 %v340, %v1722
      %1724 = vmatmul.f32.gmra.mxu0 %v1658
      %v1725 = vpop.f32.mrf.mxu0
      %v1726 = vadd.f32 %v340, %v1725
      %1727 = vmatmul.f32.gmra.mxu0 %v1661
      %v1728 = vpop.f32.mrf.mxu0
      %v1729 = vadd.f32 %v340, %v1728
      %1730 = vmatmul.f32.gmra.mxu0 %v1664
      %v1731 = vpop.f32.mrf.mxu0
      %v1732 = vadd.f32 %v340, %v1731
      %1733 = vmatmul.f32.gmra.mxu0 %v1667
      %v1734 = vpop.f32.mrf.mxu0
      %v1735 = vadd.f32 %v340, %v1734
      %1736 = vmatmul.f32.gmra.mxu0 %v1670
      %v1737 = vpop.f32.mrf.mxu0
      %v1738 = vadd.f32 %v340, %v1737
      %1739 = vmatmul.f32.gmra.mxu0 %v1673
      %v1740 = vpop.f32.mrf.mxu0
      %v1741 = vadd.f32 %v340, %v1740
      %1742 = vmatmul.f32.gmra.mxu0 %v1676
      %v1743 = vpop.f32.mrf.mxu0
      %v1744 = vadd.f32 %v340, %v1743
      %1745 = vmatmul.f32.gmra.mxu0 %v1679
      %v1746 = vpop.f32.mrf.mxu0
      %v1747 = vadd.f32 %v340, %v1746
      %1748 = vmatmul.f32.gmra.mxu0 %v1682
      %v1749 = vpop.f32.mrf.mxu0
      %v1750 = vadd.f32 %v340, %v1749
      %1751 = vmatmul.f32.gmra.mxu0 %v1685
      %v1752 = vpop.f32.mrf.mxu0
      %v1753 = vadd.f32 %v340, %v1752
      %1754 = vmatmul.f32.gmra.mxu0 %v1688
      %v1755 = vpop.f32.mrf.mxu0
      %v1756 = vadd.f32 %v340, %v1755
      %1757 = vmatmul.f32.gmra.mxu0 %v1691
      %v1758 = vpop.f32.mrf.mxu0
      %v1759 = vadd.f32 %v340, %v1758
      %1760 = vmatmul.f32.gmra.mxu0 %v1694
      %v1761 = vpop.f32.mrf.mxu0
      %v1762 = vadd.f32 %v340, %v1761
      %1763 = vdwg.mxu0
      %v1764 = vmax.f32 %v1717, 0.0
      %v1765 = vmax.f32 %v1720, 0.0
      %v1766 = vmax.f32 %v1723, 0.0
      %v1767 = vmax.f32 %v1726, 0.0
      %v1768 = vmax.f32 %v1729, 0.0
      %v1769 = vmax.f32 %v1732, 0.0
      %v1770 = vmax.f32 %v1735, 0.0
      %v1771 = vmax.f32 %v1738, 0.0
      %v1772 = vmax.f32 %v1741, 0.0
      %v1773 = vmax.f32 %v1744, 0.0
      %v1774 = vmax.f32 %v1747, 0.0
      %v1775 = vmax.f32 %v1750, 0.0
      %v1776 = vmax.f32 %v1753, 0.0
      %v1777 = vmax.f32 %v1756, 0.0
      %v1778 = vmax.f32 %v1759, 0.0
      %v1779 = vmax.f32 %v1762, 0.0
      %1784 = vrot.lane.b32.xlu0 %v1768, 32
      %v1785 = vpop.permute.xlu0 %1784
      %1786 = vrot.lane.b32.xlu0 %v1769, 32
      %v1787 = vpop.permute.xlu0 %1786
      %1788 = vrot.lane.b32.xlu0 %v1770, 32
      %v1789 = vpop.permute.xlu0 %1788
      %1790 = vrot.lane.b32.xlu0 %v1771, 32
      %v1791 = vpop.permute.xlu0 %1790
      %1800 = vrot.lane.b32.xlu0 %v1772, 64
      %v1801 = vpop.permute.xlu0 %1800
      %1802 = vrot.lane.b32.xlu0 %v1773, 64
      %v1803 = vpop.permute.xlu0 %1802
      %1804 = vrot.lane.b32.xlu0 %v1774, 64
      %v1805 = vpop.permute.xlu0 %1804
      %1806 = vrot.lane.b32.xlu0 %v1775, 64
      %v1807 = vpop.permute.xlu0 %1806
      %1816 = vrot.lane.b32.xlu0 %v1776, 96
      %v1817 = vpop.permute.xlu0 %1816
      %1818 = vrot.lane.b32.xlu0 %v1777, 96
      %v1819 = vpop.permute.xlu0 %1818
      %1820 = vrot.lane.b32.xlu0 %v1778, 96
      %v1821 = vpop.permute.xlu0 %1820
      %1822 = vrot.lane.b32.xlu0 %v1779, 96
      %v1823 = vpop.permute.xlu0 %1822
      %v1828 = vsel %vm523, %v1764, %v1785
      %v1829 = vsel %vm523, %v1765, %v1787
      %v1830 = vsel %vm523, %v1766, %v1789
      %v1831 = vsel %vm523, %v1767, %v1791
      %v1832 = vsel %vm528, %v1828, %v1801
      %v1833 = vsel %vm528, %v1829, %v1803
      %v1834 = vsel %vm528, %v1830, %v1805
      %v1835 = vsel %vm528, %v1831, %v1807
      %v1836 = vsel %vm533, %v1832, %v1817
      %v1837 = vsel %vm533, %v1833, %v1819
      %v1838 = vsel %vm533, %v1834, %v1821
      %v1839 = vsel %vm533, %v1835, %v1823
      %1840 = vst [vmem:[#allocation2 + $0xc0] sm:$0xff] %v1836
      %1841 = vst [vmem:[#allocation2 + $0xc8] sm:$0xff] %v1837
      %1842 = vst [vmem:[#allocation2 + $0xd0] sm:$0xff] %v1838
      %1843 = vst [vmem:[#allocation2 + $0xd8] sm:$0xff] %v1839
      %v1844 = vld [vmem:[%s310 + $0x380] sm:$0xff]
      %v1845 = vld [vmem:[%s310 + $0x388] sm:$0xff]
      %v1846 = vld [vmem:[%s310 + $0x390] sm:$0xff]
      %v1847 = vld [vmem:[%s310 + $0x398] sm:$0xff]
      %v1848 = vld [vmem:[%s310 + $0x3a0] sm:$0xff]
      %v1849 = vld [vmem:[%s310 + $0x3a8] sm:$0xff]
      %v1850 = vld [vmem:[%s310 + $0x3b0] sm:$0xff]
      %v1851 = vld [vmem:[%s310 + $0x3b8] sm:$0xff]
      %v1852 = vld [vmem:[%s310 + $0x3c0] sm:$0xff]
      %v1853 = vld [vmem:[%s310 + $0x3c8] sm:$0xff]
      %v1854 = vld [vmem:[%s310 + $0x3d0] sm:$0xff]
      %v1855 = vld [vmem:[%s310 + $0x3d8] sm:$0xff]
      %v1856 = vld [vmem:[%s310 + $0x3e0] sm:$0xff]
      %v1857 = vld [vmem:[%s310 + $0x3e8] sm:$0xff]
      %v1858 = vld [vmem:[%s310 + $0x3f0] sm:$0xff]
      %v1859 = vld [vmem:[%s310 + $0x3f8] sm:$0xff]
      %v1860 = vld [vmem:[%s1] sm:$0xff]
      %v1861 = vld [vmem:[%s1 + $0x8] sm:$0xff]
      %v1862 = vld [vmem:[%s1 + $0x10] sm:$0xff]
      %v1863 = vld [vmem:[%s1 + $0x18] sm:$0xff]
      %v1864 = vld [vmem:[%s1 + $0x20] sm:$0xf]
      %v1866 = vsel %vm341, %v1844, 0
      %v1869 = vsel %vm341, %v1845, 0
      %v1872 = vsel %vm341, %v1846, 0
      %v1875 = vsel %vm341, %v1847, 0
      %v1878 = vsel %vm341, %v1848, 0
      %v1881 = vsel %vm341, %v1849, 0
      %v1884 = vsel %vm341, %v1850, 0
      %v1887 = vsel %vm341, %v1851, 0
      %v1890 = vsel %vm341, %v1852, 0
      %v1893 = vsel %vm341, %v1853, 0
      %v1896 = vsel %vm341, %v1854, 0
      %v1899 = vsel %vm341, %v1855, 0
      %v1902 = vsel %vm341, %v1856, 0
      %v1905 = vsel %vm341, %v1857, 0
      %v1908 = vsel %vm341, %v1858, 0
      %v1911 = vsel %vm341, %v1859, 0
      %v1914 = vsel %vm390, %v1864, 0
      %1916 = vmatpush.msra.mxu0 0.0
      %1917 = vmatpush.msra.mxu0 0.0
      %1918 = vmatpush.msra.mxu0 0.0
      %1919 = vmatpush.msra.mxu0 0.0
      %1920 = vmatpush.msra.mxu0 0.0
      %1921 = vmatpush.msra.mxu0 0.0
      %1922 = vmatpush.msra.mxu0 0.0
      %1923 = vmatpush.msra.mxu0 0.0
      %1924 = vmatpush.msra.mxu0 0.0
      %1925 = vmatpush.msra.mxu0 0.0
      %1926 = vmatpush.msra.mxu0 0.0
      %1927 = vmatpush.msra.mxu0 %v1914
      %1928 = vmatpush.msra.mxu0 %v1863
      %1929 = vmatpush.msra.mxu0 %v1862
      %1930 = vmatpush.msra.mxu0 %v1861
      %1931 = vmatpush.msra.mxu0 %v1860
      %1932 = vmatmul.f32.gmra.mxu0 %v1866
      %v1933 = vpop.f32.mrf.mxu0
      %v1934 = vadd.f32 %v340, %v1933
      %1935 = vmatmul.f32.gmra.mxu0 %v1869
      %v1936 = vpop.f32.mrf.mxu0
      %v1937 = vadd.f32 %v340, %v1936
      %1938 = vmatmul.f32.gmra.mxu0 %v1872
      %v1939 = vpop.f32.mrf.mxu0
      %v1940 = vadd.f32 %v340, %v1939
      %1941 = vmatmul.f32.gmra.mxu0 %v1875
      %v1942 = vpop.f32.mrf.mxu0
      %v1943 = vadd.f32 %v340, %v1942
      %1944 = vmatmul.f32.gmra.mxu0 %v1878
      %v1945 = vpop.f32.mrf.mxu0
      %v1946 = vadd.f32 %v340, %v1945
      %1947 = vmatmul.f32.gmra.mxu0 %v1881
      %v1948 = vpop.f32.mrf.mxu0
      %v1949 = vadd.f32 %v340, %v1948
      %1950 = vmatmul.f32.gmra.mxu0 %v1884
      %v1951 = vpop.f32.mrf.mxu0
      %v1952 = vadd.f32 %v340, %v1951
      %1953 = vmatmul.f32.gmra.mxu0 %v1887
      %v1954 = vpop.f32.mrf.mxu0
      %v1955 = vadd.f32 %v340, %v1954
      %1956 = vmatmul.f32.gmra.mxu0 %v1890
      %v1957 = vpop.f32.mrf.mxu0
      %v1958 = vadd.f32 %v340, %v1957
      %1959 = vmatmul.f32.gmra.mxu0 %v1893
      %v1960 = vpop.f32.mrf.mxu0
      %v1961 = vadd.f32 %v340, %v1960
      %1962 = vmatmul.f32.gmra.mxu0 %v1896
      %v1963 = vpop.f32.mrf.mxu0
      %v1964 = vadd.f32 %v340, %v1963
      %1965 = vmatmul.f32.gmra.mxu0 %v1899
      %v1966 = vpop.f32.mrf.mxu0
      %v1967 = vadd.f32 %v340, %v1966
      %1968 = vmatmul.f32.gmra.mxu0 %v1902
      %v1969 = vpop.f32.mrf.mxu0
      %v1970 = vadd.f32 %v340, %v1969
      %1971 = vmatmul.f32.gmra.mxu0 %v1905
      %v1972 = vpop.f32.mrf.mxu0
      %v1973 = vadd.f32 %v340, %v1972
      %1974 = vmatmul.f32.gmra.mxu0 %v1908
      %v1975 = vpop.f32.mrf.mxu0
      %v1976 = vadd.f32 %v340, %v1975
      %1977 = vmatmul.f32.gmra.mxu0 %v1911
      %v1978 = vpop.f32.mrf.mxu0
      %v1979 = vadd.f32 %v340, %v1978
      %1980 = vdwg.mxu0
      %v1981 = vmax.f32 %v1934, 0.0
      %v1982 = vmax.f32 %v1937, 0.0
      %v1983 = vmax.f32 %v1940, 0.0
      %v1984 = vmax.f32 %v1943, 0.0
      %v1985 = vmax.f32 %v1946, 0.0
      %v1986 = vmax.f32 %v1949, 0.0
      %v1987 = vmax.f32 %v1952, 0.0
      %v1988 = vmax.f32 %v1955, 0.0
      %v1989 = vmax.f32 %v1958, 0.0
      %v1990 = vmax.f32 %v1961, 0.0
      %v1991 = vmax.f32 %v1964, 0.0
      %v1992 = vmax.f32 %v1967, 0.0
      %v1993 = vmax.f32 %v1970, 0.0
      %v1994 = vmax.f32 %v1973, 0.0
      %v1995 = vmax.f32 %v1976, 0.0
      %v1996 = vmax.f32 %v1979, 0.0
      %2001 = vrot.lane.b32.xlu0 %v1985, 32
      %v2002 = vpop.permute.xlu0 %2001
      %2003 = vrot.lane.b32.xlu0 %v1986, 32
      %v2004 = vpop.permute.xlu0 %2003
      %2005 = vrot.lane.b32.xlu0 %v1987, 32
      %v2006 = vpop.permute.xlu0 %2005
      %2007 = vrot.lane.b32.xlu0 %v1988, 32
      %v2008 = vpop.permute.xlu0 %2007
      %2017 = vrot.lane.b32.xlu0 %v1989, 64
      %v2018 = vpop.permute.xlu0 %2017
      %2019 = vrot.lane.b32.xlu0 %v1990, 64
      %v2020 = vpop.permute.xlu0 %2019
      %2021 = vrot.lane.b32.xlu0 %v1991, 64
      %v2022 = vpop.permute.xlu0 %2021
      %2023 = vrot.lane.b32.xlu0 %v1992, 64
      %v2024 = vpop.permute.xlu0 %2023
      %2033 = vrot.lane.b32.xlu0 %v1993, 96
      %v2034 = vpop.permute.xlu0 %2033
      %2035 = vrot.lane.b32.xlu0 %v1994, 96
      %v2036 = vpop.permute.xlu0 %2035
      %2037 = vrot.lane.b32.xlu0 %v1995, 96
      %v2038 = vpop.permute.xlu0 %2037
      %2039 = vrot.lane.b32.xlu0 %v1996, 96
      %v2040 = vpop.permute.xlu0 %2039
      %v2045 = vsel %vm523, %v1981, %v2002
      %v2046 = vsel %vm523, %v1982, %v2004
      %v2047 = vsel %vm523, %v1983, %v2006
      %v2048 = vsel %vm523, %v1984, %v2008
      %v2049 = vsel %vm528, %v2045, %v2018
      %v2050 = vsel %vm528, %v2046, %v2020
      %v2051 = vsel %vm528, %v2047, %v2022
      %v2052 = vsel %vm528, %v2048, %v2024
      %v2053 = vsel %vm533, %v2049, %v2034
      %v2054 = vsel %vm533, %v2050, %v2036
      %v2055 = vsel %vm533, %v2051, %v2038
      %v2056 = vsel %vm533, %v2052, %v2040
      %2057 = vst [vmem:[#allocation2 + $0xe0] sm:$0xff] %v2053
      %2058 = vst [vmem:[#allocation2 + $0xe8] sm:$0xff] %v2054
      %2059 = vst [vmem:[#allocation2 + $0xf0] sm:$0xff] %v2055
      %2060 = vst [vmem:[#allocation2 + $0xf8] sm:$0xff] %v2056
      %v2061 = vld [vmem:[%s310 + $0x400] sm:$0xff]
      %v2062 = vld [vmem:[%s310 + $0x408] sm:$0xff]
      %v2063 = vld [vmem:[%s310 + $0x410] sm:$0xff]
      %v2064 = vld [vmem:[%s310 + $0x418] sm:$0xff]
      %v2065 = vld [vmem:[%s310 + $0x420] sm:$0xff]
      %v2066 = vld [vmem:[%s310 + $0x428] sm:$0xff]
      %v2067 = vld [vmem:[%s310 + $0x430] sm:$0xff]
      %v2068 = vld [vmem:[%s310 + $0x438] sm:$0xff]
      %v2069 = vld [vmem:[%s310 + $0x440] sm:$0xff]
      %v2070 = vld [vmem:[%s310 + $0x448] sm:$0xff]
      %v2071 = vld [vmem:[%s310 + $0x450] sm:$0xff]
      %v2072 = vld [vmem:[%s310 + $0x458] sm:$0xff]
      %v2073 = vld [vmem:[%s310 + $0x460] sm:$0xff]
      %v2074 = vld [vmem:[%s310 + $0x468] sm:$0xff]
      %v2075 = vld [vmem:[%s310 + $0x470] sm:$0xff]
      %v2076 = vld [vmem:[%s310 + $0x478] sm:$0xff]
      %v2077 = vld [vmem:[%s1] sm:$0xff]
      %v2078 = vld [vmem:[%s1 + $0x8] sm:$0xff]
      %v2079 = vld [vmem:[%s1 + $0x10] sm:$0xff]
      %v2080 = vld [vmem:[%s1 + $0x18] sm:$0xff]
      %v2081 = vld [vmem:[%s1 + $0x20] sm:$0xf]
      %v2083 = vsel %vm341, %v2061, 0
      %v2086 = vsel %vm341, %v2062, 0
      %v2089 = vsel %vm341, %v2063, 0
      %v2092 = vsel %vm341, %v2064, 0
      %v2095 = vsel %vm341, %v2065, 0
      %v2098 = vsel %vm341, %v2066, 0
      %v2101 = vsel %vm341, %v2067, 0
      %v2104 = vsel %vm341, %v2068, 0
      %v2107 = vsel %vm341, %v2069, 0
      %v2110 = vsel %vm341, %v2070, 0
      %v2113 = vsel %vm341, %v2071, 0
      %v2116 = vsel %vm341, %v2072, 0
      %v2119 = vsel %vm341, %v2073, 0
      %v2122 = vsel %vm341, %v2074, 0
      %v2125 = vsel %vm341, %v2075, 0
      %v2128 = vsel %vm341, %v2076, 0
      %v2131 = vsel %vm390, %v2081, 0
      %2133 = vmatpush.msra.mxu0 0.0
      %2134 = vmatpush.msra.mxu0 0.0
      %2135 = vmatpush.msra.mxu0 0.0
      %2136 = vmatpush.msra.mxu0 0.0
      %2137 = vmatpush.msra.mxu0 0.0
      %2138 = vmatpush.msra.mxu0 0.0
      %2139 = vmatpush.msra.mxu0 0.0
      %2140 = vmatpush.msra.mxu0 0.0
      %2141 = vmatpush.msra.mxu0 0.0
      %2142 = vmatpush.msra.mxu0 0.0
      %2143 = vmatpush.msra.mxu0 0.0
      %2144 = vmatpush.msra.mxu0 %v2131
      %2145 = vmatpush.msra.mxu0 %v2080
      %2146 = vmatpush.msra.mxu0 %v2079
      %2147 = vmatpush.msra.mxu0 %v2078
      %2148 = vmatpush.msra.mxu0 %v2077
      %2149 = vmatmul.f32.gmra.mxu0 %v2083
      %v2150 = vpop.f32.mrf.mxu0
      %v2151 = vadd.f32 %v340, %v2150
      %2152 = vmatmul.f32.gmra.mxu0 %v2086
      %v2153 = vpop.f32.mrf.mxu0
      %v2154 = vadd.f32 %v340, %v2153
      %2155 = vmatmul.f32.gmra.mxu0 %v2089
      %v2156 = vpop.f32.mrf.mxu0
      %v2157 = vadd.f32 %v340, %v2156
      %2158 = vmatmul.f32.gmra.mxu0 %v2092
      %v2159 = vpop.f32.mrf.mxu0
      %v2160 = vadd.f32 %v340, %v2159
      %2161 = vmatmul.f32.gmra.mxu0 %v2095
      %v2162 = vpop.f32.mrf.mxu0
      %v2163 = vadd.f32 %v340, %v2162
      %2164 = vmatmul.f32.gmra.mxu0 %v2098
      %v2165 = vpop.f32.mrf.mxu0
      %v2166 = vadd.f32 %v340, %v2165
      %2167 = vmatmul.f32.gmra.mxu0 %v2101
      %v2168 = vpop.f32.mrf.mxu0
      %v2169 = vadd.f32 %v340, %v2168
      %2170 = vmatmul.f32.gmra.mxu0 %v2104
      %v2171 = vpop.f32.mrf.mxu0
      %v2172 = vadd.f32 %v340, %v2171
      %2173 = vmatmul.f32.gmra.mxu0 %v2107
      %v2174 = vpop.f32.mrf.mxu0
      %v2175 = vadd.f32 %v340, %v2174
      %2176 = vmatmul.f32.gmra.mxu0 %v2110
      %v2177 = vpop.f32.mrf.mxu0
      %v2178 = vadd.f32 %v340, %v2177
      %2179 = vmatmul.f32.gmra.mxu0 %v2113
      %v2180 = vpop.f32.mrf.mxu0
      %v2181 = vadd.f32 %v340, %v2180
      %2182 = vmatmul.f32.gmra.mxu0 %v2116
      %v2183 = vpop.f32.mrf.mxu0
      %v2184 = vadd.f32 %v340, %v2183
      %2185 = vmatmul.f32.gmra.mxu0 %v2119
      %v2186 = vpop.f32.mrf.mxu0
      %v2187 = vadd.f32 %v340, %v2186
      %2188 = vmatmul.f32.gmra.mxu0 %v2122
      %v2189 = vpop.f32.mrf.mxu0
      %v2190 = vadd.f32 %v340, %v2189
      %2191 = vmatmul.f32.gmra.mxu0 %v2125
      %v2192 = vpop.f32.mrf.mxu0
      %v2193 = vadd.f32 %v340, %v2192
      %2194 = vmatmul.f32.gmra.mxu0 %v2128
      %v2195 = vpop.f32.mrf.mxu0
      %v2196 = vadd.f32 %v340, %v2195
      %2197 = vdwg.mxu0
      %v2198 = vmax.f32 %v2151, 0.0
      %v2199 = vmax.f32 %v2154, 0.0
      %v2200 = vmax.f32 %v2157, 0.0
      %v2201 = vmax.f32 %v2160, 0.0
      %v2202 = vmax.f32 %v2163, 0.0
      %v2203 = vmax.f32 %v2166, 0.0
      %v2204 = vmax.f32 %v2169, 0.0
      %v2205 = vmax.f32 %v2172, 0.0
      %v2206 = vmax.f32 %v2175, 0.0
      %v2207 = vmax.f32 %v2178, 0.0
      %v2208 = vmax.f32 %v2181, 0.0
      %v2209 = vmax.f32 %v2184, 0.0
      %v2210 = vmax.f32 %v2187, 0.0
      %v2211 = vmax.f32 %v2190, 0.0
      %v2212 = vmax.f32 %v2193, 0.0
      %v2213 = vmax.f32 %v2196, 0.0
      %2218 = vrot.lane.b32.xlu0 %v2202, 32
      %v2219 = vpop.permute.xlu0 %2218
      %2220 = vrot.lane.b32.xlu0 %v2203, 32
      %v2221 = vpop.permute.xlu0 %2220
      %2222 = vrot.lane.b32.xlu0 %v2204, 32
      %v2223 = vpop.permute.xlu0 %2222
      %2224 = vrot.lane.b32.xlu0 %v2205, 32
      %v2225 = vpop.permute.xlu0 %2224
      %2234 = vrot.lane.b32.xlu0 %v2206, 64
      %v2235 = vpop.permute.xlu0 %2234
      %2236 = vrot.lane.b32.xlu0 %v2207, 64
      %v2237 = vpop.permute.xlu0 %2236
      %2238 = vrot.lane.b32.xlu0 %v2208, 64
      %v2239 = vpop.permute.xlu0 %2238
      %2240 = vrot.lane.b32.xlu0 %v2209, 64
      %v2241 = vpop.permute.xlu0 %2240
      %2250 = vrot.lane.b32.xlu0 %v2210, 96
      %v2251 = vpop.permute.xlu0 %2250
      %2252 = vrot.lane.b32.xlu0 %v2211, 96
      %v2253 = vpop.permute.xlu0 %2252
      %2254 = vrot.lane.b32.xlu0 %v2212, 96
      %v2255 = vpop.permute.xlu0 %2254
      %2256 = vrot.lane.b32.xlu0 %v2213, 96
      %v2257 = vpop.permute.xlu0 %2256
      %v2262 = vsel %vm523, %v2198, %v2219
      %v2263 = vsel %vm523, %v2199, %v2221
      %v2264 = vsel %vm523, %v2200, %v2223
      %v2265 = vsel %vm523, %v2201, %v2225
      %v2266 = vsel %vm528, %v2262, %v2235
      %v2267 = vsel %vm528, %v2263, %v2237
      %v2268 = vsel %vm528, %v2264, %v2239
      %v2269 = vsel %vm528, %v2265, %v2241
      %v2270 = vsel %vm533, %v2266, %v2251
      %v2271 = vsel %vm533, %v2267, %v2253
      %v2272 = vsel %vm533, %v2268, %v2255
      %v2273 = vsel %vm533, %v2269, %v2257
      %2274 = vst [vmem:[#allocation2 + $0x100] sm:$0xff] %v2270
      %2275 = vst [vmem:[#allocation2 + $0x108] sm:$0xff] %v2271
      %2276 = vst [vmem:[#allocation2 + $0x110] sm:$0xff] %v2272
      %2277 = vst [vmem:[#allocation2 + $0x118] sm:$0xff] %v2273
      %v2278 = vld [vmem:[%s310 + $0x480] sm:$0xff]
      %v2279 = vld [vmem:[%s310 + $0x488] sm:$0xff]
      %v2280 = vld [vmem:[%s310 + $0x490] sm:$0xff]
      %v2281 = vld [vmem:[%s310 + $0x498] sm:$0xff]
      %v2282 = vld [vmem:[%s310 + $0x4a0] sm:$0xff]
      %v2283 = vld [vmem:[%s310 + $0x4a8] sm:$0xff]
      %v2284 = vld [vmem:[%s310 + $0x4b0] sm:$0xff]
      %v2285 = vld [vmem:[%s310 + $0x4b8] sm:$0xff]
      %v2286 = vld [vmem:[%s310 + $0x4c0] sm:$0xff]
      %v2287 = vld [vmem:[%s310 + $0x4c8] sm:$0xff]
      %v2288 = vld [vmem:[%s310 + $0x4d0] sm:$0xff]
      %v2289 = vld [vmem:[%s310 + $0x4d8] sm:$0xff]
      %v2290 = vld [vmem:[%s310 + $0x4e0] sm:$0xff]
      %v2291 = vld [vmem:[%s310 + $0x4e8] sm:$0xff]
      %v2292 = vld [vmem:[%s310 + $0x4f0] sm:$0xff]
      %v2293 = vld [vmem:[%s310 + $0x4f8] sm:$0xff]
      %v2294 = vld [vmem:[%s1] sm:$0xff]
      %v2295 = vld [vmem:[%s1 + $0x8] sm:$0xff]
      %v2296 = vld [vmem:[%s1 + $0x10] sm:$0xff]
      %v2297 = vld [vmem:[%s1 + $0x18] sm:$0xff]
      %v2298 = vld [vmem:[%s1 + $0x20] sm:$0xf]
      %v2300 = vsel %vm341, %v2278, 0
      %v2303 = vsel %vm341, %v2279, 0
      %v2306 = vsel %vm341, %v2280, 0
      %v2309 = vsel %vm341, %v2281, 0
      %v2312 = vsel %vm341, %v2282, 0
      %v2315 = vsel %vm341, %v2283, 0
      %v2318 = vsel %vm341, %v2284, 0
      %v2321 = vsel %vm341, %v2285, 0
      %v2324 = vsel %vm341, %v2286, 0
      %v2327 = vsel %vm341, %v2287, 0
      %v2330 = vsel %vm341, %v2288, 0
      %v2333 = vsel %vm341, %v2289, 0
      %v2336 = vsel %vm341, %v2290, 0
      %v2339 = vsel %vm341, %v2291, 0
      %v2342 = vsel %vm341, %v2292, 0
      %v2345 = vsel %vm341, %v2293, 0
      %v2348 = vsel %vm390, %v2298, 0
      %2350 = vmatpush.msra.mxu0 0.0
      %2351 = vmatpush.msra.mxu0 0.0
      %2352 = vmatpush.msra.mxu0 0.0
      %2353 = vmatpush.msra.mxu0 0.0
      %2354 = vmatpush.msra.mxu0 0.0
      %2355 = vmatpush.msra.mxu0 0.0
      %2356 = vmatpush.msra.mxu0 0.0
      %2357 = vmatpush.msra.mxu0 0.0
      %2358 = vmatpush.msra.mxu0 0.0
      %2359 = vmatpush.msra.mxu0 0.0
      %2360 = vmatpush.msra.mxu0 0.0
      %2361 = vmatpush.msra.mxu0 %v2348
      %2362 = vmatpush.msra.mxu0 %v2297
      %2363 = vmatpush.msra.mxu0 %v2296
      %2364 = vmatpush.msra.mxu0 %v2295
      %2365 = vmatpush.msra.mxu0 %v2294
      %2366 = vmatmul.f32.gmra.mxu0 %v2300
      %v2367 = vpop.f32.mrf.mxu0
      %v2368 = vadd.f32 %v340, %v2367
      %2369 = vmatmul.f32.gmra.mxu0 %v2303
      %v2370 = vpop.f32.mrf.mxu0
      %v2371 = vadd.f32 %v340, %v2370
      %2372 = vmatmul.f32.gmra.mxu0 %v2306
      %v2373 = vpop.f32.mrf.mxu0
      %v2374 = vadd.f32 %v340, %v2373
      %2375 = vmatmul.f32.gmra.mxu0 %v2309
      %v2376 = vpop.f32.mrf.mxu0
      %v2377 = vadd.f32 %v340, %v2376
      %2378 = vmatmul.f32.gmra.mxu0 %v2312
      %v2379 = vpop.f32.mrf.mxu0
      %v2380 = vadd.f32 %v340, %v2379
      %2381 = vmatmul.f32.gmra.mxu0 %v2315
      %v2382 = vpop.f32.mrf.mxu0
      %v2383 = vadd.f32 %v340, %v2382
      %2384 = vmatmul.f32.gmra.mxu0 %v2318
      %v2385 = vpop.f32.mrf.mxu0
      %v2386 = vadd.f32 %v340, %v2385
      %2387 = vmatmul.f32.gmra.mxu0 %v2321
      %v2388 = vpop.f32.mrf.mxu0
      %v2389 = vadd.f32 %v340, %v2388
      %2390 = vmatmul.f32.gmra.mxu0 %v2324
      %v2391 = vpop.f32.mrf.mxu0
      %v2392 = vadd.f32 %v340, %v2391
      %2393 = vmatmul.f32.gmra.mxu0 %v2327
      %v2394 = vpop.f32.mrf.mxu0
      %v2395 = vadd.f32 %v340, %v2394
      %2396 = vmatmul.f32.gmra.mxu0 %v2330
      %v2397 = vpop.f32.mrf.mxu0
      %v2398 = vadd.f32 %v340, %v2397
      %2399 = vmatmul.f32.gmra.mxu0 %v2333
      %v2400 = vpop.f32.mrf.mxu0
      %v2401 = vadd.f32 %v340, %v2400
      %2402 = vmatmul.f32.gmra.mxu0 %v2336
      %v2403 = vpop.f32.mrf.mxu0
      %v2404 = vadd.f32 %v340, %v2403
      %2405 = vmatmul.f32.gmra.mxu0 %v2339
      %v2406 = vpop.f32.mrf.mxu0
      %v2407 = vadd.f32 %v340, %v2406
      %2408 = vmatmul.f32.gmra.mxu0 %v2342
      %v2409 = vpop.f32.mrf.mxu0
      %v2410 = vadd.f32 %v340, %v2409
      %2411 = vmatmul.f32.gmra.mxu0 %v2345
      %v2412 = vpop.f32.mrf.mxu0
      %v2413 = vadd.f32 %v340, %v2412
      %2414 = vdwg.mxu0
      %v2415 = vmax.f32 %v2368, 0.0
      %v2416 = vmax.f32 %v2371, 0.0
      %v2417 = vmax.f32 %v2374, 0.0
      %v2418 = vmax.f32 %v2377, 0.0
      %v2419 = vmax.f32 %v2380, 0.0
      %v2420 = vmax.f32 %v2383, 0.0
      %v2421 = vmax.f32 %v2386, 0.0
      %v2422 = vmax.f32 %v2389, 0.0
      %v2423 = vmax.f32 %v2392, 0.0
      %v2424 = vmax.f32 %v2395, 0.0
      %v2425 = vmax.f32 %v2398, 0.0
      %v2426 = vmax.f32 %v2401, 0.0
      %v2427 = vmax.f32 %v2404, 0.0
      %v2428 = vmax.f32 %v2407, 0.0
      %v2429 = vmax.f32 %v2410, 0.0
      %v2430 = vmax.f32 %v2413, 0.0
      %2435 = vrot.lane.b32.xlu0 %v2419, 32
      %v2436 = vpop.permute.xlu0 %2435
      %2437 = vrot.lane.b32.xlu0 %v2420, 32
      %v2438 = vpop.permute.xlu0 %2437
      %2439 = vrot.lane.b32.xlu0 %v2421, 32
      %v2440 = vpop.permute.xlu0 %2439
      %2441 = vrot.lane.b32.xlu0 %v2422, 32
      %v2442 = vpop.permute.xlu0 %2441
      %2451 = vrot.lane.b32.xlu0 %v2423, 64
      %v2452 = vpop.permute.xlu0 %2451
      %2453 = vrot.lane.b32.xlu0 %v2424, 64
      %v2454 = vpop.permute.xlu0 %2453
      %2455 = vrot.lane.b32.xlu0 %v2425, 64
      %v2456 = vpop.permute.xlu0 %2455
      %2457 = vrot.lane.b32.xlu0 %v2426, 64
      %v2458 = vpop.permute.xlu0 %2457
      %2467 = vrot.lane.b32.xlu0 %v2427, 96
      %v2468 = vpop.permute.xlu0 %2467
      %2469 = vrot.lane.b32.xlu0 %v2428, 96
      %v2470 = vpop.permute.xlu0 %2469
      %2471 = vrot.lane.b32.xlu0 %v2429, 96
      %v2472 = vpop.permute.xlu0 %2471
      %2473 = vrot.lane.b32.xlu0 %v2430, 96
      %v2474 = vpop.permute.xlu0 %2473
      %v2479 = vsel %vm523, %v2415, %v2436
      %v2480 = vsel %vm523, %v2416, %v2438
      %v2481 = vsel %vm523, %v2417, %v2440
      %v2482 = vsel %vm523, %v2418, %v2442
      %v2483 = vsel %vm528, %v2479, %v2452
      %v2484 = vsel %vm528, %v2480, %v2454
      %v2485 = vsel %vm528, %v2481, %v2456
      %v2486 = vsel %vm528, %v2482, %v2458
      %v2487 = vsel %vm533, %v2483, %v2468
      %v2488 = vsel %vm533, %v2484, %v2470
      %v2489 = vsel %vm533, %v2485, %v2472
      %v2490 = vsel %vm533, %v2486, %v2474
      %2491 = vst [vmem:[#allocation2 + $0x120] sm:$0xff] %v2487
      %2492 = vst [vmem:[#allocation2 + $0x128] sm:$0xff] %v2488
      %2493 = vst [vmem:[#allocation2 + $0x130] sm:$0xff] %v2489
      %2494 = vst [vmem:[#allocation2 + $0x138] sm:$0xff] %v2490
      %v2495 = vld [vmem:[%s310 + $0x500] sm:$0xff]
      %v2496 = vld [vmem:[%s310 + $0x508] sm:$0xff]
      %v2497 = vld [vmem:[%s310 + $0x510] sm:$0xff]
      %v2498 = vld [vmem:[%s310 + $0x518] sm:$0xff]
      %v2499 = vld [vmem:[%s310 + $0x520] sm:$0xff]
      %v2500 = vld [vmem:[%s310 + $0x528] sm:$0xff]
      %v2501 = vld [vmem:[%s310 + $0x530] sm:$0xff]
      %v2502 = vld [vmem:[%s310 + $0x538] sm:$0xff]
      %v2503 = vld [vmem:[%s310 + $0x540] sm:$0xff]
      %v2504 = vld [vmem:[%s310 + $0x548] sm:$0xff]
      %v2505 = vld [vmem:[%s310 + $0x550] sm:$0xff]
      %v2506 = vld [vmem:[%s310 + $0x558] sm:$0xff]
      %v2507 = vld [vmem:[%s310 + $0x560] sm:$0xff]
      %v2508 = vld [vmem:[%s310 + $0x568] sm:$0xff]
      %v2509 = vld [vmem:[%s310 + $0x570] sm:$0xff]
      %v2510 = vld [vmem:[%s310 + $0x578] sm:$0xff]
      %v2511 = vld [vmem:[%s1] sm:$0xff]
      %v2512 = vld [vmem:[%s1 + $0x8] sm:$0xff]
      %v2513 = vld [vmem:[%s1 + $0x10] sm:$0xff]
      %v2514 = vld [vmem:[%s1 + $0x18] sm:$0xff]
      %v2515 = vld [vmem:[%s1 + $0x20] sm:$0xf]
      %v2517 = vsel %vm341, %v2495, 0
      %v2520 = vsel %vm341, %v2496, 0
      %v2523 = vsel %vm341, %v2497, 0
      %v2526 = vsel %vm341, %v2498, 0
      %v2529 = vsel %vm341, %v2499, 0
      %v2532 = vsel %vm341, %v2500, 0
      %v2535 = vsel %vm341, %v2501, 0
      %v2538 = vsel %vm341, %v2502, 0
      %v2541 = vsel %vm341, %v2503, 0
      %v2544 = vsel %vm341, %v2504, 0
      %v2547 = vsel %vm341, %v2505, 0
      %v2550 = vsel %vm341, %v2506, 0
      %v2553 = vsel %vm341, %v2507, 0
      %v2556 = vsel %vm341, %v2508, 0
      %v2559 = vsel %vm341, %v2509, 0
      %v2562 = vsel %vm341, %v2510, 0
      %v2565 = vsel %vm390, %v2515, 0
      %2567 = vmatpush.msra.mxu0 0.0
      %2568 = vmatpush.msra.mxu0 0.0
      %2569 = vmatpush.msra.mxu0 0.0
      %2570 = vmatpush.msra.mxu0 0.0
      %2571 = vmatpush.msra.mxu0 0.0
      %2572 = vmatpush.msra.mxu0 0.0
      %2573 = vmatpush.msra.mxu0 0.0
      %2574 = vmatpush.msra.mxu0 0.0
      %2575 = vmatpush.msra.mxu0 0.0
      %2576 = vmatpush.msra.mxu0 0.0
      %2577 = vmatpush.msra.mxu0 0.0
      %2578 = vmatpush.msra.mxu0 %v2565
      %2579 = vmatpush.msra.mxu0 %v2514
      %2580 = vmatpush.msra.mxu0 %v2513
      %2581 = vmatpush.msra.mxu0 %v2512
      %2582 = vmatpush.msra.mxu0 %v2511
      %2583 = vmatmul.f32.gmra.mxu0 %v2517
      %v2584 = vpop.f32.mrf.mxu0
      %v2585 = vadd.f32 %v340, %v2584
      %2586 = vmatmul.f32.gmra.mxu0 %v2520
      %v2587 = vpop.f32.mrf.mxu0
      %v2588 = vadd.f32 %v340, %v2587
      %2589 = vmatmul.f32.gmra.mxu0 %v2523
      %v2590 = vpop.f32.mrf.mxu0
      %v2591 = vadd.f32 %v340, %v2590
      %2592 = vmatmul.f32.gmra.mxu0 %v2526
      %v2593 = vpop.f32.mrf.mxu0
      %v2594 = vadd.f32 %v340, %v2593
      %2595 = vmatmul.f32.gmra.mxu0 %v2529
      %v2596 = vpop.f32.mrf.mxu0
      %v2597 = vadd.f32 %v340, %v2596
      %2598 = vmatmul.f32.gmra.mxu0 %v2532
      %v2599 = vpop.f32.mrf.mxu0
      %v2600 = vadd.f32 %v340, %v2599
      %2601 = vmatmul.f32.gmra.mxu0 %v2535
      %v2602 = vpop.f32.mrf.mxu0
      %v2603 = vadd.f32 %v340, %v2602
      %2604 = vmatmul.f32.gmra.mxu0 %v2538
      %v2605 = vpop.f32.mrf.mxu0
      %v2606 = vadd.f32 %v340, %v2605
      %2607 = vmatmul.f32.gmra.mxu0 %v2541
      %v2608 = vpop.f32.mrf.mxu0
      %v2609 = vadd.f32 %v340, %v2608
      %2610 = vmatmul.f32.gmra.mxu0 %v2544
      %v2611 = vpop.f32.mrf.mxu0
      %v2612 = vadd.f32 %v340, %v2611
      %2613 = vmatmul.f32.gmra.mxu0 %v2547
      %v2614 = vpop.f32.mrf.mxu0
      %v2615 = vadd.f32 %v340, %v2614
      %2616 = vmatmul.f32.gmra.mxu0 %v2550
      %v2617 = vpop.f32.mrf.mxu0
      %v2618 = vadd.f32 %v340, %v2617
      %2619 = vmatmul.f32.gmra.mxu0 %v2553
      %v2620 = vpop.f32.mrf.mxu0
      %v2621 = vadd.f32 %v340, %v2620
      %2622 = vmatmul.f32.gmra.mxu0 %v2556
      %v2623 = vpop.f32.mrf.mxu0
      %v2624 = vadd.f32 %v340, %v2623
      %2625 = vmatmul.f32.gmra.mxu0 %v2559
      %v2626 = vpop.f32.mrf.mxu0
      %v2627 = vadd.f32 %v340, %v2626
      %2628 = vmatmul.f32.gmra.mxu0 %v2562
      %v2629 = vpop.f32.mrf.mxu0
      %v2630 = vadd.f32 %v340, %v2629
      %2631 = vdwg.mxu0
      %v2632 = vmax.f32 %v2585, 0.0
      %v2633 = vmax.f32 %v2588, 0.0
      %v2634 = vmax.f32 %v2591, 0.0
      %v2635 = vmax.f32 %v2594, 0.0
      %v2636 = vmax.f32 %v2597, 0.0
      %v2637 = vmax.f32 %v2600, 0.0
      %v2638 = vmax.f32 %v2603, 0.0
      %v2639 = vmax.f32 %v2606, 0.0
      %v2640 = vmax.f32 %v2609, 0.0
      %v2641 = vmax.f32 %v2612, 0.0
      %v2642 = vmax.f32 %v2615, 0.0
      %v2643 = vmax.f32 %v2618, 0.0
      %v2644 = vmax.f32 %v2621, 0.0
      %v2645 = vmax.f32 %v2624, 0.0
      %v2646 = vmax.f32 %v2627, 0.0
      %v2647 = vmax.f32 %v2630, 0.0
      %2652 = vrot.lane.b32.xlu0 %v2636, 32
      %v2653 = vpop.permute.xlu0 %2652
      %2654 = vrot.lane.b32.xlu0 %v2637, 32
      %v2655 = vpop.permute.xlu0 %2654
      %2656 = vrot.lane.b32.xlu0 %v2638, 32
      %v2657 = vpop.permute.xlu0 %2656
      %2658 = vrot.lane.b32.xlu0 %v2639, 32
      %v2659 = vpop.permute.xlu0 %2658
      %2668 = vrot.lane.b32.xlu0 %v2640, 64
      %v2669 = vpop.permute.xlu0 %2668
      %2670 = vrot.lane.b32.xlu0 %v2641, 64
      %v2671 = vpop.permute.xlu0 %2670
      %2672 = vrot.lane.b32.xlu0 %v2642, 64
      %v2673 = vpop.permute.xlu0 %2672
      %2674 = vrot.lane.b32.xlu0 %v2643, 64
      %v2675 = vpop.permute.xlu0 %2674
      %2684 = vrot.lane.b32.xlu0 %v2644, 96
      %v2685 = vpop.permute.xlu0 %2684
      %2686 = vrot.lane.b32.xlu0 %v2645, 96
      %v2687 = vpop.permute.xlu0 %2686
      %2688 = vrot.lane.b32.xlu0 %v2646, 96
      %v2689 = vpop.permute.xlu0 %2688
      %2690 = vrot.lane.b32.xlu0 %v2647, 96
      %v2691 = vpop.permute.xlu0 %2690
      %v2696 = vsel %vm523, %v2632, %v2653
      %v2697 = vsel %vm523, %v2633, %v2655
      %v2698 = vsel %vm523, %v2634, %v2657
      %v2699 = vsel %vm523, %v2635, %v2659
      %v2700 = vsel %vm528, %v2696, %v2669
      %v2701 = vsel %vm528, %v2697, %v2671
      %v2702 = vsel %vm528, %v2698, %v2673
      %v2703 = vsel %vm528, %v2699, %v2675
      %v2704 = vsel %vm533, %v2700, %v2685
      %v2705 = vsel %vm533, %v2701, %v2687
      %v2706 = vsel %vm533, %v2702, %v2689
      %v2707 = vsel %vm533, %v2703, %v2691
      %2708 = vst [vmem:[#allocation2 + $0x140] sm:$0xff] %v2704
      %2709 = vst [vmem:[#allocation2 + $0x148] sm:$0xff] %v2705
      %2710 = vst [vmem:[#allocation2 + $0x150] sm:$0xff] %v2706
      %2711 = vst [vmem:[#allocation2 + $0x158] sm:$0xff] %v2707
      %v2712 = vld [vmem:[%s310 + $0x580] sm:$0xff]
      %v2713 = vld [vmem:[%s310 + $0x588] sm:$0xff]
      %v2714 = vld [vmem:[%s310 + $0x590] sm:$0xff]
      %v2715 = vld [vmem:[%s310 + $0x598] sm:$0xff]
      %v2716 = vld [vmem:[%s310 + $0x5a0] sm:$0xff]
      %v2717 = vld [vmem:[%s310 + $0x5a8] sm:$0xff]
      %v2718 = vld [vmem:[%s310 + $0x5b0] sm:$0xff]
      %v2719 = vld [vmem:[%s310 + $0x5b8] sm:$0xff]
      %v2720 = vld [vmem:[%s310 + $0x5c0] sm:$0xff]
      %v2721 = vld [vmem:[%s310 + $0x5c8] sm:$0xff]
      %v2722 = vld [vmem:[%s310 + $0x5d0] sm:$0xff]
      %v2723 = vld [vmem:[%s310 + $0x5d8] sm:$0xff]
      %v2724 = vld [vmem:[%s310 + $0x5e0] sm:$0xff]
      %v2725 = vld [vmem:[%s310 + $0x5e8] sm:$0xff]
      %v2726 = vld [vmem:[%s310 + $0x5f0] sm:$0xff]
      %v2727 = vld [vmem:[%s310 + $0x5f8] sm:$0xff]
      %v2728 = vld [vmem:[%s1] sm:$0xff]
      %v2729 = vld [vmem:[%s1 + $0x8] sm:$0xff]
      %v2730 = vld [vmem:[%s1 + $0x10] sm:$0xff]
      %v2731 = vld [vmem:[%s1 + $0x18] sm:$0xff]
      %v2732 = vld [vmem:[%s1 + $0x20] sm:$0xf]
      %v2734 = vsel %vm341, %v2712, 0
      %v2737 = vsel %vm341, %v2713, 0
      %v2740 = vsel %vm341, %v2714, 0
      %v2743 = vsel %vm341, %v2715, 0
      %v2746 = vsel %vm341, %v2716, 0
      %v2749 = vsel %vm341, %v2717, 0
      %v2752 = vsel %vm341, %v2718, 0
      %v2755 = vsel %vm341, %v2719, 0
      %v2758 = vsel %vm341, %v2720, 0
      %v2761 = vsel %vm341, %v2721, 0
      %v2764 = vsel %vm341, %v2722, 0
      %v2767 = vsel %vm341, %v2723, 0
      %v2770 = vsel %vm341, %v2724, 0
      %v2773 = vsel %vm341, %v2725, 0
      %v2776 = vsel %vm341, %v2726, 0
      %v2779 = vsel %vm341, %v2727, 0
      %v2782 = vsel %vm390, %v2732, 0
      %2784 = vmatpush.msra.mxu0 0.0
      %2785 = vmatpush.msra.mxu0 0.0
      %2786 = vmatpush.msra.mxu0 0.0
      %2787 = vmatpush.msra.mxu0 0.0
      %2788 = vmatpush.msra.mxu0 0.0
      %2789 = vmatpush.msra.mxu0 0.0
      %2790 = vmatpush.msra.mxu0 0.0
      %2791 = vmatpush.msra.mxu0 0.0
      %2792 = vmatpush.msra.mxu0 0.0
      %2793 = vmatpush.msra.mxu0 0.0
      %2794 = vmatpush.msra.mxu0 0.0
      %2795 = vmatpush.msra.mxu0 %v2782
      %2796 = vmatpush.msra.mxu0 %v2731
      %2797 = vmatpush.msra.mxu0 %v2730
      %2798 = vmatpush.msra.mxu0 %v2729
      %2799 = vmatpush.msra.mxu0 %v2728
      %2800 = vmatmul.f32.gmra.mxu0 %v2734
      %v2801 = vpop.f32.mrf.mxu0
      %v2802 = vadd.f32 %v340, %v2801
      %2803 = vmatmul.f32.gmra.mxu0 %v2737
      %v2804 = vpop.f32.mrf.mxu0
      %v2805 = vadd.f32 %v340, %v2804
      %2806 = vmatmul.f32.gmra.mxu0 %v2740
      %v2807 = vpop.f32.mrf.mxu0
      %v2808 = vadd.f32 %v340, %v2807
      %2809 = vmatmul.f32.gmra.mxu0 %v2743
      %v2810 = vpop.f32.mrf.mxu0
      %v2811 = vadd.f32 %v340, %v2810
      %2812 = vmatmul.f32.gmra.mxu0 %v2746
      %v2813 = vpop.f32.mrf.mxu0
      %v2814 = vadd.f32 %v340, %v2813
      %2815 = vmatmul.f32.gmra.mxu0 %v2749
      %v2816 = vpop.f32.mrf.mxu0
      %v2817 = vadd.f32 %v340, %v2816
      %2818 = vmatmul.f32.gmra.mxu0 %v2752
      %v2819 = vpop.f32.mrf.mxu0
      %v2820 = vadd.f32 %v340, %v2819
      %2821 = vmatmul.f32.gmra.mxu0 %v2755
      %v2822 = vpop.f32.mrf.mxu0
      %v2823 = vadd.f32 %v340, %v2822
      %2824 = vmatmul.f32.gmra.mxu0 %v2758
      %v2825 = vpop.f32.mrf.mxu0
      %v2826 = vadd.f32 %v340, %v2825
      %2827 = vmatmul.f32.gmra.mxu0 %v2761
      %v2828 = vpop.f32.mrf.mxu0
      %v2829 = vadd.f32 %v340, %v2828
      %2830 = vmatmul.f32.gmra.mxu0 %v2764
      %v2831 = vpop.f32.mrf.mxu0
      %v2832 = vadd.f32 %v340, %v2831
      %2833 = vmatmul.f32.gmra.mxu0 %v2767
      %v2834 = vpop.f32.mrf.mxu0
      %v2835 = vadd.f32 %v340, %v2834
      %2836 = vmatmul.f32.gmra.mxu0 %v2770
      %v2837 = vpop.f32.mrf.mxu0
      %v2838 = vadd.f32 %v340, %v2837
      %2839 = vmatmul.f32.gmra.mxu0 %v2773
      %v2840 = vpop.f32.mrf.mxu0
      %v2841 = vadd.f32 %v340, %v2840
      %2842 = vmatmul.f32.gmra.mxu0 %v2776
      %v2843 = vpop.f32.mrf.mxu0
      %v2844 = vadd.f32 %v340, %v2843
      %2845 = vmatmul.f32.gmra.mxu0 %v2779
      %v2846 = vpop.f32.mrf.mxu0
      %v2847 = vadd.f32 %v340, %v2846
      %2848 = vdwg.mxu0
      %v2849 = vmax.f32 %v2802, 0.0
      %v2850 = vmax.f32 %v2805, 0.0
      %v2851 = vmax.f32 %v2808, 0.0
      %v2852 = vmax.f32 %v2811, 0.0
      %v2853 = vmax.f32 %v2814, 0.0
      %v2854 = vmax.f32 %v2817, 0.0
      %v2855 = vmax.f32 %v2820, 0.0
      %v2856 = vmax.f32 %v2823, 0.0
      %v2857 = vmax.f32 %v2826, 0.0
      %v2858 = vmax.f32 %v2829, 0.0
      %v2859 = vmax.f32 %v2832, 0.0
      %v2860 = vmax.f32 %v2835, 0.0
      %v2861 = vmax.f32 %v2838, 0.0
      %v2862 = vmax.f32 %v2841, 0.0
      %v2863 = vmax.f32 %v2844, 0.0
      %v2864 = vmax.f32 %v2847, 0.0
      %2869 = vrot.lane.b32.xlu0 %v2853, 32
      %v2870 = vpop.permute.xlu0 %2869
      %2871 = vrot.lane.b32.xlu0 %v2854, 32
      %v2872 = vpop.permute.xlu0 %2871
      %2873 = vrot.lane.b32.xlu0 %v2855, 32
      %v2874 = vpop.permute.xlu0 %2873
      %2875 = vrot.lane.b32.xlu0 %v2856, 32
      %v2876 = vpop.permute.xlu0 %2875
      %2885 = vrot.lane.b32.xlu0 %v2857, 64
      %v2886 = vpop.permute.xlu0 %2885
      %2887 = vrot.lane.b32.xlu0 %v2858, 64
      %v2888 = vpop.permute.xlu0 %2887
      %2889 = vrot.lane.b32.xlu0 %v2859, 64
      %v2890 = vpop.permute.xlu0 %2889
      %2891 = vrot.lane.b32.xlu0 %v2860, 64
      %v2892 = vpop.permute.xlu0 %2891
      %2901 = vrot.lane.b32.xlu0 %v2861, 96
      %v2902 = vpop.permute.xlu0 %2901
      %2903 = vrot.lane.b32.xlu0 %v2862, 96
      %v2904 = vpop.permute.xlu0 %2903
      %2905 = vrot.lane.b32.xlu0 %v2863, 96
      %v2906 = vpop.permute.xlu0 %2905
      %2907 = vrot.lane.b32.xlu0 %v2864, 96
      %v2908 = vpop.permute.xlu0 %2907
      %v2913 = vsel %vm523, %v2849, %v2870
      %v2914 = vsel %vm523, %v2850, %v2872
      %v2915 = vsel %vm523, %v2851, %v2874
      %v2916 = vsel %vm523, %v2852, %v2876
      %v2917 = vsel %vm528, %v2913, %v2886
      %v2918 = vsel %vm528, %v2914, %v2888
      %v2919 = vsel %vm528, %v2915, %v2890
      %v2920 = vsel %vm528, %v2916, %v2892
      %v2921 = vsel %vm533, %v2917, %v2902
      %v2922 = vsel %vm533, %v2918, %v2904
      %v2923 = vsel %vm533, %v2919, %v2906
      %v2924 = vsel %vm533, %v2920, %v2908
      %2925 = vst [vmem:[#allocation2 + $0x160] sm:$0xff] %v2921
      %2926 = vst [vmem:[#allocation2 + $0x168] sm:$0xff] %v2922
      %2927 = vst [vmem:[#allocation2 + $0x170] sm:$0xff] %v2923
      %2928 = vst [vmem:[#allocation2 + $0x178] sm:$0xff] %v2924
      %v2929 = vld [vmem:[%s310 + $0x600] sm:$0xff]
      %v2930 = vld [vmem:[%s310 + $0x608] sm:$0xff]
      %v2931 = vld [vmem:[%s310 + $0x610] sm:$0xff]
      %v2932 = vld [vmem:[%s310 + $0x618] sm:$0xff]
      %v2933 = vld [vmem:[%s310 + $0x620] sm:$0xff]
      %v2934 = vld [vmem:[%s310 + $0x628] sm:$0xff]
      %v2935 = vld [vmem:[%s310 + $0x630] sm:$0xff]
      %v2936 = vld [vmem:[%s310 + $0x638] sm:$0xff]
      %v2937 = vld [vmem:[%s310 + $0x640] sm:$0xff]
      %v2938 = vld [vmem:[%s310 + $0x648] sm:$0xff]
      %v2939 = vld [vmem:[%s310 + $0x650] sm:$0xff]
      %v2940 = vld [vmem:[%s310 + $0x658] sm:$0xff]
      %v2941 = vld [vmem:[%s310 + $0x660] sm:$0xff]
      %v2942 = vld [vmem:[%s310 + $0x668] sm:$0xff]
      %v2943 = vld [vmem:[%s310 + $0x670] sm:$0xff]
      %v2944 = vld [vmem:[%s310 + $0x678] sm:$0xff]
      %v2945 = vld [vmem:[%s1] sm:$0xff]
      %v2946 = vld [vmem:[%s1 + $0x8] sm:$0xff]
      %v2947 = vld [vmem:[%s1 + $0x10] sm:$0xff]
      %v2948 = vld [vmem:[%s1 + $0x18] sm:$0xff]
      %v2949 = vld [vmem:[%s1 + $0x20] sm:$0xf]
      %v2951 = vsel %vm341, %v2929, 0
      %v2954 = vsel %vm341, %v2930, 0
      %v2957 = vsel %vm341, %v2931, 0
      %v2960 = vsel %vm341, %v2932, 0
      %v2963 = vsel %vm341, %v2933, 0
      %v2966 = vsel %vm341, %v2934, 0
      %v2969 = vsel %vm341, %v2935, 0
      %v2972 = vsel %vm341, %v2936, 0
      %v2975 = vsel %vm341, %v2937, 0
      %v2978 = vsel %vm341, %v2938, 0
      %v2981 = vsel %vm341, %v2939, 0
      %v2984 = vsel %vm341, %v2940, 0
      %v2987 = vsel %vm341, %v2941, 0
      %v2990 = vsel %vm341, %v2942, 0
      %v2993 = vsel %vm341, %v2943, 0
      %v2996 = vsel %vm341, %v2944, 0
      %v2999 = vsel %vm390, %v2949, 0
      %3001 = vmatpush.msra.mxu0 0.0
      %3002 = vmatpush.msra.mxu0 0.0
      %3003 = vmatpush.msra.mxu0 0.0
      %3004 = vmatpush.msra.mxu0 0.0
      %3005 = vmatpush.msra.mxu0 0.0
      %3006 = vmatpush.msra.mxu0 0.0
      %3007 = vmatpush.msra.mxu0 0.0
      %3008 = vmatpush.msra.mxu0 0.0
      %3009 = vmatpush.msra.mxu0 0.0
      %3010 = vmatpush.msra.mxu0 0.0
      %3011 = vmatpush.msra.mxu0 0.0
      %3012 = vmatpush.msra.mxu0 %v2999
      %3013 = vmatpush.msra.mxu0 %v2948
      %3014 = vmatpush.msra.mxu0 %v2947
      %3015 = vmatpush.msra.mxu0 %v2946
      %3016 = vmatpush.msra.mxu0 %v2945
      %3017 = vmatmul.f32.gmra.mxu0 %v2951
      %v3018 = vpop.f32.mrf.mxu0
      %v3019 = vadd.f32 %v340, %v3018
      %3020 = vmatmul.f32.gmra.mxu0 %v2954
      %v3021 = vpop.f32.mrf.mxu0
      %v3022 = vadd.f32 %v340, %v3021
      %3023 = vmatmul.f32.gmra.mxu0 %v2957
      %v3024 = vpop.f32.mrf.mxu0
      %v3025 = vadd.f32 %v340, %v3024
      %3026 = vmatmul.f32.gmra.mxu0 %v2960
      %v3027 = vpop.f32.mrf.mxu0
      %v3028 = vadd.f32 %v340, %v3027
      %3029 = vmatmul.f32.gmra.mxu0 %v2963
      %v3030 = vpop.f32.mrf.mxu0
      %v3031 = vadd.f32 %v340, %v3030
      %3032 = vmatmul.f32.gmra.mxu0 %v2966
      %v3033 = vpop.f32.mrf.mxu0
      %v3034 = vadd.f32 %v340, %v3033
      %3035 = vmatmul.f32.gmra.mxu0 %v2969
      %v3036 = vpop.f32.mrf.mxu0
      %v3037 = vadd.f32 %v340, %v3036
      %3038 = vmatmul.f32.gmra.mxu0 %v2972
      %v3039 = vpop.f32.mrf.mxu0
      %v3040 = vadd.f32 %v340, %v3039
      %3041 = vmatmul.f32.gmra.mxu0 %v2975
      %v3042 = vpop.f32.mrf.mxu0
      %v3043 = vadd.f32 %v340, %v3042
      %3044 = vmatmul.f32.gmra.mxu0 %v2978
      %v3045 = vpop.f32.mrf.mxu0
      %v3046 = vadd.f32 %v340, %v3045
      %3047 = vmatmul.f32.gmra.mxu0 %v2981
      %v3048 = vpop.f32.mrf.mxu0
      %v3049 = vadd.f32 %v340, %v3048
      %3050 = vmatmul.f32.gmra.mxu0 %v2984
      %v3051 = vpop.f32.mrf.mxu0
      %v3052 = vadd.f32 %v340, %v3051
      %3053 = vmatmul.f32.gmra.mxu0 %v2987
      %v3054 = vpop.f32.mrf.mxu0
      %v3055 = vadd.f32 %v340, %v3054
      %3056 = vmatmul.f32.gmra.mxu0 %v2990
      %v3057 = vpop.f32.mrf.mxu0
      %v3058 = vadd.f32 %v340, %v3057
      %3059 = vmatmul.f32.gmra.mxu0 %v2993
      %v3060 = vpop.f32.mrf.mxu0
      %v3061 = vadd.f32 %v340, %v3060
      %3062 = vmatmul.f32.gmra.mxu0 %v2996
      %v3063 = vpop.f32.mrf.mxu0
      %v3064 = vadd.f32 %v340, %v3063
      %3065 = vdwg.mxu0
      %v3066 = vmax.f32 %v3019, 0.0
      %v3067 = vmax.f32 %v3022, 0.0
      %v3068 = vmax.f32 %v3025, 0.0
      %v3069 = vmax.f32 %v3028, 0.0
      %v3070 = vmax.f32 %v3031, 0.0
      %v3071 = vmax.f32 %v3034, 0.0
      %v3072 = vmax.f32 %v3037, 0.0
      %v3073 = vmax.f32 %v3040, 0.0
      %v3074 = vmax.f32 %v3043, 0.0
      %v3075 = vmax.f32 %v3046, 0.0
      %v3076 = vmax.f32 %v3049, 0.0
      %v3077 = vmax.f32 %v3052, 0.0
      %v3078 = vmax.f32 %v3055, 0.0
      %v3079 = vmax.f32 %v3058, 0.0
      %v3080 = vmax.f32 %v3061, 0.0
      %v3081 = vmax.f32 %v3064, 0.0
      %3086 = vrot.lane.b32.xlu0 %v3070, 32
      %v3087 = vpop.permute.xlu0 %3086
      %3088 = vrot.lane.b32.xlu0 %v3071, 32
      %v3089 = vpop.permute.xlu0 %3088
      %3090 = vrot.lane.b32.xlu0 %v3072, 32
      %v3091 = vpop.permute.xlu0 %3090
      %3092 = vrot.lane.b32.xlu0 %v3073, 32
      %v3093 = vpop.permute.xlu0 %3092
      %3102 = vrot.lane.b32.xlu0 %v3074, 64
      %v3103 = vpop.permute.xlu0 %3102
      %3104 = vrot.lane.b32.xlu0 %v3075, 64
      %v3105 = vpop.permute.xlu0 %3104
      %3106 = vrot.lane.b32.xlu0 %v3076, 64
      %v3107 = vpop.permute.xlu0 %3106
      %3108 = vrot.lane.b32.xlu0 %v3077, 64
      %v3109 = vpop.permute.xlu0 %3108
      %3118 = vrot.lane.b32.xlu0 %v3078, 96
      %v3119 = vpop.permute.xlu0 %3118
      %3120 = vrot.lane.b32.xlu0 %v3079, 96
      %v3121 = vpop.permute.xlu0 %3120
      %3122 = vrot.lane.b32.xlu0 %v3080, 96
      %v3123 = vpop.permute.xlu0 %3122
      %3124 = vrot.lane.b32.xlu0 %v3081, 96
      %v3125 = vpop.permute.xlu0 %3124
      %v3130 = vsel %vm523, %v3066, %v3087
      %v3131 = vsel %vm523, %v3067, %v3089
      %v3132 = vsel %vm523, %v3068, %v3091
      %v3133 = vsel %vm523, %v3069, %v3093
      %v3134 = vsel %vm528, %v3130, %v3103
      %v3135 = vsel %vm528, %v3131, %v3105
      %v3136 = vsel %vm528, %v3132, %v3107
      %v3137 = vsel %vm528, %v3133, %v3109
      %v3138 = vsel %vm533, %v3134, %v3119
      %v3139 = vsel %vm533, %v3135, %v3121
      %v3140 = vsel %vm533, %v3136, %v3123
      %v3141 = vsel %vm533, %v3137, %v3125
      %3142 = vst [vmem:[#allocation2 + $0x180] sm:$0xff] %v3138
      %3143 = vst [vmem:[#allocation2 + $0x188] sm:$0xff] %v3139
      %3144 = vst [vmem:[#allocation2 + $0x190] sm:$0xff] %v3140
      %3145 = vst [vmem:[#allocation2 + $0x198] sm:$0xff] %v3141
      %v3146 = vld [vmem:[%s310 + $0x680] sm:$0xff]
      %v3147 = vld [vmem:[%s310 + $0x688] sm:$0xff]
      %v3148 = vld [vmem:[%s310 + $0x690] sm:$0xff]
      %v3149 = vld [vmem:[%s310 + $0x698] sm:$0xff]
      %v3150 = vld [vmem:[%s310 + $0x6a0] sm:$0xff]
      %v3151 = vld [vmem:[%s310 + $0x6a8] sm:$0xff]
      %v3152 = vld [vmem:[%s310 + $0x6b0] sm:$0xff]
      %v3153 = vld [vmem:[%s310 + $0x6b8] sm:$0xff]
      %v3154 = vld [vmem:[%s310 + $0x6c0] sm:$0xff]
      %v3155 = vld [vmem:[%s310 + $0x6c8] sm:$0xff]
      %v3156 = vld [vmem:[%s310 + $0x6d0] sm:$0xff]
      %v3157 = vld [vmem:[%s310 + $0x6d8] sm:$0xff]
      %v3158 = vld [vmem:[%s310 + $0x6e0] sm:$0xff]
      %v3159 = vld [vmem:[%s310 + $0x6e8] sm:$0xff]
      %v3160 = vld [vmem:[%s310 + $0x6f0] sm:$0xff]
      %v3161 = vld [vmem:[%s310 + $0x6f8] sm:$0xff]
      %v3162 = vld [vmem:[%s1] sm:$0xff]
      %v3163 = vld [vmem:[%s1 + $0x8] sm:$0xff]
      %v3164 = vld [vmem:[%s1 + $0x10] sm:$0xff]
      %v3165 = vld [vmem:[%s1 + $0x18] sm:$0xff]
      %v3166 = vld [vmem:[%s1 + $0x20] sm:$0xf]
      %v3168 = vsel %vm341, %v3146, 0
      %v3171 = vsel %vm341, %v3147, 0
      %v3174 = vsel %vm341, %v3148, 0
      %v3177 = vsel %vm341, %v3149, 0
      %v3180 = vsel %vm341, %v3150, 0
      %v3183 = vsel %vm341, %v3151, 0
      %v3186 = vsel %vm341, %v3152, 0
      %v3189 = vsel %vm341, %v3153, 0
      %v3192 = vsel %vm341, %v3154, 0
      %v3195 = vsel %vm341, %v3155, 0
      %v3198 = vsel %vm341, %v3156, 0
      %v3201 = vsel %vm341, %v3157, 0
      %v3204 = vsel %vm341, %v3158, 0
      %v3207 = vsel %vm341, %v3159, 0
      %v3210 = vsel %vm341, %v3160, 0
      %v3213 = vsel %vm341, %v3161, 0
      %v3216 = vsel %vm390, %v3166, 0
      %3218 = vmatpush.msra.mxu0 0.0
      %3219 = vmatpush.msra.mxu0 0.0
      %3220 = vmatpush.msra.mxu0 0.0
      %3221 = vmatpush.msra.mxu0 0.0
      %3222 = vmatpush.msra.mxu0 0.0
      %3223 = vmatpush.msra.mxu0 0.0
      %3224 = vmatpush.msra.mxu0 0.0
      %3225 = vmatpush.msra.mxu0 0.0
      %3226 = vmatpush.msra.mxu0 0.0
      %3227 = vmatpush.msra.mxu0 0.0
      %3228 = vmatpush.msra.mxu0 0.0
      %3229 = vmatpush.msra.mxu0 %v3216
      %3230 = vmatpush.msra.mxu0 %v3165
      %3231 = vmatpush.msra.mxu0 %v3164
      %3232 = vmatpush.msra.mxu0 %v3163
      %3233 = vmatpush.msra.mxu0 %v3162
      %3234 = vmatmul.f32.gmra.mxu0 %v3168
      %v3235 = vpop.f32.mrf.mxu0
      %v3236 = vadd.f32 %v340, %v3235
      %3237 = vmatmul.f32.gmra.mxu0 %v3171
      %v3238 = vpop.f32.mrf.mxu0
      %v3239 = vadd.f32 %v340, %v3238
      %3240 = vmatmul.f32.gmra.mxu0 %v3174
      %v3241 = vpop.f32.mrf.mxu0
      %v3242 = vadd.f32 %v340, %v3241
      %3243 = vmatmul.f32.gmra.mxu0 %v3177
      %v3244 = vpop.f32.mrf.mxu0
      %v3245 = vadd.f32 %v340, %v3244
      %3246 = vmatmul.f32.gmra.mxu0 %v3180
      %v3247 = vpop.f32.mrf.mxu0
      %v3248 = vadd.f32 %v340, %v3247
      %3249 = vmatmul.f32.gmra.mxu0 %v3183
      %v3250 = vpop.f32.mrf.mxu0
      %v3251 = vadd.f32 %v340, %v3250
      %3252 = vmatmul.f32.gmra.mxu0 %v3186
      %v3253 = vpop.f32.mrf.mxu0
      %v3254 = vadd.f32 %v340, %v3253
      %3255 = vmatmul.f32.gmra.mxu0 %v3189
      %v3256 = vpop.f32.mrf.mxu0
      %v3257 = vadd.f32 %v340, %v3256
      %3258 = vmatmul.f32.gmra.mxu0 %v3192
      %v3259 = vpop.f32.mrf.mxu0
      %v3260 = vadd.f32 %v340, %v3259
      %3261 = vmatmul.f32.gmra.mxu0 %v3195
      %v3262 = vpop.f32.mrf.mxu0
      %v3263 = vadd.f32 %v340, %v3262
      %3264 = vmatmul.f32.gmra.mxu0 %v3198
      %v3265 = vpop.f32.mrf.mxu0
      %v3266 = vadd.f32 %v340, %v3265
      %3267 = vmatmul.f32.gmra.mxu0 %v3201
      %v3268 = vpop.f32.mrf.mxu0
      %v3269 = vadd.f32 %v340, %v3268
      %3270 = vmatmul.f32.gmra.mxu0 %v3204
      %v3271 = vpop.f32.mrf.mxu0
      %v3272 = vadd.f32 %v340, %v3271
      %3273 = vmatmul.f32.gmra.mxu0 %v3207
      %v3274 = vpop.f32.mrf.mxu0
      %v3275 = vadd.f32 %v340, %v3274
      %3276 = vmatmul.f32.gmra.mxu0 %v3210
      %v3277 = vpop.f32.mrf.mxu0
      %v3278 = vadd.f32 %v340, %v3277
      %3279 = vmatmul.f32.gmra.mxu0 %v3213
      %v3280 = vpop.f32.mrf.mxu0
      %v3281 = vadd.f32 %v340, %v3280
      %3282 = vdwg.mxu0
      %v3283 = vmax.f32 %v3236, 0.0
      %v3284 = vmax.f32 %v3239, 0.0
      %v3285 = vmax.f32 %v3242, 0.0
      %v3286 = vmax.f32 %v3245, 0.0
      %v3287 = vmax.f32 %v3248, 0.0
      %v3288 = vmax.f32 %v3251, 0.0
      %v3289 = vmax.f32 %v3254, 0.0
      %v3290 = vmax.f32 %v3257, 0.0
      %v3291 = vmax.f32 %v3260, 0.0
      %v3292 = vmax.f32 %v3263, 0.0
      %v3293 = vmax.f32 %v3266, 0.0
      %v3294 = vmax.f32 %v3269, 0.0
      %v3295 = vmax.f32 %v3272, 0.0
      %v3296 = vmax.f32 %v3275, 0.0
      %v3297 = vmax.f32 %v3278, 0.0
      %v3298 = vmax.f32 %v3281, 0.0
      %3303 = vrot.lane.b32.xlu0 %v3287, 32
      %v3304 = vpop.permute.xlu0 %3303
      %3305 = vrot.lane.b32.xlu0 %v3288, 32
      %v3306 = vpop.permute.xlu0 %3305
      %3307 = vrot.lane.b32.xlu0 %v3289, 32
      %v3308 = vpop.permute.xlu0 %3307
      %3309 = vrot.lane.b32.xlu0 %v3290, 32
      %v3310 = vpop.permute.xlu0 %3309
      %3319 = vrot.lane.b32.xlu0 %v3291, 64
      %v3320 = vpop.permute.xlu0 %3319
      %3321 = vrot.lane.b32.xlu0 %v3292, 64
      %v3322 = vpop.permute.xlu0 %3321
      %3323 = vrot.lane.b32.xlu0 %v3293, 64
      %v3324 = vpop.permute.xlu0 %3323
      %3325 = vrot.lane.b32.xlu0 %v3294, 64
      %v3326 = vpop.permute.xlu0 %3325
      %3335 = vrot.lane.b32.xlu0 %v3295, 96
      %v3336 = vpop.permute.xlu0 %3335
      %3337 = vrot.lane.b32.xlu0 %v3296, 96
      %v3338 = vpop.permute.xlu0 %3337
      %3339 = vrot.lane.b32.xlu0 %v3297, 96
      %v3340 = vpop.permute.xlu0 %3339
      %3341 = vrot.lane.b32.xlu0 %v3298, 96
      %v3342 = vpop.permute.xlu0 %3341
      %v3347 = vsel %vm523, %v3283, %v3304
      %v3348 = vsel %vm523, %v3284, %v3306
      %v3349 = vsel %vm523, %v3285, %v3308
      %v3350 = vsel %vm523, %v3286, %v3310
      %v3351 = vsel %vm528, %v3347, %v3320
      %v3352 = vsel %vm528, %v3348, %v3322
      %v3353 = vsel %vm528, %v3349, %v3324
      %v3354 = vsel %vm528, %v3350, %v3326
      %v3355 = vsel %vm533, %v3351, %v3336
      %v3356 = vsel %vm533, %v3352, %v3338
      %v3357 = vsel %vm533, %v3353, %v3340
      %v3358 = vsel %vm533, %v3354, %v3342
      %3359 = vst [vmem:[#allocation2 + $0x1a0] sm:$0xff] %v3355
      %3360 = vst [vmem:[#allocation2 + $0x1a8] sm:$0xff] %v3356
      %3361 = vst [vmem:[#allocation2 + $0x1b0] sm:$0xff] %v3357
      %3362 = vst [vmem:[#allocation2 + $0x1b8] sm:$0xff] %v3358
      %v3363 = vld [vmem:[%s310 + $0x700] sm:$0xff]
      %v3364 = vld [vmem:[%s310 + $0x708] sm:$0xff]
      %v3365 = vld [vmem:[%s310 + $0x710] sm:$0xff]
      %v3366 = vld [vmem:[%s310 + $0x718] sm:$0xff]
      %v3367 = vld [vmem:[%s310 + $0x720] sm:$0xff]
      %v3368 = vld [vmem:[%s310 + $0x728] sm:$0xff]
      %v3369 = vld [vmem:[%s310 + $0x730] sm:$0xff]
      %v3370 = vld [vmem:[%s310 + $0x738] sm:$0xff]
      %v3371 = vld [vmem:[%s310 + $0x740] sm:$0xff]
      %v3372 = vld [vmem:[%s310 + $0x748] sm:$0xff]
      %v3373 = vld [vmem:[%s310 + $0x750] sm:$0xff]
      %v3374 = vld [vmem:[%s310 + $0x758] sm:$0xff]
      %v3375 = vld [vmem:[%s310 + $0x760] sm:$0xff]
      %v3376 = vld [vmem:[%s310 + $0x768] sm:$0xff]
      %v3377 = vld [vmem:[%s310 + $0x770] sm:$0xff]
      %v3378 = vld [vmem:[%s310 + $0x778] sm:$0xff]
      %v3379 = vld [vmem:[%s1] sm:$0xff]
      %v3380 = vld [vmem:[%s1 + $0x8] sm:$0xff]
      %v3381 = vld [vmem:[%s1 + $0x10] sm:$0xff]
      %v3382 = vld [vmem:[%s1 + $0x18] sm:$0xff]
      %v3383 = vld [vmem:[%s1 + $0x20] sm:$0xf]
      %v3385 = vsel %vm341, %v3363, 0
      %v3388 = vsel %vm341, %v3364, 0
      %v3391 = vsel %vm341, %v3365, 0
      %v3394 = vsel %vm341, %v3366, 0
      %v3397 = vsel %vm341, %v3367, 0
      %v3400 = vsel %vm341, %v3368, 0
      %v3403 = vsel %vm341, %v3369, 0
      %v3406 = vsel %vm341, %v3370, 0
      %v3409 = vsel %vm341, %v3371, 0
      %v3412 = vsel %vm341, %v3372, 0
      %v3415 = vsel %vm341, %v3373, 0
      %v3418 = vsel %vm341, %v3374, 0
      %v3421 = vsel %vm341, %v3375, 0
      %v3424 = vsel %vm341, %v3376, 0
      %v3427 = vsel %vm341, %v3377, 0
      %v3430 = vsel %vm341, %v3378, 0
      %v3433 = vsel %vm390, %v3383, 0
      %3435 = vmatpush.msra.mxu0 0.0
      %3436 = vmatpush.msra.mxu0 0.0
      %3437 = vmatpush.msra.mxu0 0.0
      %3438 = vmatpush.msra.mxu0 0.0
      %3439 = vmatpush.msra.mxu0 0.0
      %3440 = vmatpush.msra.mxu0 0.0
      %3441 = vmatpush.msra.mxu0 0.0
      %3442 = vmatpush.msra.mxu0 0.0
      %3443 = vmatpush.msra.mxu0 0.0
      %3444 = vmatpush.msra.mxu0 0.0
      %3445 = vmatpush.msra.mxu0 0.0
      %3446 = vmatpush.msra.mxu0 %v3433
      %3447 = vmatpush.msra.mxu0 %v3382
      %3448 = vmatpush.msra.mxu0 %v3381
      %3449 = vmatpush.msra.mxu0 %v3380
      %3450 = vmatpush.msra.mxu0 %v3379
      %3451 = vmatmul.f32.gmra.mxu0 %v3385
      %v3452 = vpop.f32.mrf.mxu0
      %v3453 = vadd.f32 %v340, %v3452
      %3454 = vmatmul.f32.gmra.mxu0 %v3388
      %v3455 = vpop.f32.mrf.mxu0
      %v3456 = vadd.f32 %v340, %v3455
      %3457 = vmatmul.f32.gmra.mxu0 %v3391
      %v3458 = vpop.f32.mrf.mxu0
      %v3459 = vadd.f32 %v340, %v3458
      %3460 = vmatmul.f32.gmra.mxu0 %v3394
      %v3461 = vpop.f32.mrf.mxu0
      %v3462 = vadd.f32 %v340, %v3461
      %3463 = vmatmul.f32.gmra.mxu0 %v3397
      %v3464 = vpop.f32.mrf.mxu0
      %v3465 = vadd.f32 %v340, %v3464
      %3466 = vmatmul.f32.gmra.mxu0 %v3400
      %v3467 = vpop.f32.mrf.mxu0
      %v3468 = vadd.f32 %v340, %v3467
      %3469 = vmatmul.f32.gmra.mxu0 %v3403
      %v3470 = vpop.f32.mrf.mxu0
      %v3471 = vadd.f32 %v340, %v3470
      %3472 = vmatmul.f32.gmra.mxu0 %v3406
      %v3473 = vpop.f32.mrf.mxu0
      %v3474 = vadd.f32 %v340, %v3473
      %3475 = vmatmul.f32.gmra.mxu0 %v3409
      %v3476 = vpop.f32.mrf.mxu0
      %v3477 = vadd.f32 %v340, %v3476
      %3478 = vmatmul.f32.gmra.mxu0 %v3412
      %v3479 = vpop.f32.mrf.mxu0
      %v3480 = vadd.f32 %v340, %v3479
      %3481 = vmatmul.f32.gmra.mxu0 %v3415
      %v3482 = vpop.f32.mrf.mxu0
      %v3483 = vadd.f32 %v340, %v3482
      %3484 = vmatmul.f32.gmra.mxu0 %v3418
      %v3485 = vpop.f32.mrf.mxu0
      %v3486 = vadd.f32 %v340, %v3485
      %3487 = vmatmul.f32.gmra.mxu0 %v3421
      %v3488 = vpop.f32.mrf.mxu0
      %v3489 = vadd.f32 %v340, %v3488
      %3490 = vmatmul.f32.gmra.mxu0 %v3424
      %v3491 = vpop.f32.mrf.mxu0
      %v3492 = vadd.f32 %v340, %v3491
      %3493 = vmatmul.f32.gmra.mxu0 %v3427
      %v3494 = vpop.f32.mrf.mxu0
      %v3495 = vadd.f32 %v340, %v3494
      %3496 = vmatmul.f32.gmra.mxu0 %v3430
      %v3497 = vpop.f32.mrf.mxu0
      %v3498 = vadd.f32 %v340, %v3497
      %3499 = vdwg.mxu0
      %v3500 = vmax.f32 %v3453, 0.0
      %v3501 = vmax.f32 %v3456, 0.0
      %v3502 = vmax.f32 %v3459, 0.0
      %v3503 = vmax.f32 %v3462, 0.0
      %v3504 = vmax.f32 %v3465, 0.0
      %v3505 = vmax.f32 %v3468, 0.0
      %v3506 = vmax.f32 %v3471, 0.0
      %v3507 = vmax.f32 %v3474, 0.0
      %v3508 = vmax.f32 %v3477, 0.0
      %v3509 = vmax.f32 %v3480, 0.0
      %v3510 = vmax.f32 %v3483, 0.0
      %v3511 = vmax.f32 %v3486, 0.0
      %v3512 = vmax.f32 %v3489, 0.0
      %v3513 = vmax.f32 %v3492, 0.0
      %v3514 = vmax.f32 %v3495, 0.0
      %v3515 = vmax.f32 %v3498, 0.0
      %3520 = vrot.lane.b32.xlu0 %v3504, 32
      %v3521 = vpop.permute.xlu0 %3520
      %3522 = vrot.lane.b32.xlu0 %v3505, 32
      %v3523 = vpop.permute.xlu0 %3522
      %3524 = vrot.lane.b32.xlu0 %v3506, 32
      %v3525 = vpop.permute.xlu0 %3524
      %3526 = vrot.lane.b32.xlu0 %v3507, 32
      %v3527 = vpop.permute.xlu0 %3526
      %3536 = vrot.lane.b32.xlu0 %v3508, 64
      %v3537 = vpop.permute.xlu0 %3536
      %3538 = vrot.lane.b32.xlu0 %v3509, 64
      %v3539 = vpop.permute.xlu0 %3538
      %3540 = vrot.lane.b32.xlu0 %v3510, 64
      %v3541 = vpop.permute.xlu0 %3540
      %3542 = vrot.lane.b32.xlu0 %v3511, 64
      %v3543 = vpop.permute.xlu0 %3542
      %3552 = vrot.lane.b32.xlu0 %v3512, 96
      %v3553 = vpop.permute.xlu0 %3552
      %3554 = vrot.lane.b32.xlu0 %v3513, 96
      %v3555 = vpop.permute.xlu0 %3554
      %3556 = vrot.lane.b32.xlu0 %v3514, 96
      %v3557 = vpop.permute.xlu0 %3556
      %3558 = vrot.lane.b32.xlu0 %v3515, 96
      %v3559 = vpop.permute.xlu0 %3558
      %v3564 = vsel %vm523, %v3500, %v3521
      %v3565 = vsel %vm523, %v3501, %v3523
      %v3566 = vsel %vm523, %v3502, %v3525
      %v3567 = vsel %vm523, %v3503, %v3527
      %v3568 = vsel %vm528, %v3564, %v3537
      %v3569 = vsel %vm528, %v3565, %v3539
      %v3570 = vsel %vm528, %v3566, %v3541
      %v3571 = vsel %vm528, %v3567, %v3543
      %v3572 = vsel %vm533, %v3568, %v3553
      %v3573 = vsel %vm533, %v3569, %v3555
      %v3574 = vsel %vm533, %v3570, %v3557
      %v3575 = vsel %vm533, %v3571, %v3559
      %3576 = vst [vmem:[#allocation2 + $0x1c0] sm:$0xff] %v3572
      %3577 = vst [vmem:[#allocation2 + $0x1c8] sm:$0xff] %v3573
      %3578 = vst [vmem:[#allocation2 + $0x1d0] sm:$0xff] %v3574
      %3579 = vst [vmem:[#allocation2 + $0x1d8] sm:$0xff] %v3575
      %v3580 = vld [vmem:[%s310 + $0x780] sm:$0xff]
      %v3581 = vld [vmem:[%s310 + $0x788] sm:$0xff]
      %v3582 = vld [vmem:[%s310 + $0x790] sm:$0xff]
      %v3583 = vld [vmem:[%s310 + $0x798] sm:$0xff]
      %v3584 = vld [vmem:[%s310 + $0x7a0] sm:$0xff]
      %v3585 = vld [vmem:[%s310 + $0x7a8] sm:$0xff]
      %v3586 = vld [vmem:[%s310 + $0x7b0] sm:$0xff]
      %v3587 = vld [vmem:[%s310 + $0x7b8] sm:$0xff]
      %v3588 = vld [vmem:[%s310 + $0x7c0] sm:$0xff]
      %v3589 = vld [vmem:[%s310 + $0x7c8] sm:$0xff]
      %v3590 = vld [vmem:[%s310 + $0x7d0] sm:$0xff]
      %v3591 = vld [vmem:[%s310 + $0x7d8] sm:$0xff]
      %v3592 = vld [vmem:[%s310 + $0x7e0] sm:$0xff]
      %v3593 = vld [vmem:[%s310 + $0x7e8] sm:$0xff]
      %v3594 = vld [vmem:[%s310 + $0x7f0] sm:$0xff]
      %v3595 = vld [vmem:[%s310 + $0x7f8] sm:$0xff]
      %v3596 = vld [vmem:[%s1] sm:$0xff]
      %v3597 = vld [vmem:[%s1 + $0x8] sm:$0xff]
      %v3598 = vld [vmem:[%s1 + $0x10] sm:$0xff]
      %v3599 = vld [vmem:[%s1 + $0x18] sm:$0xff]
      %v3600 = vld [vmem:[%s1 + $0x20] sm:$0xf]
      %v3602 = vsel %vm341, %v3580, 0
      %v3605 = vsel %vm341, %v3581, 0
      %v3608 = vsel %vm341, %v3582, 0
      %v3611 = vsel %vm341, %v3583, 0
      %v3614 = vsel %vm341, %v3584, 0
      %v3617 = vsel %vm341, %v3585, 0
      %v3620 = vsel %vm341, %v3586, 0
      %v3623 = vsel %vm341, %v3587, 0
      %v3626 = vsel %vm341, %v3588, 0
      %v3629 = vsel %vm341, %v3589, 0
      %v3632 = vsel %vm341, %v3590, 0
      %v3635 = vsel %vm341, %v3591, 0
      %v3638 = vsel %vm341, %v3592, 0
      %v3641 = vsel %vm341, %v3593, 0
      %v3644 = vsel %vm341, %v3594, 0
      %v3647 = vsel %vm341, %v3595, 0
      %v3650 = vsel %vm390, %v3600, 0
      %3652 = vmatpush.msra.mxu0 0.0
      %3653 = vmatpush.msra.mxu0 0.0
      %3654 = vmatpush.msra.mxu0 0.0
      %3655 = vmatpush.msra.mxu0 0.0
      %3656 = vmatpush.msra.mxu0 0.0
      %3657 = vmatpush.msra.mxu0 0.0
      %3658 = vmatpush.msra.mxu0 0.0
      %3659 = vmatpush.msra.mxu0 0.0
      %3660 = vmatpush.msra.mxu0 0.0
      %3661 = vmatpush.msra.mxu0 0.0
      %3662 = vmatpush.msra.mxu0 0.0
      %3663 = vmatpush.msra.mxu0 %v3650
      %3664 = vmatpush.msra.mxu0 %v3599
      %3665 = vmatpush.msra.mxu0 %v3598
      %3666 = vmatpush.msra.mxu0 %v3597
      %3667 = vmatpush.msra.mxu0 %v3596
      %3668 = vmatmul.f32.gmra.mxu0 %v3602
      %v3669 = vpop.f32.mrf.mxu0
      %v3670 = vadd.f32 %v340, %v3669
      %3671 = vmatmul.f32.gmra.mxu0 %v3605
      %v3672 = vpop.f32.mrf.mxu0
      %v3673 = vadd.f32 %v340, %v3672
      %3674 = vmatmul.f32.gmra.mxu0 %v3608
      %v3675 = vpop.f32.mrf.mxu0
      %v3676 = vadd.f32 %v340, %v3675
      %3677 = vmatmul.f32.gmra.mxu0 %v3611
      %v3678 = vpop.f32.mrf.mxu0
      %v3679 = vadd.f32 %v340, %v3678
      %3680 = vmatmul.f32.gmra.mxu0 %v3614
      %v3681 = vpop.f32.mrf.mxu0
      %v3682 = vadd.f32 %v340, %v3681
      %3683 = vmatmul.f32.gmra.mxu0 %v3617
      %v3684 = vpop.f32.mrf.mxu0
      %v3685 = vadd.f32 %v340, %v3684
      %3686 = vmatmul.f32.gmra.mxu0 %v3620
      %v3687 = vpop.f32.mrf.mxu0
      %v3688 = vadd.f32 %v340, %v3687
      %3689 = vmatmul.f32.gmra.mxu0 %v3623
      %v3690 = vpop.f32.mrf.mxu0
      %v3691 = vadd.f32 %v340, %v3690
      %3692 = vmatmul.f32.gmra.mxu0 %v3626
      %v3693 = vpop.f32.mrf.mxu0
      %v3694 = vadd.f32 %v340, %v3693
      %3695 = vmatmul.f32.gmra.mxu0 %v3629
      %v3696 = vpop.f32.mrf.mxu0
      %v3697 = vadd.f32 %v340, %v3696
      %3698 = vmatmul.f32.gmra.mxu0 %v3632
      %v3699 = vpop.f32.mrf.mxu0
      %v3700 = vadd.f32 %v340, %v3699
      %3701 = vmatmul.f32.gmra.mxu0 %v3635
      %v3702 = vpop.f32.mrf.mxu0
      %v3703 = vadd.f32 %v340, %v3702
      %3704 = vmatmul.f32.gmra.mxu0 %v3638
      %v3705 = vpop.f32.mrf.mxu0
      %v3706 = vadd.f32 %v340, %v3705
      %3707 = vmatmul.f32.gmra.mxu0 %v3641
      %v3708 = vpop.f32.mrf.mxu0
      %v3709 = vadd.f32 %v340, %v3708
      %3710 = vmatmul.f32.gmra.mxu0 %v3644
      %v3711 = vpop.f32.mrf.mxu0
      %v3712 = vadd.f32 %v340, %v3711
      %3713 = vmatmul.f32.gmra.mxu0 %v3647
      %v3714 = vpop.f32.mrf.mxu0
      %v3715 = vadd.f32 %v340, %v3714
      %3716 = vdwg.mxu0
      %v3717 = vmax.f32 %v3670, 0.0
      %v3718 = vmax.f32 %v3673, 0.0
      %v3719 = vmax.f32 %v3676, 0.0
      %v3720 = vmax.f32 %v3679, 0.0
      %v3721 = vmax.f32 %v3682, 0.0
      %v3722 = vmax.f32 %v3685, 0.0
      %v3723 = vmax.f32 %v3688, 0.0
      %v3724 = vmax.f32 %v3691, 0.0
      %v3725 = vmax.f32 %v3694, 0.0
      %v3726 = vmax.f32 %v3697, 0.0
      %v3727 = vmax.f32 %v3700, 0.0
      %v3728 = vmax.f32 %v3703, 0.0
      %v3729 = vmax.f32 %v3706, 0.0
      %v3730 = vmax.f32 %v3709, 0.0
      %v3731 = vmax.f32 %v3712, 0.0
      %v3732 = vmax.f32 %v3715, 0.0
      %3737 = vrot.lane.b32.xlu0 %v3721, 32
      %v3738 = vpop.permute.xlu0 %3737
      %3739 = vrot.lane.b32.xlu0 %v3722, 32
      %v3740 = vpop.permute.xlu0 %3739
      %3741 = vrot.lane.b32.xlu0 %v3723, 32
      %v3742 = vpop.permute.xlu0 %3741
      %3743 = vrot.lane.b32.xlu0 %v3724, 32
      %v3744 = vpop.permute.xlu0 %3743
      %3753 = vrot.lane.b32.xlu0 %v3725, 64
      %v3754 = vpop.permute.xlu0 %3753
      %3755 = vrot.lane.b32.xlu0 %v3726, 64
      %v3756 = vpop.permute.xlu0 %3755
      %3757 = vrot.lane.b32.xlu0 %v3727, 64
      %v3758 = vpop.permute.xlu0 %3757
      %3759 = vrot.lane.b32.xlu0 %v3728, 64
      %v3760 = vpop.permute.xlu0 %3759
      %3769 = vrot.lane.b32.xlu0 %v3729, 96
      %v3770 = vpop.permute.xlu0 %3769
      %3771 = vrot.lane.b32.xlu0 %v3730, 96
      %v3772 = vpop.permute.xlu0 %3771
      %3773 = vrot.lane.b32.xlu0 %v3731, 96
      %v3774 = vpop.permute.xlu0 %3773
      %3775 = vrot.lane.b32.xlu0 %v3732, 96
      %v3776 = vpop.permute.xlu0 %3775
      %v3781 = vsel %vm523, %v3717, %v3738
      %v3782 = vsel %vm523, %v3718, %v3740
      %v3783 = vsel %vm523, %v3719, %v3742
      %v3784 = vsel %vm523, %v3720, %v3744
      %v3785 = vsel %vm528, %v3781, %v3754
      %v3786 = vsel %vm528, %v3782, %v3756
      %v3787 = vsel %vm528, %v3783, %v3758
      %v3788 = vsel %vm528, %v3784, %v3760
      %v3789 = vsel %vm533, %v3785, %v3770
      %v3790 = vsel %vm533, %v3786, %v3772
      %v3791 = vsel %vm533, %v3787, %v3774
      %v3792 = vsel %vm533, %v3788, %v3776
      %3793 = vst [vmem:[#allocation2 + $0x1e0] sm:$0xff] %v3789
      %3794 = vst [vmem:[#allocation2 + $0x1e8] sm:$0xff] %v3790
      %3795 = vst [vmem:[#allocation2 + $0x1f0] sm:$0xff] %v3791
      %3796 = vst [vmem:[#allocation2 + $0x1f8] sm:$0xff] %v3792
      %v3797 = vld [vmem:[%s6 + $0x1] sm:$0x1]
      %v3798 = vld [vmem:[#allocation2 + $0x20] sm:$0xff]
      %v3799 = vld [vmem:[#allocation2 + $0x28] sm:$0xff]
      %v3800 = vld [vmem:[#allocation2 + $0x30] sm:$0xff]
      %v3801 = vld [vmem:[#allocation2 + $0x38] sm:$0xff]
      %v3802 = vld [vmem:[#allocation2] sm:$0xff]
      %v3803 = vld [vmem:[#allocation2 + $0x8] sm:$0xff]
      %v3804 = vld [vmem:[#allocation2 + $0x10] sm:$0xff]
      %v3805 = vld [vmem:[#allocation2 + $0x18] sm:$0xff]
      %v3806 = vld [vmem:[#allocation2 + $0x1a0] sm:$0xff]
      %v3807 = vld [vmem:[#allocation2 + $0x1a8] sm:$0xff]
      %v3808 = vld [vmem:[#allocation2 + $0x1b0] sm:$0xff]
      %v3809 = vld [vmem:[#allocation2 + $0x1b8] sm:$0xff]
      %vm3814 = vcmask 1044480
      %v3815 = vrot.slane %v3806, 3
      %v3816 = vrot.slane %v3807, 3
      %v3817 = vsel %vm3814, %v3815, %v3816
      %v3818 = vrot.slane %v3808, 3
      %v3819 = vsel %vm3814, %v3816, %v3818
      %v3820 = vrot.slane %v3809, 3
      %v3821 = vsel %vm3814, %v3818, %v3820
      %3822 = vrot.lane.b32.xlu0 %v3815, 96
      %v3823 = vpop.permute.xlu0 %3822
      %3824 = vrot.lane.b32.xlu0 %v3817, 96
      %v3825 = vpop.permute.xlu0 %3824
      %3826 = vrot.lane.b32.xlu0 %v3819, 96
      %v3827 = vpop.permute.xlu0 %3826
      %3828 = vrot.lane.b32.xlu0 %v3821, 96
      %v3829 = vpop.permute.xlu0 %3828
      %v3831 = vsel %vm3814, 0.0, %v3823
      %v3832 = vld [vmem:[#allocation2 + $0x180] sm:$0xff]
      %v3833 = vld [vmem:[#allocation2 + $0x188] sm:$0xff]
      %v3834 = vld [vmem:[#allocation2 + $0x190] sm:$0xff]
      %v3835 = vld [vmem:[#allocation2 + $0x198] sm:$0xff]
      %v3840 = vrot.slane %v3832, 3
      %v3841 = vrot.slane %v3833, 3
      %v3842 = vsel %vm3814, %v3840, %v3841
      %v3843 = vrot.slane %v3834, 3
      %v3844 = vsel %vm3814, %v3841, %v3843
      %v3845 = vrot.slane %v3835, 3
      %v3846 = vsel %vm3814, %v3843, %v3845
      %3847 = vrot.lane.b32.xlu0 %v3840, 96
      %v3848 = vpop.permute.xlu0 %3847
      %3849 = vrot.lane.b32.xlu0 %v3842, 96
      %v3850 = vpop.permute.xlu0 %3849
      %3851 = vrot.lane.b32.xlu0 %v3844, 96
      %v3852 = vpop.permute.xlu0 %3851
      %3853 = vrot.lane.b32.xlu0 %v3846, 96
      %v3854 = vpop.permute.xlu0 %3853
      %v3859 = vsel %vm3814, 0.0, %v3848
      %3861 = vrot.lane.b32.xlu0 %v3831, 64
      %v3862 = vpop.permute.xlu0 %3861
      %3863 = vrot.lane.b32.xlu0 %v3825, 64
      %v3864 = vpop.permute.xlu0 %3863
      %3865 = vrot.lane.b32.xlu0 %v3827, 64
      %v3866 = vpop.permute.xlu0 %3865
      %3867 = vrot.lane.b32.xlu0 %v3829, 64
      %v3868 = vpop.permute.xlu0 %3867
      %v3873 = vsel %vm528, %v3802, %v3862
      %v3874 = vsel %vm528, %v3803, %v3864
      %v3875 = vsel %vm528, %v3804, %v3866
      %v3876 = vsel %vm528, %v3805, %v3868
      %3877 = vst [vmem:[#allocation5] sm:$0xff] %v3798
      %3878 = vst [vmem:[#allocation5 + $0x8] sm:$0xff] %v3873
      %3879 = vst.msk [vmem:[#allocation5 + $0x10] sm:$0xff] %vm523, %v3859
      %3880 = vst [vmem:[#allocation5 + $0x18] sm:$0xff] %v3799
      %3881 = vst [vmem:[#allocation5 + $0x20] sm:$0xff] %v3874
      %3882 = vst.msk [vmem:[#allocation5 + $0x28] sm:$0xff] %vm523, %v3850
      %3883 = vst [vmem:[#allocation5 + $0x30] sm:$0xff] %v3800
      %3884 = vst [vmem:[#allocation5 + $0x38] sm:$0xff] %v3875
      %3885 = vst.msk [vmem:[#allocation5 + $0x40] sm:$0xff] %vm523, %v3852
      %3886 = vst [vmem:[#allocation5 + $0x48] sm:$0xff] %v3801
      %3887 = vst [vmem:[#allocation5 + $0x50] sm:$0xff] %v3876
      %3888 = vst.msk [vmem:[#allocation5 + $0x58] sm:$0xff] %vm523, %v3854
      %v3889 = vld [vmem:[#allocation2 + $0xa0] sm:$0xff]
      %v3890 = vld [vmem:[#allocation2 + $0xa8] sm:$0xff]
      %v3891 = vld [vmem:[#allocation2 + $0xb0] sm:$0xff]
      %v3892 = vld [vmem:[#allocation2 + $0xb8] sm:$0xff]
      %v3893 = vld [vmem:[#allocation2 + $0x80] sm:$0xff]
      %v3894 = vld [vmem:[#allocation2 + $0x88] sm:$0xff]
      %v3895 = vld [vmem:[#allocation2 + $0x90] sm:$0xff]
      %v3896 = vld [vmem:[#allocation2 + $0x98] sm:$0xff]
      %v3897 = vld [vmem:[#allocation2 + $0x20] sm:$0xff]
      %v3898 = vld [vmem:[#allocation2 + $0x28] sm:$0xff]
      %v3899 = vld [vmem:[#allocation2 + $0x30] sm:$0xff]
      %v3900 = vld [vmem:[#allocation2 + $0x38] sm:$0xff]
      %v3901 = vld [vmem:[#allocation2] sm:$0xff]
      %v3902 = vld [vmem:[#allocation2 + $0x8] sm:$0xff]
      %v3903 = vld [vmem:[#allocation2 + $0x10] sm:$0xff]
      %v3904 = vld [vmem:[#allocation2 + $0x18] sm:$0xff]
      %3909 = vrot.lane.b32.xlu0 %v3897, 32
      %v3910 = vpop.permute.xlu0 %3909
      %3911 = vrot.lane.b32.xlu0 %v3898, 32
      %v3912 = vpop.permute.xlu0 %3911
      %3913 = vrot.lane.b32.xlu0 %v3899, 32
      %v3914 = vpop.permute.xlu0 %3913
      %3915 = vrot.lane.b32.xlu0 %v3900, 32
      %v3916 = vpop.permute.xlu0 %3915
      %3925 = vrot.lane.b32.xlu0 %v3901, 96
      %v3926 = vpop.permute.xlu0 %3925
      %3927 = vrot.lane.b32.xlu0 %v3902, 96
      %v3928 = vpop.permute.xlu0 %3927
      %3929 = vrot.lane.b32.xlu0 %v3903, 96
      %v3930 = vpop.permute.xlu0 %3929
      %3931 = vrot.lane.b32.xlu0 %v3904, 96
      %v3932 = vpop.permute.xlu0 %3931
      %v3937 = vsel %vm528, %v3893, %v3910
      %v3938 = vsel %vm528, %v3894, %v3912
      %v3939 = vsel %vm528, %v3895, %v3914
      %v3940 = vsel %vm528, %v3896, %v3916
      %3941 = vst [vmem:[#allocation5 + $0x60] sm:$0xff] %v3889
      %3942 = vst [vmem:[#allocation5 + $0x68] sm:$0xff] %v3937
      %3943 = vst.msk [vmem:[#allocation5 + $0x70] sm:$0xff] %vm523, %v3926
      %3944 = vst [vmem:[#allocation5 + $0x78] sm:$0xff] %v3890
      %3945 = vst [vmem:[#allocation5 + $0x80] sm:$0xff] %v3938
      %3946 = vst.msk [vmem:[#allocation5 + $0x88] sm:$0xff] %vm523, %v3928
      %3947 = vst [vmem:[#allocation5 + $0x90] sm:$0xff] %v3891
      %3948 = vst [vmem:[#allocation5 + $0x98] sm:$0xff] %v3939
      %3949 = vst.msk [vmem:[#allocation5 + $0xa0] sm:$0xff] %vm523, %v3930
      %3950 = vst [vmem:[#allocation5 + $0xa8] sm:$0xff] %v3892
      %3951 = vst [vmem:[#allocation5 + $0xb0] sm:$0xff] %v3940
      %3952 = vst.msk [vmem:[#allocation5 + $0xb8] sm:$0xff] %vm523, %v3932
      %v3953 = vld [vmem:[#allocation2 + $0x80] sm:$0xff]
      %v3954 = vld [vmem:[#allocation2 + $0x88] sm:$0xff]
      %v3955 = vld [vmem:[#allocation2 + $0x90] sm:$0xff]
      %v3956 = vld [vmem:[#allocation2 + $0x98] sm:$0xff]
      %v3957 = vld [vmem:[#allocation2 + $0xe0] sm:$0xff]
      %v3958 = vld [vmem:[#allocation2 + $0xe8] sm:$0xff]
      %v3959 = vld [vmem:[#allocation2 + $0xf0] sm:$0xff]
      %v3960 = vld [vmem:[#allocation2 + $0xf8] sm:$0xff]
      %vm3965 = vcmask 1040384
      %v3966 = vrot.slane %v3957, 7
      %v3967 = vrot.slane %v3958, 7
      %v3968 = vsel %vm3965, %v3966, %v3967
      %v3969 = vrot.slane %v3959, 7
      %v3970 = vsel %vm3965, %v3967, %v3969
      %v3971 = vrot.slane %v3960, 7
      %v3972 = vsel %vm3965, %v3969, %v3971
      %v3977 = vsel %vm3965, 0.0, %v3966
      %v3978 = vlaneseq
      %v3979 = vshrl.u32 %v3978, 7
      %v3980 = vadd.s32 %v3979, 8
      %v3981 = vadd.s32 %v3979, 16
      %v3982 = vadd.s32 %v3979, 24
      %vm3983 = vcmp.lt.s32.totalorder %v3979, 0
      %v3984 = vsub.s32 0, %v3979
      %v3985 = vsel %vm3983, %v3984, %v3979
      %v3986 = vand.u32 %v3985, 65535
      %v3987 = vshrl.u32 %v3985, 16
      %v3989 = vmul.u32 %v3986, 52429
      %v3990 = vmul.u32 %v3986, 52428
      %v3991 = vmul.u32 %v3987, 52429
      %v3992 = vmul.u32 %v3987, 52428
      %v3993 = vshll.u32 %v3990, 16
      %v3994 = vshrl.u32 %v3990, 16
      %v3995 = vshll.u32 %v3991, 16
      %v3996 = vshrl.u32 %v3991, 16
      %vm3997 = vc.u32 %v3989, %v3993
      %v3998 = vsel %vm3997, 1, 0
      %v3999 = vadd.s32 %v3989, %v3993
      %v4000 = vadd.s32 %v3992, %v3998
      %vm4001 = vc.u32 %v3999, %v3995
      %v4002 = vsel %vm4001, 1, 0
      %v4003 = vadd.s32 %v3999, %v3995
      %v4004 = vadd.s32 %v4000, %v4002
      %v4005 = vadd.s32 %v4004, %v3994
      %v4006 = vadd.s32 %v4005, %v3996
      %v4007 = vshrl.u32 %v4006, 2
      %v4008 = vmul.u32 %v4007, 5
      %v4009 = vsub.s32 %v3985, %v4008
      %v4010 = vsub.s32 0, %v4009
      %v4011 = vsel %vm3983, %v4010, %v4009
      %vm4012 = vcmp.lt.s32.totalorder %v3980, 0
      %v4013 = vsub.s32 0, %v3980
      %v4014 = vsel %vm4012, %v4013, %v3980
      %v4015 = vand.u32 %v4014, 65535
      %v4016 = vshrl.u32 %v4014, 16
      %v4018 = vmul.u32 %v4015, 52429
      %v4019 = vmul.u32 %v4015, 52428
      %v4020 = vmul.u32 %v4016, 52429
      %v4021 = vmul.u32 %v4016, 52428
      %v4022 = vshll.u32 %v4019, 16
      %v4023 = vshrl.u32 %v4019, 16
      %v4024 = vshll.u32 %v4020, 16
      %v4025 = vshrl.u32 %v4020, 16
      %vm4026 = vc.u32 %v4018, %v4022
      %v4027 = vsel %vm4026, 1, 0
      %v4028 = vadd.s32 %v4018, %v4022
      %v4029 = vadd.s32 %v4021, %v4027
      %vm4030 = vc.u32 %v4028, %v4024
      %v4031 = vsel %vm4030, 1, 0
      %v4032 = vadd.s32 %v4028, %v4024
      %v4033 = vadd.s32 %v4029, %v4031
      %v4034 = vadd.s32 %v4033, %v4023
      %v4035 = vadd.s32 %v4034, %v4025
      %v4036 = vshrl.u32 %v4035, 2
      %v4037 = vmul.u32 %v4036, 5
      %v4038 = vsub.s32 %v4014, %v4037
      %v4039 = vsub.s32 0, %v4038
      %v4040 = vsel %vm4012, %v4039, %v4038
      %vm4041 = vcmp.lt.s32.totalorder %v3981, 0
      %v4042 = vsub.s32 0, %v3981
      %v4043 = vsel %vm4041, %v4042, %v3981
      %v4044 = vand.u32 %v4043, 65535
      %v4045 = vshrl.u32 %v4043, 16
      %v4047 = vmul.u32 %v4044, 52429
      %v4048 = vmul.u32 %v4044, 52428
      %v4049 = vmul.u32 %v4045, 52429
      %v4050 = vmul.u32 %v4045, 52428
      %v4051 = vshll.u32 %v4048, 16
      %v4052 = vshrl.u32 %v4048, 16
      %v4053 = vshll.u32 %v4049, 16
      %v4054 = vshrl.u32 %v4049, 16
      %vm4055 = vc.u32 %v4047, %v4051
      %v4056 = vsel %vm4055, 1, 0
      %v4057 = vadd.s32 %v4047, %v4051
      %v4058 = vadd.s32 %v4050, %v4056
      %vm4059 = vc.u32 %v4057, %v4053
      %v4060 = vsel %vm4059, 1, 0
      %v4061 = vadd.s32 %v4057, %v4053
      %v4062 = vadd.s32 %v4058, %v4060
      %v4063 = vadd.s32 %v4062, %v4052
      %v4064 = vadd.s32 %v4063, %v4054
      %v4065 = vshrl.u32 %v4064, 2
      %v4066 = vmul.u32 %v4065, 5
      %v4067 = vsub.s32 %v4043, %v4066
      %v4068 = vsub.s32 0, %v4067
      %v4069 = vsel %vm4041, %v4068, %v4067
      %vm4070 = vcmp.lt.s32.totalorder %v3982, 0
      %v4071 = vsub.s32 0, %v3982
      %v4072 = vsel %vm4070, %v4071, %v3982
      %v4073 = vand.u32 %v4072, 65535
      %v4074 = vshrl.u32 %v4072, 16
      %v4076 = vmul.u32 %v4073, 52429
      %v4077 = vmul.u32 %v4073, 52428
      %v4078 = vmul.u32 %v4074, 52429
      %v4079 = vmul.u32 %v4074, 52428
      %v4080 = vshll.u32 %v4077, 16
      %v4081 = vshrl.u32 %v4077, 16
      %v4082 = vshll.u32 %v4078, 16
      %v4083 = vshrl.u32 %v4078, 16
      %vm4084 = vc.u32 %v4076, %v4080
      %v4085 = vsel %vm4084, 1, 0
      %v4086 = vadd.s32 %v4076, %v4080
      %v4087 = vadd.s32 %v4079, %v4085
      %vm4088 = vc.u32 %v4086, %v4082
      %v4089 = vsel %vm4088, 1, 0
      %v4090 = vadd.s32 %v4086, %v4082
      %v4091 = vadd.s32 %v4087, %v4089
      %v4092 = vadd.s32 %v4091, %v4081
      %v4093 = vadd.s32 %v4092, %v4083
      %v4094 = vshrl.u32 %v4093, 2
      %v4095 = vmul.u32 %v4094, 5
      %v4096 = vsub.s32 %v4072, %v4095
      %v4097 = vsub.s32 0, %v4096
      %v4098 = vsel %vm4070, %v4097, %v4096
      %vm4099 = vcmp.ne.s32.totalorder %v4011, 0
      %vm4100 = vcmp.ne.s32.totalorder %v4040, 0
      %vm4101 = vcmp.ne.s32.totalorder %v4069, 0
      %vm4102 = vcmp.ne.s32.totalorder %v4098, 0
      %vm4103 = vcmp.lt.s32.totalorder %v4011, 0
      %vm4104 = vcmp.lt.s32.totalorder %v4040, 0
      %vm4105 = vcmp.lt.s32.totalorder %v4069, 0
      %vm4106 = vcmp.lt.s32.totalorder %v4098, 0
      %vm4107 = vmand %vm4103, %vm4099
      %vm4108 = vmand %vm4104, %vm4100
      %vm4109 = vmand %vm4105, %vm4101
      %vm4110 = vmand %vm4106, %vm4102
      %v4111 = vadd.s32 %v4011, 5
      %v4112 = vadd.s32 %v4040, 5
      %v4113 = vadd.s32 %v4069, 5
      %v4114 = vadd.s32 %v4098, 5
      %v4115 = vsel %vm4107, %v4111, %v4011
      %v4116 = vsel %vm4108, %v4112, %v4040
      %v4117 = vsel %vm4109, %v4113, %v4069
      %v4118 = vsel %vm4110, %v4114, %v4098
      %vm4119 = vcmp.eq.s32.totalorder %v4115, 0
      %vm4120 = vcmp.eq.s32.totalorder %v4116, 0
      %vm4121 = vcmp.eq.s32.totalorder %v4117, 0
      %vm4122 = vcmp.eq.s32.totalorder %v4118, 0
      %v4123 = vsel %vm4119, 0.0, %v3977
      %v4124 = vsel %vm4120, 0.0, %v3968
      %v4125 = vsel %vm4121, 0.0, %v3970
      %v4126 = vsel %vm4122, 0.0, %v3972
      %v4127 = vld [vmem:[#allocation2] sm:$0xff]
      %v4128 = vld [vmem:[#allocation2 + $0x8] sm:$0xff]
      %v4129 = vld [vmem:[#allocation2 + $0x10] sm:$0xff]
      %v4130 = vld [vmem:[#allocation2 + $0x18] sm:$0xff]
      %v4131 = vld [vmem:[#allocation2 + $0x60] sm:$0xff]
      %v4132 = vld [vmem:[#allocation2 + $0x68] sm:$0xff]
      %v4133 = vld [vmem:[#allocation2 + $0x70] sm:$0xff]
      %v4134 = vld [vmem:[#allocation2 + $0x78] sm:$0xff]
      %v4139 = vrot.slane %v4131, 7
      %v4140 = vrot.slane %v4132, 7
      %v4141 = vsel %vm3965, %v4139, %v4140
      %v4142 = vrot.slane %v4133, 7
      %v4143 = vsel %vm3965, %v4140, %v4142
      %v4144 = vrot.slane %v4134, 7
      %v4145 = vsel %vm3965, %v4142, %v4144
      %4146 = vrot.lane.b32.xlu0 %v4139, 96
      %v4147 = vpop.permute.xlu0 %4146
      %4148 = vrot.lane.b32.xlu0 %v4141, 96
      %v4149 = vpop.permute.xlu0 %4148
      %4150 = vrot.lane.b32.xlu0 %v4143, 96
      %v4151 = vpop.permute.xlu0 %4150
      %4152 = vrot.lane.b32.xlu0 %v4145, 96
      %v4153 = vpop.permute.xlu0 %4152
      %v4158 = vsel %vm3965, 0.0, %v4147
      %v4159 = vsel %vm4119, 0.0, %v4158
      %v4160 = vsel %vm4120, 0.0, %v4149
      %v4161 = vsel %vm4121, 0.0, %v4151
      %v4162 = vsel %vm4122, 0.0, %v4153
      %4167 = vrot.lane.b32.xlu0 %v4127, 32
      %v4168 = vpop.permute.xlu0 %4167
      %4169 = vrot.lane.b32.xlu0 %v4128, 32
      %v4170 = vpop.permute.xlu0 %4169
      %4171 = vrot.lane.b32.xlu0 %v4129, 32
      %v4172 = vpop.permute.xlu0 %4171
      %4173 = vrot.lane.b32.xlu0 %v4130, 32
      %v4174 = vpop.permute.xlu0 %4173
      %v4179 = vsel %vm528, %v4123, %v4168
      %v4180 = vsel %vm528, %v4124, %v4170
      %v4181 = vsel %vm528, %v4125, %v4172
      %v4182 = vsel %vm528, %v4126, %v4174
      %4183 = vst [vmem:[#allocation5 + $0xc0] sm:$0xff] %v3953
      %4184 = vst [vmem:[#allocation5 + $0xc8] sm:$0xff] %v4179
      %4185 = vst.msk [vmem:[#allocation5 + $0xd0] sm:$0xff] %vm523, %v4159
      %4186 = vst [vmem:[#allocation5 + $0xd8] sm:$0xff] %v3954
      %4187 = vst [vmem:[#allocation5 + $0xe0] sm:$0xff] %v4180
      %4188 = vst.msk [vmem:[#allocation5 + $0xe8] sm:$0xff] %vm523, %v4160
      %4189 = vst [vmem:[#allocation5 + $0xf0] sm:$0xff] %v3955
      %4190 = vst [vmem:[#allocation5 + $0xf8] sm:$0xff] %v4181
      %4191 = vst.msk [vmem:[#allocation5 + $0x100] sm:$0xff] %vm523, %v4161
      %4192 = vst [vmem:[#allocation5 + $0x108] sm:$0xff] %v3956
      %4193 = vst [vmem:[#allocation5 + $0x110] sm:$0xff] %v4182
      %4194 = vst.msk [vmem:[#allocation5 + $0x118] sm:$0xff] %vm523, %v4162
      %v4195 = vld [vmem:[#allocation2] sm:$0xff]
      %v4196 = vld [vmem:[#allocation2 + $0x8] sm:$0xff]
      %v4197 = vld [vmem:[#allocation2 + $0x10] sm:$0xff]
      %v4198 = vld [vmem:[#allocation2 + $0x18] sm:$0xff]
      %v4199 = vld [vmem:[#allocation2 + $0x60] sm:$0xff]
      %v4200 = vld [vmem:[#allocation2 + $0x68] sm:$0xff]
      %v4201 = vld [vmem:[#allocation2 + $0x70] sm:$0xff]
      %v4202 = vld [vmem:[#allocation2 + $0x78] sm:$0xff]
      %v4207 = vrot.slane %v4199, 7
      %v4208 = vrot.slane %v4200, 7
      %v4209 = vsel %vm3965, %v4207, %v4208
      %v4210 = vrot.slane %v4201, 7
      %v4211 = vsel %vm3965, %v4208, %v4210
      %v4212 = vrot.slane %v4202, 7
      %v4213 = vsel %vm3965, %v4210, %v4212
      %v4218 = vsel %vm3965, 0.0, %v4207
      %v4219 = vsel %vm4119, 0.0, %v4218
      %v4220 = vsel %vm4120, 0.0, %v4209
      %v4221 = vsel %vm4121, 0.0, %v4211
      %v4222 = vsel %vm4122, 0.0, %v4213
      %v4223 = vld [vmem:[#allocation2 + $0x180] sm:$0xff]
      %v4224 = vld [vmem:[#allocation2 + $0x188] sm:$0xff]
      %v4225 = vld [vmem:[#allocation2 + $0x190] sm:$0xff]
      %v4226 = vld [vmem:[#allocation2 + $0x198] sm:$0xff]
      %v4231 = vrot.slane %v4223, 3
      %v4232 = vrot.slane %v4224, 3
      %v4233 = vsel %vm3814, %v4231, %v4232
      %v4234 = vrot.slane %v4225, 3
      %v4235 = vsel %vm3814, %v4232, %v4234
      %v4236 = vrot.slane %v4226, 3
      %v4237 = vsel %vm3814, %v4234, %v4236
      %4238 = vrot.lane.b32.xlu0 %v4231, 96
      %v4239 = vpop.permute.xlu0 %4238
      %4240 = vrot.lane.b32.xlu0 %v4233, 96
      %v4241 = vpop.permute.xlu0 %4240
      %4242 = vrot.lane.b32.xlu0 %v4235, 96
      %v4243 = vpop.permute.xlu0 %4242
      %4244 = vrot.lane.b32.xlu0 %v4237, 96
      %v4245 = vpop.permute.xlu0 %4244
      %v4247 = vsel %vm3814, 0.0, %v4239
      %v4248 = vld [vmem:[#allocation2 + $0x1e0] sm:$0xff]
      %v4249 = vld [vmem:[#allocation2 + $0x1e8] sm:$0xff]
      %v4250 = vld [vmem:[#allocation2 + $0x1f0] sm:$0xff]
      %v4251 = vld [vmem:[#allocation2 + $0x1f8] sm:$0xff]
      %vm4256 = vcmask 1045504
      %v4257 = vrot.slane %v4248, 2
      %v4258 = vrot.slane %v4249, 2
      %v4259 = vsel %vm4256, %v4257, %v4258
      %v4260 = vrot.slane %v4250, 2
      %v4261 = vsel %vm4256, %v4258, %v4260
      %v4262 = vrot.slane %v4251, 2
      %v4263 = vsel %vm4256, %v4260, %v4262
      %4264 = vrot.lane.b32.xlu0 %v4257, 96
      %v4265 = vpop.permute.xlu0 %4264
      %4266 = vrot.lane.b32.xlu0 %v4259, 96
      %v4267 = vpop.permute.xlu0 %4266
      %4268 = vrot.lane.b32.xlu0 %v4261, 96
      %v4269 = vpop.permute.xlu0 %4268
      %4270 = vrot.lane.b32.xlu0 %v4263, 96
      %v4271 = vpop.permute.xlu0 %4270
      %v4276 = vsel %vm4256, 0.0, %v4265
      %v4277 = vsel %vm4119, 0.0, %v4276
      %v4278 = vsel %vm4120, 0.0, %v4267
      %v4279 = vsel %vm4121, 0.0, %v4269
      %v4280 = vsel %vm4122, 0.0, %v4271
      %4282 = vrot.lane.b32.xlu0 %v4247, 64
      %v4283 = vpop.permute.xlu0 %4282
      %4284 = vrot.lane.b32.xlu0 %v4241, 64
      %v4285 = vpop.permute.xlu0 %4284
      %4286 = vrot.lane.b32.xlu0 %v4243, 64
      %v4287 = vpop.permute.xlu0 %4286
      %4288 = vrot.lane.b32.xlu0 %v4245, 64
      %v4289 = vpop.permute.xlu0 %4288
      %v4294 = vsel %vm528, %v4219, %v4283
      %v4295 = vsel %vm528, %v4220, %v4285
      %v4296 = vsel %vm528, %v4221, %v4287
      %v4297 = vsel %vm528, %v4222, %v4289
      %4298 = vst [vmem:[#allocation5 + $0x120] sm:$0xff] %v4195
      %4299 = vst [vmem:[#allocation5 + $0x128] sm:$0xff] %v4294
      %4300 = vst.msk [vmem:[#allocation5 + $0x130] sm:$0xff] %vm523, %v4277
      %4301 = vst [vmem:[#allocation5 + $0x138] sm:$0xff] %v4196
      %4302 = vst [vmem:[#allocation5 + $0x140] sm:$0xff] %v4295
      %4303 = vst.msk [vmem:[#allocation5 + $0x148] sm:$0xff] %vm523, %v4278
      %4304 = vst [vmem:[#allocation5 + $0x150] sm:$0xff] %v4197
      %4305 = vst [vmem:[#allocation5 + $0x158] sm:$0xff] %v4296
      %4306 = vst.msk [vmem:[#allocation5 + $0x160] sm:$0xff] %vm523, %v4279
      %4307 = vst [vmem:[#allocation5 + $0x168] sm:$0xff] %v4198
      %4308 = vst [vmem:[#allocation5 + $0x170] sm:$0xff] %v4297
      %4309 = vst.msk [vmem:[#allocation5 + $0x178] sm:$0xff] %vm523, %v4280
      %v4310 = vld [vmem:[#allocation2 + $0x60] sm:$0xff]
      %v4311 = vld [vmem:[#allocation2 + $0x68] sm:$0xff]
      %v4312 = vld [vmem:[#allocation2 + $0x70] sm:$0xff]
      %v4313 = vld [vmem:[#allocation2 + $0x78] sm:$0xff]
      %v4314 = vld [vmem:[#allocation2 + $0x40] sm:$0xff]
      %v4315 = vld [vmem:[#allocation2 + $0x48] sm:$0xff]
      %v4316 = vld [vmem:[#allocation2 + $0x50] sm:$0xff]
      %v4317 = vld [vmem:[#allocation2 + $0x58] sm:$0xff]
      %v4318 = vld [vmem:[#allocation2 + $0x1e0] sm:$0xff]
      %v4319 = vld [vmem:[#allocation2 + $0x1e8] sm:$0xff]
      %v4320 = vld [vmem:[#allocation2 + $0x1f0] sm:$0xff]
      %v4321 = vld [vmem:[#allocation2 + $0x1f8] sm:$0xff]
      %v4326 = vrot.slane %v4318, 3
      %v4327 = vrot.slane %v4319, 3
      %v4328 = vsel %vm3814, %v4326, %v4327
      %v4329 = vrot.slane %v4320, 3
      %v4330 = vsel %vm3814, %v4327, %v4329
      %v4331 = vrot.slane %v4321, 3
      %v4332 = vsel %vm3814, %v4329, %v4331
      %4333 = vrot.lane.b32.xlu0 %v4326, 96
      %v4334 = vpop.permute.xlu0 %4333
      %4335 = vrot.lane.b32.xlu0 %v4328, 96
      %v4336 = vpop.permute.xlu0 %4335
      %4337 = vrot.lane.b32.xlu0 %v4330, 96
      %v4338 = vpop.permute.xlu0 %4337
      %4339 = vrot.lane.b32.xlu0 %v4332, 96
      %v4340 = vpop.permute.xlu0 %4339
      %v4342 = vsel %vm3814, 0.0, %v4334
      %v4343 = vld [vmem:[#allocation2 + $0x1c0] sm:$0xff]
      %v4344 = vld [vmem:[#allocation2 + $0x1c8] sm:$0xff]
      %v4345 = vld [vmem:[#allocation2 + $0x1d0] sm:$0xff]
      %v4346 = vld [vmem:[#allocation2 + $0x1d8] sm:$0xff]
      %v4351 = vrot.slane %v4343, 3
      %v4352 = vrot.slane %v4344, 3
      %v4353 = vsel %vm3814, %v4351, %v4352
      %v4354 = vrot.slane %v4345, 3
      %v4355 = vsel %vm3814, %v4352, %v4354
      %v4356 = vrot.slane %v4346, 3
      %v4357 = vsel %vm3814, %v4354, %v4356
      %4358 = vrot.lane.b32.xlu0 %v4351, 96
      %v4359 = vpop.permute.xlu0 %4358
      %4360 = vrot.lane.b32.xlu0 %v4353, 96
      %v4361 = vpop.permute.xlu0 %4360
      %4362 = vrot.lane.b32.xlu0 %v4355, 96
      %v4363 = vpop.permute.xlu0 %4362
      %4364 = vrot.lane.b32.xlu0 %v4357, 96
      %v4365 = vpop.permute.xlu0 %4364
      %v4370 = vsel %vm3814, 0.0, %v4359
      %4372 = vrot.lane.b32.xlu0 %v4342, 64
      %v4373 = vpop.permute.xlu0 %4372
      %4374 = vrot.lane.b32.xlu0 %v4336, 64
      %v4375 = vpop.permute.xlu0 %4374
      %4376 = vrot.lane.b32.xlu0 %v4338, 64
      %v4377 = vpop.permute.xlu0 %4376
      %4378 = vrot.lane.b32.xlu0 %v4340, 64
      %v4379 = vpop.permute.xlu0 %4378
      %v4384 = vsel %vm528, %v4314, %v4373
      %v4385 = vsel %vm528, %v4315, %v4375
      %v4386 = vsel %vm528, %v4316, %v4377
      %v4387 = vsel %vm528, %v4317, %v4379
      %4388 = vst [vmem:[#allocation5 + $0x180] sm:$0xff] %v4310
      %4389 = vst [vmem:[#allocation5 + $0x188] sm:$0xff] %v4384
      %4390 = vst.msk [vmem:[#allocation5 + $0x190] sm:$0xff] %vm523, %v4370
      %4391 = vst [vmem:[#allocation5 + $0x198] sm:$0xff] %v4311
      %4392 = vst [vmem:[#allocation5 + $0x1a0] sm:$0xff] %v4385
      %4393 = vst.msk [vmem:[#allocation5 + $0x1a8] sm:$0xff] %vm523, %v4361
      %4394 = vst [vmem:[#allocation5 + $0x1b0] sm:$0xff] %v4312
      %4395 = vst [vmem:[#allocation5 + $0x1b8] sm:$0xff] %v4386
      %4396 = vst.msk [vmem:[#allocation5 + $0x1c0] sm:$0xff] %vm523, %v4363
      %4397 = vst [vmem:[#allocation5 + $0x1c8] sm:$0xff] %v4313
      %4398 = vst [vmem:[#allocation5 + $0x1d0] sm:$0xff] %v4387
      %4399 = vst.msk [vmem:[#allocation5 + $0x1d8] sm:$0xff] %vm523, %v4365
      %v4400 = vld [vmem:[#allocation2 + $0xe0] sm:$0xff]
      %v4401 = vld [vmem:[#allocation2 + $0xe8] sm:$0xff]
      %v4402 = vld [vmem:[#allocation2 + $0xf0] sm:$0xff]
      %v4403 = vld [vmem:[#allocation2 + $0xf8] sm:$0xff]
      %v4404 = vld [vmem:[#allocation2 + $0xc0] sm:$0xff]
      %v4405 = vld [vmem:[#allocation2 + $0xc8] sm:$0xff]
      %v4406 = vld [vmem:[#allocation2 + $0xd0] sm:$0xff]
      %v4407 = vld [vmem:[#allocation2 + $0xd8] sm:$0xff]
      %v4408 = vld [vmem:[#allocation2 + $0x60] sm:$0xff]
      %v4409 = vld [vmem:[#allocation2 + $0x68] sm:$0xff]
      %v4410 = vld [vmem:[#allocation2 + $0x70] sm:$0xff]
      %v4411 = vld [vmem:[#allocation2 + $0x78] sm:$0xff]
      %v4412 = vld [vmem:[#allocation2 + $0x40] sm:$0xff]
      %v4413 = vld [vmem:[#allocation2 + $0x48] sm:$0xff]
      %v4414 = vld [vmem:[#allocation2 + $0x50] sm:$0xff]
      %v4415 = vld [vmem:[#allocation2 + $0x58] sm:$0xff]
      %4420 = vrot.lane.b32.xlu0 %v4408, 32
      %v4421 = vpop.permute.xlu0 %4420
      %4422 = vrot.lane.b32.xlu0 %v4409, 32
      %v4423 = vpop.permute.xlu0 %4422
      %4424 = vrot.lane.b32.xlu0 %v4410, 32
      %v4425 = vpop.permute.xlu0 %4424
      %4426 = vrot.lane.b32.xlu0 %v4411, 32
      %v4427 = vpop.permute.xlu0 %4426
      %4436 = vrot.lane.b32.xlu0 %v4412, 96
      %v4437 = vpop.permute.xlu0 %4436
      %4438 = vrot.lane.b32.xlu0 %v4413, 96
      %v4439 = vpop.permute.xlu0 %4438
      %4440 = vrot.lane.b32.xlu0 %v4414, 96
      %v4441 = vpop.permute.xlu0 %4440
      %4442 = vrot.lane.b32.xlu0 %v4415, 96
      %v4443 = vpop.permute.xlu0 %4442
      %v4448 = vsel %vm528, %v4404, %v4421
      %v4449 = vsel %vm528, %v4405, %v4423
      %v4450 = vsel %vm528, %v4406, %v4425
      %v4451 = vsel %vm528, %v4407, %v4427
      %4452 = vst [vmem:[#allocation5 + $0x1e0] sm:$0xff] %v4400
      %4453 = vst [vmem:[#allocation5 + $0x1e8] sm:$0xff] %v4448
      %4454 = vst.msk [vmem:[#allocation5 + $0x1f0] sm:$0xff] %vm523, %v4437
      %4455 = vst [vmem:[#allocation5 + $0x1f8] sm:$0xff] %v4401
      %4456 = vst [vmem:[#allocation5 + $0x200] sm:$0xff] %v4449
      %4457 = vst.msk [vmem:[#allocation5 + $0x208] sm:$0xff] %vm523, %v4439
      %4458 = vst [vmem:[#allocation5 + $0x210] sm:$0xff] %v4402
      %4459 = vst [vmem:[#allocation5 + $0x218] sm:$0xff] %v4450
      %4460 = vst.msk [vmem:[#allocation5 + $0x220] sm:$0xff] %vm523, %v4441
      %4461 = vst [vmem:[#allocation5 + $0x228] sm:$0xff] %v4403
      %4462 = vst [vmem:[#allocation5 + $0x230] sm:$0xff] %v4451
      %4463 = vst.msk [vmem:[#allocation5 + $0x238] sm:$0xff] %vm523, %v4443
      %v4464 = vld [vmem:[#allocation2 + $0xc0] sm:$0xff]
      %v4465 = vld [vmem:[#allocation2 + $0xc8] sm:$0xff]
      %v4466 = vld [vmem:[#allocation2 + $0xd0] sm:$0xff]
      %v4467 = vld [vmem:[#allocation2 + $0xd8] sm:$0xff]
      %v4468 = vld [vmem:[#allocation2 + $0xa0] sm:$0xff]
      %v4469 = vld [vmem:[#allocation2 + $0xa8] sm:$0xff]
      %v4470 = vld [vmem:[#allocation2 + $0xb0] sm:$0xff]
      %v4471 = vld [vmem:[#allocation2 + $0xb8] sm:$0xff]
      %v4472 = vld [vmem:[#allocation2 + $0x40] sm:$0xff]
      %v4473 = vld [vmem:[#allocation2 + $0x48] sm:$0xff]
      %v4474 = vld [vmem:[#allocation2 + $0x50] sm:$0xff]
      %v4475 = vld [vmem:[#allocation2 + $0x58] sm:$0xff]
      %v4476 = vld [vmem:[#allocation2 + $0x20] sm:$0xff]
      %v4477 = vld [vmem:[#allocation2 + $0x28] sm:$0xff]
      %v4478 = vld [vmem:[#allocation2 + $0x30] sm:$0xff]
      %v4479 = vld [vmem:[#allocation2 + $0x38] sm:$0xff]
      %4484 = vrot.lane.b32.xlu0 %v4472, 32
      %v4485 = vpop.permute.xlu0 %4484
      %4486 = vrot.lane.b32.xlu0 %v4473, 32
      %v4487 = vpop.permute.xlu0 %4486
      %4488 = vrot.lane.b32.xlu0 %v4474, 32
      %v4489 = vpop.permute.xlu0 %4488
      %4490 = vrot.lane.b32.xlu0 %v4475, 32
      %v4491 = vpop.permute.xlu0 %4490
      %4500 = vrot.lane.b32.xlu0 %v4476, 96
      %v4501 = vpop.permute.xlu0 %4500
      %4502 = vrot.lane.b32.xlu0 %v4477, 96
      %v4503 = vpop.permute.xlu0 %4502
      %4504 = vrot.lane.b32.xlu0 %v4478, 96
      %v4505 = vpop.permute.xlu0 %4504
      %4506 = vrot.lane.b32.xlu0 %v4479, 96
      %v4507 = vpop.permute.xlu0 %4506
      %v4512 = vsel %vm528, %v4468, %v4485
      %v4513 = vsel %vm528, %v4469, %v4487
      %v4514 = vsel %vm528, %v4470, %v4489
      %v4515 = vsel %vm528, %v4471, %v4491
      %4516 = vst [vmem:[#allocation5 + $0x240] sm:$0xff] %v4464
      %4517 = vst [vmem:[#allocation5 + $0x248] sm:$0xff] %v4512
      %4518 = vst.msk [vmem:[#allocation5 + $0x250] sm:$0xff] %vm523, %v4501
      %4519 = vst [vmem:[#allocation5 + $0x258] sm:$0xff] %v4465
      %4520 = vst [vmem:[#allocation5 + $0x260] sm:$0xff] %v4513
      %4521 = vst.msk [vmem:[#allocation5 + $0x268] sm:$0xff] %vm523, %v4503
      %4522 = vst [vmem:[#allocation5 + $0x270] sm:$0xff] %v4466
      %4523 = vst [vmem:[#allocation5 + $0x278] sm:$0xff] %v4514
      %4524 = vst.msk [vmem:[#allocation5 + $0x280] sm:$0xff] %vm523, %v4505
      %4525 = vst [vmem:[#allocation5 + $0x288] sm:$0xff] %v4467
      %4526 = vst [vmem:[#allocation5 + $0x290] sm:$0xff] %v4515
      %4527 = vst.msk [vmem:[#allocation5 + $0x298] sm:$0xff] %vm523, %v4507
      %v4528 = vld [vmem:[#allocation2 + $0x40] sm:$0xff]
      %v4529 = vld [vmem:[#allocation2 + $0x48] sm:$0xff]
      %v4530 = vld [vmem:[#allocation2 + $0x50] sm:$0xff]
      %v4531 = vld [vmem:[#allocation2 + $0x58] sm:$0xff]
      %v4532 = vld [vmem:[#allocation2 + $0x20] sm:$0xff]
      %v4533 = vld [vmem:[#allocation2 + $0x28] sm:$0xff]
      %v4534 = vld [vmem:[#allocation2 + $0x30] sm:$0xff]
      %v4535 = vld [vmem:[#allocation2 + $0x38] sm:$0xff]
      %v4536 = vld [vmem:[#allocation2 + $0x1c0] sm:$0xff]
      %v4537 = vld [vmem:[#allocation2 + $0x1c8] sm:$0xff]
      %v4538 = vld [vmem:[#allocation2 + $0x1d0] sm:$0xff]
      %v4539 = vld [vmem:[#allocation2 + $0x1d8] sm:$0xff]
      %v4544 = vrot.slane %v4536, 3
      %v4545 = vrot.slane %v4537, 3
      %v4546 = vsel %vm3814, %v4544, %v4545
      %v4547 = vrot.slane %v4538, 3
      %v4548 = vsel %vm3814, %v4545, %v4547
      %v4549 = vrot.slane %v4539, 3
      %v4550 = vsel %vm3814, %v4547, %v4549
      %4551 = vrot.lane.b32.xlu0 %v4544, 96
      %v4552 = vpop.permute.xlu0 %4551
      %4553 = vrot.lane.b32.xlu0 %v4546, 96
      %v4554 = vpop.permute.xlu0 %4553
      %4555 = vrot.lane.b32.xlu0 %v4548, 96
      %v4556 = vpop.permute.xlu0 %4555
      %4557 = vrot.lane.b32.xlu0 %v4550, 96
      %v4558 = vpop.permute.xlu0 %4557
      %v4560 = vsel %vm3814, 0.0, %v4552
      %v4561 = vld [vmem:[#allocation2 + $0x1a0] sm:$0xff]
      %v4562 = vld [vmem:[#allocation2 + $0x1a8] sm:$0xff]
      %v4563 = vld [vmem:[#allocation2 + $0x1b0] sm:$0xff]
      %v4564 = vld [vmem:[#allocation2 + $0x1b8] sm:$0xff]
      %v4569 = vrot.slane %v4561, 3
      %v4570 = vrot.slane %v4562, 3
      %v4571 = vsel %vm3814, %v4569, %v4570
      %v4572 = vrot.slane %v4563, 3
      %v4573 = vsel %vm3814, %v4570, %v4572
      %v4574 = vrot.slane %v4564, 3
      %v4575 = vsel %vm3814, %v4572, %v4574
      %4576 = vrot.lane.b32.xlu0 %v4569, 96
      %v4577 = vpop.permute.xlu0 %4576
      %4578 = vrot.lane.b32.xlu0 %v4571, 96
      %v4579 = vpop.permute.xlu0 %4578
      %4580 = vrot.lane.b32.xlu0 %v4573, 96
      %v4581 = vpop.permute.xlu0 %4580
      %4582 = vrot.lane.b32.xlu0 %v4575, 96
      %v4583 = vpop.permute.xlu0 %4582
      %v4588 = vsel %vm3814, 0.0, %v4577
      %4590 = vrot.lane.b32.xlu0 %v4560, 64
      %v4591 = vpop.permute.xlu0 %4590
      %4592 = vrot.lane.b32.xlu0 %v4554, 64
      %v4593 = vpop.permute.xlu0 %4592
      %4594 = vrot.lane.b32.xlu0 %v4556, 64
      %v4595 = vpop.permute.xlu0 %4594
      %4596 = vrot.lane.b32.xlu0 %v4558, 64
      %v4597 = vpop.permute.xlu0 %4596
      %v4602 = vsel %vm528, %v4532, %v4591
      %v4603 = vsel %vm528, %v4533, %v4593
      %v4604 = vsel %vm528, %v4534, %v4595
      %v4605 = vsel %vm528, %v4535, %v4597
      %4606 = vst [vmem:[#allocation5 + $0x2a0] sm:$0xff] %v4528
      %4607 = vst [vmem:[#allocation5 + $0x2a8] sm:$0xff] %v4602
      %4608 = vst.msk [vmem:[#allocation5 + $0x2b0] sm:$0xff] %vm523, %v4588
      %4609 = vst [vmem:[#allocation5 + $0x2b8] sm:$0xff] %v4529
      %4610 = vst [vmem:[#allocation5 + $0x2c0] sm:$0xff] %v4603
      %4611 = vst.msk [vmem:[#allocation5 + $0x2c8] sm:$0xff] %vm523, %v4579
      %4612 = vst [vmem:[#allocation5 + $0x2d0] sm:$0xff] %v4530
      %4613 = vst [vmem:[#allocation5 + $0x2d8] sm:$0xff] %v4604
      %4614 = vst.msk [vmem:[#allocation5 + $0x2e0] sm:$0xff] %vm523, %v4581
      %4615 = vst [vmem:[#allocation5 + $0x2e8] sm:$0xff] %v4531
      %4616 = vst [vmem:[#allocation5 + $0x2f0] sm:$0xff] %v4605
      %4617 = vst.msk [vmem:[#allocation5 + $0x2f8] sm:$0xff] %vm523, %v4583
      %v4618 = vld [vmem:[#allocation2 + $0x120] sm:$0xff]
      %v4619 = vld [vmem:[#allocation2 + $0x128] sm:$0xff]
      %v4620 = vld [vmem:[#allocation2 + $0x130] sm:$0xff]
      %v4621 = vld [vmem:[#allocation2 + $0x138] sm:$0xff]
      %v4622 = vld [vmem:[#allocation2 + $0x100] sm:$0xff]
      %v4623 = vld [vmem:[#allocation2 + $0x108] sm:$0xff]
      %v4624 = vld [vmem:[#allocation2 + $0x110] sm:$0xff]
      %v4625 = vld [vmem:[#allocation2 + $0x118] sm:$0xff]
      %v4626 = vld [vmem:[#allocation2 + $0xa0] sm:$0xff]
      %v4627 = vld [vmem:[#allocation2 + $0xa8] sm:$0xff]
      %v4628 = vld [vmem:[#allocation2 + $0xb0] sm:$0xff]
      %v4629 = vld [vmem:[#allocation2 + $0xb8] sm:$0xff]
      %v4630 = vld [vmem:[#allocation2 + $0x80] sm:$0xff]
      %v4631 = vld [vmem:[#allocation2 + $0x88] sm:$0xff]
      %v4632 = vld [vmem:[#allocation2 + $0x90] sm:$0xff]
      %v4633 = vld [vmem:[#allocation2 + $0x98] sm:$0xff]
      %4638 = vrot.lane.b32.xlu0 %v4626, 32
      %v4639 = vpop.permute.xlu0 %4638
      %4640 = vrot.lane.b32.xlu0 %v4627, 32
      %v4641 = vpop.permute.xlu0 %4640
      %4642 = vrot.lane.b32.xlu0 %v4628, 32
      %v4643 = vpop.permute.xlu0 %4642
      %4644 = vrot.lane.b32.xlu0 %v4629, 32
      %v4645 = vpop.permute.xlu0 %4644
      %4654 = vrot.lane.b32.xlu0 %v4630, 96
      %v4655 = vpop.permute.xlu0 %4654
      %4656 = vrot.lane.b32.xlu0 %v4631, 96
      %v4657 = vpop.permute.xlu0 %4656
      %4658 = vrot.lane.b32.xlu0 %v4632, 96
      %v4659 = vpop.permute.xlu0 %4658
      %4660 = vrot.lane.b32.xlu0 %v4633, 96
      %v4661 = vpop.permute.xlu0 %4660
      %v4666 = vsel %vm528, %v4622, %v4639
      %v4667 = vsel %vm528, %v4623, %v4641
      %v4668 = vsel %vm528, %v4624, %v4643
      %v4669 = vsel %vm528, %v4625, %v4645
      %4670 = vst [vmem:[#allocation5 + $0x300] sm:$0xff] %v4618
      %4671 = vst [vmem:[#allocation5 + $0x308] sm:$0xff] %v4666
      %4672 = vst.msk [vmem:[#allocation5 + $0x310] sm:$0xff] %vm523, %v4655
      %4673 = vst [vmem:[#allocation5 + $0x318] sm:$0xff] %v4619
      %4674 = vst [vmem:[#allocation5 + $0x320] sm:$0xff] %v4667
      %4675 = vst.msk [vmem:[#allocation5 + $0x328] sm:$0xff] %vm523, %v4657
      %4676 = vst [vmem:[#allocation5 + $0x330] sm:$0xff] %v4620
      %4677 = vst [vmem:[#allocation5 + $0x338] sm:$0xff] %v4668
      %4678 = vst.msk [vmem:[#allocation5 + $0x340] sm:$0xff] %vm523, %v4659
      %4679 = vst [vmem:[#allocation5 + $0x348] sm:$0xff] %v4621
      %4680 = vst [vmem:[#allocation5 + $0x350] sm:$0xff] %v4669
      %4681 = vst.msk [vmem:[#allocation5 + $0x358] sm:$0xff] %vm523, %v4661
      %v4682 = vld [vmem:[#allocation2 + $0x1a0] sm:$0xff]
      %v4683 = vld [vmem:[#allocation2 + $0x1a8] sm:$0xff]
      %v4684 = vld [vmem:[#allocation2 + $0x1b0] sm:$0xff]
      %v4685 = vld [vmem:[#allocation2 + $0x1b8] sm:$0xff]
      %v4686 = vld [vmem:[#allocation2 + $0x180] sm:$0xff]
      %v4687 = vld [vmem:[#allocation2 + $0x188] sm:$0xff]
      %v4688 = vld [vmem:[#allocation2 + $0x190] sm:$0xff]
      %v4689 = vld [vmem:[#allocation2 + $0x198] sm:$0xff]
      %v4690 = vld [vmem:[#allocation2 + $0x120] sm:$0xff]
      %v4691 = vld [vmem:[#allocation2 + $0x128] sm:$0xff]
      %v4692 = vld [vmem:[#allocation2 + $0x130] sm:$0xff]
      %v4693 = vld [vmem:[#allocation2 + $0x138] sm:$0xff]
      %v4694 = vld [vmem:[#allocation2 + $0x100] sm:$0xff]
      %v4695 = vld [vmem:[#allocation2 + $0x108] sm:$0xff]
      %v4696 = vld [vmem:[#allocation2 + $0x110] sm:$0xff]
      %v4697 = vld [vmem:[#allocation2 + $0x118] sm:$0xff]
      %4702 = vrot.lane.b32.xlu0 %v4690, 32
      %v4703 = vpop.permute.xlu0 %4702
      %4704 = vrot.lane.b32.xlu0 %v4691, 32
      %v4705 = vpop.permute.xlu0 %4704
      %4706 = vrot.lane.b32.xlu0 %v4692, 32
      %v4707 = vpop.permute.xlu0 %4706
      %4708 = vrot.lane.b32.xlu0 %v4693, 32
      %v4709 = vpop.permute.xlu0 %4708
      %4718 = vrot.lane.b32.xlu0 %v4694, 96
      %v4719 = vpop.permute.xlu0 %4718
      %4720 = vrot.lane.b32.xlu0 %v4695, 96
      %v4721 = vpop.permute.xlu0 %4720
      %4722 = vrot.lane.b32.xlu0 %v4696, 96
      %v4723 = vpop.permute.xlu0 %4722
      %4724 = vrot.lane.b32.xlu0 %v4697, 96
      %v4725 = vpop.permute.xlu0 %4724
      %v4730 = vsel %vm528, %v4686, %v4703
      %v4731 = vsel %vm528, %v4687, %v4705
      %v4732 = vsel %vm528, %v4688, %v4707
      %v4733 = vsel %vm528, %v4689, %v4709
      %4734 = vst [vmem:[#allocation5 + $0x360] sm:$0xff] %v4682
      %4735 = vst [vmem:[#allocation5 + $0x368] sm:$0xff] %v4730
      %4736 = vst.msk [vmem:[#allocation5 + $0x370] sm:$0xff] %vm523, %v4719
      %4737 = vst [vmem:[#allocation5 + $0x378] sm:$0xff] %v4683
      %4738 = vst [vmem:[#allocation5 + $0x380] sm:$0xff] %v4731
      %4739 = vst.msk [vmem:[#allocation5 + $0x388] sm:$0xff] %vm523, %v4721
      %4740 = vst [vmem:[#allocation5 + $0x390] sm:$0xff] %v4684
      %4741 = vst [vmem:[#allocation5 + $0x398] sm:$0xff] %v4732
      %4742 = vst.msk [vmem:[#allocation5 + $0x3a0] sm:$0xff] %vm523, %v4723
      %4743 = vst [vmem:[#allocation5 + $0x3a8] sm:$0xff] %v4685
      %4744 = vst [vmem:[#allocation5 + $0x3b0] sm:$0xff] %v4733
      %4745 = vst.msk [vmem:[#allocation5 + $0x3b8] sm:$0xff] %vm523, %v4725
      %v4746 = vld [vmem:[#allocation2 + $0x180] sm:$0xff]
      %v4747 = vld [vmem:[#allocation2 + $0x188] sm:$0xff]
      %v4748 = vld [vmem:[#allocation2 + $0x190] sm:$0xff]
      %v4749 = vld [vmem:[#allocation2 + $0x198] sm:$0xff]
      %v4750 = vld [vmem:[#allocation2 + $0x1e0] sm:$0xff]
      %v4751 = vld [vmem:[#allocation2 + $0x1e8] sm:$0xff]
      %v4752 = vld [vmem:[#allocation2 + $0x1f0] sm:$0xff]
      %v4753 = vld [vmem:[#allocation2 + $0x1f8] sm:$0xff]
      %v4758 = vrot.slane %v4750, 7
      %v4759 = vrot.slane %v4751, 7
      %v4760 = vsel %vm3965, %v4758, %v4759
      %v4761 = vrot.slane %v4752, 7
      %v4762 = vsel %vm3965, %v4759, %v4761
      %v4763 = vrot.slane %v4753, 7
      %v4764 = vsel %vm3965, %v4761, %v4763
      %v4769 = vsel %vm3965, 0.0, %v4758
      %v4770 = vsel %vm4119, 0.0, %v4769
      %v4771 = vsel %vm4120, 0.0, %v4760
      %v4772 = vsel %vm4121, 0.0, %v4762
      %v4773 = vsel %vm4122, 0.0, %v4764
      %v4774 = vld [vmem:[#allocation2 + $0x100] sm:$0xff]
      %v4775 = vld [vmem:[#allocation2 + $0x108] sm:$0xff]
      %v4776 = vld [vmem:[#allocation2 + $0x110] sm:$0xff]
      %v4777 = vld [vmem:[#allocation2 + $0x118] sm:$0xff]
      %v4778 = vld [vmem:[#allocation2 + $0x160] sm:$0xff]
      %v4779 = vld [vmem:[#allocation2 + $0x168] sm:$0xff]
      %v4780 = vld [vmem:[#allocation2 + $0x170] sm:$0xff]
      %v4781 = vld [vmem:[#allocation2 + $0x178] sm:$0xff]
      %v4786 = vrot.slane %v4778, 7
      %v4787 = vrot.slane %v4779, 7
      %v4788 = vsel %vm3965, %v4786, %v4787
      %v4789 = vrot.slane %v4780, 7
      %v4790 = vsel %vm3965, %v4787, %v4789
      %v4791 = vrot.slane %v4781, 7
      %v4792 = vsel %vm3965, %v4789, %v4791
      %4793 = vrot.lane.b32.xlu0 %v4786, 96
      %v4794 = vpop.permute.xlu0 %4793
      %4795 = vrot.lane.b32.xlu0 %v4788, 96
      %v4796 = vpop.permute.xlu0 %4795
      %4797 = vrot.lane.b32.xlu0 %v4790, 96
      %v4798 = vpop.permute.xlu0 %4797
      %4799 = vrot.lane.b32.xlu0 %v4792, 96
      %v4800 = vpop.permute.xlu0 %4799
      %v4805 = vsel %vm3965, 0.0, %v4794
      %v4806 = vsel %vm4119, 0.0, %v4805
      %v4807 = vsel %vm4120, 0.0, %v4796
      %v4808 = vsel %vm4121, 0.0, %v4798
      %v4809 = vsel %vm4122, 0.0, %v4800
      %4814 = vrot.lane.b32.xlu0 %v4774, 32
      %v4815 = vpop.permute.xlu0 %4814
      %4816 = vrot.lane.b32.xlu0 %v4775, 32
      %v4817 = vpop.permute.xlu0 %4816
      %4818 = vrot.lane.b32.xlu0 %v4776, 32
      %v4819 = vpop.permute.xlu0 %4818
      %4820 = vrot.lane.b32.xlu0 %v4777, 32
      %v4821 = vpop.permute.xlu0 %4820
      %v4826 = vsel %vm528, %v4770, %v4815
      %v4827 = vsel %vm528, %v4771, %v4817
      %v4828 = vsel %vm528, %v4772, %v4819
      %v4829 = vsel %vm528, %v4773, %v4821
      %4830 = vst [vmem:[#allocation5 + $0x3c0] sm:$0xff] %v4746
      %4831 = vst [vmem:[#allocation5 + $0x3c8] sm:$0xff] %v4826
      %4832 = vst.msk [vmem:[#allocation5 + $0x3d0] sm:$0xff] %vm523, %v4806
      %4833 = vst [vmem:[#allocation5 + $0x3d8] sm:$0xff] %v4747
      %4834 = vst [vmem:[#allocation5 + $0x3e0] sm:$0xff] %v4827
      %4835 = vst.msk [vmem:[#allocation5 + $0x3e8] sm:$0xff] %vm523, %v4807
      %4836 = vst [vmem:[#allocation5 + $0x3f0] sm:$0xff] %v4748
      %4837 = vst [vmem:[#allocation5 + $0x3f8] sm:$0xff] %v4828
      %4838 = vst.msk [vmem:[#allocation5 + $0x400] sm:$0xff] %vm523, %v4808
      %4839 = vst [vmem:[#allocation5 + $0x408] sm:$0xff] %v4749
      %4840 = vst [vmem:[#allocation5 + $0x410] sm:$0xff] %v4829
      %4841 = vst.msk [vmem:[#allocation5 + $0x418] sm:$0xff] %vm523, %v4809
      %v4842 = vld [vmem:[#allocation2 + $0x100] sm:$0xff]
      %v4843 = vld [vmem:[#allocation2 + $0x108] sm:$0xff]
      %v4844 = vld [vmem:[#allocation2 + $0x110] sm:$0xff]
      %v4845 = vld [vmem:[#allocation2 + $0x118] sm:$0xff]
      %v4846 = vld [vmem:[#allocation2 + $0x160] sm:$0xff]
      %v4847 = vld [vmem:[#allocation2 + $0x168] sm:$0xff]
      %v4848 = vld [vmem:[#allocation2 + $0x170] sm:$0xff]
      %v4849 = vld [vmem:[#allocation2 + $0x178] sm:$0xff]
      %v4854 = vrot.slane %v4846, 7
      %v4855 = vrot.slane %v4847, 7
      %v4856 = vsel %vm3965, %v4854, %v4855
      %v4857 = vrot.slane %v4848, 7
      %v4858 = vsel %vm3965, %v4855, %v4857
      %v4859 = vrot.slane %v4849, 7
      %v4860 = vsel %vm3965, %v4857, %v4859
      %v4865 = vsel %vm3965, 0.0, %v4854
      %v4866 = vsel %vm4119, 0.0, %v4865
      %v4867 = vsel %vm4120, 0.0, %v4856
      %v4868 = vsel %vm4121, 0.0, %v4858
      %v4869 = vsel %vm4122, 0.0, %v4860
      %v4870 = vld [vmem:[#allocation2 + $0x80] sm:$0xff]
      %v4871 = vld [vmem:[#allocation2 + $0x88] sm:$0xff]
      %v4872 = vld [vmem:[#allocation2 + $0x90] sm:$0xff]
      %v4873 = vld [vmem:[#allocation2 + $0x98] sm:$0xff]
      %v4874 = vld [vmem:[#allocation2 + $0xe0] sm:$0xff]
      %v4875 = vld [vmem:[#allocation2 + $0xe8] sm:$0xff]
      %v4876 = vld [vmem:[#allocation2 + $0xf0] sm:$0xff]
      %v4877 = vld [vmem:[#allocation2 + $0xf8] sm:$0xff]
      %v4882 = vrot.slane %v4874, 7
      %v4883 = vrot.slane %v4875, 7
      %v4884 = vsel %vm3965, %v4882, %v4883
      %v4885 = vrot.slane %v4876, 7
      %v4886 = vsel %vm3965, %v4883, %v4885
      %v4887 = vrot.slane %v4877, 7
      %v4888 = vsel %vm3965, %v4885, %v4887
      %4889 = vrot.lane.b32.xlu0 %v4882, 96
      %v4890 = vpop.permute.xlu0 %4889
      %4891 = vrot.lane.b32.xlu0 %v4884, 96
      %v4892 = vpop.permute.xlu0 %4891
      %4893 = vrot.lane.b32.xlu0 %v4886, 96
      %v4894 = vpop.permute.xlu0 %4893
      %4895 = vrot.lane.b32.xlu0 %v4888, 96
      %v4896 = vpop.permute.xlu0 %4895
      %v4901 = vsel %vm3965, 0.0, %v4890
      %v4902 = vsel %vm4119, 0.0, %v4901
      %v4903 = vsel %vm4120, 0.0, %v4892
      %v4904 = vsel %vm4121, 0.0, %v4894
      %v4905 = vsel %vm4122, 0.0, %v4896
      %4910 = vrot.lane.b32.xlu0 %v4870, 32
      %v4911 = vpop.permute.xlu0 %4910
      %4912 = vrot.lane.b32.xlu0 %v4871, 32
      %v4913 = vpop.permute.xlu0 %4912
      %4914 = vrot.lane.b32.xlu0 %v4872, 32
      %v4915 = vpop.permute.xlu0 %4914
      %4916 = vrot.lane.b32.xlu0 %v4873, 32
      %v4917 = vpop.permute.xlu0 %4916
      %v4922 = vsel %vm528, %v4866, %v4911
      %v4923 = vsel %vm528, %v4867, %v4913
      %v4924 = vsel %vm528, %v4868, %v4915
      %v4925 = vsel %vm528, %v4869, %v4917
      %4926 = vst [vmem:[#allocation5 + $0x420] sm:$0xff] %v4842
      %4927 = vst [vmem:[#allocation5 + $0x428] sm:$0xff] %v4922
      %4928 = vst.msk [vmem:[#allocation5 + $0x430] sm:$0xff] %vm523, %v4902
      %4929 = vst [vmem:[#allocation5 + $0x438] sm:$0xff] %v4843
      %4930 = vst [vmem:[#allocation5 + $0x440] sm:$0xff] %v4923
      %4931 = vst.msk [vmem:[#allocation5 + $0x448] sm:$0xff] %vm523, %v4903
      %4932 = vst [vmem:[#allocation5 + $0x450] sm:$0xff] %v4844
      %4933 = vst [vmem:[#allocation5 + $0x458] sm:$0xff] %v4924
      %4934 = vst.msk [vmem:[#allocation5 + $0x460] sm:$0xff] %vm523, %v4904
      %4935 = vst [vmem:[#allocation5 + $0x468] sm:$0xff] %v4845
      %4936 = vst [vmem:[#allocation5 + $0x470] sm:$0xff] %v4925
      %4937 = vst.msk [vmem:[#allocation5 + $0x478] sm:$0xff] %vm523, %v4905
      %v4938 = vld [vmem:[#allocation2 + $0x160] sm:$0xff]
      %v4939 = vld [vmem:[#allocation2 + $0x168] sm:$0xff]
      %v4940 = vld [vmem:[#allocation2 + $0x170] sm:$0xff]
      %v4941 = vld [vmem:[#allocation2 + $0x178] sm:$0xff]
      %v4942 = vld [vmem:[#allocation2 + $0x140] sm:$0xff]
      %v4943 = vld [vmem:[#allocation2 + $0x148] sm:$0xff]
      %v4944 = vld [vmem:[#allocation2 + $0x150] sm:$0xff]
      %v4945 = vld [vmem:[#allocation2 + $0x158] sm:$0xff]
      %v4946 = vld [vmem:[#allocation2 + $0xe0] sm:$0xff]
      %v4947 = vld [vmem:[#allocation2 + $0xe8] sm:$0xff]
      %v4948 = vld [vmem:[#allocation2 + $0xf0] sm:$0xff]
      %v4949 = vld [vmem:[#allocation2 + $0xf8] sm:$0xff]
      %v4950 = vld [vmem:[#allocation2 + $0xc0] sm:$0xff]
      %v4951 = vld [vmem:[#allocation2 + $0xc8] sm:$0xff]
      %v4952 = vld [vmem:[#allocation2 + $0xd0] sm:$0xff]
      %v4953 = vld [vmem:[#allocation2 + $0xd8] sm:$0xff]
      %4958 = vrot.lane.b32.xlu0 %v4946, 32
      %v4959 = vpop.permute.xlu0 %4958
      %4960 = vrot.lane.b32.xlu0 %v4947, 32
      %v4961 = vpop.permute.xlu0 %4960
      %4962 = vrot.lane.b32.xlu0 %v4948, 32
      %v4963 = vpop.permute.xlu0 %4962
      %4964 = vrot.lane.b32.xlu0 %v4949, 32
      %v4965 = vpop.permute.xlu0 %4964
      %4974 = vrot.lane.b32.xlu0 %v4950, 96
      %v4975 = vpop.permute.xlu0 %4974
      %4976 = vrot.lane.b32.xlu0 %v4951, 96
      %v4977 = vpop.permute.xlu0 %4976
      %4978 = vrot.lane.b32.xlu0 %v4952, 96
      %v4979 = vpop.permute.xlu0 %4978
      %4980 = vrot.lane.b32.xlu0 %v4953, 96
      %v4981 = vpop.permute.xlu0 %4980
      %v4986 = vsel %vm528, %v4942, %v4959
      %v4987 = vsel %vm528, %v4943, %v4961
      %v4988 = vsel %vm528, %v4944, %v4963
      %v4989 = vsel %vm528, %v4945, %v4965
      %4990 = vst [vmem:[#allocation5 + $0x480] sm:$0xff] %v4938
      %4991 = vst [vmem:[#allocation5 + $0x488] sm:$0xff] %v4986
      %4992 = vst.msk [vmem:[#allocation5 + $0x490] sm:$0xff] %vm523, %v4975
      %4993 = vst [vmem:[#allocation5 + $0x498] sm:$0xff] %v4939
      %4994 = vst [vmem:[#allocation5 + $0x4a0] sm:$0xff] %v4987
      %4995 = vst.msk [vmem:[#allocation5 + $0x4a8] sm:$0xff] %vm523, %v4977
      %4996 = vst [vmem:[#allocation5 + $0x4b0] sm:$0xff] %v4940
      %4997 = vst [vmem:[#allocation5 + $0x4b8] sm:$0xff] %v4988
      %4998 = vst.msk [vmem:[#allocation5 + $0x4c0] sm:$0xff] %vm523, %v4979
      %4999 = vst [vmem:[#allocation5 + $0x4c8] sm:$0xff] %v4941
      %5000 = vst [vmem:[#allocation5 + $0x4d0] sm:$0xff] %v4989
      %5001 = vst.msk [vmem:[#allocation5 + $0x4d8] sm:$0xff] %vm523, %v4981
      %v5002 = vld [vmem:[#allocation2 + $0x1e0] sm:$0xff]
      %v5003 = vld [vmem:[#allocation2 + $0x1e8] sm:$0xff]
      %v5004 = vld [vmem:[#allocation2 + $0x1f0] sm:$0xff]
      %v5005 = vld [vmem:[#allocation2 + $0x1f8] sm:$0xff]
      %v5006 = vld [vmem:[#allocation2 + $0x1c0] sm:$0xff]
      %v5007 = vld [vmem:[#allocation2 + $0x1c8] sm:$0xff]
      %v5008 = vld [vmem:[#allocation2 + $0x1d0] sm:$0xff]
      %v5009 = vld [vmem:[#allocation2 + $0x1d8] sm:$0xff]
      %v5010 = vld [vmem:[#allocation2 + $0x160] sm:$0xff]
      %v5011 = vld [vmem:[#allocation2 + $0x168] sm:$0xff]
      %v5012 = vld [vmem:[#allocation2 + $0x170] sm:$0xff]
      %v5013 = vld [vmem:[#allocation2 + $0x178] sm:$0xff]
      %v5014 = vld [vmem:[#allocation2 + $0x140] sm:$0xff]
      %v5015 = vld [vmem:[#allocation2 + $0x148] sm:$0xff]
      %v5016 = vld [vmem:[#allocation2 + $0x150] sm:$0xff]
      %v5017 = vld [vmem:[#allocation2 + $0x158] sm:$0xff]
      %5022 = vrot.lane.b32.xlu0 %v5010, 32
      %v5023 = vpop.permute.xlu0 %5022
      %5024 = vrot.lane.b32.xlu0 %v5011, 32
      %v5025 = vpop.permute.xlu0 %5024
      %5026 = vrot.lane.b32.xlu0 %v5012, 32
      %v5027 = vpop.permute.xlu0 %5026
      %5028 = vrot.lane.b32.xlu0 %v5013, 32
      %v5029 = vpop.permute.xlu0 %5028
      %5038 = vrot.lane.b32.xlu0 %v5014, 96
      %v5039 = vpop.permute.xlu0 %5038
      %5040 = vrot.lane.b32.xlu0 %v5015, 96
      %v5041 = vpop.permute.xlu0 %5040
      %5042 = vrot.lane.b32.xlu0 %v5016, 96
      %v5043 = vpop.permute.xlu0 %5042
      %5044 = vrot.lane.b32.xlu0 %v5017, 96
      %v5045 = vpop.permute.xlu0 %5044
      %v5050 = vsel %vm528, %v5006, %v5023
      %v5051 = vsel %vm528, %v5007, %v5025
      %v5052 = vsel %vm528, %v5008, %v5027
      %v5053 = vsel %vm528, %v5009, %v5029
      %5054 = vst [vmem:[#allocation5 + $0x4e0] sm:$0xff] %v5002
      %5055 = vst [vmem:[#allocation5 + $0x4e8] sm:$0xff] %v5050
      %5056 = vst.msk [vmem:[#allocation5 + $0x4f0] sm:$0xff] %vm523, %v5039
      %5057 = vst [vmem:[#allocation5 + $0x4f8] sm:$0xff] %v5003
      %5058 = vst [vmem:[#allocation5 + $0x500] sm:$0xff] %v5051
      %5059 = vst.msk [vmem:[#allocation5 + $0x508] sm:$0xff] %vm523, %v5041
      %5060 = vst [vmem:[#allocation5 + $0x510] sm:$0xff] %v5004
      %5061 = vst [vmem:[#allocation5 + $0x518] sm:$0xff] %v5052
      %5062 = vst.msk [vmem:[#allocation5 + $0x520] sm:$0xff] %vm523, %v5043
      %5063 = vst [vmem:[#allocation5 + $0x528] sm:$0xff] %v5005
      %5064 = vst [vmem:[#allocation5 + $0x530] sm:$0xff] %v5053
      %5065 = vst.msk [vmem:[#allocation5 + $0x538] sm:$0xff] %vm523, %v5045
      %v5066 = vld [vmem:[#allocation2 + $0x1c0] sm:$0xff]
      %v5067 = vld [vmem:[#allocation2 + $0x1c8] sm:$0xff]
      %v5068 = vld [vmem:[#allocation2 + $0x1d0] sm:$0xff]
      %v5069 = vld [vmem:[#allocation2 + $0x1d8] sm:$0xff]
      %v5070 = vld [vmem:[#allocation2 + $0x1a0] sm:$0xff]
      %v5071 = vld [vmem:[#allocation2 + $0x1a8] sm:$0xff]
      %v5072 = vld [vmem:[#allocation2 + $0x1b0] sm:$0xff]
      %v5073 = vld [vmem:[#allocation2 + $0x1b8] sm:$0xff]
      %v5074 = vld [vmem:[#allocation2 + $0x140] sm:$0xff]
      %v5075 = vld [vmem:[#allocation2 + $0x148] sm:$0xff]
      %v5076 = vld [vmem:[#allocation2 + $0x150] sm:$0xff]
      %v5077 = vld [vmem:[#allocation2 + $0x158] sm:$0xff]
      %v5078 = vld [vmem:[#allocation2 + $0x120] sm:$0xff]
      %v5079 = vld [vmem:[#allocation2 + $0x128] sm:$0xff]
      %v5080 = vld [vmem:[#allocation2 + $0x130] sm:$0xff]
      %v5081 = vld [vmem:[#allocation2 + $0x138] sm:$0xff]
      %5086 = vrot.lane.b32.xlu0 %v5074, 32
      %v5087 = vpop.permute.xlu0 %5086
      %5088 = vrot.lane.b32.xlu0 %v5075, 32
      %v5089 = vpop.permute.xlu0 %5088
      %5090 = vrot.lane.b32.xlu0 %v5076, 32
      %v5091 = vpop.permute.xlu0 %5090
      %5092 = vrot.lane.b32.xlu0 %v5077, 32
      %v5093 = vpop.permute.xlu0 %5092
      %5102 = vrot.lane.b32.xlu0 %v5078, 96
      %v5103 = vpop.permute.xlu0 %5102
      %5104 = vrot.lane.b32.xlu0 %v5079, 96
      %v5105 = vpop.permute.xlu0 %5104
      %5106 = vrot.lane.b32.xlu0 %v5080, 96
      %v5107 = vpop.permute.xlu0 %5106
      %5108 = vrot.lane.b32.xlu0 %v5081, 96
      %v5109 = vpop.permute.xlu0 %5108
      %v5114 = vsel %vm528, %v5070, %v5087
      %v5115 = vsel %vm528, %v5071, %v5089
      %v5116 = vsel %vm528, %v5072, %v5091
      %v5117 = vsel %vm528, %v5073, %v5093
      %5118 = vst [vmem:[#allocation5 + $0x540] sm:$0xff] %v5066
      %5119 = vst [vmem:[#allocation5 + $0x548] sm:$0xff] %v5114
      %5120 = vst.msk [vmem:[#allocation5 + $0x550] sm:$0xff] %vm523, %v5103
      %5121 = vst [vmem:[#allocation5 + $0x558] sm:$0xff] %v5067
      %5122 = vst [vmem:[#allocation5 + $0x560] sm:$0xff] %v5115
      %5123 = vst.msk [vmem:[#allocation5 + $0x568] sm:$0xff] %vm523, %v5105
      %5124 = vst [vmem:[#allocation5 + $0x570] sm:$0xff] %v5068
      %5125 = vst [vmem:[#allocation5 + $0x578] sm:$0xff] %v5116
      %5126 = vst.msk [vmem:[#allocation5 + $0x580] sm:$0xff] %vm523, %v5107
      %5127 = vst [vmem:[#allocation5 + $0x588] sm:$0xff] %v5069
      %5128 = vst [vmem:[#allocation5 + $0x590] sm:$0xff] %v5117
      %5129 = vst.msk [vmem:[#allocation5 + $0x598] sm:$0xff] %vm523, %v5109
      %v5130 = vld [vmem:[#allocation2 + $0x140] sm:$0xff]
      %v5131 = vld [vmem:[#allocation2 + $0x148] sm:$0xff]
      %v5132 = vld [vmem:[#allocation2 + $0x150] sm:$0xff]
      %v5133 = vld [vmem:[#allocation2 + $0x158] sm:$0xff]
      %v5134 = vld [vmem:[#allocation2 + $0x120] sm:$0xff]
      %v5135 = vld [vmem:[#allocation2 + $0x128] sm:$0xff]
      %v5136 = vld [vmem:[#allocation2 + $0x130] sm:$0xff]
      %v5137 = vld [vmem:[#allocation2 + $0x138] sm:$0xff]
      %v5138 = vld [vmem:[#allocation2 + $0xc0] sm:$0xff]
      %v5139 = vld [vmem:[#allocation2 + $0xc8] sm:$0xff]
      %v5140 = vld [vmem:[#allocation2 + $0xd0] sm:$0xff]
      %v5141 = vld [vmem:[#allocation2 + $0xd8] sm:$0xff]
      %v5142 = vld [vmem:[#allocation2 + $0xa0] sm:$0xff]
      %v5143 = vld [vmem:[#allocation2 + $0xa8] sm:$0xff]
      %v5144 = vld [vmem:[#allocation2 + $0xb0] sm:$0xff]
      %v5145 = vld [vmem:[#allocation2 + $0xb8] sm:$0xff]
      %5150 = vrot.lane.b32.xlu0 %v5138, 32
      %v5151 = vpop.permute.xlu0 %5150
      %5152 = vrot.lane.b32.xlu0 %v5139, 32
      %v5153 = vpop.permute.xlu0 %5152
      %5154 = vrot.lane.b32.xlu0 %v5140, 32
      %v5155 = vpop.permute.xlu0 %5154
      %5156 = vrot.lane.b32.xlu0 %v5141, 32
      %v5157 = vpop.permute.xlu0 %5156
      %5166 = vrot.lane.b32.xlu0 %v5142, 96
      %v5167 = vpop.permute.xlu0 %5166
      %5168 = vrot.lane.b32.xlu0 %v5143, 96
      %v5169 = vpop.permute.xlu0 %5168
      %5170 = vrot.lane.b32.xlu0 %v5144, 96
      %v5171 = vpop.permute.xlu0 %5170
      %5172 = vrot.lane.b32.xlu0 %v5145, 96
      %v5173 = vpop.permute.xlu0 %5172
      %v5178 = vsel %vm528, %v5134, %v5151
      %v5179 = vsel %vm528, %v5135, %v5153
      %v5180 = vsel %vm528, %v5136, %v5155
      %v5181 = vsel %vm528, %v5137, %v5157
      %5182 = vst [vmem:[#allocation5 + $0x5a0] sm:$0xff] %v5130
      %5183 = vst [vmem:[#allocation5 + $0x5a8] sm:$0xff] %v5178
      %5184 = vst.msk [vmem:[#allocation5 + $0x5b0] sm:$0xff] %vm523, %v5167
      %5185 = vst [vmem:[#allocation5 + $0x5b8] sm:$0xff] %v5131
      %5186 = vst [vmem:[#allocation5 + $0x5c0] sm:$0xff] %v5179
      %5187 = vst.msk [vmem:[#allocation5 + $0x5c8] sm:$0xff] %vm523, %v5169
      %5188 = vst [vmem:[#allocation5 + $0x5d0] sm:$0xff] %v5132
      %5189 = vst [vmem:[#allocation5 + $0x5d8] sm:$0xff] %v5180
      %5190 = vst.msk [vmem:[#allocation5 + $0x5e0] sm:$0xff] %vm523, %v5171
      %5191 = vst [vmem:[#allocation5 + $0x5e8] sm:$0xff] %v5133
      %5192 = vst [vmem:[#allocation5 + $0x5f0] sm:$0xff] %v5181
      %5193 = vst.msk [vmem:[#allocation5 + $0x5f8] sm:$0xff] %vm523, %v5173
      %v5194 = vld [vmem:[#allocation5] sm:$0xff]
      %v5195 = vld [vmem:[#allocation5 + $0x8] sm:$0xff]
      %v5196 = vld [vmem:[#allocation5 + $0x10] sm:$0xff]
      %v5197 = vld [vmem:[#allocation5 + $0x18] sm:$0xff]
      %v5198 = vld [vmem:[#allocation5 + $0x20] sm:$0xff]
      %v5199 = vld [vmem:[#allocation5 + $0x28] sm:$0xff]
      %v5200 = vld [vmem:[#allocation5 + $0x30] sm:$0xff]
      %v5201 = vld [vmem:[#allocation5 + $0x38] sm:$0xff]
      %v5202 = vld [vmem:[#allocation5 + $0x40] sm:$0xff]
      %v5203 = vld [vmem:[#allocation5 + $0x48] sm:$0xff]
      %v5204 = vld [vmem:[#allocation5 + $0x50] sm:$0xff]
      %v5205 = vld [vmem:[#allocation5 + $0x58] sm:$0xff]
      %v5206 = vld [vmem:[#allocation5 + $0x60] sm:$0xff]
      %v5207 = vld [vmem:[#allocation5 + $0x68] sm:$0xff]
      %v5208 = vld [vmem:[#allocation5 + $0x70] sm:$0xff]
      %v5209 = vld [vmem:[#allocation5 + $0x78] sm:$0xff]
      %v5210 = vld [vmem:[#allocation5 + $0x80] sm:$0xff]
      %v5211 = vld [vmem:[#allocation5 + $0x88] sm:$0xff]
      %v5212 = vld [vmem:[#allocation5 + $0x90] sm:$0xff]
      %v5213 = vld [vmem:[#allocation5 + $0x98] sm:$0xff]
      %v5214 = vld [vmem:[#allocation5 + $0xa0] sm:$0xff]
      %v5215 = vld [vmem:[#allocation5 + $0xa8] sm:$0xff]
      %v5216 = vld [vmem:[#allocation5 + $0xb0] sm:$0xff]
      %v5217 = vld [vmem:[#allocation5 + $0xb8] sm:$0xff]
      %v5218 = vld [vmem:[#allocation5 + $0xc0] sm:$0xff]
      %v5219 = vld [vmem:[#allocation5 + $0xc8] sm:$0xff]
      %v5220 = vld [vmem:[#allocation5 + $0xd0] sm:$0xff]
      %v5221 = vld [vmem:[#allocation5 + $0xd8] sm:$0xff]
      %v5222 = vld [vmem:[#allocation5 + $0xe0] sm:$0xff]
      %v5223 = vld [vmem:[#allocation5 + $0xe8] sm:$0xff]
      %v5224 = vld [vmem:[#allocation5 + $0xf0] sm:$0xff]
      %v5225 = vld [vmem:[#allocation5 + $0xf8] sm:$0xff]
      %v5226 = vld [vmem:[#allocation5 + $0x100] sm:$0xff]
      %v5227 = vld [vmem:[#allocation5 + $0x108] sm:$0xff]
      %v5228 = vld [vmem:[#allocation5 + $0x110] sm:$0xff]
      %v5229 = vld [vmem:[#allocation5 + $0x118] sm:$0xff]
      %v5230 = vld [vmem:[#allocation5 + $0x120] sm:$0xff]
      %v5231 = vld [vmem:[#allocation5 + $0x128] sm:$0xff]
      %v5232 = vld [vmem:[#allocation5 + $0x130] sm:$0xff]
      %v5233 = vld [vmem:[#allocation5 + $0x138] sm:$0xff]
      %v5234 = vld [vmem:[#allocation5 + $0x140] sm:$0xff]
      %v5235 = vld [vmem:[#allocation5 + $0x148] sm:$0xff]
      %v5236 = vld [vmem:[#allocation5 + $0x150] sm:$0xff]
      %v5237 = vld [vmem:[#allocation5 + $0x158] sm:$0xff]
      %v5238 = vld [vmem:[#allocation5 + $0x160] sm:$0xff]
      %v5239 = vld [vmem:[#allocation5 + $0x168] sm:$0xff]
      %v5240 = vld [vmem:[#allocation5 + $0x170] sm:$0xff]
      %v5241 = vld [vmem:[#allocation5 + $0x178] sm:$0xff]
      %v5242 = vld [vmem:[%s2] sm:$0xff]
      %v5243 = vld [vmem:[%s2 + $0x8] sm:$0xff]
      %v5244 = vld [vmem:[%s2 + $0x10] sm:$0xff]
      %v5245 = vld [vmem:[%s2 + $0x18] sm:$0xff]
      %v5246 = vld [vmem:[%s2 + $0x20] sm:$0xff]
      %v5247 = vld [vmem:[%s2 + $0x28] sm:$0xff]
      %v5248 = vld [vmem:[%s2 + $0x30] sm:$0xff]
      %v5249 = vld [vmem:[%s2 + $0x38] sm:$0xff]
      %v5250 = vld [vmem:[%s2 + $0x40] sm:$0xff]
      %v5251 = vld [vmem:[%s2 + $0x48] sm:$0xff]
      %v5252 = vld [vmem:[%s2 + $0x50] sm:$0xff]
      %v5253 = vld [vmem:[%s2 + $0x58] sm:$0xff]
      %v5254 = vld [vmem:[%s2 + $0x60] sm:$0xff]
      %v5255 = vld [vmem:[%s2 + $0x68] sm:$0xff]
      %v5256 = vld [vmem:[%s2 + $0x70] sm:$0xff]
      %v5257 = vld [vmem:[%s2 + $0x78] sm:$0xff]
      %v5258 = vld [vmem:[%s2 + $0x80] sm:$0xff]
      %v5259 = vld [vmem:[%s2 + $0x88] sm:$0xff]
      %v5260 = vld [vmem:[%s2 + $0x90] sm:$0xff]
      %v5261 = vld [vmem:[%s2 + $0x98] sm:$0xff]
      %v5262 = vld [vmem:[%s2 + $0xa0] sm:$0xff]
      %v5263 = vld [vmem:[%s2 + $0xa8] sm:$0xff]
      %v5264 = vld [vmem:[%s2 + $0xb0] sm:$0xff]
      %v5265 = vld [vmem:[%s2 + $0xb8] sm:$0xff]
      %v5266 = vld [vmem:[%s2 + $0xc0] sm:$0xff]
      %v5267 = vld [vmem:[%s2 + $0xc8] sm:$0xff]
      %v5268 = vld [vmem:[%s2 + $0xd0] sm:$0xff]
      %v5269 = vld [vmem:[%s2 + $0xd8] sm:$0xff]
      %v5270 = vld [vmem:[%s2 + $0xe0] sm:$0xff]
      %v5271 = vld [vmem:[%s2 + $0xe8] sm:$0xff]
      %v5272 = vld [vmem:[%s2 + $0xf0] sm:$0xff]
      %v5273 = vld [vmem:[%s2 + $0xf8] sm:$0xff]
      %v5274 = vld [vmem:[%s2 + $0x100] sm:$0xff]
      %v5275 = vld [vmem:[%s2 + $0x108] sm:$0xff]
      %v5276 = vld [vmem:[%s2 + $0x110] sm:$0xff]
      %v5277 = vld [vmem:[%s2 + $0x118] sm:$0xff]
      %v5278 = vperm.slane %v3797, 0
      %v5280 = vsel %vm523, %v5196, 0
      %v5283 = vsel %vm523, %v5199, 0
      %v5286 = vsel %vm523, %v5202, 0
      %v5289 = vsel %vm523, %v5205, 0
      %v5292 = vsel %vm523, %v5208, 0
      %v5295 = vsel %vm523, %v5211, 0
      %v5298 = vsel %vm523, %v5214, 0
      %v5301 = vsel %vm523, %v5217, 0
      %v5304 = vsel %vm523, %v5220, 0
      %v5307 = vsel %vm523, %v5223, 0
      %v5310 = vsel %vm523, %v5226, 0
      %v5313 = vsel %vm523, %v5229, 0
      %v5316 = vsel %vm523, %v5232, 0
      %v5319 = vsel %vm523, %v5235, 0
      %v5322 = vsel %vm523, %v5238, 0
      %v5325 = vsel %vm523, %v5241, 0
      %5327 = vmatpush.msra.mxu0 %v5257
      %5328 = vmatpush.msra.mxu0 %v5256
      %5329 = vmatpush.msra.mxu0 %v5255
      %5330 = vmatpush.msra.mxu0 %v5254
      %5331 = vmatpush.msra.mxu0 %v5253
      %5332 = vmatpush.msra.mxu0 %v5252
      %5333 = vmatpush.msra.mxu0 %v5251
      %5334 = vmatpush.msra.mxu0 %v5250
      %5335 = vmatpush.msra.mxu0 %v5249
      %5336 = vmatpush.msra.mxu0 %v5248
      %5337 = vmatpush.msra.mxu0 %v5247
      %5338 = vmatpush.msra.mxu0 %v5246
      %5339 = vmatpush.msra.mxu0 %v5245
      %5340 = vmatpush.msra.mxu0 %v5244
      %5341 = vmatpush.msra.mxu0 %v5243
      %5342 = vmatpush.msra.mxu0 %v5242
      %5343 = vmatmul.f32.gmra.mxu0 %v5194
      %v5344 = vpop.f32.mrf.mxu0
      %v5345 = vadd.f32 %v5278, %v5344
      %5346 = vmatmul.f32.gmra.mxu0 %v5197
      %v5347 = vpop.f32.mrf.mxu0
      %v5348 = vadd.f32 %v5278, %v5347
      %5349 = vmatmul.f32.gmra.mxu0 %v5200
      %v5350 = vpop.f32.mrf.mxu0
      %v5351 = vadd.f32 %v5278, %v5350
      %5352 = vmatmul.f32.gmra.mxu0 %v5203
      %v5353 = vpop.f32.mrf.mxu0
      %v5354 = vadd.f32 %v5278, %v5353
      %5355 = vmatmul.f32.gmra.mxu0 %v5206
      %v5356 = vpop.f32.mrf.mxu0
      %v5357 = vadd.f32 %v5278, %v5356
      %5358 = vmatmul.f32.gmra.mxu0 %v5209
      %v5359 = vpop.f32.mrf.mxu0
      %v5360 = vadd.f32 %v5278, %v5359
      %5361 = vmatmul.f32.gmra.mxu0 %v5212
      %v5362 = vpop.f32.mrf.mxu0
      %v5363 = vadd.f32 %v5278, %v5362
      %5364 = vmatmul.f32.gmra.mxu0 %v5215
      %v5365 = vpop.f32.mrf.mxu0
      %v5366 = vadd.f32 %v5278, %v5365
      %5367 = vmatmul.f32.gmra.mxu0 %v5218
      %v5368 = vpop.f32.mrf.mxu0
      %v5369 = vadd.f32 %v5278, %v5368
      %5370 = vmatmul.f32.gmra.mxu0 %v5221
      %v5371 = vpop.f32.mrf.mxu0
      %v5372 = vadd.f32 %v5278, %v5371
      %5373 = vmatmul.f32.gmra.mxu0 %v5224
      %v5374 = vpop.f32.mrf.mxu0
      %v5375 = vadd.f32 %v5278, %v5374
      %5376 = vmatmul.f32.gmra.mxu0 %v5227
      %v5377 = vpop.f32.mrf.mxu0
      %v5378 = vadd.f32 %v5278, %v5377
      %5379 = vmatmul.f32.gmra.mxu0 %v5230
      %v5380 = vpop.f32.mrf.mxu0
      %v5381 = vadd.f32 %v5278, %v5380
      %5382 = vmatmul.f32.gmra.mxu0 %v5233
      %v5383 = vpop.f32.mrf.mxu0
      %v5384 = vadd.f32 %v5278, %v5383
      %5385 = vmatmul.f32.gmra.mxu0 %v5236
      %v5386 = vpop.f32.mrf.mxu0
      %v5387 = vadd.f32 %v5278, %v5386
      %5388 = vmatmul.f32.gmra.mxu0 %v5239
      %v5389 = vpop.f32.mrf.mxu0
      %v5390 = vadd.f32 %v5278, %v5389
      %5391 = vdwg.mxu0
      %5392 = vmatpush.msra.mxu0 %v5273
      %5393 = vmatpush.msra.mxu0 %v5272
      %5394 = vmatpush.msra.mxu0 %v5271
      %5395 = vmatpush.msra.mxu0 %v5270
      %5396 = vmatpush.msra.mxu0 %v5269
      %5397 = vmatpush.msra.mxu0 %v5268
      %5398 = vmatpush.msra.mxu0 %v5267
      %5399 = vmatpush.msra.mxu0 %v5266
      %5400 = vmatpush.msra.mxu0 %v5265
      %5401 = vmatpush.msra.mxu0 %v5264
      %5402 = vmatpush.msra.mxu0 %v5263
      %5403 = vmatpush.msra.mxu0 %v5262
      %5404 = vmatpush.msra.mxu0 %v5261
      %5405 = vmatpush.msra.mxu0 %v5260
      %5406 = vmatpush.msra.mxu0 %v5259
      %5407 = vmatpush.msra.mxu0 %v5258
      %5408 = vmatmul.f32.gmra.mxu0 %v5195
      %v5409 = vpop.f32.mrf.mxu0
      %v5410 = vadd.f32 %v5345, %v5409
      %5411 = vmatmul.f32.gmra.mxu0 %v5198
      %v5412 = vpop.f32.mrf.mxu0
      %v5413 = vadd.f32 %v5348, %v5412
      %5414 = vmatmul.f32.gmra.mxu0 %v5201
      %v5415 = vpop.f32.mrf.mxu0
      %v5416 = vadd.f32 %v5351, %v5415
      %5417 = vmatmul.f32.gmra.mxu0 %v5204
      %v5418 = vpop.f32.mrf.mxu0
      %v5419 = vadd.f32 %v5354, %v5418
      %5420 = vmatmul.f32.gmra.mxu0 %v5207
      %v5421 = vpop.f32.mrf.mxu0
      %v5422 = vadd.f32 %v5357, %v5421
      %5423 = vmatmul.f32.gmra.mxu0 %v5210
      %v5424 = vpop.f32.mrf.mxu0
      %v5425 = vadd.f32 %v5360, %v5424
      %5426 = vmatmul.f32.gmra.mxu0 %v5213
      %v5427 = vpop.f32.mrf.mxu0
      %v5428 = vadd.f32 %v5363, %v5427
      %5429 = vmatmul.f32.gmra.mxu0 %v5216
      %v5430 = vpop.f32.mrf.mxu0
      %v5431 = vadd.f32 %v5366, %v5430
      %5432 = vmatmul.f32.gmra.mxu0 %v5219
      %v5433 = vpop.f32.mrf.mxu0
      %v5434 = vadd.f32 %v5369, %v5433
      %5435 = vmatmul.f32.gmra.mxu0 %v5222
      %v5436 = vpop.f32.mrf.mxu0
      %v5437 = vadd.f32 %v5372, %v5436
      %5438 = vmatmul.f32.gmra.mxu0 %v5225
      %v5439 = vpop.f32.mrf.mxu0
      %v5440 = vadd.f32 %v5375, %v5439
      %5441 = vmatmul.f32.gmra.mxu0 %v5228
      %v5442 = vpop.f32.mrf.mxu0
      %v5443 = vadd.f32 %v5378, %v5442
      %5444 = vmatmul.f32.gmra.mxu0 %v5231
      %v5445 = vpop.f32.mrf.mxu0
      %v5446 = vadd.f32 %v5381, %v5445
      %5447 = vmatmul.f32.gmra.mxu0 %v5234
      %v5448 = vpop.f32.mrf.mxu0
      %v5449 = vadd.f32 %v5384, %v5448
      %5450 = vmatmul.f32.gmra.mxu0 %v5237
      %v5451 = vpop.f32.mrf.mxu0
      %v5452 = vadd.f32 %v5387, %v5451
      %5453 = vmatmul.f32.gmra.mxu0 %v5240
      %v5454 = vpop.f32.mrf.mxu0
      %v5455 = vadd.f32 %v5390, %v5454
      %5456 = vdwg.mxu0
      %5457 = vmatpush.msra.mxu0 0.0
      %5458 = vmatpush.msra.mxu0 0.0
      %5459 = vmatpush.msra.mxu0 0.0
      %5460 = vmatpush.msra.mxu0 0.0
      %5461 = vmatpush.msra.mxu0 0.0
      %5462 = vmatpush.msra.mxu0 0.0
      %5463 = vmatpush.msra.mxu0 0.0
      %5464 = vmatpush.msra.mxu0 0.0
      %5465 = vmatpush.msra.mxu0 0.0
      %5466 = vmatpush.msra.mxu0 0.0
      %5467 = vmatpush.msra.mxu0 0.0
      %5468 = vmatpush.msra.mxu0 0.0
      %5469 = vmatpush.msra.mxu0 %v5277
      %5470 = vmatpush.msra.mxu0 %v5276
      %5471 = vmatpush.msra.mxu0 %v5275
      %5472 = vmatpush.msra.mxu0 %v5274
      %5473 = vmatmul.f32.gmra.mxu0 %v5280
      %v5474 = vpop.f32.mrf.mxu0
      %v5475 = vadd.f32 %v5410, %v5474
      %5476 = vmatmul.f32.gmra.mxu0 %v5283
      %v5477 = vpop.f32.mrf.mxu0
      %v5478 = vadd.f32 %v5413, %v5477
      %5479 = vmatmul.f32.gmra.mxu0 %v5286
      %v5480 = vpop.f32.mrf.mxu0
      %v5481 = vadd.f32 %v5416, %v5480
      %5482 = vmatmul.f32.gmra.mxu0 %v5289
      %v5483 = vpop.f32.mrf.mxu0
      %v5484 = vadd.f32 %v5419, %v5483
      %5485 = vmatmul.f32.gmra.mxu0 %v5292
      %v5486 = vpop.f32.mrf.mxu0
      %v5487 = vadd.f32 %v5422, %v5486
      %5488 = vmatmul.f32.gmra.mxu0 %v5295
      %v5489 = vpop.f32.mrf.mxu0
      %v5490 = vadd.f32 %v5425, %v5489
      %5491 = vmatmul.f32.gmra.mxu0 %v5298
      %v5492 = vpop.f32.mrf.mxu0
      %v5493 = vadd.f32 %v5428, %v5492
      %5494 = vmatmul.f32.gmra.mxu0 %v5301
      %v5495 = vpop.f32.mrf.mxu0
      %v5496 = vadd.f32 %v5431, %v5495
      %5497 = vmatmul.f32.gmra.mxu0 %v5304
      %v5498 = vpop.f32.mrf.mxu0
      %v5499 = vadd.f32 %v5434, %v5498
      %5500 = vmatmul.f32.gmra.mxu0 %v5307
      %v5501 = vpop.f32.mrf.mxu0
      %v5502 = vadd.f32 %v5437, %v5501
      %5503 = vmatmul.f32.gmra.mxu0 %v5310
      %v5504 = vpop.f32.mrf.mxu0
      %v5505 = vadd.f32 %v5440, %v5504
      %5506 = vmatmul.f32.gmra.mxu0 %v5313
      %v5507 = vpop.f32.mrf.mxu0
      %v5508 = vadd.f32 %v5443, %v5507
      %5509 = vmatmul.f32.gmra.mxu0 %v5316
      %v5510 = vpop.f32.mrf.mxu0
      %v5511 = vadd.f32 %v5446, %v5510
      %5512 = vmatmul.f32.gmra.mxu0 %v5319
      %v5513 = vpop.f32.mrf.mxu0
      %v5514 = vadd.f32 %v5449, %v5513
      %5515 = vmatmul.f32.gmra.mxu0 %v5322
      %v5516 = vpop.f32.mrf.mxu0
      %v5517 = vadd.f32 %v5452, %v5516
      %5518 = vmatmul.f32.gmra.mxu0 %v5325
      %v5519 = vpop.f32.mrf.mxu0
      %v5520 = vadd.f32 %v5455, %v5519
      %5521 = vdwg.mxu0
      %v5522 = vmax.f32 %v5475, 0.0
      %v5523 = vmax.f32 %v5478, 0.0
      %v5524 = vmax.f32 %v5481, 0.0
      %v5525 = vmax.f32 %v5484, 0.0
      %v5526 = vmax.f32 %v5487, 0.0
      %v5527 = vmax.f32 %v5490, 0.0
      %v5528 = vmax.f32 %v5493, 0.0
      %v5529 = vmax.f32 %v5496, 0.0
      %v5530 = vmax.f32 %v5499, 0.0
      %v5531 = vmax.f32 %v5502, 0.0
      %v5532 = vmax.f32 %v5505, 0.0
      %v5533 = vmax.f32 %v5508, 0.0
      %v5534 = vmax.f32 %v5511, 0.0
      %v5535 = vmax.f32 %v5514, 0.0
      %v5536 = vmax.f32 %v5517, 0.0
      %v5537 = vmax.f32 %v5520, 0.0
      %5542 = vrot.lane.b32.xlu0 %v5526, 32
      %v5543 = vpop.permute.xlu0 %5542
      %5544 = vrot.lane.b32.xlu0 %v5527, 32
      %v5545 = vpop.permute.xlu0 %5544
      %5546 = vrot.lane.b32.xlu0 %v5528, 32
      %v5547 = vpop.permute.xlu0 %5546
      %5548 = vrot.lane.b32.xlu0 %v5529, 32
      %v5549 = vpop.permute.xlu0 %5548
      %5558 = vrot.lane.b32.xlu0 %v5530, 64
      %v5559 = vpop.permute.xlu0 %5558
      %5560 = vrot.lane.b32.xlu0 %v5531, 64
      %v5561 = vpop.permute.xlu0 %5560
      %5562 = vrot.lane.b32.xlu0 %v5532, 64
      %v5563 = vpop.permute.xlu0 %5562
      %5564 = vrot.lane.b32.xlu0 %v5533, 64
      %v5565 = vpop.permute.xlu0 %5564
      %5574 = vrot.lane.b32.xlu0 %v5534, 96
      %v5575 = vpop.permute.xlu0 %5574
      %5576 = vrot.lane.b32.xlu0 %v5535, 96
      %v5577 = vpop.permute.xlu0 %5576
      %5578 = vrot.lane.b32.xlu0 %v5536, 96
      %v5579 = vpop.permute.xlu0 %5578
      %5580 = vrot.lane.b32.xlu0 %v5537, 96
      %v5581 = vpop.permute.xlu0 %5580
      %v5586 = vsel %vm523, %v5522, %v5543
      %v5587 = vsel %vm523, %v5523, %v5545
      %v5588 = vsel %vm523, %v5524, %v5547
      %v5589 = vsel %vm523, %v5525, %v5549
      %v5590 = vsel %vm528, %v5586, %v5559
      %v5591 = vsel %vm528, %v5587, %v5561
      %v5592 = vsel %vm528, %v5588, %v5563
      %v5593 = vsel %vm528, %v5589, %v5565
      %v5594 = vsel %vm533, %v5590, %v5575
      %v5595 = vsel %vm533, %v5591, %v5577
      %v5596 = vsel %vm533, %v5592, %v5579
      %v5597 = vsel %vm533, %v5593, %v5581
      %5598 = vst [vmem:[#allocation3] sm:$0xff] %v5594
      %5599 = vst [vmem:[#allocation3 + $0x8] sm:$0xff] %v5595
      %5600 = vst [vmem:[#allocation3 + $0x10] sm:$0xff] %v5596
      %5601 = vst [vmem:[#allocation3 + $0x18] sm:$0xff] %v5597
      %v5602 = vld [vmem:[#allocation5 + $0x180] sm:$0xff]
      %v5603 = vld [vmem:[#allocation5 + $0x188] sm:$0xff]
      %v5604 = vld [vmem:[#allocation5 + $0x190] sm:$0xff]
      %v5605 = vld [vmem:[#allocation5 + $0x198] sm:$0xff]
      %v5606 = vld [vmem:[#allocation5 + $0x1a0] sm:$0xff]
      %v5607 = vld [vmem:[#allocation5 + $0x1a8] sm:$0xff]
      %v5608 = vld [vmem:[#allocation5 + $0x1b0] sm:$0xff]
      %v5609 = vld [vmem:[#allocation5 + $0x1b8] sm:$0xff]
      %v5610 = vld [vmem:[#allocation5 + $0x1c0] sm:$0xff]
      %v5611 = vld [vmem:[#allocation5 + $0x1c8] sm:$0xff]
      %v5612 = vld [vmem:[#allocation5 + $0x1d0] sm:$0xff]
      %v5613 = vld [vmem:[#allocation5 + $0x1d8] sm:$0xff]
      %v5614 = vld [vmem:[#allocation5 + $0x1e0] sm:$0xff]
      %v5615 = vld [vmem:[#allocation5 + $0x1e8] sm:$0xff]
      %v5616 = vld [vmem:[#allocation5 + $0x1f0] sm:$0xff]
      %v5617 = vld [vmem:[#allocation5 + $0x1f8] sm:$0xff]
      %v5618 = vld [vmem:[#allocation5 + $0x200] sm:$0xff]
      %v5619 = vld [vmem:[#allocation5 + $0x208] sm:$0xff]
      %v5620 = vld [vmem:[#allocation5 + $0x210] sm:$0xff]
      %v5621 = vld [vmem:[#allocation5 + $0x218] sm:$0xff]
      %v5622 = vld [vmem:[#allocation5 + $0x220] sm:$0xff]
      %v5623 = vld [vmem:[#allocation5 + $0x228] sm:$0xff]
      %v5624 = vld [vmem:[#allocation5 + $0x230] sm:$0xff]
      %v5625 = vld [vmem:[#allocation5 + $0x238] sm:$0xff]
      %v5626 = vld [vmem:[#allocation5 + $0x240] sm:$0xff]
      %v5627 = vld [vmem:[#allocation5 + $0x248] sm:$0xff]
      %v5628 = vld [vmem:[#allocation5 + $0x250] sm:$0xff]
      %v5629 = vld [vmem:[#allocation5 + $0x258] sm:$0xff]
      %v5630 = vld [vmem:[#allocation5 + $0x260] sm:$0xff]
      %v5631 = vld [vmem:[#allocation5 + $0x268] sm:$0xff]
      %v5632 = vld [vmem:[#allocation5 + $0x270] sm:$0xff]
      %v5633 = vld [vmem:[#allocation5 + $0x278] sm:$0xff]
      %v5634 = vld [vmem:[#allocation5 + $0x280] sm:$0xff]
      %v5635 = vld [vmem:[#allocation5 + $0x288] sm:$0xff]
      %v5636 = vld [vmem:[#allocation5 + $0x290] sm:$0xff]
      %v5637 = vld [vmem:[#allocation5 + $0x298] sm:$0xff]
      %v5638 = vld [vmem:[#allocation5 + $0x2a0] sm:$0xff]
      %v5639 = vld [vmem:[#allocation5 + $0x2a8] sm:$0xff]
      %v5640 = vld [vmem:[#allocation5 + $0x2b0] sm:$0xff]
      %v5641 = vld [vmem:[#allocation5 + $0x2b8] sm:$0xff]
      %v5642 = vld [vmem:[#allocation5 + $0x2c0] sm:$0xff]
      %v5643 = vld [vmem:[#allocation5 + $0x2c8] sm:$0xff]
      %v5644 = vld [vmem:[#allocation5 + $0x2d0] sm:$0xff]
      %v5645 = vld [vmem:[#allocation5 + $0x2d8] sm:$0xff]
      %v5646 = vld [vmem:[#allocation5 + $0x2e0] sm:$0xff]
      %v5647 = vld [vmem:[#allocation5 + $0x2e8] sm:$0xff]
      %v5648 = vld [vmem:[#allocation5 + $0x2f0] sm:$0xff]
      %v5649 = vld [vmem:[#allocation5 + $0x2f8] sm:$0xff]
      %v5650 = vld [vmem:[%s2] sm:$0xff]
      %v5651 = vld [vmem:[%s2 + $0x8] sm:$0xff]
      %v5652 = vld [vmem:[%s2 + $0x10] sm:$0xff]
      %v5653 = vld [vmem:[%s2 + $0x18] sm:$0xff]
      %v5654 = vld [vmem:[%s2 + $0x20] sm:$0xff]
      %v5655 = vld [vmem:[%s2 + $0x28] sm:$0xff]
      %v5656 = vld [vmem:[%s2 + $0x30] sm:$0xff]
      %v5657 = vld [vmem:[%s2 + $0x38] sm:$0xff]
      %v5658 = vld [vmem:[%s2 + $0x40] sm:$0xff]
      %v5659 = vld [vmem:[%s2 + $0x48] sm:$0xff]
      %v5660 = vld [vmem:[%s2 + $0x50] sm:$0xff]
      %v5661 = vld [vmem:[%s2 + $0x58] sm:$0xff]
      %v5662 = vld [vmem:[%s2 + $0x60] sm:$0xff]
      %v5663 = vld [vmem:[%s2 + $0x68] sm:$0xff]
      %v5664 = vld [vmem:[%s2 + $0x70] sm:$0xff]
      %v5665 = vld [vmem:[%s2 + $0x78] sm:$0xff]
      %v5666 = vld [vmem:[%s2 + $0x80] sm:$0xff]
      %v5667 = vld [vmem:[%s2 + $0x88] sm:$0xff]
      %v5668 = vld [vmem:[%s2 + $0x90] sm:$0xff]
      %v5669 = vld [vmem:[%s2 + $0x98] sm:$0xff]
      %v5670 = vld [vmem:[%s2 + $0xa0] sm:$0xff]
      %v5671 = vld [vmem:[%s2 + $0xa8] sm:$0xff]
      %v5672 = vld [vmem:[%s2 + $0xb0] sm:$0xff]
      %v5673 = vld [vmem:[%s2 + $0xb8] sm:$0xff]
      %v5674 = vld [vmem:[%s2 + $0xc0] sm:$0xff]
      %v5675 = vld [vmem:[%s2 + $0xc8] sm:$0xff]
      %v5676 = vld [vmem:[%s2 + $0xd0] sm:$0xff]
      %v5677 = vld [vmem:[%s2 + $0xd8] sm:$0xff]
      %v5678 = vld [vmem:[%s2 + $0xe0] sm:$0xff]
      %v5679 = vld [vmem:[%s2 + $0xe8] sm:$0xff]
      %v5680 = vld [vmem:[%s2 + $0xf0] sm:$0xff]
      %v5681 = vld [vmem:[%s2 + $0xf8] sm:$0xff]
      %v5682 = vld [vmem:[%s2 + $0x100] sm:$0xff]
      %v5683 = vld [vmem:[%s2 + $0x108] sm:$0xff]
      %v5684 = vld [vmem:[%s2 + $0x110] sm:$0xff]
      %v5685 = vld [vmem:[%s2 + $0x118] sm:$0xff]
      %v5687 = vsel %vm523, %v5604, 0
      %v5690 = vsel %vm523, %v5607, 0
      %v5693 = vsel %vm523, %v5610, 0
      %v5696 = vsel %vm523, %v5613, 0
      %v5699 = vsel %vm523, %v5616, 0
      %v5702 = vsel %vm523, %v5619, 0
      %v5705 = vsel %vm523, %v5622, 0
      %v5708 = vsel %vm523, %v5625, 0
      %v5711 = vsel %vm523, %v5628, 0
      %v5714 = vsel %vm523, %v5631, 0
      %v5717 = vsel %vm523, %v5634, 0
      %v5720 = vsel %vm523, %v5637, 0
      %v5723 = vsel %vm523, %v5640, 0
      %v5726 = vsel %vm523, %v5643, 0
      %v5729 = vsel %vm523, %v5646, 0
      %v5732 = vsel %vm523, %v5649, 0
      %5734 = vmatpush.msra.mxu0 %v5665
      %5735 = vmatpush.msra.mxu0 %v5664
      %5736 = vmatpush.msra.mxu0 %v5663
      %5737 = vmatpush.msra.mxu0 %v5662
      %5738 = vmatpush.msra.mxu0 %v5661
      %5739 = vmatpush.msra.mxu0 %v5660
      %5740 = vmatpush.msra.mxu0 %v5659
      %5741 = vmatpush.msra.mxu0 %v5658
      %5742 = vmatpush.msra.mxu0 %v5657
      %5743 = vmatpush.msra.mxu0 %v5656
      %5744 = vmatpush.msra.mxu0 %v5655
      %5745 = vmatpush.msra.mxu0 %v5654
      %5746 = vmatpush.msra.mxu0 %v5653
      %5747 = vmatpush.msra.mxu0 %v5652
      %5748 = vmatpush.msra.mxu0 %v5651
      %5749 = vmatpush.msra.mxu0 %v5650
      %5750 = vmatmul.f32.gmra.mxu0 %v5602
      %v5751 = vpop.f32.mrf.mxu0
      %v5752 = vadd.f32 %v5278, %v5751
      %5753 = vmatmul.f32.gmra.mxu0 %v5605
      %v5754 = vpop.f32.mrf.mxu0
      %v5755 = vadd.f32 %v5278, %v5754
      %5756 = vmatmul.f32.gmra.mxu0 %v5608
      %v5757 = vpop.f32.mrf.mxu0
      %v5758 = vadd.f32 %v5278, %v5757
      %5759 = vmatmul.f32.gmra.mxu0 %v5611
      %v5760 = vpop.f32.mrf.mxu0
      %v5761 = vadd.f32 %v5278, %v5760
      %5762 = vmatmul.f32.gmra.mxu0 %v5614
      %v5763 = vpop.f32.mrf.mxu0
      %v5764 = vadd.f32 %v5278, %v5763
      %5765 = vmatmul.f32.gmra.mxu0 %v5617
      %v5766 = vpop.f32.mrf.mxu0
      %v5767 = vadd.f32 %v5278, %v5766
      %5768 = vmatmul.f32.gmra.mxu0 %v5620
      %v5769 = vpop.f32.mrf.mxu0
      %v5770 = vadd.f32 %v5278, %v5769
      %5771 = vmatmul.f32.gmra.mxu0 %v5623
      %v5772 = vpop.f32.mrf.mxu0
      %v5773 = vadd.f32 %v5278, %v5772
      %5774 = vmatmul.f32.gmra.mxu0 %v5626
      %v5775 = vpop.f32.mrf.mxu0
      %v5776 = vadd.f32 %v5278, %v5775
      %5777 = vmatmul.f32.gmra.mxu0 %v5629
      %v5778 = vpop.f32.mrf.mxu0
      %v5779 = vadd.f32 %v5278, %v5778
      %5780 = vmatmul.f32.gmra.mxu0 %v5632
      %v5781 = vpop.f32.mrf.mxu0
      %v5782 = vadd.f32 %v5278, %v5781
      %5783 = vmatmul.f32.gmra.mxu0 %v5635
      %v5784 = vpop.f32.mrf.mxu0
      %v5785 = vadd.f32 %v5278, %v5784
      %5786 = vmatmul.f32.gmra.mxu0 %v5638
      %v5787 = vpop.f32.mrf.mxu0
      %v5788 = vadd.f32 %v5278, %v5787
      %5789 = vmatmul.f32.gmra.mxu0 %v5641
      %v5790 = vpop.f32.mrf.mxu0
      %v5791 = vadd.f32 %v5278, %v5790
      %5792 = vmatmul.f32.gmra.mxu0 %v5644
      %v5793 = vpop.f32.mrf.mxu0
      %v5794 = vadd.f32 %v5278, %v5793
      %5795 = vmatmul.f32.gmra.mxu0 %v5647
      %v5796 = vpop.f32.mrf.mxu0
      %v5797 = vadd.f32 %v5278, %v5796
      %5798 = vdwg.mxu0
      %5799 = vmatpush.msra.mxu0 %v5681
      %5800 = vmatpush.msra.mxu0 %v5680
      %5801 = vmatpush.msra.mxu0 %v5679
      %5802 = vmatpush.msra.mxu0 %v5678
      %5803 = vmatpush.msra.mxu0 %v5677
      %5804 = vmatpush.msra.mxu0 %v5676
      %5805 = vmatpush.msra.mxu0 %v5675
      %5806 = vmatpush.msra.mxu0 %v5674
      %5807 = vmatpush.msra.mxu0 %v5673
      %5808 = vmatpush.msra.mxu0 %v5672
      %5809 = vmatpush.msra.mxu0 %v5671
      %5810 = vmatpush.msra.mxu0 %v5670
      %5811 = vmatpush.msra.mxu0 %v5669
      %5812 = vmatpush.msra.mxu0 %v5668
      %5813 = vmatpush.msra.mxu0 %v5667
      %5814 = vmatpush.msra.mxu0 %v5666
      %5815 = vmatmul.f32.gmra.mxu0 %v5603
      %v5816 = vpop.f32.mrf.mxu0
      %v5817 = vadd.f32 %v5752, %v5816
      %5818 = vmatmul.f32.gmra.mxu0 %v5606
      %v5819 = vpop.f32.mrf.mxu0
      %v5820 = vadd.f32 %v5755, %v5819
      %5821 = vmatmul.f32.gmra.mxu0 %v5609
      %v5822 = vpop.f32.mrf.mxu0
      %v5823 = vadd.f32 %v5758, %v5822
      %5824 = vmatmul.f32.gmra.mxu0 %v5612
      %v5825 = vpop.f32.mrf.mxu0
      %v5826 = vadd.f32 %v5761, %v5825
      %5827 = vmatmul.f32.gmra.mxu0 %v5615
      %v5828 = vpop.f32.mrf.mxu0
      %v5829 = vadd.f32 %v5764, %v5828
      %5830 = vmatmul.f32.gmra.mxu0 %v5618
      %v5831 = vpop.f32.mrf.mxu0
      %v5832 = vadd.f32 %v5767, %v5831
      %5833 = vmatmul.f32.gmra.mxu0 %v5621
      %v5834 = vpop.f32.mrf.mxu0
      %v5835 = vadd.f32 %v5770, %v5834
      %5836 = vmatmul.f32.gmra.mxu0 %v5624
      %v5837 = vpop.f32.mrf.mxu0
      %v5838 = vadd.f32 %v5773, %v5837
      %5839 = vmatmul.f32.gmra.mxu0 %v5627
      %v5840 = vpop.f32.mrf.mxu0
      %v5841 = vadd.f32 %v5776, %v5840
      %5842 = vmatmul.f32.gmra.mxu0 %v5630
      %v5843 = vpop.f32.mrf.mxu0
      %v5844 = vadd.f32 %v5779, %v5843
      %5845 = vmatmul.f32.gmra.mxu0 %v5633
      %v5846 = vpop.f32.mrf.mxu0
      %v5847 = vadd.f32 %v5782, %v5846
      %5848 = vmatmul.f32.gmra.mxu0 %v5636
      %v5849 = vpop.f32.mrf.mxu0
      %v5850 = vadd.f32 %v5785, %v5849
      %5851 = vmatmul.f32.gmra.mxu0 %v5639
      %v5852 = vpop.f32.mrf.mxu0
      %v5853 = vadd.f32 %v5788, %v5852
      %5854 = vmatmul.f32.gmra.mxu0 %v5642
      %v5855 = vpop.f32.mrf.mxu0
      %v5856 = vadd.f32 %v5791, %v5855
      %5857 = vmatmul.f32.gmra.mxu0 %v5645
      %v5858 = vpop.f32.mrf.mxu0
      %v5859 = vadd.f32 %v5794, %v5858
      %5860 = vmatmul.f32.gmra.mxu0 %v5648
      %v5861 = vpop.f32.mrf.mxu0
      %v5862 = vadd.f32 %v5797, %v5861
      %5863 = vdwg.mxu0
      %5864 = vmatpush.msra.mxu0 0.0
      %5865 = vmatpush.msra.mxu0 0.0
      %5866 = vmatpush.msra.mxu0 0.0
      %5867 = vmatpush.msra.mxu0 0.0
      %5868 = vmatpush.msra.mxu0 0.0
      %5869 = vmatpush.msra.mxu0 0.0
      %5870 = vmatpush.msra.mxu0 0.0
      %5871 = vmatpush.msra.mxu0 0.0
      %5872 = vmatpush.msra.mxu0 0.0
      %5873 = vmatpush.msra.mxu0 0.0
      %5874 = vmatpush.msra.mxu0 0.0
      %5875 = vmatpush.msra.mxu0 0.0
      %5876 = vmatpush.msra.mxu0 %v5685
      %5877 = vmatpush.msra.mxu0 %v5684
      %5878 = vmatpush.msra.mxu0 %v5683
      %5879 = vmatpush.msra.mxu0 %v5682
      %5880 = vmatmul.f32.gmra.mxu0 %v5687
      %v5881 = vpop.f32.mrf.mxu0
      %v5882 = vadd.f32 %v5817, %v5881
      %5883 = vmatmul.f32.gmra.mxu0 %v5690
      %v5884 = vpop.f32.mrf.mxu0
      %v5885 = vadd.f32 %v5820, %v5884
      %5886 = vmatmul.f32.gmra.mxu0 %v5693
      %v5887 = vpop.f32.mrf.mxu0
      %v5888 = vadd.f32 %v5823, %v5887
      %5889 = vmatmul.f32.gmra.mxu0 %v5696
      %v5890 = vpop.f32.mrf.mxu0
      %v5891 = vadd.f32 %v5826, %v5890
      %5892 = vmatmul.f32.gmra.mxu0 %v5699
      %v5893 = vpop.f32.mrf.mxu0
      %v5894 = vadd.f32 %v5829, %v5893
      %5895 = vmatmul.f32.gmra.mxu0 %v5702
      %v5896 = vpop.f32.mrf.mxu0
      %v5897 = vadd.f32 %v5832, %v5896
      %5898 = vmatmul.f32.gmra.mxu0 %v5705
      %v5899 = vpop.f32.mrf.mxu0
      %v5900 = vadd.f32 %v5835, %v5899
      %5901 = vmatmul.f32.gmra.mxu0 %v5708
      %v5902 = vpop.f32.mrf.mxu0
      %v5903 = vadd.f32 %v5838, %v5902
      %5904 = vmatmul.f32.gmra.mxu0 %v5711
      %v5905 = vpop.f32.mrf.mxu0
      %v5906 = vadd.f32 %v5841, %v5905
      %5907 = vmatmul.f32.gmra.mxu0 %v5714
      %v5908 = vpop.f32.mrf.mxu0
      %v5909 = vadd.f32 %v5844, %v5908
      %5910 = vmatmul.f32.gmra.mxu0 %v5717
      %v5911 = vpop.f32.mrf.mxu0
      %v5912 = vadd.f32 %v5847, %v5911
      %5913 = vmatmul.f32.gmra.mxu0 %v5720
      %v5914 = vpop.f32.mrf.mxu0
      %v5915 = vadd.f32 %v5850, %v5914
      %5916 = vmatmul.f32.gmra.mxu0 %v5723
      %v5917 = vpop.f32.mrf.mxu0
      %v5918 = vadd.f32 %v5853, %v5917
      %5919 = vmatmul.f32.gmra.mxu0 %v5726
      %v5920 = vpop.f32.mrf.mxu0
      %v5921 = vadd.f32 %v5856, %v5920
      %5922 = vmatmul.f32.gmra.mxu0 %v5729
      %v5923 = vpop.f32.mrf.mxu0
      %v5924 = vadd.f32 %v5859, %v5923
      %5925 = vmatmul.f32.gmra.mxu0 %v5732
      %v5926 = vpop.f32.mrf.mxu0
      %v5927 = vadd.f32 %v5862, %v5926
      %5928 = vdwg.mxu0
      %v5929 = vmax.f32 %v5882, 0.0
      %v5930 = vmax.f32 %v5885, 0.0
      %v5931 = vmax.f32 %v5888, 0.0
      %v5932 = vmax.f32 %v5891, 0.0
      %v5933 = vmax.f32 %v5894, 0.0
      %v5934 = vmax.f32 %v5897, 0.0
      %v5935 = vmax.f32 %v5900, 0.0
      %v5936 = vmax.f32 %v5903, 0.0
      %v5937 = vmax.f32 %v5906, 0.0
      %v5938 = vmax.f32 %v5909, 0.0
      %v5939 = vmax.f32 %v5912, 0.0
      %v5940 = vmax.f32 %v5915, 0.0
      %v5941 = vmax.f32 %v5918, 0.0
      %v5942 = vmax.f32 %v5921, 0.0
      %v5943 = vmax.f32 %v5924, 0.0
      %v5944 = vmax.f32 %v5927, 0.0
      %5949 = vrot.lane.b32.xlu0 %v5933, 32
      %v5950 = vpop.permute.xlu0 %5949
      %5951 = vrot.lane.b32.xlu0 %v5934, 32
      %v5952 = vpop.permute.xlu0 %5951
      %5953 = vrot.lane.b32.xlu0 %v5935, 32
      %v5954 = vpop.permute.xlu0 %5953
      %5955 = vrot.lane.b32.xlu0 %v5936, 32
      %v5956 = vpop.permute.xlu0 %5955
      %5965 = vrot.lane.b32.xlu0 %v5937, 64
      %v5966 = vpop.permute.xlu0 %5965
      %5967 = vrot.lane.b32.xlu0 %v5938, 64
      %v5968 = vpop.permute.xlu0 %5967
      %5969 = vrot.lane.b32.xlu0 %v5939, 64
      %v5970 = vpop.permute.xlu0 %5969
      %5971 = vrot.lane.b32.xlu0 %v5940, 64
      %v5972 = vpop.permute.xlu0 %5971
      %5981 = vrot.lane.b32.xlu0 %v5941, 96
      %v5982 = vpop.permute.xlu0 %5981
      %5983 = vrot.lane.b32.xlu0 %v5942, 96
      %v5984 = vpop.permute.xlu0 %5983
      %5985 = vrot.lane.b32.xlu0 %v5943, 96
      %v5986 = vpop.permute.xlu0 %5985
      %5987 = vrot.lane.b32.xlu0 %v5944, 96
      %v5988 = vpop.permute.xlu0 %5987
      %v5993 = vsel %vm523, %v5929, %v5950
      %v5994 = vsel %vm523, %v5930, %v5952
      %v5995 = vsel %vm523, %v5931, %v5954
      %v5996 = vsel %vm523, %v5932, %v5956
      %v5997 = vsel %vm528, %v5993, %v5966
      %v5998 = vsel %vm528, %v5994, %v5968
      %v5999 = vsel %vm528, %v5995, %v5970
      %v6000 = vsel %vm528, %v5996, %v5972
      %v6001 = vsel %vm533, %v5997, %v5982
      %v6002 = vsel %vm533, %v5998, %v5984
      %v6003 = vsel %vm533, %v5999, %v5986
      %v6004 = vsel %vm533, %v6000, %v5988
      %6005 = vst [vmem:[#allocation3 + $0x20] sm:$0xff] %v6001
      %6006 = vst [vmem:[#allocation3 + $0x28] sm:$0xff] %v6002
      %6007 = vst [vmem:[#allocation3 + $0x30] sm:$0xff] %v6003
      %6008 = vst [vmem:[#allocation3 + $0x38] sm:$0xff] %v6004
      %v6009 = vld [vmem:[#allocation5 + $0x300] sm:$0xff]
      %v6010 = vld [vmem:[#allocation5 + $0x308] sm:$0xff]
      %v6011 = vld [vmem:[#allocation5 + $0x310] sm:$0xff]
      %v6012 = vld [vmem:[#allocation5 + $0x318] sm:$0xff]
      %v6013 = vld [vmem:[#allocation5 + $0x320] sm:$0xff]
      %v6014 = vld [vmem:[#allocation5 + $0x328] sm:$0xff]
      %v6015 = vld [vmem:[#allocation5 + $0x330] sm:$0xff]
      %v6016 = vld [vmem:[#allocation5 + $0x338] sm:$0xff]
      %v6017 = vld [vmem:[#allocation5 + $0x340] sm:$0xff]
      %v6018 = vld [vmem:[#allocation5 + $0x348] sm:$0xff]
      %v6019 = vld [vmem:[#allocation5 + $0x350] sm:$0xff]
      %v6020 = vld [vmem:[#allocation5 + $0x358] sm:$0xff]
      %v6021 = vld [vmem:[#allocation5 + $0x360] sm:$0xff]
      %v6022 = vld [vmem:[#allocation5 + $0x368] sm:$0xff]
      %v6023 = vld [vmem:[#allocation5 + $0x370] sm:$0xff]
      %v6024 = vld [vmem:[#allocation5 + $0x378] sm:$0xff]
      %v6025 = vld [vmem:[#allocation5 + $0x380] sm:$0xff]
      %v6026 = vld [vmem:[#allocation5 + $0x388] sm:$0xff]
      %v6027 = vld [vmem:[#allocation5 + $0x390] sm:$0xff]
      %v6028 = vld [vmem:[#allocation5 + $0x398] sm:$0xff]
      %v6029 = vld [vmem:[#allocation5 + $0x3a0] sm:$0xff]
      %v6030 = vld [vmem:[#allocation5 + $0x3a8] sm:$0xff]
      %v6031 = vld [vmem:[#allocation5 + $0x3b0] sm:$0xff]
      %v6032 = vld [vmem:[#allocation5 + $0x3b8] sm:$0xff]
      %v6033 = vld [vmem:[#allocation5 + $0x3c0] sm:$0xff]
      %v6034 = vld [vmem:[#allocation5 + $0x3c8] sm:$0xff]
      %v6035 = vld [vmem:[#allocation5 + $0x3d0] sm:$0xff]
      %v6036 = vld [vmem:[#allocation5 + $0x3d8] sm:$0xff]
      %v6037 = vld [vmem:[#allocation5 + $0x3e0] sm:$0xff]
      %v6038 = vld [vmem:[#allocation5 + $0x3e8] sm:$0xff]
      %v6039 = vld [vmem:[#allocation5 + $0x3f0] sm:$0xff]
      %v6040 = vld [vmem:[#allocation5 + $0x3f8] sm:$0xff]
      %v6041 = vld [vmem:[#allocation5 + $0x400] sm:$0xff]
      %v6042 = vld [vmem:[#allocation5 + $0x408] sm:$0xff]
      %v6043 = vld [vmem:[#allocation5 + $0x410] sm:$0xff]
      %v6044 = vld [vmem:[#allocation5 + $0x418] sm:$0xff]
      %v6045 = vld [vmem:[#allocation5 + $0x420] sm:$0xff]
      %v6046 = vld [vmem:[#allocation5 + $0x428] sm:$0xff]
      %v6047 = vld [vmem:[#allocation5 + $0x430] sm:$0xff]
      %v6048 = vld [vmem:[#allocation5 + $0x438] sm:$0xff]
      %v6049 = vld [vmem:[#allocation5 + $0x440] sm:$0xff]
      %v6050 = vld [vmem:[#allocation5 + $0x448] sm:$0xff]
      %v6051 = vld [vmem:[#allocation5 + $0x450] sm:$0xff]
      %v6052 = vld [vmem:[#allocation5 + $0x458] sm:$0xff]
      %v6053 = vld [vmem:[#allocation5 + $0x460] sm:$0xff]
      %v6054 = vld [vmem:[#allocation5 + $0x468] sm:$0xff]
      %v6055 = vld [vmem:[#allocation5 + $0x470] sm:$0xff]
      %v6056 = vld [vmem:[#allocation5 + $0x478] sm:$0xff]
      %v6057 = vld [vmem:[%s2] sm:$0xff]
      %v6058 = vld [vmem:[%s2 + $0x8] sm:$0xff]
      %v6059 = vld [vmem:[%s2 + $0x10] sm:$0xff]
      %v6060 = vld [vmem:[%s2 + $0x18] sm:$0xff]
      %v6061 = vld [vmem:[%s2 + $0x20] sm:$0xff]
      %v6062 = vld [vmem:[%s2 + $0x28] sm:$0xff]
      %v6063 = vld [vmem:[%s2 + $0x30] sm:$0xff]
      %v6064 = vld [vmem:[%s2 + $0x38] sm:$0xff]
      %v6065 = vld [vmem:[%s2 + $0x40] sm:$0xff]
      %v6066 = vld [vmem:[%s2 + $0x48] sm:$0xff]
      %v6067 = vld [vmem:[%s2 + $0x50] sm:$0xff]
      %v6068 = vld [vmem:[%s2 + $0x58] sm:$0xff]
      %v6069 = vld [vmem:[%s2 + $0x60] sm:$0xff]
      %v6070 = vld [vmem:[%s2 + $0x68] sm:$0xff]
      %v6071 = vld [vmem:[%s2 + $0x70] sm:$0xff]
      %v6072 = vld [vmem:[%s2 + $0x78] sm:$0xff]
      %v6073 = vld [vmem:[%s2 + $0x80] sm:$0xff]
      %v6074 = vld [vmem:[%s2 + $0x88] sm:$0xff]
      %v6075 = vld [vmem:[%s2 + $0x90] sm:$0xff]
      %v6076 = vld [vmem:[%s2 + $0x98] sm:$0xff]
      %v6077 = vld [vmem:[%s2 + $0xa0] sm:$0xff]
      %v6078 = vld [vmem:[%s2 + $0xa8] sm:$0xff]
      %v6079 = vld [vmem:[%s2 + $0xb0] sm:$0xff]
      %v6080 = vld [vmem:[%s2 + $0xb8] sm:$0xff]
      %v6081 = vld [vmem:[%s2 + $0xc0] sm:$0xff]
      %v6082 = vld [vmem:[%s2 + $0xc8] sm:$0xff]
      %v6083 = vld [vmem:[%s2 + $0xd0] sm:$0xff]
      %v6084 = vld [vmem:[%s2 + $0xd8] sm:$0xff]
      %v6085 = vld [vmem:[%s2 + $0xe0] sm:$0xff]
      %v6086 = vld [vmem:[%s2 + $0xe8] sm:$0xff]
      %v6087 = vld [vmem:[%s2 + $0xf0] sm:$0xff]
      %v6088 = vld [vmem:[%s2 + $0xf8] sm:$0xff]
      %v6089 = vld [vmem:[%s2 + $0x100] sm:$0xff]
      %v6090 = vld [vmem:[%s2 + $0x108] sm:$0xff]
      %v6091 = vld [vmem:[%s2 + $0x110] sm:$0xff]
      %v6092 = vld [vmem:[%s2 + $0x118] sm:$0xff]
      %v6094 = vsel %vm523, %v6011, 0
      %v6097 = vsel %vm523, %v6014, 0
      %v6100 = vsel %vm523, %v6017, 0
      %v6103 = vsel %vm523, %v6020, 0
      %v6106 = vsel %vm523, %v6023, 0
      %v6109 = vsel %vm523, %v6026, 0
      %v6112 = vsel %vm523, %v6029, 0
      %v6115 = vsel %vm523, %v6032, 0
      %v6118 = vsel %vm523, %v6035, 0
      %v6121 = vsel %vm523, %v6038, 0
      %v6124 = vsel %vm523, %v6041, 0
      %v6127 = vsel %vm523, %v6044, 0
      %v6130 = vsel %vm523, %v6047, 0
      %v6133 = vsel %vm523, %v6050, 0
      %v6136 = vsel %vm523, %v6053, 0
      %v6139 = vsel %vm523, %v6056, 0
      %6141 = vmatpush.msra.mxu0 %v6072
      %6142 = vmatpush.msra.mxu0 %v6071
      %6143 = vmatpush.msra.mxu0 %v6070
      %6144 = vmatpush.msra.mxu0 %v6069
      %6145 = vmatpush.msra.mxu0 %v6068
      %6146 = vmatpush.msra.mxu0 %v6067
      %6147 = vmatpush.msra.mxu0 %v6066
      %6148 = vmatpush.msra.mxu0 %v6065
      %6149 = vmatpush.msra.mxu0 %v6064
      %6150 = vmatpush.msra.mxu0 %v6063
      %6151 = vmatpush.msra.mxu0 %v6062
      %6152 = vmatpush.msra.mxu0 %v6061
      %6153 = vmatpush.msra.mxu0 %v6060
      %6154 = vmatpush.msra.mxu0 %v6059
      %6155 = vmatpush.msra.mxu0 %v6058
      %6156 = vmatpush.msra.mxu0 %v6057
      %6157 = vmatmul.f32.gmra.mxu0 %v6009
      %v6158 = vpop.f32.mrf.mxu0
      %v6159 = vadd.f32 %v5278, %v6158
      %6160 = vmatmul.f32.gmra.mxu0 %v6012
      %v6161 = vpop.f32.mrf.mxu0
      %v6162 = vadd.f32 %v5278, %v6161
      %6163 = vmatmul.f32.gmra.mxu0 %v6015
      %v6164 = vpop.f32.mrf.mxu0
      %v6165 = vadd.f32 %v5278, %v6164
      %6166 = vmatmul.f32.gmra.mxu0 %v6018
      %v6167 = vpop.f32.mrf.mxu0
      %v6168 = vadd.f32 %v5278, %v6167
      %6169 = vmatmul.f32.gmra.mxu0 %v6021
      %v6170 = vpop.f32.mrf.mxu0
      %v6171 = vadd.f32 %v5278, %v6170
      %6172 = vmatmul.f32.gmra.mxu0 %v6024
      %v6173 = vpop.f32.mrf.mxu0
      %v6174 = vadd.f32 %v5278, %v6173
      %6175 = vmatmul.f32.gmra.mxu0 %v6027
      %v6176 = vpop.f32.mrf.mxu0
      %v6177 = vadd.f32 %v5278, %v6176
      %6178 = vmatmul.f32.gmra.mxu0 %v6030
      %v6179 = vpop.f32.mrf.mxu0
      %v6180 = vadd.f32 %v5278, %v6179
      %6181 = vmatmul.f32.gmra.mxu0 %v6033
      %v6182 = vpop.f32.mrf.mxu0
      %v6183 = vadd.f32 %v5278, %v6182
      %6184 = vmatmul.f32.gmra.mxu0 %v6036
      %v6185 = vpop.f32.mrf.mxu0
      %v6186 = vadd.f32 %v5278, %v6185
      %6187 = vmatmul.f32.gmra.mxu0 %v6039
      %v6188 = vpop.f32.mrf.mxu0
      %v6189 = vadd.f32 %v5278, %v6188
      %6190 = vmatmul.f32.gmra.mxu0 %v6042
      %v6191 = vpop.f32.mrf.mxu0
      %v6192 = vadd.f32 %v5278, %v6191
      %6193 = vmatmul.f32.gmra.mxu0 %v6045
      %v6194 = vpop.f32.mrf.mxu0
      %v6195 = vadd.f32 %v5278, %v6194
      %6196 = vmatmul.f32.gmra.mxu0 %v6048
      %v6197 = vpop.f32.mrf.mxu0
      %v6198 = vadd.f32 %v5278, %v6197
      %6199 = vmatmul.f32.gmra.mxu0 %v6051
      %v6200 = vpop.f32.mrf.mxu0
      %v6201 = vadd.f32 %v5278, %v6200
      %6202 = vmatmul.f32.gmra.mxu0 %v6054
      %v6203 = vpop.f32.mrf.mxu0
      %v6204 = vadd.f32 %v5278, %v6203
      %6205 = vdwg.mxu0
      %6206 = vmatpush.msra.mxu0 %v6088
      %6207 = vmatpush.msra.mxu0 %v6087
      %6208 = vmatpush.msra.mxu0 %v6086
      %6209 = vmatpush.msra.mxu0 %v6085
      %6210 = vmatpush.msra.mxu0 %v6084
      %6211 = vmatpush.msra.mxu0 %v6083
      %6212 = vmatpush.msra.mxu0 %v6082
      %6213 = vmatpush.msra.mxu0 %v6081
      %6214 = vmatpush.msra.mxu0 %v6080
      %6215 = vmatpush.msra.mxu0 %v6079
      %6216 = vmatpush.msra.mxu0 %v6078
      %6217 = vmatpush.msra.mxu0 %v6077
      %6218 = vmatpush.msra.mxu0 %v6076
      %6219 = vmatpush.msra.mxu0 %v6075
      %6220 = vmatpush.msra.mxu0 %v6074
      %6221 = vmatpush.msra.mxu0 %v6073
      %6222 = vmatmul.f32.gmra.mxu0 %v6010
      %v6223 = vpop.f32.mrf.mxu0
      %v6224 = vadd.f32 %v6159, %v6223
      %6225 = vmatmul.f32.gmra.mxu0 %v6013
      %v6226 = vpop.f32.mrf.mxu0
      %v6227 = vadd.f32 %v6162, %v6226
      %6228 = vmatmul.f32.gmra.mxu0 %v6016
      %v6229 = vpop.f32.mrf.mxu0
      %v6230 = vadd.f32 %v6165, %v6229
      %6231 = vmatmul.f32.gmra.mxu0 %v6019
      %v6232 = vpop.f32.mrf.mxu0
      %v6233 = vadd.f32 %v6168, %v6232
      %6234 = vmatmul.f32.gmra.mxu0 %v6022
      %v6235 = vpop.f32.mrf.mxu0
      %v6236 = vadd.f32 %v6171, %v6235
      %6237 = vmatmul.f32.gmra.mxu0 %v6025
      %v6238 = vpop.f32.mrf.mxu0
      %v6239 = vadd.f32 %v6174, %v6238
      %6240 = vmatmul.f32.gmra.mxu0 %v6028
      %v6241 = vpop.f32.mrf.mxu0
      %v6242 = vadd.f32 %v6177, %v6241
      %6243 = vmatmul.f32.gmra.mxu0 %v6031
      %v6244 = vpop.f32.mrf.mxu0
      %v6245 = vadd.f32 %v6180, %v6244
      %6246 = vmatmul.f32.gmra.mxu0 %v6034
      %v6247 = vpop.f32.mrf.mxu0
      %v6248 = vadd.f32 %v6183, %v6247
      %6249 = vmatmul.f32.gmra.mxu0 %v6037
      %v6250 = vpop.f32.mrf.mxu0
      %v6251 = vadd.f32 %v6186, %v6250
      %6252 = vmatmul.f32.gmra.mxu0 %v6040
      %v6253 = vpop.f32.mrf.mxu0
      %v6254 = vadd.f32 %v6189, %v6253
      %6255 = vmatmul.f32.gmra.mxu0 %v6043
      %v6256 = vpop.f32.mrf.mxu0
      %v6257 = vadd.f32 %v6192, %v6256
      %6258 = vmatmul.f32.gmra.mxu0 %v6046
      %v6259 = vpop.f32.mrf.mxu0
      %v6260 = vadd.f32 %v6195, %v6259
      %6261 = vmatmul.f32.gmra.mxu0 %v6049
      %v6262 = vpop.f32.mrf.mxu0
      %v6263 = vadd.f32 %v6198, %v6262
      %6264 = vmatmul.f32.gmra.mxu0 %v6052
      %v6265 = vpop.f32.mrf.mxu0
      %v6266 = vadd.f32 %v6201, %v6265
      %6267 = vmatmul.f32.gmra.mxu0 %v6055
      %v6268 = vpop.f32.mrf.mxu0
      %v6269 = vadd.f32 %v6204, %v6268
      %6270 = vdwg.mxu0
      %6271 = vmatpush.msra.mxu0 0.0
      %6272 = vmatpush.msra.mxu0 0.0
      %6273 = vmatpush.msra.mxu0 0.0
      %6274 = vmatpush.msra.mxu0 0.0
      %6275 = vmatpush.msra.mxu0 0.0
      %6276 = vmatpush.msra.mxu0 0.0
      %6277 = vmatpush.msra.mxu0 0.0
      %6278 = vmatpush.msra.mxu0 0.0
      %6279 = vmatpush.msra.mxu0 0.0
      %6280 = vmatpush.msra.mxu0 0.0
      %6281 = vmatpush.msra.mxu0 0.0
      %6282 = vmatpush.msra.mxu0 0.0
      %6283 = vmatpush.msra.mxu0 %v6092
      %6284 = vmatpush.msra.mxu0 %v6091
      %6285 = vmatpush.msra.mxu0 %v6090
      %6286 = vmatpush.msra.mxu0 %v6089
      %6287 = vmatmul.f32.gmra.mxu0 %v6094
      %v6288 = vpop.f32.mrf.mxu0
      %v6289 = vadd.f32 %v6224, %v6288
      %6290 = vmatmul.f32.gmra.mxu0 %v6097
      %v6291 = vpop.f32.mrf.mxu0
      %v6292 = vadd.f32 %v6227, %v6291
      %6293 = vmatmul.f32.gmra.mxu0 %v6100
      %v6294 = vpop.f32.mrf.mxu0
      %v6295 = vadd.f32 %v6230, %v6294
      %6296 = vmatmul.f32.gmra.mxu0 %v6103
      %v6297 = vpop.f32.mrf.mxu0
      %v6298 = vadd.f32 %v6233, %v6297
      %6299 = vmatmul.f32.gmra.mxu0 %v6106
      %v6300 = vpop.f32.mrf.mxu0
      %v6301 = vadd.f32 %v6236, %v6300
      %6302 = vmatmul.f32.gmra.mxu0 %v6109
      %v6303 = vpop.f32.mrf.mxu0
      %v6304 = vadd.f32 %v6239, %v6303
      %6305 = vmatmul.f32.gmra.mxu0 %v6112
      %v6306 = vpop.f32.mrf.mxu0
      %v6307 = vadd.f32 %v6242, %v6306
      %6308 = vmatmul.f32.gmra.mxu0 %v6115
      %v6309 = vpop.f32.mrf.mxu0
      %v6310 = vadd.f32 %v6245, %v6309
      %6311 = vmatmul.f32.gmra.mxu0 %v6118
      %v6312 = vpop.f32.mrf.mxu0
      %v6313 = vadd.f32 %v6248, %v6312
      %6314 = vmatmul.f32.gmra.mxu0 %v6121
      %v6315 = vpop.f32.mrf.mxu0
      %v6316 = vadd.f32 %v6251, %v6315
      %6317 = vmatmul.f32.gmra.mxu0 %v6124
      %v6318 = vpop.f32.mrf.mxu0
      %v6319 = vadd.f32 %v6254, %v6318
      %6320 = vmatmul.f32.gmra.mxu0 %v6127
      %v6321 = vpop.f32.mrf.mxu0
      %v6322 = vadd.f32 %v6257, %v6321
      %6323 = vmatmul.f32.gmra.mxu0 %v6130
      %v6324 = vpop.f32.mrf.mxu0
      %v6325 = vadd.f32 %v6260, %v6324
      %6326 = vmatmul.f32.gmra.mxu0 %v6133
      %v6327 = vpop.f32.mrf.mxu0
      %v6328 = vadd.f32 %v6263, %v6327
      %6329 = vmatmul.f32.gmra.mxu0 %v6136
      %v6330 = vpop.f32.mrf.mxu0
      %v6331 = vadd.f32 %v6266, %v6330
      %6332 = vmatmul.f32.gmra.mxu0 %v6139
      %v6333 = vpop.f32.mrf.mxu0
      %v6334 = vadd.f32 %v6269, %v6333
      %6335 = vdwg.mxu0
      %v6336 = vmax.f32 %v6289, 0.0
      %v6337 = vmax.f32 %v6292, 0.0
      %v6338 = vmax.f32 %v6295, 0.0
      %v6339 = vmax.f32 %v6298, 0.0
      %v6340 = vmax.f32 %v6301, 0.0
      %v6341 = vmax.f32 %v6304, 0.0
      %v6342 = vmax.f32 %v6307, 0.0
      %v6343 = vmax.f32 %v6310, 0.0
      %v6344 = vmax.f32 %v6313, 0.0
      %v6345 = vmax.f32 %v6316, 0.0
      %v6346 = vmax.f32 %v6319, 0.0
      %v6347 = vmax.f32 %v6322, 0.0
      %v6348 = vmax.f32 %v6325, 0.0
      %v6349 = vmax.f32 %v6328, 0.0
      %v6350 = vmax.f32 %v6331, 0.0
      %v6351 = vmax.f32 %v6334, 0.0
      %6356 = vrot.lane.b32.xlu0 %v6340, 32
      %v6357 = vpop.permute.xlu0 %6356
      %6358 = vrot.lane.b32.xlu0 %v6341, 32
      %v6359 = vpop.permute.xlu0 %6358
      %6360 = vrot.lane.b32.xlu0 %v6342, 32
      %v6361 = vpop.permute.xlu0 %6360
      %6362 = vrot.lane.b32.xlu0 %v6343, 32
      %v6363 = vpop.permute.xlu0 %6362
      %6372 = vrot.lane.b32.xlu0 %v6344, 64
      %v6373 = vpop.permute.xlu0 %6372
      %6374 = vrot.lane.b32.xlu0 %v6345, 64
      %v6375 = vpop.permute.xlu0 %6374
      %6376 = vrot.lane.b32.xlu0 %v6346, 64
      %v6377 = vpop.permute.xlu0 %6376
      %6378 = vrot.lane.b32.xlu0 %v6347, 64
      %v6379 = vpop.permute.xlu0 %6378
      %6388 = vrot.lane.b32.xlu0 %v6348, 96
      %v6389 = vpop.permute.xlu0 %6388
      %6390 = vrot.lane.b32.xlu0 %v6349, 96
      %v6391 = vpop.permute.xlu0 %6390
      %6392 = vrot.lane.b32.xlu0 %v6350, 96
      %v6393 = vpop.permute.xlu0 %6392
      %6394 = vrot.lane.b32.xlu0 %v6351, 96
      %v6395 = vpop.permute.xlu0 %6394
      %v6400 = vsel %vm523, %v6336, %v6357
      %v6401 = vsel %vm523, %v6337, %v6359
      %v6402 = vsel %vm523, %v6338, %v6361
      %v6403 = vsel %vm523, %v6339, %v6363
      %v6404 = vsel %vm528, %v6400, %v6373
      %v6405 = vsel %vm528, %v6401, %v6375
      %v6406 = vsel %vm528, %v6402, %v6377
      %v6407 = vsel %vm528, %v6403, %v6379
      %v6408 = vsel %vm533, %v6404, %v6389
      %v6409 = vsel %vm533, %v6405, %v6391
      %v6410 = vsel %vm533, %v6406, %v6393
      %v6411 = vsel %vm533, %v6407, %v6395
      %6412 = vst [vmem:[#allocation3 + $0x40] sm:$0xff] %v6408
      %6413 = vst [vmem:[#allocation3 + $0x48] sm:$0xff] %v6409
      %6414 = vst [vmem:[#allocation3 + $0x50] sm:$0xff] %v6410
      %6415 = vst [vmem:[#allocation3 + $0x58] sm:$0xff] %v6411
      %v6416 = vld [vmem:[#allocation5 + $0x480] sm:$0xff]
      %v6417 = vld [vmem:[#allocation5 + $0x488] sm:$0xff]
      %v6418 = vld [vmem:[#allocation5 + $0x490] sm:$0xff]
      %v6419 = vld [vmem:[#allocation5 + $0x498] sm:$0xff]
      %v6420 = vld [vmem:[#allocation5 + $0x4a0] sm:$0xff]
      %v6421 = vld [vmem:[#allocation5 + $0x4a8] sm:$0xff]
      %v6422 = vld [vmem:[#allocation5 + $0x4b0] sm:$0xff]
      %v6423 = vld [vmem:[#allocation5 + $0x4b8] sm:$0xff]
      %v6424 = vld [vmem:[#allocation5 + $0x4c0] sm:$0xff]
      %v6425 = vld [vmem:[#allocation5 + $0x4c8] sm:$0xff]
      %v6426 = vld [vmem:[#allocation5 + $0x4d0] sm:$0xff]
      %v6427 = vld [vmem:[#allocation5 + $0x4d8] sm:$0xff]
      %v6428 = vld [vmem:[#allocation5 + $0x4e0] sm:$0xff]
      %v6429 = vld [vmem:[#allocation5 + $0x4e8] sm:$0xff]
      %v6430 = vld [vmem:[#allocation5 + $0x4f0] sm:$0xff]
      %v6431 = vld [vmem:[#allocation5 + $0x4f8] sm:$0xff]
      %v6432 = vld [vmem:[#allocation5 + $0x500] sm:$0xff]
      %v6433 = vld [vmem:[#allocation5 + $0x508] sm:$0xff]
      %v6434 = vld [vmem:[#allocation5 + $0x510] sm:$0xff]
      %v6435 = vld [vmem:[#allocation5 + $0x518] sm:$0xff]
      %v6436 = vld [vmem:[#allocation5 + $0x520] sm:$0xff]
      %v6437 = vld [vmem:[#allocation5 + $0x528] sm:$0xff]
      %v6438 = vld [vmem:[#allocation5 + $0x530] sm:$0xff]
      %v6439 = vld [vmem:[#allocation5 + $0x538] sm:$0xff]
      %v6440 = vld [vmem:[#allocation5 + $0x540] sm:$0xff]
      %v6441 = vld [vmem:[#allocation5 + $0x548] sm:$0xff]
      %v6442 = vld [vmem:[#allocation5 + $0x550] sm:$0xff]
      %v6443 = vld [vmem:[#allocation5 + $0x558] sm:$0xff]
      %v6444 = vld [vmem:[#allocation5 + $0x560] sm:$0xff]
      %v6445 = vld [vmem:[#allocation5 + $0x568] sm:$0xff]
      %v6446 = vld [vmem:[#allocation5 + $0x570] sm:$0xff]
      %v6447 = vld [vmem:[#allocation5 + $0x578] sm:$0xff]
      %v6448 = vld [vmem:[#allocation5 + $0x580] sm:$0xff]
      %v6449 = vld [vmem:[#allocation5 + $0x588] sm:$0xff]
      %v6450 = vld [vmem:[#allocation5 + $0x590] sm:$0xff]
      %v6451 = vld [vmem:[#allocation5 + $0x598] sm:$0xff]
      %v6452 = vld [vmem:[#allocation5 + $0x5a0] sm:$0xff]
      %v6453 = vld [vmem:[#allocation5 + $0x5a8] sm:$0xff]
      %v6454 = vld [vmem:[#allocation5 + $0x5b0] sm:$0xff]
      %v6455 = vld [vmem:[#allocation5 + $0x5b8] sm:$0xff]
      %v6456 = vld [vmem:[#allocation5 + $0x5c0] sm:$0xff]
      %v6457 = vld [vmem:[#allocation5 + $0x5c8] sm:$0xff]
      %v6458 = vld [vmem:[#allocation5 + $0x5d0] sm:$0xff]
      %v6459 = vld [vmem:[#allocation5 + $0x5d8] sm:$0xff]
      %v6460 = vld [vmem:[#allocation5 + $0x5e0] sm:$0xff]
      %v6461 = vld [vmem:[#allocation5 + $0x5e8] sm:$0xff]
      %v6462 = vld [vmem:[#allocation5 + $0x5f0] sm:$0xff]
      %v6463 = vld [vmem:[#allocation5 + $0x5f8] sm:$0xff]
      %v6464 = vld [vmem:[%s2] sm:$0xff]
      %v6465 = vld [vmem:[%s2 + $0x8] sm:$0xff]
      %v6466 = vld [vmem:[%s2 + $0x10] sm:$0xff]
      %v6467 = vld [vmem:[%s2 + $0x18] sm:$0xff]
      %v6468 = vld [vmem:[%s2 + $0x20] sm:$0xff]
      %v6469 = vld [vmem:[%s2 + $0x28] sm:$0xff]
      %v6470 = vld [vmem:[%s2 + $0x30] sm:$0xff]
      %v6471 = vld [vmem:[%s2 + $0x38] sm:$0xff]
      %v6472 = vld [vmem:[%s2 + $0x40] sm:$0xff]
      %v6473 = vld [vmem:[%s2 + $0x48] sm:$0xff]
      %v6474 = vld [vmem:[%s2 + $0x50] sm:$0xff]
      %v6475 = vld [vmem:[%s2 + $0x58] sm:$0xff]
      %v6476 = vld [vmem:[%s2 + $0x60] sm:$0xff]
      %v6477 = vld [vmem:[%s2 + $0x68] sm:$0xff]
      %v6478 = vld [vmem:[%s2 + $0x70] sm:$0xff]
      %v6479 = vld [vmem:[%s2 + $0x78] sm:$0xff]
      %v6480 = vld [vmem:[%s2 + $0x80] sm:$0xff]
      %v6481 = vld [vmem:[%s2 + $0x88] sm:$0xff]
      %v6482 = vld [vmem:[%s2 + $0x90] sm:$0xff]
      %v6483 = vld [vmem:[%s2 + $0x98] sm:$0xff]
      %v6484 = vld [vmem:[%s2 + $0xa0] sm:$0xff]
      %v6485 = vld [vmem:[%s2 + $0xa8] sm:$0xff]
      %v6486 = vld [vmem:[%s2 + $0xb0] sm:$0xff]
      %v6487 = vld [vmem:[%s2 + $0xb8] sm:$0xff]
      %v6488 = vld [vmem:[%s2 + $0xc0] sm:$0xff]
      %v6489 = vld [vmem:[%s2 + $0xc8] sm:$0xff]
      %v6490 = vld [vmem:[%s2 + $0xd0] sm:$0xff]
      %v6491 = vld [vmem:[%s2 + $0xd8] sm:$0xff]
      %v6492 = vld [vmem:[%s2 + $0xe0] sm:$0xff]
      %v6493 = vld [vmem:[%s2 + $0xe8] sm:$0xff]
      %v6494 = vld [vmem:[%s2 + $0xf0] sm:$0xff]
      %v6495 = vld [vmem:[%s2 + $0xf8] sm:$0xff]
      %v6496 = vld [vmem:[%s2 + $0x100] sm:$0xff]
      %v6497 = vld [vmem:[%s2 + $0x108] sm:$0xff]
      %v6498 = vld [vmem:[%s2 + $0x110] sm:$0xff]
      %v6499 = vld [vmem:[%s2 + $0x118] sm:$0xff]
      %v6501 = vsel %vm523, %v6418, 0
      %v6504 = vsel %vm523, %v6421, 0
      %v6507 = vsel %vm523, %v6424, 0
      %v6510 = vsel %vm523, %v6427, 0
      %v6513 = vsel %vm523, %v6430, 0
      %v6516 = vsel %vm523, %v6433, 0
      %v6519 = vsel %vm523, %v6436, 0
      %v6522 = vsel %vm523, %v6439, 0
      %v6525 = vsel %vm523, %v6442, 0
      %v6528 = vsel %vm523, %v6445, 0
      %v6531 = vsel %vm523, %v6448, 0
      %v6534 = vsel %vm523, %v6451, 0
      %v6537 = vsel %vm523, %v6454, 0
      %v6540 = vsel %vm523, %v6457, 0
      %v6543 = vsel %vm523, %v6460, 0
      %v6546 = vsel %vm523, %v6463, 0
      %6548 = vmatpush.msra.mxu0 %v6479
      %6549 = vmatpush.msra.mxu0 %v6478
      %6550 = vmatpush.msra.mxu0 %v6477
      %6551 = vmatpush.msra.mxu0 %v6476
      %6552 = vmatpush.msra.mxu0 %v6475
      %6553 = vmatpush.msra.mxu0 %v6474
      %6554 = vmatpush.msra.mxu0 %v6473
      %6555 = vmatpush.msra.mxu0 %v6472
      %6556 = vmatpush.msra.mxu0 %v6471
      %6557 = vmatpush.msra.mxu0 %v6470
      %6558 = vmatpush.msra.mxu0 %v6469
      %6559 = vmatpush.msra.mxu0 %v6468
      %6560 = vmatpush.msra.mxu0 %v6467
      %6561 = vmatpush.msra.mxu0 %v6466
      %6562 = vmatpush.msra.mxu0 %v6465
      %6563 = vmatpush.msra.mxu0 %v6464
      %6564 = vmatmul.f32.gmra.mxu0 %v6416
      %v6565 = vpop.f32.mrf.mxu0
      %v6566 = vadd.f32 %v5278, %v6565
      %6567 = vmatmul.f32.gmra.mxu0 %v6419
      %v6568 = vpop.f32.mrf.mxu0
      %v6569 = vadd.f32 %v5278, %v6568
      %6570 = vmatmul.f32.gmra.mxu0 %v6422
      %v6571 = vpop.f32.mrf.mxu0
      %v6572 = vadd.f32 %v5278, %v6571
      %6573 = vmatmul.f32.gmra.mxu0 %v6425
      %v6574 = vpop.f32.mrf.mxu0
      %v6575 = vadd.f32 %v5278, %v6574
      %6576 = vmatmul.f32.gmra.mxu0 %v6428
      %v6577 = vpop.f32.mrf.mxu0
      %v6578 = vadd.f32 %v5278, %v6577
      %6579 = vmatmul.f32.gmra.mxu0 %v6431
      %v6580 = vpop.f32.mrf.mxu0
      %v6581 = vadd.f32 %v5278, %v6580
      %6582 = vmatmul.f32.gmra.mxu0 %v6434
      %v6583 = vpop.f32.mrf.mxu0
      %v6584 = vadd.f32 %v5278, %v6583
      %6585 = vmatmul.f32.gmra.mxu0 %v6437
      %v6586 = vpop.f32.mrf.mxu0
      %v6587 = vadd.f32 %v5278, %v6586
      %6588 = vmatmul.f32.gmra.mxu0 %v6440
      %v6589 = vpop.f32.mrf.mxu0
      %v6590 = vadd.f32 %v5278, %v6589
      %6591 = vmatmul.f32.gmra.mxu0 %v6443
      %v6592 = vpop.f32.mrf.mxu0
      %v6593 = vadd.f32 %v5278, %v6592
      %6594 = vmatmul.f32.gmra.mxu0 %v6446
      %v6595 = vpop.f32.mrf.mxu0
      %v6596 = vadd.f32 %v5278, %v6595
      %6597 = vmatmul.f32.gmra.mxu0 %v6449
      %v6598 = vpop.f32.mrf.mxu0
      %v6599 = vadd.f32 %v5278, %v6598
      %6600 = vmatmul.f32.gmra.mxu0 %v6452
      %v6601 = vpop.f32.mrf.mxu0
      %v6602 = vadd.f32 %v5278, %v6601
      %6603 = vmatmul.f32.gmra.mxu0 %v6455
      %v6604 = vpop.f32.mrf.mxu0
      %v6605 = vadd.f32 %v5278, %v6604
      %6606 = vmatmul.f32.gmra.mxu0 %v6458
      %v6607 = vpop.f32.mrf.mxu0
      %v6608 = vadd.f32 %v5278, %v6607
      %6609 = vmatmul.f32.gmra.mxu0 %v6461
      %v6610 = vpop.f32.mrf.mxu0
      %v6611 = vadd.f32 %v5278, %v6610
      %6612 = vdwg.mxu0
      %6613 = vmatpush.msra.mxu0 %v6495
      %6614 = vmatpush.msra.mxu0 %v6494
      %6615 = vmatpush.msra.mxu0 %v6493
      %6616 = vmatpush.msra.mxu0 %v6492
      %6617 = vmatpush.msra.mxu0 %v6491
      %6618 = vmatpush.msra.mxu0 %v6490
      %6619 = vmatpush.msra.mxu0 %v6489
      %6620 = vmatpush.msra.mxu0 %v6488
      %6621 = vmatpush.msra.mxu0 %v6487
      %6622 = vmatpush.msra.mxu0 %v6486
      %6623 = vmatpush.msra.mxu0 %v6485
      %6624 = vmatpush.msra.mxu0 %v6484
      %6625 = vmatpush.msra.mxu0 %v6483
      %6626 = vmatpush.msra.mxu0 %v6482
      %6627 = vmatpush.msra.mxu0 %v6481
      %6628 = vmatpush.msra.mxu0 %v6480
      %6629 = vmatmul.f32.gmra.mxu0 %v6417
      %v6630 = vpop.f32.mrf.mxu0
      %v6631 = vadd.f32 %v6566, %v6630
      %6632 = vmatmul.f32.gmra.mxu0 %v6420
      %v6633 = vpop.f32.mrf.mxu0
      %v6634 = vadd.f32 %v6569, %v6633
      %6635 = vmatmul.f32.gmra.mxu0 %v6423
      %v6636 = vpop.f32.mrf.mxu0
      %v6637 = vadd.f32 %v6572, %v6636
      %6638 = vmatmul.f32.gmra.mxu0 %v6426
      %v6639 = vpop.f32.mrf.mxu0
      %v6640 = vadd.f32 %v6575, %v6639
      %6641 = vmatmul.f32.gmra.mxu0 %v6429
      %v6642 = vpop.f32.mrf.mxu0
      %v6643 = vadd.f32 %v6578, %v6642
      %6644 = vmatmul.f32.gmra.mxu0 %v6432
      %v6645 = vpop.f32.mrf.mxu0
      %v6646 = vadd.f32 %v6581, %v6645
      %6647 = vmatmul.f32.gmra.mxu0 %v6435
      %v6648 = vpop.f32.mrf.mxu0
      %v6649 = vadd.f32 %v6584, %v6648
      %6650 = vmatmul.f32.gmra.mxu0 %v6438
      %v6651 = vpop.f32.mrf.mxu0
      %v6652 = vadd.f32 %v6587, %v6651
      %6653 = vmatmul.f32.gmra.mxu0 %v6441
      %v6654 = vpop.f32.mrf.mxu0
      %v6655 = vadd.f32 %v6590, %v6654
      %6656 = vmatmul.f32.gmra.mxu0 %v6444
      %v6657 = vpop.f32.mrf.mxu0
      %v6658 = vadd.f32 %v6593, %v6657
      %6659 = vmatmul.f32.gmra.mxu0 %v6447
      %v6660 = vpop.f32.mrf.mxu0
      %v6661 = vadd.f32 %v6596, %v6660
      %6662 = vmatmul.f32.gmra.mxu0 %v6450
      %v6663 = vpop.f32.mrf.mxu0
      %v6664 = vadd.f32 %v6599, %v6663
      %6665 = vmatmul.f32.gmra.mxu0 %v6453
      %v6666 = vpop.f32.mrf.mxu0
      %v6667 = vadd.f32 %v6602, %v6666
      %6668 = vmatmul.f32.gmra.mxu0 %v6456
      %v6669 = vpop.f32.mrf.mxu0
      %v6670 = vadd.f32 %v6605, %v6669
      %6671 = vmatmul.f32.gmra.mxu0 %v6459
      %v6672 = vpop.f32.mrf.mxu0
      %v6673 = vadd.f32 %v6608, %v6672
      %6674 = vmatmul.f32.gmra.mxu0 %v6462
      %v6675 = vpop.f32.mrf.mxu0
      %v6676 = vadd.f32 %v6611, %v6675
      %6677 = vdwg.mxu0
      %6678 = vmatpush.msra.mxu0 0.0
      %6679 = vmatpush.msra.mxu0 0.0
      %6680 = vmatpush.msra.mxu0 0.0
      %6681 = vmatpush.msra.mxu0 0.0
      %6682 = vmatpush.msra.mxu0 0.0
      %6683 = vmatpush.msra.mxu0 0.0
      %6684 = vmatpush.msra.mxu0 0.0
      %6685 = vmatpush.msra.mxu0 0.0
      %6686 = vmatpush.msra.mxu0 0.0
      %6687 = vmatpush.msra.mxu0 0.0
      %6688 = vmatpush.msra.mxu0 0.0
      %6689 = vmatpush.msra.mxu0 0.0
      %6690 = vmatpush.msra.mxu0 %v6499
      %6691 = vmatpush.msra.mxu0 %v6498
      %6692 = vmatpush.msra.mxu0 %v6497
      %6693 = vmatpush.msra.mxu0 %v6496
      %6694 = vmatmul.f32.gmra.mxu0 %v6501
      %v6695 = vpop.f32.mrf.mxu0
      %v6696 = vadd.f32 %v6631, %v6695
      %6697 = vmatmul.f32.gmra.mxu0 %v6504
      %v6698 = vpop.f32.mrf.mxu0
      %v6699 = vadd.f32 %v6634, %v6698
      %6700 = vmatmul.f32.gmra.mxu0 %v6507
      %v6701 = vpop.f32.mrf.mxu0
      %v6702 = vadd.f32 %v6637, %v6701
      %6703 = vmatmul.f32.gmra.mxu0 %v6510
      %v6704 = vpop.f32.mrf.mxu0
      %v6705 = vadd.f32 %v6640, %v6704
      %6706 = vmatmul.f32.gmra.mxu0 %v6513
      %v6707 = vpop.f32.mrf.mxu0
      %v6708 = vadd.f32 %v6643, %v6707
      %6709 = vmatmul.f32.gmra.mxu0 %v6516
      %v6710 = vpop.f32.mrf.mxu0
      %v6711 = vadd.f32 %v6646, %v6710
      %6712 = vmatmul.f32.gmra.mxu0 %v6519
      %v6713 = vpop.f32.mrf.mxu0
      %v6714 = vadd.f32 %v6649, %v6713
      %6715 = vmatmul.f32.gmra.mxu0 %v6522
      %v6716 = vpop.f32.mrf.mxu0
      %v6717 = vadd.f32 %v6652, %v6716
      %6718 = vmatmul.f32.gmra.mxu0 %v6525
      %v6719 = vpop.f32.mrf.mxu0
      %v6720 = vadd.f32 %v6655, %v6719
      %6721 = vmatmul.f32.gmra.mxu0 %v6528
      %v6722 = vpop.f32.mrf.mxu0
      %v6723 = vadd.f32 %v6658, %v6722
      %6724 = vmatmul.f32.gmra.mxu0 %v6531
      %v6725 = vpop.f32.mrf.mxu0
      %v6726 = vadd.f32 %v6661, %v6725
      %6727 = vmatmul.f32.gmra.mxu0 %v6534
      %v6728 = vpop.f32.mrf.mxu0
      %v6729 = vadd.f32 %v6664, %v6728
      %6730 = vmatmul.f32.gmra.mxu0 %v6537
      %v6731 = vpop.f32.mrf.mxu0
      %v6732 = vadd.f32 %v6667, %v6731
      %6733 = vmatmul.f32.gmra.mxu0 %v6540
      %v6734 = vpop.f32.mrf.mxu0
      %v6735 = vadd.f32 %v6670, %v6734
      %6736 = vmatmul.f32.gmra.mxu0 %v6543
      %v6737 = vpop.f32.mrf.mxu0
      %v6738 = vadd.f32 %v6673, %v6737
      %6739 = vmatmul.f32.gmra.mxu0 %v6546
      %v6740 = vpop.f32.mrf.mxu0
      %v6741 = vadd.f32 %v6676, %v6740
      %6742 = vdwg.mxu0
      %v6743 = vmax.f32 %v6696, 0.0
      %v6744 = vmax.f32 %v6699, 0.0
      %v6745 = vmax.f32 %v6702, 0.0
      %v6746 = vmax.f32 %v6705, 0.0
      %v6747 = vmax.f32 %v6708, 0.0
      %v6748 = vmax.f32 %v6711, 0.0
      %v6749 = vmax.f32 %v6714, 0.0
      %v6750 = vmax.f32 %v6717, 0.0
      %v6751 = vmax.f32 %v6720, 0.0
      %v6752 = vmax.f32 %v6723, 0.0
      %v6753 = vmax.f32 %v6726, 0.0
      %v6754 = vmax.f32 %v6729, 0.0
      %v6755 = vmax.f32 %v6732, 0.0
      %v6756 = vmax.f32 %v6735, 0.0
      %v6757 = vmax.f32 %v6738, 0.0
      %v6758 = vmax.f32 %v6741, 0.0
      %6763 = vrot.lane.b32.xlu0 %v6747, 32
      %v6764 = vpop.permute.xlu0 %6763
      %6765 = vrot.lane.b32.xlu0 %v6748, 32
      %v6766 = vpop.permute.xlu0 %6765
      %6767 = vrot.lane.b32.xlu0 %v6749, 32
      %v6768 = vpop.permute.xlu0 %6767
      %6769 = vrot.lane.b32.xlu0 %v6750, 32
      %v6770 = vpop.permute.xlu0 %6769
      %6779 = vrot.lane.b32.xlu0 %v6751, 64
      %v6780 = vpop.permute.xlu0 %6779
      %6781 = vrot.lane.b32.xlu0 %v6752, 64
      %v6782 = vpop.permute.xlu0 %6781
      %6783 = vrot.lane.b32.xlu0 %v6753, 64
      %v6784 = vpop.permute.xlu0 %6783
      %6785 = vrot.lane.b32.xlu0 %v6754, 64
      %v6786 = vpop.permute.xlu0 %6785
      %6795 = vrot.lane.b32.xlu0 %v6755, 96
      %v6796 = vpop.permute.xlu0 %6795
      %6797 = vrot.lane.b32.xlu0 %v6756, 96
      %v6798 = vpop.permute.xlu0 %6797
      %6799 = vrot.lane.b32.xlu0 %v6757, 96
      %v6800 = vpop.permute.xlu0 %6799
      %6801 = vrot.lane.b32.xlu0 %v6758, 96
      %v6802 = vpop.permute.xlu0 %6801
      %v6807 = vsel %vm523, %v6743, %v6764
      %v6808 = vsel %vm523, %v6744, %v6766
      %v6809 = vsel %vm523, %v6745, %v6768
      %v6810 = vsel %vm523, %v6746, %v6770
      %v6811 = vsel %vm528, %v6807, %v6780
      %v6812 = vsel %vm528, %v6808, %v6782
      %v6813 = vsel %vm528, %v6809, %v6784
      %v6814 = vsel %vm528, %v6810, %v6786
      %v6815 = vsel %vm533, %v6811, %v6796
      %v6816 = vsel %vm533, %v6812, %v6798
      %v6817 = vsel %vm533, %v6813, %v6800
      %v6818 = vsel %vm533, %v6814, %v6802
      %6819 = vst [vmem:[#allocation3 + $0x60] sm:$0xff] %v6815
      %6820 = vst [vmem:[#allocation3 + $0x68] sm:$0xff] %v6816
      %6821 = vst [vmem:[#allocation3 + $0x70] sm:$0xff] %v6817
      %6822 = vst [vmem:[#allocation3 + $0x78] sm:$0xff] %v6818
      %v6823 = vld [vmem:[%s6 + $0x2] sm:$0x1]
      %v6824 = vld [vmem:[#allocation3 + $0x20] sm:$0xff]
      %v6825 = vld [vmem:[#allocation3 + $0x28] sm:$0xff]
      %v6826 = vld [vmem:[#allocation3 + $0x30] sm:$0xff]
      %v6827 = vld [vmem:[#allocation3 + $0x38] sm:$0xff]
      %v6828 = vld [vmem:[#allocation3] sm:$0xff]
      %v6829 = vld [vmem:[#allocation3 + $0x8] sm:$0xff]
      %v6830 = vld [vmem:[#allocation3 + $0x10] sm:$0xff]
      %v6831 = vld [vmem:[#allocation3 + $0x18] sm:$0xff]
      %v6832 = vld [vmem:[#allocation3 + $0x60] sm:$0xff]
      %v6833 = vld [vmem:[#allocation3 + $0x68] sm:$0xff]
      %v6834 = vld [vmem:[#allocation3 + $0x70] sm:$0xff]
      %v6835 = vld [vmem:[#allocation3 + $0x78] sm:$0xff]
      %v6840 = vrot.slane %v6832, 3
      %v6841 = vrot.slane %v6833, 3
      %v6842 = vsel %vm3814, %v6840, %v6841
      %v6843 = vrot.slane %v6834, 3
      %v6844 = vsel %vm3814, %v6841, %v6843
      %v6845 = vrot.slane %v6835, 3
      %v6846 = vsel %vm3814, %v6843, %v6845
      %6847 = vrot.lane.b32.xlu0 %v6840, 96
      %v6848 = vpop.permute.xlu0 %6847
      %6849 = vrot.lane.b32.xlu0 %v6842, 96
      %v6850 = vpop.permute.xlu0 %6849
      %6851 = vrot.lane.b32.xlu0 %v6844, 96
      %v6852 = vpop.permute.xlu0 %6851
      %6853 = vrot.lane.b32.xlu0 %v6846, 96
      %v6854 = vpop.permute.xlu0 %6853
      %v6856 = vsel %vm3814, 0.0, %v6848
      %v6857 = vld [vmem:[#allocation3 + $0x40] sm:$0xff]
      %v6858 = vld [vmem:[#allocation3 + $0x48] sm:$0xff]
      %v6859 = vld [vmem:[#allocation3 + $0x50] sm:$0xff]
      %v6860 = vld [vmem:[#allocation3 + $0x58] sm:$0xff]
      %v6865 = vrot.slane %v6857, 3
      %v6866 = vrot.slane %v6858, 3
      %v6867 = vsel %vm3814, %v6865, %v6866
      %v6868 = vrot.slane %v6859, 3
      %v6869 = vsel %vm3814, %v6866, %v6868
      %v6870 = vrot.slane %v6860, 3
      %v6871 = vsel %vm3814, %v6868, %v6870
      %6872 = vrot.lane.b32.xlu0 %v6865, 96
      %v6873 = vpop.permute.xlu0 %6872
      %6874 = vrot.lane.b32.xlu0 %v6867, 96
      %v6875 = vpop.permute.xlu0 %6874
      %6876 = vrot.lane.b32.xlu0 %v6869, 96
      %v6877 = vpop.permute.xlu0 %6876
      %6878 = vrot.lane.b32.xlu0 %v6871, 96
      %v6879 = vpop.permute.xlu0 %6878
      %v6884 = vsel %vm3814, 0.0, %v6873
      %6886 = vrot.lane.b32.xlu0 %v6856, 64
      %v6887 = vpop.permute.xlu0 %6886
      %6888 = vrot.lane.b32.xlu0 %v6850, 64
      %v6889 = vpop.permute.xlu0 %6888
      %6890 = vrot.lane.b32.xlu0 %v6852, 64
      %v6891 = vpop.permute.xlu0 %6890
      %6892 = vrot.lane.b32.xlu0 %v6854, 64
      %v6893 = vpop.permute.xlu0 %6892
      %v6898 = vsel %vm528, %v6828, %v6887
      %v6899 = vsel %vm528, %v6829, %v6889
      %v6900 = vsel %vm528, %v6830, %v6891
      %v6901 = vsel %vm528, %v6831, %v6893
      %6902 = vst [vmem:[#allocation5] sm:$0xff] %v6824
      %6903 = vst [vmem:[#allocation5 + $0x8] sm:$0xff] %v6898
      %6904 = vst.msk [vmem:[#allocation5 + $0x10] sm:$0xff] %vm523, %v6884
      %6905 = vst [vmem:[#allocation5 + $0x18] sm:$0xff] %v6825
      %6906 = vst [vmem:[#allocation5 + $0x20] sm:$0xff] %v6899
      %6907 = vst.msk [vmem:[#allocation5 + $0x28] sm:$0xff] %vm523, %v6875
      %6908 = vst [vmem:[#allocation5 + $0x30] sm:$0xff] %v6826
      %6909 = vst [vmem:[#allocation5 + $0x38] sm:$0xff] %v6900
      %6910 = vst.msk [vmem:[#allocation5 + $0x40] sm:$0xff] %vm523, %v6877
      %6911 = vst [vmem:[#allocation5 + $0x48] sm:$0xff] %v6827
      %6912 = vst [vmem:[#allocation5 + $0x50] sm:$0xff] %v6901
      %6913 = vst.msk [vmem:[#allocation5 + $0x58] sm:$0xff] %vm523, %v6879
      %v6914 = vld [vmem:[#allocation3 + $0x60] sm:$0xff]
      %v6915 = vld [vmem:[#allocation3 + $0x68] sm:$0xff]
      %v6916 = vld [vmem:[#allocation3 + $0x70] sm:$0xff]
      %v6917 = vld [vmem:[#allocation3 + $0x78] sm:$0xff]
      %v6918 = vld [vmem:[#allocation3 + $0x40] sm:$0xff]
      %v6919 = vld [vmem:[#allocation3 + $0x48] sm:$0xff]
      %v6920 = vld [vmem:[#allocation3 + $0x50] sm:$0xff]
      %v6921 = vld [vmem:[#allocation3 + $0x58] sm:$0xff]
      %v6922 = vld [vmem:[#allocation3 + $0x20] sm:$0xff]
      %v6923 = vld [vmem:[#allocation3 + $0x28] sm:$0xff]
      %v6924 = vld [vmem:[#allocation3 + $0x30] sm:$0xff]
      %v6925 = vld [vmem:[#allocation3 + $0x38] sm:$0xff]
      %v6926 = vld [vmem:[#allocation3] sm:$0xff]
      %v6927 = vld [vmem:[#allocation3 + $0x8] sm:$0xff]
      %v6928 = vld [vmem:[#allocation3 + $0x10] sm:$0xff]
      %v6929 = vld [vmem:[#allocation3 + $0x18] sm:$0xff]
      %6934 = vrot.lane.b32.xlu0 %v6922, 32
      %v6935 = vpop.permute.xlu0 %6934
      %6936 = vrot.lane.b32.xlu0 %v6923, 32
      %v6937 = vpop.permute.xlu0 %6936
      %6938 = vrot.lane.b32.xlu0 %v6924, 32
      %v6939 = vpop.permute.xlu0 %6938
      %6940 = vrot.lane.b32.xlu0 %v6925, 32
      %v6941 = vpop.permute.xlu0 %6940
      %6950 = vrot.lane.b32.xlu0 %v6926, 96
      %v6951 = vpop.permute.xlu0 %6950
      %6952 = vrot.lane.b32.xlu0 %v6927, 96
      %v6953 = vpop.permute.xlu0 %6952
      %6954 = vrot.lane.b32.xlu0 %v6928, 96
      %v6955 = vpop.permute.xlu0 %6954
      %6956 = vrot.lane.b32.xlu0 %v6929, 96
      %v6957 = vpop.permute.xlu0 %6956
      %v6962 = vsel %vm528, %v6918, %v6935
      %v6963 = vsel %vm528, %v6919, %v6937
      %v6964 = vsel %vm528, %v6920, %v6939
      %v6965 = vsel %vm528, %v6921, %v6941
      %6966 = vst [vmem:[#allocation5 + $0x60] sm:$0xff] %v6914
      %6967 = vst [vmem:[#allocation5 + $0x68] sm:$0xff] %v6962
      %6968 = vst.msk [vmem:[#allocation5 + $0x70] sm:$0xff] %vm523, %v6951
      %6969 = vst [vmem:[#allocation5 + $0x78] sm:$0xff] %v6915
      %6970 = vst [vmem:[#allocation5 + $0x80] sm:$0xff] %v6963
      %6971 = vst.msk [vmem:[#allocation5 + $0x88] sm:$0xff] %vm523, %v6953
      %6972 = vst [vmem:[#allocation5 + $0x90] sm:$0xff] %v6916
      %6973 = vst [vmem:[#allocation5 + $0x98] sm:$0xff] %v6964
      %6974 = vst.msk [vmem:[#allocation5 + $0xa0] sm:$0xff] %vm523, %v6955
      %6975 = vst [vmem:[#allocation5 + $0xa8] sm:$0xff] %v6917
      %6976 = vst [vmem:[#allocation5 + $0xb0] sm:$0xff] %v6965
      %6977 = vst.msk [vmem:[#allocation5 + $0xb8] sm:$0xff] %vm523, %v6957
      %v6978 = vld [vmem:[#allocation3 + $0x40] sm:$0xff]
      %v6979 = vld [vmem:[#allocation3 + $0x48] sm:$0xff]
      %v6980 = vld [vmem:[#allocation3 + $0x50] sm:$0xff]
      %v6981 = vld [vmem:[#allocation3 + $0x58] sm:$0xff]
      %v6982 = vld [vmem:[#allocation3 + $0x60] sm:$0xff]
      %v6983 = vld [vmem:[#allocation3 + $0x68] sm:$0xff]
      %v6984 = vld [vmem:[#allocation3 + $0x70] sm:$0xff]
      %v6985 = vld [vmem:[#allocation3 + $0x78] sm:$0xff]
      %v6990 = vrot.slane %v6982, 7
      %v6991 = vrot.slane %v6983, 7
      %v6992 = vsel %vm3965, %v6990, %v6991
      %v6993 = vrot.slane %v6984, 7
      %v6994 = vsel %vm3965, %v6991, %v6993
      %v6995 = vrot.slane %v6985, 7
      %v6996 = vsel %vm3965, %v6993, %v6995
      %v7001 = vsel %vm3965, 0.0, %v6990
      %v7002 = vsel %vm4119, 0.0, %v7001
      %v7003 = vsel %vm4120, 0.0, %v6992
      %v7004 = vsel %vm4121, 0.0, %v6994
      %v7005 = vsel %vm4122, 0.0, %v6996
      %v7006 = vld [vmem:[#allocation3] sm:$0xff]
      %v7007 = vld [vmem:[#allocation3 + $0x8] sm:$0xff]
      %v7008 = vld [vmem:[#allocation3 + $0x10] sm:$0xff]
      %v7009 = vld [vmem:[#allocation3 + $0x18] sm:$0xff]
      %v7010 = vld [vmem:[#allocation3 + $0x20] sm:$0xff]
      %v7011 = vld [vmem:[#allocation3 + $0x28] sm:$0xff]
      %v7012 = vld [vmem:[#allocation3 + $0x30] sm:$0xff]
      %v7013 = vld [vmem:[#allocation3 + $0x38] sm:$0xff]
      %v7018 = vrot.slane %v7010, 7
      %v7019 = vrot.slane %v7011, 7
      %v7020 = vsel %vm3965, %v7018, %v7019
      %v7021 = vrot.slane %v7012, 7
      %v7022 = vsel %vm3965, %v7019, %v7021
      %v7023 = vrot.slane %v7013, 7
      %v7024 = vsel %vm3965, %v7021, %v7023
      %7025 = vrot.lane.b32.xlu0 %v7018, 96
      %v7026 = vpop.permute.xlu0 %7025
      %7027 = vrot.lane.b32.xlu0 %v7020, 96
      %v7028 = vpop.permute.xlu0 %7027
      %7029 = vrot.lane.b32.xlu0 %v7022, 96
      %v7030 = vpop.permute.xlu0 %7029
      %7031 = vrot.lane.b32.xlu0 %v7024, 96
      %v7032 = vpop.permute.xlu0 %7031
      %v7037 = vsel %vm3965, 0.0, %v7026
      %v7038 = vsel %vm4119, 0.0, %v7037
      %v7039 = vsel %vm4120, 0.0, %v7028
      %v7040 = vsel %vm4121, 0.0, %v7030
      %v7041 = vsel %vm4122, 0.0, %v7032
      %7046 = vrot.lane.b32.xlu0 %v7006, 32
      %v7047 = vpop.permute.xlu0 %7046
      %7048 = vrot.lane.b32.xlu0 %v7007, 32
      %v7049 = vpop.permute.xlu0 %7048
      %7050 = vrot.lane.b32.xlu0 %v7008, 32
      %v7051 = vpop.permute.xlu0 %7050
      %7052 = vrot.lane.b32.xlu0 %v7009, 32
      %v7053 = vpop.permute.xlu0 %7052
      %v7058 = vsel %vm528, %v7002, %v7047
      %v7059 = vsel %vm528, %v7003, %v7049
      %v7060 = vsel %vm528, %v7004, %v7051
      %v7061 = vsel %vm528, %v7005, %v7053
      %7062 = vst [vmem:[#allocation5 + $0xc0] sm:$0xff] %v6978
      %7063 = vst [vmem:[#allocation5 + $0xc8] sm:$0xff] %v7058
      %7064 = vst.msk [vmem:[#allocation5 + $0xd0] sm:$0xff] %vm523, %v7038
      %7065 = vst [vmem:[#allocation5 + $0xd8] sm:$0xff] %v6979
      %7066 = vst [vmem:[#allocation5 + $0xe0] sm:$0xff] %v7059
      %7067 = vst.msk [vmem:[#allocation5 + $0xe8] sm:$0xff] %vm523, %v7039
      %7068 = vst [vmem:[#allocation5 + $0xf0] sm:$0xff] %v6980
      %7069 = vst [vmem:[#allocation5 + $0xf8] sm:$0xff] %v7060
      %7070 = vst.msk [vmem:[#allocation5 + $0x100] sm:$0xff] %vm523, %v7040
      %7071 = vst [vmem:[#allocation5 + $0x108] sm:$0xff] %v6981
      %7072 = vst [vmem:[#allocation5 + $0x110] sm:$0xff] %v7061
      %7073 = vst.msk [vmem:[#allocation5 + $0x118] sm:$0xff] %vm523, %v7041
      %v7074 = vld [vmem:[#allocation3] sm:$0xff]
      %v7075 = vld [vmem:[#allocation3 + $0x8] sm:$0xff]
      %v7076 = vld [vmem:[#allocation3 + $0x10] sm:$0xff]
      %v7077 = vld [vmem:[#allocation3 + $0x18] sm:$0xff]
      %v7078 = vld [vmem:[#allocation3 + $0x20] sm:$0xff]
      %v7079 = vld [vmem:[#allocation3 + $0x28] sm:$0xff]
      %v7080 = vld [vmem:[#allocation3 + $0x30] sm:$0xff]
      %v7081 = vld [vmem:[#allocation3 + $0x38] sm:$0xff]
      %v7086 = vrot.slane %v7078, 7
      %v7087 = vrot.slane %v7079, 7
      %v7088 = vsel %vm3965, %v7086, %v7087
      %v7089 = vrot.slane %v7080, 7
      %v7090 = vsel %vm3965, %v7087, %v7089
      %v7091 = vrot.slane %v7081, 7
      %v7092 = vsel %vm3965, %v7089, %v7091
      %v7097 = vsel %vm3965, 0.0, %v7086
      %v7098 = vsel %vm4119, 0.0, %v7097
      %v7099 = vsel %vm4120, 0.0, %v7088
      %v7100 = vsel %vm4121, 0.0, %v7090
      %v7101 = vsel %vm4122, 0.0, %v7092
      %v7102 = vld [vmem:[#allocation3 + $0x40] sm:$0xff]
      %v7103 = vld [vmem:[#allocation3 + $0x48] sm:$0xff]
      %v7104 = vld [vmem:[#allocation3 + $0x50] sm:$0xff]
      %v7105 = vld [vmem:[#allocation3 + $0x58] sm:$0xff]
      %v7110 = vrot.slane %v7102, 3
      %v7111 = vrot.slane %v7103, 3
      %v7112 = vsel %vm3814, %v7110, %v7111
      %v7113 = vrot.slane %v7104, 3
      %v7114 = vsel %vm3814, %v7111, %v7113
      %v7115 = vrot.slane %v7105, 3
      %v7116 = vsel %vm3814, %v7113, %v7115
      %7117 = vrot.lane.b32.xlu0 %v7110, 96
      %v7118 = vpop.permute.xlu0 %7117
      %7119 = vrot.lane.b32.xlu0 %v7112, 96
      %v7120 = vpop.permute.xlu0 %7119
      %7121 = vrot.lane.b32.xlu0 %v7114, 96
      %v7122 = vpop.permute.xlu0 %7121
      %7123 = vrot.lane.b32.xlu0 %v7116, 96
      %v7124 = vpop.permute.xlu0 %7123
      %v7126 = vsel %vm3814, 0.0, %v7118
      %v7127 = vld [vmem:[#allocation3 + $0x60] sm:$0xff]
      %v7128 = vld [vmem:[#allocation3 + $0x68] sm:$0xff]
      %v7129 = vld [vmem:[#allocation3 + $0x70] sm:$0xff]
      %v7130 = vld [vmem:[#allocation3 + $0x78] sm:$0xff]
      %v7135 = vrot.slane %v7127, 2
      %v7136 = vrot.slane %v7128, 2
      %v7137 = vsel %vm4256, %v7135, %v7136
      %v7138 = vrot.slane %v7129, 2
      %v7139 = vsel %vm4256, %v7136, %v7138
      %v7140 = vrot.slane %v7130, 2
      %v7141 = vsel %vm4256, %v7138, %v7140
      %7142 = vrot.lane.b32.xlu0 %v7135, 96
      %v7143 = vpop.permute.xlu0 %7142
      %7144 = vrot.lane.b32.xlu0 %v7137, 96
      %v7145 = vpop.permute.xlu0 %7144
      %7146 = vrot.lane.b32.xlu0 %v7139, 96
      %v7147 = vpop.permute.xlu0 %7146
      %7148 = vrot.lane.b32.xlu0 %v7141, 96
      %v7149 = vpop.permute.xlu0 %7148
      %v7154 = vsel %vm4256, 0.0, %v7143
      %v7155 = vsel %vm4119, 0.0, %v7154
      %v7156 = vsel %vm4120, 0.0, %v7145
      %v7157 = vsel %vm4121, 0.0, %v7147
      %v7158 = vsel %vm4122, 0.0, %v7149
      %7160 = vrot.lane.b32.xlu0 %v7126, 64
      %v7161 = vpop.permute.xlu0 %7160
      %7162 = vrot.lane.b32.xlu0 %v7120, 64
      %v7163 = vpop.permute.xlu0 %7162
      %7164 = vrot.lane.b32.xlu0 %v7122, 64
      %v7165 = vpop.permute.xlu0 %7164
      %7166 = vrot.lane.b32.xlu0 %v7124, 64
      %v7167 = vpop.permute.xlu0 %7166
      %v7172 = vsel %vm528, %v7098, %v7161
      %v7173 = vsel %vm528, %v7099, %v7163
      %v7174 = vsel %vm528, %v7100, %v7165
      %v7175 = vsel %vm528, %v7101, %v7167
      %7176 = vst [vmem:[#allocation5 + $0x120] sm:$0xff] %v7074
      %7177 = vst [vmem:[#allocation5 + $0x128] sm:$0xff] %v7172
      %7178 = vst.msk [vmem:[#allocation5 + $0x130] sm:$0xff] %vm523, %v7155
      %7179 = vst [vmem:[#allocation5 + $0x138] sm:$0xff] %v7075
      %7180 = vst [vmem:[#allocation5 + $0x140] sm:$0xff] %v7173
      %7181 = vst.msk [vmem:[#allocation5 + $0x148] sm:$0xff] %vm523, %v7156
      %7182 = vst [vmem:[#allocation5 + $0x150] sm:$0xff] %v7076
      %7183 = vst [vmem:[#allocation5 + $0x158] sm:$0xff] %v7174
      %7184 = vst.msk [vmem:[#allocation5 + $0x160] sm:$0xff] %vm523, %v7157
      %7185 = vst [vmem:[#allocation5 + $0x168] sm:$0xff] %v7077
      %7186 = vst [vmem:[#allocation5 + $0x170] sm:$0xff] %v7175
      %7187 = vst.msk [vmem:[#allocation5 + $0x178] sm:$0xff] %vm523, %v7158
      %v7188 = vld [vmem:[#allocation5] sm:$0xff]
      %v7189 = vld [vmem:[#allocation5 + $0x8] sm:$0xff]
      %v7190 = vld [vmem:[#allocation5 + $0x10] sm:$0xff]
      %v7191 = vld [vmem:[#allocation5 + $0x18] sm:$0xff]
      %v7192 = vld [vmem:[#allocation5 + $0x20] sm:$0xff]
      %v7193 = vld [vmem:[#allocation5 + $0x28] sm:$0xff]
      %v7194 = vld [vmem:[#allocation5 + $0x30] sm:$0xff]
      %v7195 = vld [vmem:[#allocation5 + $0x38] sm:$0xff]
      %v7196 = vld [vmem:[#allocation5 + $0x40] sm:$0xff]
      %v7197 = vld [vmem:[#allocation5 + $0x48] sm:$0xff]
      %v7198 = vld [vmem:[#allocation5 + $0x50] sm:$0xff]
      %v7199 = vld [vmem:[#allocation5 + $0x58] sm:$0xff]
      %v7200 = vld [vmem:[#allocation5 + $0x60] sm:$0xff]
      %v7201 = vld [vmem:[#allocation5 + $0x68] sm:$0xff]
      %v7202 = vld [vmem:[#allocation5 + $0x70] sm:$0xff]
      %v7203 = vld [vmem:[#allocation5 + $0x78] sm:$0xff]
      %v7204 = vld [vmem:[#allocation5 + $0x80] sm:$0xff]
      %v7205 = vld [vmem:[#allocation5 + $0x88] sm:$0xff]
      %v7206 = vld [vmem:[#allocation5 + $0x90] sm:$0xff]
      %v7207 = vld [vmem:[#allocation5 + $0x98] sm:$0xff]
      %v7208 = vld [vmem:[#allocation5 + $0xa0] sm:$0xff]
      %v7209 = vld [vmem:[#allocation5 + $0xa8] sm:$0xff]
      %v7210 = vld [vmem:[#allocation5 + $0xb0] sm:$0xff]
      %v7211 = vld [vmem:[#allocation5 + $0xb8] sm:$0xff]
      %v7212 = vld [vmem:[#allocation5 + $0xc0] sm:$0xff]
      %v7213 = vld [vmem:[#allocation5 + $0xc8] sm:$0xff]
      %v7214 = vld [vmem:[#allocation5 + $0xd0] sm:$0xff]
      %v7215 = vld [vmem:[#allocation5 + $0xd8] sm:$0xff]
      %v7216 = vld [vmem:[#allocation5 + $0xe0] sm:$0xff]
      %v7217 = vld [vmem:[#allocation5 + $0xe8] sm:$0xff]
      %v7218 = vld [vmem:[#allocation5 + $0xf0] sm:$0xff]
      %v7219 = vld [vmem:[#allocation5 + $0xf8] sm:$0xff]
      %v7220 = vld [vmem:[#allocation5 + $0x100] sm:$0xff]
      %v7221 = vld [vmem:[#allocation5 + $0x108] sm:$0xff]
      %v7222 = vld [vmem:[#allocation5 + $0x110] sm:$0xff]
      %v7223 = vld [vmem:[#allocation5 + $0x118] sm:$0xff]
      %v7224 = vld [vmem:[#allocation5 + $0x120] sm:$0xff]
      %v7225 = vld [vmem:[#allocation5 + $0x128] sm:$0xff]
      %v7226 = vld [vmem:[#allocation5 + $0x130] sm:$0xff]
      %v7227 = vld [vmem:[#allocation5 + $0x138] sm:$0xff]
      %v7228 = vld [vmem:[#allocation5 + $0x140] sm:$0xff]
      %v7229 = vld [vmem:[#allocation5 + $0x148] sm:$0xff]
      %v7230 = vld [vmem:[#allocation5 + $0x150] sm:$0xff]
      %v7231 = vld [vmem:[#allocation5 + $0x158] sm:$0xff]
      %v7232 = vld [vmem:[#allocation5 + $0x160] sm:$0xff]
      %v7233 = vld [vmem:[#allocation5 + $0x168] sm:$0xff]
      %v7234 = vld [vmem:[#allocation5 + $0x170] sm:$0xff]
      %v7235 = vld [vmem:[#allocation5 + $0x178] sm:$0xff]
      %v7236 = vld [vmem:[%s2 + $0x120] sm:$0xff]
      %v7237 = vld [vmem:[%s2 + $0x128] sm:$0xff]
      %v7238 = vld [vmem:[%s2 + $0x130] sm:$0xff]
      %v7239 = vld [vmem:[%s2 + $0x138] sm:$0xff]
      %v7240 = vld [vmem:[%s2 + $0x140] sm:$0xff]
      %v7241 = vld [vmem:[%s2 + $0x148] sm:$0xff]
      %v7242 = vld [vmem:[%s2 + $0x150] sm:$0xff]
      %v7243 = vld [vmem:[%s2 + $0x158] sm:$0xff]
      %v7244 = vld [vmem:[%s2 + $0x160] sm:$0xff]
      %v7245 = vld [vmem:[%s2 + $0x168] sm:$0xff]
      %v7246 = vld [vmem:[%s2 + $0x170] sm:$0xff]
      %v7247 = vld [vmem:[%s2 + $0x178] sm:$0xff]
      %v7248 = vld [vmem:[%s2 + $0x180] sm:$0xff]
      %v7249 = vld [vmem:[%s2 + $0x188] sm:$0xff]
      %v7250 = vld [vmem:[%s2 + $0x190] sm:$0xff]
      %v7251 = vld [vmem:[%s2 + $0x198] sm:$0xff]
      %v7252 = vld [vmem:[%s2 + $0x1a0] sm:$0xff]
      %v7253 = vld [vmem:[%s2 + $0x1a8] sm:$0xff]
      %v7254 = vld [vmem:[%s2 + $0x1b0] sm:$0xff]
      %v7255 = vld [vmem:[%s2 + $0x1b8] sm:$0xff]
      %v7256 = vld [vmem:[%s2 + $0x1c0] sm:$0xff]
      %v7257 = vld [vmem:[%s2 + $0x1c8] sm:$0xff]
      %v7258 = vld [vmem:[%s2 + $0x1d0] sm:$0xff]
      %v7259 = vld [vmem:[%s2 + $0x1d8] sm:$0xff]
      %v7260 = vld [vmem:[%s2 + $0x1e0] sm:$0xff]
      %v7261 = vld [vmem:[%s2 + $0x1e8] sm:$0xff]
      %v7262 = vld [vmem:[%s2 + $0x1f0] sm:$0xff]
      %v7263 = vld [vmem:[%s2 + $0x1f8] sm:$0xff]
      %v7264 = vld [vmem:[%s2 + $0x200] sm:$0xff]
      %v7265 = vld [vmem:[%s2 + $0x208] sm:$0xff]
      %v7266 = vld [vmem:[%s2 + $0x210] sm:$0xff]
      %v7267 = vld [vmem:[%s2 + $0x218] sm:$0xff]
      %v7268 = vld [vmem:[%s2 + $0x220] sm:$0xff]
      %v7269 = vld [vmem:[%s2 + $0x228] sm:$0xff]
      %v7270 = vld [vmem:[%s2 + $0x230] sm:$0xff]
      %v7271 = vld [vmem:[%s2 + $0x238] sm:$0xff]
      %v7272 = vperm.slane %v6823, 0
      %v7274 = vsel %vm523, %v7190, 0
      %v7277 = vsel %vm523, %v7193, 0
      %v7280 = vsel %vm523, %v7196, 0
      %v7283 = vsel %vm523, %v7199, 0
      %v7286 = vsel %vm523, %v7202, 0
      %v7289 = vsel %vm523, %v7205, 0
      %v7292 = vsel %vm523, %v7208, 0
      %v7295 = vsel %vm523, %v7211, 0
      %v7298 = vsel %vm523, %v7214, 0
      %v7301 = vsel %vm523, %v7217, 0
      %v7304 = vsel %vm523, %v7220, 0
      %v7307 = vsel %vm523, %v7223, 0
      %v7310 = vsel %vm523, %v7226, 0
      %v7313 = vsel %vm523, %v7229, 0
      %v7316 = vsel %vm523, %v7232, 0
      %v7319 = vsel %vm523, %v7235, 0
      %7321 = vmatpush.msra.mxu0 %v7251
      %7322 = vmatpush.msra.mxu0 %v7250
      %7323 = vmatpush.msra.mxu0 %v7249
      %7324 = vmatpush.msra.mxu0 %v7248
      %7325 = vmatpush.msra.mxu0 %v7247
      %7326 = vmatpush.msra.mxu0 %v7246
      %7327 = vmatpush.msra.mxu0 %v7245
      %7328 = vmatpush.msra.mxu0 %v7244
      %7329 = vmatpush.msra.mxu0 %v7243
      %7330 = vmatpush.msra.mxu0 %v7242
      %7331 = vmatpush.msra.mxu0 %v7241
      %7332 = vmatpush.msra.mxu0 %v7240
      %7333 = vmatpush.msra.mxu0 %v7239
      %7334 = vmatpush.msra.mxu0 %v7238
      %7335 = vmatpush.msra.mxu0 %v7237
      %7336 = vmatpush.msra.mxu0 %v7236
      %7337 = vmatmul.f32.gmra.mxu0 %v7188
      %v7338 = vpop.f32.mrf.mxu0
      %v7339 = vadd.f32 %v7272, %v7338
      %7340 = vmatmul.f32.gmra.mxu0 %v7191
      %v7341 = vpop.f32.mrf.mxu0
      %v7342 = vadd.f32 %v7272, %v7341
      %7343 = vmatmul.f32.gmra.mxu0 %v7194
      %v7344 = vpop.f32.mrf.mxu0
      %v7345 = vadd.f32 %v7272, %v7344
      %7346 = vmatmul.f32.gmra.mxu0 %v7197
      %v7347 = vpop.f32.mrf.mxu0
      %v7348 = vadd.f32 %v7272, %v7347
      %7349 = vmatmul.f32.gmra.mxu0 %v7200
      %v7350 = vpop.f32.mrf.mxu0
      %v7351 = vadd.f32 %v7272, %v7350
      %7352 = vmatmul.f32.gmra.mxu0 %v7203
      %v7353 = vpop.f32.mrf.mxu0
      %v7354 = vadd.f32 %v7272, %v7353
      %7355 = vmatmul.f32.gmra.mxu0 %v7206
      %v7356 = vpop.f32.mrf.mxu0
      %v7357 = vadd.f32 %v7272, %v7356
      %7358 = vmatmul.f32.gmra.mxu0 %v7209
      %v7359 = vpop.f32.mrf.mxu0
      %v7360 = vadd.f32 %v7272, %v7359
      %7361 = vmatmul.f32.gmra.mxu0 %v7212
      %v7362 = vpop.f32.mrf.mxu0
      %v7363 = vadd.f32 %v7272, %v7362
      %7364 = vmatmul.f32.gmra.mxu0 %v7215
      %v7365 = vpop.f32.mrf.mxu0
      %v7366 = vadd.f32 %v7272, %v7365
      %7367 = vmatmul.f32.gmra.mxu0 %v7218
      %v7368 = vpop.f32.mrf.mxu0
      %v7369 = vadd.f32 %v7272, %v7368
      %7370 = vmatmul.f32.gmra.mxu0 %v7221
      %v7371 = vpop.f32.mrf.mxu0
      %v7372 = vadd.f32 %v7272, %v7371
      %7373 = vmatmul.f32.gmra.mxu0 %v7224
      %v7374 = vpop.f32.mrf.mxu0
      %v7375 = vadd.f32 %v7272, %v7374
      %7376 = vmatmul.f32.gmra.mxu0 %v7227
      %v7377 = vpop.f32.mrf.mxu0
      %v7378 = vadd.f32 %v7272, %v7377
      %7379 = vmatmul.f32.gmra.mxu0 %v7230
      %v7380 = vpop.f32.mrf.mxu0
      %v7381 = vadd.f32 %v7272, %v7380
      %7382 = vmatmul.f32.gmra.mxu0 %v7233
      %v7383 = vpop.f32.mrf.mxu0
      %v7384 = vadd.f32 %v7272, %v7383
      %7385 = vdwg.mxu0
      %7386 = vmatpush.msra.mxu0 %v7267
      %7387 = vmatpush.msra.mxu0 %v7266
      %7388 = vmatpush.msra.mxu0 %v7265
      %7389 = vmatpush.msra.mxu0 %v7264
      %7390 = vmatpush.msra.mxu0 %v7263
      %7391 = vmatpush.msra.mxu0 %v7262
      %7392 = vmatpush.msra.mxu0 %v7261
      %7393 = vmatpush.msra.mxu0 %v7260
      %7394 = vmatpush.msra.mxu0 %v7259
      %7395 = vmatpush.msra.mxu0 %v7258
      %7396 = vmatpush.msra.mxu0 %v7257
      %7397 = vmatpush.msra.mxu0 %v7256
      %7398 = vmatpush.msra.mxu0 %v7255
      %7399 = vmatpush.msra.mxu0 %v7254
      %7400 = vmatpush.msra.mxu0 %v7253
      %7401 = vmatpush.msra.mxu0 %v7252
      %7402 = vmatmul.f32.gmra.mxu0 %v7189
      %v7403 = vpop.f32.mrf.mxu0
      %v7404 = vadd.f32 %v7339, %v7403
      %7405 = vmatmul.f32.gmra.mxu0 %v7192
      %v7406 = vpop.f32.mrf.mxu0
      %v7407 = vadd.f32 %v7342, %v7406
      %7408 = vmatmul.f32.gmra.mxu0 %v7195
      %v7409 = vpop.f32.mrf.mxu0
      %v7410 = vadd.f32 %v7345, %v7409
      %7411 = vmatmul.f32.gmra.mxu0 %v7198
      %v7412 = vpop.f32.mrf.mxu0
      %v7413 = vadd.f32 %v7348, %v7412
      %7414 = vmatmul.f32.gmra.mxu0 %v7201
      %v7415 = vpop.f32.mrf.mxu0
      %v7416 = vadd.f32 %v7351, %v7415
      %7417 = vmatmul.f32.gmra.mxu0 %v7204
      %v7418 = vpop.f32.mrf.mxu0
      %v7419 = vadd.f32 %v7354, %v7418
      %7420 = vmatmul.f32.gmra.mxu0 %v7207
      %v7421 = vpop.f32.mrf.mxu0
      %v7422 = vadd.f32 %v7357, %v7421
      %7423 = vmatmul.f32.gmra.mxu0 %v7210
      %v7424 = vpop.f32.mrf.mxu0
      %v7425 = vadd.f32 %v7360, %v7424
      %7426 = vmatmul.f32.gmra.mxu0 %v7213
      %v7427 = vpop.f32.mrf.mxu0
      %v7428 = vadd.f32 %v7363, %v7427
      %7429 = vmatmul.f32.gmra.mxu0 %v7216
      %v7430 = vpop.f32.mrf.mxu0
      %v7431 = vadd.f32 %v7366, %v7430
      %7432 = vmatmul.f32.gmra.mxu0 %v7219
      %v7433 = vpop.f32.mrf.mxu0
      %v7434 = vadd.f32 %v7369, %v7433
      %7435 = vmatmul.f32.gmra.mxu0 %v7222
      %v7436 = vpop.f32.mrf.mxu0
      %v7437 = vadd.f32 %v7372, %v7436
      %7438 = vmatmul.f32.gmra.mxu0 %v7225
      %v7439 = vpop.f32.mrf.mxu0
      %v7440 = vadd.f32 %v7375, %v7439
      %7441 = vmatmul.f32.gmra.mxu0 %v7228
      %v7442 = vpop.f32.mrf.mxu0
      %v7443 = vadd.f32 %v7378, %v7442
      %7444 = vmatmul.f32.gmra.mxu0 %v7231
      %v7445 = vpop.f32.mrf.mxu0
      %v7446 = vadd.f32 %v7381, %v7445
      %7447 = vmatmul.f32.gmra.mxu0 %v7234
      %v7448 = vpop.f32.mrf.mxu0
      %v7449 = vadd.f32 %v7384, %v7448
      %7450 = vdwg.mxu0
      %7451 = vmatpush.msra.mxu0 0.0
      %7452 = vmatpush.msra.mxu0 0.0
      %7453 = vmatpush.msra.mxu0 0.0
      %7454 = vmatpush.msra.mxu0 0.0
      %7455 = vmatpush.msra.mxu0 0.0
      %7456 = vmatpush.msra.mxu0 0.0
      %7457 = vmatpush.msra.mxu0 0.0
      %7458 = vmatpush.msra.mxu0 0.0
      %7459 = vmatpush.msra.mxu0 0.0
      %7460 = vmatpush.msra.mxu0 0.0
      %7461 = vmatpush.msra.mxu0 0.0
      %7462 = vmatpush.msra.mxu0 0.0
      %7463 = vmatpush.msra.mxu0 %v7271
      %7464 = vmatpush.msra.mxu0 %v7270
      %7465 = vmatpush.msra.mxu0 %v7269
      %7466 = vmatpush.msra.mxu0 %v7268
      %7467 = vmatmul.f32.gmra.mxu0 %v7274
      %v7468 = vpop.f32.mrf.mxu0
      %v7469 = vadd.f32 %v7404, %v7468
      %7470 = vmatmul.f32.gmra.mxu0 %v7277
      %v7471 = vpop.f32.mrf.mxu0
      %v7472 = vadd.f32 %v7407, %v7471
      %7473 = vmatmul.f32.gmra.mxu0 %v7280
      %v7474 = vpop.f32.mrf.mxu0
      %v7475 = vadd.f32 %v7410, %v7474
      %7476 = vmatmul.f32.gmra.mxu0 %v7283
      %v7477 = vpop.f32.mrf.mxu0
      %v7478 = vadd.f32 %v7413, %v7477
      %7479 = vmatmul.f32.gmra.mxu0 %v7286
      %v7480 = vpop.f32.mrf.mxu0
      %v7481 = vadd.f32 %v7416, %v7480
      %7482 = vmatmul.f32.gmra.mxu0 %v7289
      %v7483 = vpop.f32.mrf.mxu0
      %v7484 = vadd.f32 %v7419, %v7483
      %7485 = vmatmul.f32.gmra.mxu0 %v7292
      %v7486 = vpop.f32.mrf.mxu0
      %v7487 = vadd.f32 %v7422, %v7486
      %7488 = vmatmul.f32.gmra.mxu0 %v7295
      %v7489 = vpop.f32.mrf.mxu0
      %v7490 = vadd.f32 %v7425, %v7489
      %7491 = vmatmul.f32.gmra.mxu0 %v7298
      %v7492 = vpop.f32.mrf.mxu0
      %v7493 = vadd.f32 %v7428, %v7492
      %7494 = vmatmul.f32.gmra.mxu0 %v7301
      %v7495 = vpop.f32.mrf.mxu0
      %v7496 = vadd.f32 %v7431, %v7495
      %7497 = vmatmul.f32.gmra.mxu0 %v7304
      %v7498 = vpop.f32.mrf.mxu0
      %v7499 = vadd.f32 %v7434, %v7498
      %7500 = vmatmul.f32.gmra.mxu0 %v7307
      %v7501 = vpop.f32.mrf.mxu0
      %v7502 = vadd.f32 %v7437, %v7501
      %7503 = vmatmul.f32.gmra.mxu0 %v7310
      %v7504 = vpop.f32.mrf.mxu0
      %v7505 = vadd.f32 %v7440, %v7504
      %7506 = vmatmul.f32.gmra.mxu0 %v7313
      %v7507 = vpop.f32.mrf.mxu0
      %v7508 = vadd.f32 %v7443, %v7507
      %7509 = vmatmul.f32.gmra.mxu0 %v7316
      %v7510 = vpop.f32.mrf.mxu0
      %v7511 = vadd.f32 %v7446, %v7510
      %7512 = vmatmul.f32.gmra.mxu0 %v7319
      %v7513 = vpop.f32.mrf.mxu0
      %v7514 = vadd.f32 %v7449, %v7513
      %7515 = vdwg.mxu0
      %v7516 = vmax.f32 %v7469, 0.0
      %v7517 = vmax.f32 %v7472, 0.0
      %v7518 = vmax.f32 %v7475, 0.0
      %v7519 = vmax.f32 %v7478, 0.0
      %v7520 = vmax.f32 %v7481, 0.0
      %v7521 = vmax.f32 %v7484, 0.0
      %v7522 = vmax.f32 %v7487, 0.0
      %v7523 = vmax.f32 %v7490, 0.0
      %v7524 = vmax.f32 %v7493, 0.0
      %v7525 = vmax.f32 %v7496, 0.0
      %v7526 = vmax.f32 %v7499, 0.0
      %v7527 = vmax.f32 %v7502, 0.0
      %v7528 = vmax.f32 %v7505, 0.0
      %v7529 = vmax.f32 %v7508, 0.0
      %v7530 = vmax.f32 %v7511, 0.0
      %v7531 = vmax.f32 %v7514, 0.0
      %7536 = vrot.lane.b32.xlu0 %v7520, 32
      %v7537 = vpop.permute.xlu0 %7536
      %7538 = vrot.lane.b32.xlu0 %v7521, 32
      %v7539 = vpop.permute.xlu0 %7538
      %7540 = vrot.lane.b32.xlu0 %v7522, 32
      %v7541 = vpop.permute.xlu0 %7540
      %7542 = vrot.lane.b32.xlu0 %v7523, 32
      %v7543 = vpop.permute.xlu0 %7542
      %7552 = vrot.lane.b32.xlu0 %v7524, 64
      %v7553 = vpop.permute.xlu0 %7552
      %7554 = vrot.lane.b32.xlu0 %v7525, 64
      %v7555 = vpop.permute.xlu0 %7554
      %7556 = vrot.lane.b32.xlu0 %v7526, 64
      %v7557 = vpop.permute.xlu0 %7556
      %7558 = vrot.lane.b32.xlu0 %v7527, 64
      %v7559 = vpop.permute.xlu0 %7558
      %7568 = vrot.lane.b32.xlu0 %v7528, 96
      %v7569 = vpop.permute.xlu0 %7568
      %7570 = vrot.lane.b32.xlu0 %v7529, 96
      %v7571 = vpop.permute.xlu0 %7570
      %7572 = vrot.lane.b32.xlu0 %v7530, 96
      %v7573 = vpop.permute.xlu0 %7572
      %7574 = vrot.lane.b32.xlu0 %v7531, 96
      %v7575 = vpop.permute.xlu0 %7574
      %v7580 = vsel %vm523, %v7516, %v7537
      %v7581 = vsel %vm523, %v7517, %v7539
      %v7582 = vsel %vm523, %v7518, %v7541
      %v7583 = vsel %vm523, %v7519, %v7543
      %v7584 = vsel %vm528, %v7580, %v7553
      %v7585 = vsel %vm528, %v7581, %v7555
      %v7586 = vsel %vm528, %v7582, %v7557
      %v7587 = vsel %vm528, %v7583, %v7559
      %v7588 = vsel %vm533, %v7584, %v7569
      %v7589 = vsel %vm533, %v7585, %v7571
      %v7590 = vsel %vm533, %v7586, %v7573
      %v7591 = vsel %vm533, %v7587, %v7575
      %7592 = vst [vmem:[#allocation4] sm:$0xff] %v7588
      %7593 = vst [vmem:[#allocation4 + $0x8] sm:$0xff] %v7589
      %7594 = vst [vmem:[#allocation4 + $0x10] sm:$0xff] %v7590
      %7595 = vst [vmem:[#allocation4 + $0x18] sm:$0xff] %v7591
      %v7596 = vld [vmem:[%s6 + $0x3] sm:$0x1]
      %v7597 = vld [vmem:[#allocation4] sm:$0xff]
      %v7598 = vld [vmem:[#allocation4 + $0x8] sm:$0xff]
      %v7599 = vld [vmem:[#allocation4 + $0x10] sm:$0xff]
      %v7600 = vld [vmem:[#allocation4 + $0x18] sm:$0xff]
      %v7605 = vrot.slane %v7597, 7
      %v7606 = vrot.slane %v7598, 7
      %v7607 = vsel %vm3965, %v7605, %v7606
      %v7608 = vrot.slane %v7599, 7
      %v7609 = vsel %vm3965, %v7606, %v7608
      %v7610 = vrot.slane %v7600, 7
      %v7611 = vsel %vm3965, %v7608, %v7610
      %v7616 = vsel %vm3965, 0.0, %v7605
      %v7617 = vsel %vm4119, 0.0, %v7616
      %v7618 = vsel %vm4120, 0.0, %v7607
      %v7619 = vsel %vm4121, 0.0, %v7609
      %v7620 = vsel %vm4122, 0.0, %v7611
      %v7621 = vrot.slane %v7597, 3
      %v7622 = vrot.slane %v7598, 3
      %v7623 = vsel %vm3814, %v7621, %v7622
      %v7624 = vrot.slane %v7599, 3
      %v7625 = vsel %vm3814, %v7622, %v7624
      %v7626 = vrot.slane %v7600, 3
      %v7627 = vsel %vm3814, %v7624, %v7626
      %7628 = vrot.lane.b32.xlu0 %v7621, 96
      %v7629 = vpop.permute.xlu0 %7628
      %7630 = vrot.lane.b32.xlu0 %v7623, 96
      %v7631 = vpop.permute.xlu0 %7630
      %7632 = vrot.lane.b32.xlu0 %v7625, 96
      %v7633 = vpop.permute.xlu0 %7632
      %7634 = vrot.lane.b32.xlu0 %v7627, 96
      %v7635 = vpop.permute.xlu0 %7634
      %v7637 = vsel %vm3814, 0.0, %v7629
      %v7638 = vrot.slane %v7597, 2
      %v7639 = vrot.slane %v7598, 2
      %v7640 = vsel %vm4256, %v7638, %v7639
      %v7641 = vrot.slane %v7599, 2
      %v7642 = vsel %vm4256, %v7639, %v7641
      %v7643 = vrot.slane %v7600, 2
      %v7644 = vsel %vm4256, %v7641, %v7643
      %7645 = vrot.lane.b32.xlu0 %v7638, 96
      %v7646 = vpop.permute.xlu0 %7645
      %7647 = vrot.lane.b32.xlu0 %v7640, 96
      %v7648 = vpop.permute.xlu0 %7647
      %7649 = vrot.lane.b32.xlu0 %v7642, 96
      %v7650 = vpop.permute.xlu0 %7649
      %7651 = vrot.lane.b32.xlu0 %v7644, 96
      %v7652 = vpop.permute.xlu0 %7651
      %v7657 = vsel %vm4256, 0.0, %v7646
      %v7658 = vsel %vm4119, 0.0, %v7657
      %v7659 = vsel %vm4120, 0.0, %v7648
      %v7660 = vsel %vm4121, 0.0, %v7650
      %v7661 = vsel %vm4122, 0.0, %v7652
      %7663 = vrot.lane.b32.xlu0 %v7637, 64
      %v7664 = vpop.permute.xlu0 %7663
      %7665 = vrot.lane.b32.xlu0 %v7631, 64
      %v7666 = vpop.permute.xlu0 %7665
      %7667 = vrot.lane.b32.xlu0 %v7633, 64
      %v7668 = vpop.permute.xlu0 %7667
      %7669 = vrot.lane.b32.xlu0 %v7635, 64
      %v7670 = vpop.permute.xlu0 %7669
      %v7675 = vsel %vm528, %v7617, %v7664
      %v7676 = vsel %vm528, %v7618, %v7666
      %v7677 = vsel %vm528, %v7619, %v7668
      %v7678 = vsel %vm528, %v7620, %v7670
      %7679 = vst [vmem:[#allocation5] sm:$0xff] %v7597
      %7680 = vst [vmem:[#allocation5 + $0x8] sm:$0xff] %v7675
      %7681 = vst.msk [vmem:[#allocation5 + $0x10] sm:$0xff] %vm523, %v7658
      %7682 = vst [vmem:[#allocation5 + $0x18] sm:$0xff] %v7598
      %7683 = vst [vmem:[#allocation5 + $0x20] sm:$0xff] %v7676
      %7684 = vst.msk [vmem:[#allocation5 + $0x28] sm:$0xff] %vm523, %v7659
      %7685 = vst [vmem:[#allocation5 + $0x30] sm:$0xff] %v7599
      %7686 = vst [vmem:[#allocation5 + $0x38] sm:$0xff] %v7677
      %7687 = vst.msk [vmem:[#allocation5 + $0x40] sm:$0xff] %vm523, %v7660
      %7688 = vst [vmem:[#allocation5 + $0x48] sm:$0xff] %v7600
      %7689 = vst [vmem:[#allocation5 + $0x50] sm:$0xff] %v7678
      %7690 = vst.msk [vmem:[#allocation5 + $0x58] sm:$0xff] %vm523, %v7661
      %v7691 = vld [vmem:[#allocation5] sm:$0xff]
      %v7692 = vld [vmem:[#allocation5 + $0x8] sm:$0xff]
      %v7693 = vld [vmem:[#allocation5 + $0x10] sm:$0xff]
      %v7694 = vld [vmem:[#allocation5 + $0x18] sm:$0xff]
      %v7695 = vld [vmem:[#allocation5 + $0x20] sm:$0xff]
      %v7696 = vld [vmem:[#allocation5 + $0x28] sm:$0xff]
      %v7697 = vld [vmem:[#allocation5 + $0x30] sm:$0xff]
      %v7698 = vld [vmem:[#allocation5 + $0x38] sm:$0xff]
      %v7699 = vld [vmem:[#allocation5 + $0x40] sm:$0xff]
      %v7700 = vld [vmem:[#allocation5 + $0x48] sm:$0xff]
      %v7701 = vld [vmem:[#allocation5 + $0x50] sm:$0xff]
      %v7702 = vld [vmem:[#allocation5 + $0x58] sm:$0xff]
      %v7703 = vld [vmem:[%s2 + $0x240] sm:$0xff]
      %v7704 = vld [vmem:[%s2 + $0x248] sm:$0xff]
      %v7705 = vld [vmem:[%s2 + $0x250] sm:$0xff]
      %v7706 = vld [vmem:[%s2 + $0x258] sm:$0xff]
      %v7707 = vld [vmem:[%s2 + $0x260] sm:$0xff]
      %v7708 = vld [vmem:[%s2 + $0x268] sm:$0xff]
      %v7709 = vld [vmem:[%s2 + $0x270] sm:$0xff]
      %v7710 = vld [vmem:[%s2 + $0x278] sm:$0xff]
      %v7711 = vld [vmem:[%s2 + $0x280] sm:$0xff]
      %v7712 = vld [vmem:[%s2 + $0x288] sm:$0xff]
      %v7713 = vld [vmem:[%s2 + $0x290] sm:$0xff]
      %v7714 = vld [vmem:[%s2 + $0x298] sm:$0xff]
      %v7715 = vld [vmem:[%s2 + $0x2a0] sm:$0xff]
      %v7716 = vld [vmem:[%s2 + $0x2a8] sm:$0xff]
      %v7717 = vld [vmem:[%s2 + $0x2b0] sm:$0xff]
      %v7718 = vld [vmem:[%s2 + $0x2b8] sm:$0xff]
      %v7719 = vld [vmem:[%s2 + $0x2c0] sm:$0xff]
      %v7720 = vld [vmem:[%s2 + $0x2c8] sm:$0xff]
      %v7721 = vld [vmem:[%s2 + $0x2d0] sm:$0xff]
      %v7722 = vld [vmem:[%s2 + $0x2d8] sm:$0xff]
      %v7723 = vld [vmem:[%s2 + $0x2e0] sm:$0xff]
      %v7724 = vld [vmem:[%s2 + $0x2e8] sm:$0xff]
      %v7725 = vld [vmem:[%s2 + $0x2f0] sm:$0xff]
      %v7726 = vld [vmem:[%s2 + $0x2f8] sm:$0xff]
      %v7727 = vld [vmem:[%s2 + $0x300] sm:$0xff]
      %v7728 = vld [vmem:[%s2 + $0x308] sm:$0xff]
      %v7729 = vld [vmem:[%s2 + $0x310] sm:$0xff]
      %v7730 = vld [vmem:[%s2 + $0x318] sm:$0xff]
      %v7731 = vld [vmem:[%s2 + $0x320] sm:$0xff]
      %v7732 = vld [vmem:[%s2 + $0x328] sm:$0xff]
      %v7733 = vld [vmem:[%s2 + $0x330] sm:$0xff]
      %v7734 = vld [vmem:[%s2 + $0x338] sm:$0xff]
      %v7735 = vld [vmem:[%s2 + $0x340] sm:$0xff]
      %v7736 = vld [vmem:[%s2 + $0x348] sm:$0xff]
      %v7737 = vld [vmem:[%s2 + $0x350] sm:$0xff]
      %v7738 = vld [vmem:[%s2 + $0x358] sm:$0xff]
      %v7739 = vperm.slane %v7596, 0
      %v7741 = vsel %vm523, %v7693, 0
      %v7744 = vsel %vm523, %v7696, 0
      %v7747 = vsel %vm523, %v7699, 0
      %v7750 = vsel %vm523, %v7702, 0
      %7752 = vmatpush.msra.mxu0 %v7718
      %7753 = vmatpush.msra.mxu0 %v7717
      %7754 = vmatpush.msra.mxu0 %v7716
      %7755 = vmatpush.msra.mxu0 %v7715
      %7756 = vmatpush.msra.mxu0 %v7714
      %7757 = vmatpush.msra.mxu0 %v7713
      %7758 = vmatpush.msra.mxu0 %v7712
      %7759 = vmatpush.msra.mxu0 %v7711
      %7760 = vmatpush.msra.mxu0 %v7710
      %7761 = vmatpush.msra.mxu0 %v7709
      %7762 = vmatpush.msra.mxu0 %v7708
      %7763 = vmatpush.msra.mxu0 %v7707
      %7764 = vmatpush.msra.mxu0 %v7706
      %7765 = vmatpush.msra.mxu0 %v7705
      %7766 = vmatpush.msra.mxu0 %v7704
      %7767 = vmatpush.msra.mxu0 %v7703
      %7768 = vmatmul.f32.gmra.mxu0 %v7691
      %v7769 = vpop.f32.mrf.mxu0
      %v7770 = vadd.f32 %v7739, %v7769
      %7771 = vmatmul.f32.gmra.mxu0 %v7694
      %v7772 = vpop.f32.mrf.mxu0
      %v7773 = vadd.f32 %v7739, %v7772
      %7774 = vmatmul.f32.gmra.mxu0 %v7697
      %v7775 = vpop.f32.mrf.mxu0
      %v7776 = vadd.f32 %v7739, %v7775
      %7777 = vmatmul.f32.gmra.mxu0 %v7700
      %v7778 = vpop.f32.mrf.mxu0
      %v7779 = vadd.f32 %v7739, %v7778
      %7780 = vdwg.mxu0
      %7781 = vmatpush.msra.mxu0 %v7734
      %7782 = vmatpush.msra.mxu0 %v7733
      %7783 = vmatpush.msra.mxu0 %v7732
      %7784 = vmatpush.msra.mxu0 %v7731
      %7785 = vmatpush.msra.mxu0 %v7730
      %7786 = vmatpush.msra.mxu0 %v7729
      %7787 = vmatpush.msra.mxu0 %v7728
      %7788 = vmatpush.msra.mxu0 %v7727
      %7789 = vmatpush.msra.mxu0 %v7726
      %7790 = vmatpush.msra.mxu0 %v7725
      %7791 = vmatpush.msra.mxu0 %v7724
      %7792 = vmatpush.msra.mxu0 %v7723
      %7793 = vmatpush.msra.mxu0 %v7722
      %7794 = vmatpush.msra.mxu0 %v7721
      %7795 = vmatpush.msra.mxu0 %v7720
      %7796 = vmatpush.msra.mxu0 %v7719
      %7797 = vmatmul.f32.gmra.mxu0 %v7692
      %v7798 = vpop.f32.mrf.mxu0
      %v7799 = vadd.f32 %v7770, %v7798
      %7800 = vmatmul.f32.gmra.mxu0 %v7695
      %v7801 = vpop.f32.mrf.mxu0
      %v7802 = vadd.f32 %v7773, %v7801
      %7803 = vmatmul.f32.gmra.mxu0 %v7698
      %v7804 = vpop.f32.mrf.mxu0
      %v7805 = vadd.f32 %v7776, %v7804
      %7806 = vmatmul.f32.gmra.mxu0 %v7701
      %v7807 = vpop.f32.mrf.mxu0
      %v7808 = vadd.f32 %v7779, %v7807
      %7809 = vdwg.mxu0
      %7810 = vmatpush.msra.mxu0 0.0
      %7811 = vmatpush.msra.mxu0 0.0
      %7812 = vmatpush.msra.mxu0 0.0
      %7813 = vmatpush.msra.mxu0 0.0
      %7814 = vmatpush.msra.mxu0 0.0
      %7815 = vmatpush.msra.mxu0 0.0
      %7816 = vmatpush.msra.mxu0 0.0
      %7817 = vmatpush.msra.mxu0 0.0
      %7818 = vmatpush.msra.mxu0 0.0
      %7819 = vmatpush.msra.mxu0 0.0
      %7820 = vmatpush.msra.mxu0 0.0
      %7821 = vmatpush.msra.mxu0 0.0
      %7822 = vmatpush.msra.mxu0 %v7738
      %7823 = vmatpush.msra.mxu0 %v7737
      %7824 = vmatpush.msra.mxu0 %v7736
      %7825 = vmatpush.msra.mxu0 %v7735
      %7826 = vmatmul.f32.gmra.mxu0 %v7741
      %v7827 = vpop.f32.mrf.mxu0
      %v7828 = vadd.f32 %v7799, %v7827
      %7829 = vmatmul.f32.gmra.mxu0 %v7744
      %v7830 = vpop.f32.mrf.mxu0
      %v7831 = vadd.f32 %v7802, %v7830
      %7832 = vmatmul.f32.gmra.mxu0 %v7747
      %v7833 = vpop.f32.mrf.mxu0
      %v7834 = vadd.f32 %v7805, %v7833
      %7835 = vmatmul.f32.gmra.mxu0 %v7750
      %v7836 = vpop.f32.mrf.mxu0
      %v7837 = vadd.f32 %v7808, %v7836
      %7838 = vdwg.mxu0
      %v7839 = vmax.f32 %v7828, 0.0
      %v7840 = vmax.f32 %v7831, 0.0
      %v7841 = vmax.f32 %v7834, 0.0
      %v7842 = vmax.f32 %v7837, 0.0
      %7844 = vrot.lane.b32.xlu0 %v7840, 32
      %v7845 = vpop.permute.xlu0 %7844
      %7848 = vrot.lane.b32.xlu0 %v7841, 64
      %v7849 = vpop.permute.xlu0 %7848
      %7852 = vrot.lane.b32.xlu0 %v7842, 96
      %v7853 = vpop.permute.xlu0 %7852
      %v7855 = vsel %vm523, %v7839, %v7845
      %v7856 = vsel %vm528, %v7855, %v7849
      %v7857 = vsel %vm533, %v7856, %v7853
      %v7858 = vld [vmem:[%s6 + $0x4] sm:$0x1]
      %v7859 = vld [vmem:[%s3] sm:$0xff]
      %v7860 = vld [vmem:[%s3 + $0x8] sm:$0xff]
      %v7861 = vld [vmem:[%s3 + $0x10] sm:$0xff]
      %v7862 = vld [vmem:[%s3 + $0x18] sm:$0xff]
      %v7863 = vld [vmem:[%s3 + $0x20] sm:$0xff]
      %v7864 = vld [vmem:[%s3 + $0x28] sm:$0xff]
      %v7865 = vld [vmem:[%s3 + $0x30] sm:$0xff]
      %v7866 = vld [vmem:[%s3 + $0x38] sm:$0xff]
      %v7867 = vld [vmem:[%s3 + $0x40] sm:$0xff]
      %v7868 = vld [vmem:[%s3 + $0x48] sm:$0xff]
      %v7869 = vld [vmem:[%s3 + $0x50] sm:$0xff]
      %v7870 = vld [vmem:[%s3 + $0x58] sm:$0xff]
      %v7871 = vld [vmem:[%s3 + $0x60] sm:$0xff]
      %v7872 = vld [vmem:[%s3 + $0x68] sm:$0xff]
      %v7873 = vld [vmem:[%s3 + $0x70] sm:$0xff]
      %v7874 = vld [vmem:[%s3 + $0x78] sm:$0xff]
      %7875 = vmatpush.msra.mxu0 %v7874
      %7876 = vmatpush.msra.mxu0 %v7873
      %7877 = vmatpush.msra.mxu0 %v7872
      %7878 = vmatpush.msra.mxu0 %v7871
      %7879 = vmatpush.msra.mxu0 %v7870
      %7880 = vmatpush.msra.mxu0 %v7869
      %7881 = vmatpush.msra.mxu0 %v7868
      %7882 = vmatpush.msra.mxu0 %v7867
      %7883 = vmatpush.msra.mxu0 %v7866
      %7884 = vmatpush.msra.mxu0 %v7865
      %7885 = vmatpush.msra.mxu0 %v7864
      %7886 = vmatpush.msra.mxu0 %v7863
      %7887 = vmatpush.msra.mxu0 %v7862
      %7888 = vmatpush.msra.mxu0 %v7861
      %7889 = vmatpush.msra.mxu0 %v7860
      %7890 = vmatpush.msra.mxu0 %v7859
      %7891 = vmatmul.f32.gmra.mxu0 %v7857
      %v7892 = vpop.f32.mrf.mxu0
      %v7893 = vadd.f32 0.0, %v7892
      %7894 = vdwg.mxu0
      %v7895 = vadd.f32 %v7858, %v7893
      %v7896 = vld [vmem:[%s3 + $0x80] sm:$0xff]
      %v7897 = vld [vmem:[%s3 + $0x88] sm:$0xff]
      %v7898 = vld [vmem:[%s3 + $0x90] sm:$0xff]
      %v7899 = vld [vmem:[%s3 + $0x98] sm:$0xff]
      %v7900 = vld [vmem:[%s3 + $0xa0] sm:$0xff]
      %v7901 = vld [vmem:[%s3 + $0xa8] sm:$0xff]
      %v7902 = vld [vmem:[%s3 + $0xb0] sm:$0xff]
      %v7903 = vld [vmem:[%s3 + $0xb8] sm:$0xff]
      %v7904 = vld [vmem:[%s3 + $0xc0] sm:$0xff]
      %v7905 = vld [vmem:[%s3 + $0xc8] sm:$0xff]
      %v7906 = vld [vmem:[%s3 + $0xd0] sm:$0xff]
      %v7907 = vld [vmem:[%s3 + $0xd8] sm:$0xff]
      %v7908 = vld [vmem:[%s3 + $0xe0] sm:$0xff]
      %v7909 = vld [vmem:[%s3 + $0xe8] sm:$0xff]
      %v7910 = vld [vmem:[%s3 + $0xf0] sm:$0xff]
      %v7911 = vld [vmem:[%s3 + $0xf8] sm:$0xff]
      %v7913 = vrot.slane %v7857, 1
      %7915 = vmatpush.msra.mxu0 %v7911
      %7916 = vmatpush.msra.mxu0 %v7910
      %7917 = vmatpush.msra.mxu0 %v7909
      %7918 = vmatpush.msra.mxu0 %v7908
      %7919 = vmatpush.msra.mxu0 %v7907
      %7920 = vmatpush.msra.mxu0 %v7906
      %7921 = vmatpush.msra.mxu0 %v7905
      %7922 = vmatpush.msra.mxu0 %v7904
      %7923 = vmatpush.msra.mxu0 %v7903
      %7924 = vmatpush.msra.mxu0 %v7902
      %7925 = vmatpush.msra.mxu0 %v7901
      %7926 = vmatpush.msra.mxu0 %v7900
      %7927 = vmatpush.msra.mxu0 %v7899
      %7928 = vmatpush.msra.mxu0 %v7898
      %7929 = vmatpush.msra.mxu0 %v7897
      %7930 = vmatpush.msra.mxu0 %v7896
      %7931 = vmatmul.f32.gmra.mxu0 %v7913
      %v7932 = vpop.f32.mrf.mxu0
      %v7933 = vadd.f32 0.0, %v7932
      %7934 = vdwg.mxu0
      %v7935 = vadd.f32 %v7895, %v7933
      %v7936 = vld [vmem:[%s3 + $0x100] sm:$0xff]
      %v7937 = vld [vmem:[%s3 + $0x108] sm:$0xff]
      %v7938 = vld [vmem:[%s3 + $0x110] sm:$0xff]
      %v7939 = vld [vmem:[%s3 + $0x118] sm:$0xff]
      %v7940 = vld [vmem:[%s3 + $0x120] sm:$0xff]
      %v7941 = vld [vmem:[%s3 + $0x128] sm:$0xff]
      %v7942 = vld [vmem:[%s3 + $0x130] sm:$0xff]
      %v7943 = vld [vmem:[%s3 + $0x138] sm:$0xff]
      %v7944 = vld [vmem:[%s3 + $0x140] sm:$0xff]
      %v7945 = vld [vmem:[%s3 + $0x148] sm:$0xff]
      %v7946 = vld [vmem:[%s3 + $0x150] sm:$0xff]
      %v7947 = vld [vmem:[%s3 + $0x158] sm:$0xff]
      %v7948 = vld [vmem:[%s3 + $0x160] sm:$0xff]
      %v7949 = vld [vmem:[%s3 + $0x168] sm:$0xff]
      %v7950 = vld [vmem:[%s3 + $0x170] sm:$0xff]
      %v7951 = vld [vmem:[%s3 + $0x178] sm:$0xff]
      %v7952 = vrot.slane %v7857, 2
      %7954 = vmatpush.msra.mxu0 %v7951
      %7955 = vmatpush.msra.mxu0 %v7950
      %7956 = vmatpush.msra.mxu0 %v7949
      %7957 = vmatpush.msra.mxu0 %v7948
      %7958 = vmatpush.msra.mxu0 %v7947
      %7959 = vmatpush.msra.mxu0 %v7946
      %7960 = vmatpush.msra.mxu0 %v7945
      %7961 = vmatpush.msra.mxu0 %v7944
      %7962 = vmatpush.msra.mxu0 %v7943
      %7963 = vmatpush.msra.mxu0 %v7942
      %7964 = vmatpush.msra.mxu0 %v7941
      %7965 = vmatpush.msra.mxu0 %v7940
      %7966 = vmatpush.msra.mxu0 %v7939
      %7967 = vmatpush.msra.mxu0 %v7938
      %7968 = vmatpush.msra.mxu0 %v7937
      %7969 = vmatpush.msra.mxu0 %v7936
      %7970 = vmatmul.f32.gmra.mxu0 %v7952
      %v7971 = vpop.f32.mrf.mxu0
      %v7972 = vadd.f32 0.0, %v7971
      %7973 = vdwg.mxu0
      %v7974 = vadd.f32 %v7935, %v7972
      %v7975 = vld [vmem:[%s3 + $0x180] sm:$0xff]
      %v7976 = vld [vmem:[%s3 + $0x188] sm:$0xff]
      %v7977 = vld [vmem:[%s3 + $0x190] sm:$0xff]
      %v7978 = vld [vmem:[%s3 + $0x198] sm:$0xff]
      %v7979 = vld [vmem:[%s3 + $0x1a0] sm:$0xff]
      %v7980 = vld [vmem:[%s3 + $0x1a8] sm:$0xff]
      %v7981 = vld [vmem:[%s3 + $0x1b0] sm:$0xff]
      %v7982 = vld [vmem:[%s3 + $0x1b8] sm:$0xff]
      %v7983 = vld [vmem:[%s3 + $0x1c0] sm:$0xff]
      %v7984 = vld [vmem:[%s3 + $0x1c8] sm:$0xff]
      %v7985 = vld [vmem:[%s3 + $0x1d0] sm:$0xff]
      %v7986 = vld [vmem:[%s3 + $0x1d8] sm:$0xff]
      %v7987 = vld [vmem:[%s3 + $0x1e0] sm:$0xff]
      %v7988 = vld [vmem:[%s3 + $0x1e8] sm:$0xff]
      %v7989 = vld [vmem:[%s3 + $0x1f0] sm:$0xff]
      %v7990 = vld [vmem:[%s3 + $0x1f8] sm:$0xff]
      %v7991 = vrot.slane %v7857, 3
      %7993 = vmatpush.msra.mxu0 %v7990
      %7994 = vmatpush.msra.mxu0 %v7989
      %7995 = vmatpush.msra.mxu0 %v7988
      %7996 = vmatpush.msra.mxu0 %v7987
      %7997 = vmatpush.msra.mxu0 %v7986
      %7998 = vmatpush.msra.mxu0 %v7985
      %7999 = vmatpush.msra.mxu0 %v7984
      %8000 = vmatpush.msra.mxu0 %v7983
      %8001 = vmatpush.msra.mxu0 %v7982
      %8002 = vmatpush.msra.mxu0 %v7981
      %8003 = vmatpush.msra.mxu0 %v7980
      %8004 = vmatpush.msra.mxu0 %v7979
      %8005 = vmatpush.msra.mxu0 %v7978
      %8006 = vmatpush.msra.mxu0 %v7977
      %8007 = vmatpush.msra.mxu0 %v7976
      %8008 = vmatpush.msra.mxu0 %v7975
      %8009 = vmatmul.f32.gmra.mxu0 %v7991
      %v8010 = vpop.f32.mrf.mxu0
      %v8011 = vadd.f32 0.0, %v8010
      %8012 = vdwg.mxu0
      %v8013 = vadd.f32 %v7974, %v8011
      %v8014 = vld [vmem:[%s3 + $0x200] sm:$0xff]
      %v8015 = vld [vmem:[%s3 + $0x208] sm:$0xff]
      %v8016 = vld [vmem:[%s3 + $0x210] sm:$0xff]
      %v8017 = vld [vmem:[%s3 + $0x218] sm:$0xff]
      %v8018 = vld [vmem:[%s3 + $0x220] sm:$0xff]
      %v8019 = vld [vmem:[%s3 + $0x228] sm:$0xff]
      %v8020 = vld [vmem:[%s3 + $0x230] sm:$0xff]
      %v8021 = vld [vmem:[%s3 + $0x238] sm:$0xff]
      %v8022 = vld [vmem:[%s3 + $0x240] sm:$0xff]
      %v8023 = vld [vmem:[%s3 + $0x248] sm:$0xff]
      %v8024 = vld [vmem:[%s3 + $0x250] sm:$0xff]
      %v8025 = vld [vmem:[%s3 + $0x258] sm:$0xff]
      %v8026 = vld [vmem:[%s3 + $0x260] sm:$0xff]
      %v8027 = vld [vmem:[%s3 + $0x268] sm:$0xff]
      %v8028 = vld [vmem:[%s3 + $0x270] sm:$0xff]
      %v8029 = vld [vmem:[%s3 + $0x278] sm:$0xff]
      %v8030 = vrot.slane %v7857, 4
      %8032 = vmatpush.msra.mxu0 %v8029
      %8033 = vmatpush.msra.mxu0 %v8028
      %8034 = vmatpush.msra.mxu0 %v8027
      %8035 = vmatpush.msra.mxu0 %v8026
      %8036 = vmatpush.msra.mxu0 %v8025
      %8037 = vmatpush.msra.mxu0 %v8024
      %8038 = vmatpush.msra.mxu0 %v8023
      %8039 = vmatpush.msra.mxu0 %v8022
      %8040 = vmatpush.msra.mxu0 %v8021
      %8041 = vmatpush.msra.mxu0 %v8020
      %8042 = vmatpush.msra.mxu0 %v8019
      %8043 = vmatpush.msra.mxu0 %v8018
      %8044 = vmatpush.msra.mxu0 %v8017
      %8045 = vmatpush.msra.mxu0 %v8016
      %8046 = vmatpush.msra.mxu0 %v8015
      %8047 = vmatpush.msra.mxu0 %v8014
      %8048 = vmatmul.f32.gmra.mxu0 %v8030
      %v8049 = vpop.f32.mrf.mxu0
      %v8050 = vadd.f32 0.0, %v8049
      %8051 = vdwg.mxu0
      %v8052 = vadd.f32 %v8013, %v8050
      %v8053 = vld [vmem:[%s3 + $0x280] sm:$0xff]
      %v8054 = vld [vmem:[%s3 + $0x288] sm:$0xff]
      %v8055 = vld [vmem:[%s3 + $0x290] sm:$0xff]
      %v8056 = vld [vmem:[%s3 + $0x298] sm:$0xff]
      %v8057 = vld [vmem:[%s3 + $0x2a0] sm:$0xff]
      %v8058 = vld [vmem:[%s3 + $0x2a8] sm:$0xff]
      %v8059 = vld [vmem:[%s3 + $0x2b0] sm:$0xff]
      %v8060 = vld [vmem:[%s3 + $0x2b8] sm:$0xff]
      %v8061 = vld [vmem:[%s3 + $0x2c0] sm:$0xff]
      %v8062 = vld [vmem:[%s3 + $0x2c8] sm:$0xff]
      %v8063 = vld [vmem:[%s3 + $0x2d0] sm:$0xff]
      %v8064 = vld [vmem:[%s3 + $0x2d8] sm:$0xff]
      %v8065 = vld [vmem:[%s3 + $0x2e0] sm:$0xff]
      %v8066 = vld [vmem:[%s3 + $0x2e8] sm:$0xff]
      %v8067 = vld [vmem:[%s3 + $0x2f0] sm:$0xff]
      %v8068 = vld [vmem:[%s3 + $0x2f8] sm:$0xff]
      %v8069 = vrot.slane %v7857, 5
      %8071 = vmatpush.msra.mxu0 %v8068
      %8072 = vmatpush.msra.mxu0 %v8067
      %8073 = vmatpush.msra.mxu0 %v8066
      %8074 = vmatpush.msra.mxu0 %v8065
      %8075 = vmatpush.msra.mxu0 %v8064
      %8076 = vmatpush.msra.mxu0 %v8063
      %8077 = vmatpush.msra.mxu0 %v8062
      %8078 = vmatpush.msra.mxu0 %v8061
      %8079 = vmatpush.msra.mxu0 %v8060
      %8080 = vmatpush.msra.mxu0 %v8059
      %8081 = vmatpush.msra.mxu0 %v8058
      %8082 = vmatpush.msra.mxu0 %v8057
      %8083 = vmatpush.msra.mxu0 %v8056
      %8084 = vmatpush.msra.mxu0 %v8055
      %8085 = vmatpush.msra.mxu0 %v8054
      %8086 = vmatpush.msra.mxu0 %v8053
      %8087 = vmatmul.f32.gmra.mxu0 %v8069
      %v8088 = vpop.f32.mrf.mxu0
      %v8089 = vadd.f32 0.0, %v8088
      %8090 = vdwg.mxu0
      %v8091 = vadd.f32 %v8052, %v8089
      %v8092 = vld [vmem:[%s3 + $0x300] sm:$0xff]
      %v8093 = vld [vmem:[%s3 + $0x308] sm:$0xff]
      %v8094 = vld [vmem:[%s3 + $0x310] sm:$0xff]
      %v8095 = vld [vmem:[%s3 + $0x318] sm:$0xff]
      %v8096 = vld [vmem:[%s3 + $0x320] sm:$0xff]
      %v8097 = vld [vmem:[%s3 + $0x328] sm:$0xff]
      %v8098 = vld [vmem:[%s3 + $0x330] sm:$0xff]
      %v8099 = vld [vmem:[%s3 + $0x338] sm:$0xff]
      %v8100 = vld [vmem:[%s3 + $0x340] sm:$0xff]
      %v8101 = vld [vmem:[%s3 + $0x348] sm:$0xff]
      %v8102 = vld [vmem:[%s3 + $0x350] sm:$0xff]
      %v8103 = vld [vmem:[%s3 + $0x358] sm:$0xff]
      %v8104 = vld [vmem:[%s3 + $0x360] sm:$0xff]
      %v8105 = vld [vmem:[%s3 + $0x368] sm:$0xff]
      %v8106 = vld [vmem:[%s3 + $0x370] sm:$0xff]
      %v8107 = vld [vmem:[%s3 + $0x378] sm:$0xff]
      %v8108 = vrot.slane %v7857, 6
      %8110 = vmatpush.msra.mxu0 %v8107
      %8111 = vmatpush.msra.mxu0 %v8106
      %8112 = vmatpush.msra.mxu0 %v8105
      %8113 = vmatpush.msra.mxu0 %v8104
      %8114 = vmatpush.msra.mxu0 %v8103
      %8115 = vmatpush.msra.mxu0 %v8102
      %8116 = vmatpush.msra.mxu0 %v8101
      %8117 = vmatpush.msra.mxu0 %v8100
      %8118 = vmatpush.msra.mxu0 %v8099
      %8119 = vmatpush.msra.mxu0 %v8098
      %8120 = vmatpush.msra.mxu0 %v8097
      %8121 = vmatpush.msra.mxu0 %v8096
      %8122 = vmatpush.msra.mxu0 %v8095
      %8123 = vmatpush.msra.mxu0 %v8094
      %8124 = vmatpush.msra.mxu0 %v8093
      %8125 = vmatpush.msra.mxu0 %v8092
      %8126 = vmatmul.f32.gmra.mxu0 %v8108
      %v8127 = vpop.f32.mrf.mxu0
      %v8128 = vadd.f32 0.0, %v8127
      %8129 = vdwg.mxu0
      %v8130 = vadd.f32 %v8091, %v8128
      %v8131 = vld [vmem:[%s3 + $0x380] sm:$0xff]
      %v8132 = vld [vmem:[%s3 + $0x388] sm:$0xff]
      %v8133 = vld [vmem:[%s3 + $0x390] sm:$0xff]
      %v8134 = vld [vmem:[%s3 + $0x398] sm:$0xff]
      %v8135 = vld [vmem:[%s3 + $0x3a0] sm:$0xff]
      %v8136 = vld [vmem:[%s3 + $0x3a8] sm:$0xff]
      %v8137 = vld [vmem:[%s3 + $0x3b0] sm:$0xff]
      %v8138 = vld [vmem:[%s3 + $0x3b8] sm:$0xff]
      %v8139 = vld [vmem:[%s3 + $0x3c0] sm:$0xff]
      %v8140 = vld [vmem:[%s3 + $0x3c8] sm:$0xff]
      %v8141 = vld [vmem:[%s3 + $0x3d0] sm:$0xff]
      %v8142 = vld [vmem:[%s3 + $0x3d8] sm:$0xff]
      %v8143 = vld [vmem:[%s3 + $0x3e0] sm:$0xff]
      %v8144 = vld [vmem:[%s3 + $0x3e8] sm:$0xff]
      %v8145 = vld [vmem:[%s3 + $0x3f0] sm:$0xff]
      %v8146 = vld [vmem:[%s3 + $0x3f8] sm:$0xff]
      %v8147 = vrot.slane %v7857, 7
      %8149 = vmatpush.msra.mxu0 %v8146
      %8150 = vmatpush.msra.mxu0 %v8145
      %8151 = vmatpush.msra.mxu0 %v8144
      %8152 = vmatpush.msra.mxu0 %v8143
      %8153 = vmatpush.msra.mxu0 %v8142
      %8154 = vmatpush.msra.mxu0 %v8141
      %8155 = vmatpush.msra.mxu0 %v8140
      %8156 = vmatpush.msra.mxu0 %v8139
      %8157 = vmatpush.msra.mxu0 %v8138
      %8158 = vmatpush.msra.mxu0 %v8137
      %8159 = vmatpush.msra.mxu0 %v8136
      %8160 = vmatpush.msra.mxu0 %v8135
      %8161 = vmatpush.msra.mxu0 %v8134
      %8162 = vmatpush.msra.mxu0 %v8133
      %8163 = vmatpush.msra.mxu0 %v8132
      %8164 = vmatpush.msra.mxu0 %v8131
      %8165 = vmatmul.f32.gmra.mxu0 %v8147
      %v8166 = vpop.f32.mrf.mxu0
      %v8167 = vadd.f32 0.0, %v8166
      %8168 = vdwg.mxu0
      %v8169 = vadd.f32 %v8130, %v8167
      %v8170 = vld [vmem:[%s314] sm:$0x1]
      %v8171 = vld [vmem:[%s4] sm:$0xff]
      %v8172 = vld [vmem:[%s4 + $0x8] sm:$0xff]
      %v8173 = vld [vmem:[%s4 + $0x10] sm:$0xff]
      %v8174 = vld [vmem:[%s4 + $0x18] sm:$0xff]
      %v8175 = vld [vmem:[%s6 + $0x5] sm:$0x1]
      %v8177 = vsel %vm523, %v8170, 0
      %8179 = vmatpush.msra.mxu0 0.0
      %8180 = vmatpush.msra.mxu0 0.0
      %8181 = vmatpush.msra.mxu0 0.0
      %8182 = vmatpush.msra.mxu0 0.0
      %8183 = vmatpush.msra.mxu0 0.0
      %8184 = vmatpush.msra.mxu0 0.0
      %8185 = vmatpush.msra.mxu0 0.0
      %8186 = vmatpush.msra.mxu0 0.0
      %8187 = vmatpush.msra.mxu0 0.0
      %8188 = vmatpush.msra.mxu0 0.0
      %8189 = vmatpush.msra.mxu0 0.0
      %8190 = vmatpush.msra.mxu0 0.0
      %8191 = vmatpush.msra.mxu0 %v8174
      %8192 = vmatpush.msra.mxu0 %v8173
      %8193 = vmatpush.msra.mxu0 %v8172
      %8194 = vmatpush.msra.mxu0 %v8171
      %8195 = vmatmul.f32.gmra.mxu0 %v8177
      %v8196 = vpop.f32.mrf.mxu0
      %v8197 = vadd.f32 %v8175, %v8196
      %8198 = vdwg.mxu0
      %v8199 = vadd.f32 %v8169, %v8197
      %v8200 = vxor.u32 %v8199, 2147483648
      %v8201 = vmul.f32 %v8200, 1.442695
      %v8202 = vpow.pop %v8201
      %v8203 = vadd.f32 %v8202, 1.0
      %v8204 = vrcp.pop %v8203
      %v8205 = vmul.f32 %v8203, %v8204
      %v8206 = vsub.f32 1.0, %v8205
      %v8207 = vmul.f32 %v8204, %v8206
      %v8208 = vadd.f32 %v8204, %v8207
      %vm8209 = vweird.f32 %v8203
      %vm8210 = vweird.f32 %v8204
      %vm8211 = vmor %vm8209, %vm8210
      %v8212 = vsel %vm8211, %v8204, %v8208
      %v8213 = vand.u32 2147483647, %v8203
      %vm8214 = vcmp.eq.f32.partialorder %v8213, 8.507059e+37
      %v8215 = vand.u32 %v8203, 2147483648
      %v8216 = vor.u32 1.1754944e-38, %v8215
      %v8217 = vsel %vm8214, %v8216, %v8212
      %v8218 = vmul.f32 1.0, %v8217
      %8220 = vrot.lane.b32.xlu0 %v8197, 64
      %v8221 = vpop.permute.xlu0 %8220
      %v8223 = vmul.f32 %v8218, %v8221
      %8225 = vrot.lane.b32.xlu0 %v8223, 64
      %v8226 = vpop.permute.xlu0 %8225
      %v8228 = vadd.f32 %v8169, %v8226
      %v8229 = vtanh.pop %v8228
      %v8230 = vsub.f32 1.0, %v8218
      %8232 = vrot.lane.b32.xlu0 %v8229, 96
      %v8233 = vpop.permute.xlu0 %8232
      %v8235 = vmul.f32 %v8230, %v8233
      %v8236 = vperm.slane %v8170, 0
      %8237 = vrot.lane.b32.xlu0 %v8236, 32
      %v8238 = vpop.permute.xlu0 %8237
      %v8240 = vmul.f32 %v8218, %v8238
      %v8241 = vadd.f32 %v8235, %v8240
      %v8242 = vld [vmem:[%s5] sm:$0xff]
      %v8243 = vld [vmem:[%s5 + $0x8] sm:$0xff]
      %v8244 = vld [vmem:[%s5 + $0x10] sm:$0xff]
      %v8245 = vld [vmem:[%s5 + $0x18] sm:$0xff]
      %v8246 = vld [vmem:[%s6 + $0x6] sm:$0x1]
      %8248 = vrot.lane.b32.xlu0 %v8241, 96
      %v8249 = vpop.permute.xlu0 %8248
      %v8250 = vsel %vm523, %v8249, 0
      %8252 = vmatpush.msra.mxu0 0.0
      %8253 = vmatpush.msra.mxu0 0.0
      %8254 = vmatpush.msra.mxu0 0.0
      %8255 = vmatpush.msra.mxu0 0.0
      %8256 = vmatpush.msra.mxu0 0.0
      %8257 = vmatpush.msra.mxu0 0.0
      %8258 = vmatpush.msra.mxu0 0.0
      %8259 = vmatpush.msra.mxu0 0.0
      %8260 = vmatpush.msra.mxu0 0.0
      %8261 = vmatpush.msra.mxu0 0.0
      %8262 = vmatpush.msra.mxu0 0.0
      %8263 = vmatpush.msra.mxu0 0.0
      %8264 = vmatpush.msra.mxu0 %v8245
      %8265 = vmatpush.msra.mxu0 %v8244
      %8266 = vmatpush.msra.mxu0 %v8243
      %8267 = vmatpush.msra.mxu0 %v8242
      %8268 = vmatmul.f32.gmra.mxu0 %v8250
      %v8269 = vpop.f32.mrf.mxu0
      %v8270 = vadd.f32 %v8246, %v8269
      %8271 = vdwg.mxu0
      %8274 = vrot.lane.b32.xlu0 %v8270, 32
      %v8275 = vpop.permute.xlu0 %8274
      %v8277 = vsel %vm523, %v8249, %v8275
      %vm8278 = vcmask 294912
      %8279 = vst.msk [vmem:[%s317] sm:$0x1] %vm8278, %v8277
      %p8280 = scmp.lt.s32.totalorder %s19, 1
      %s8281 = scalar_select %p8280, %s19, 1
      %s8282 = scalar_lea.vmem %s8, %s8281
      // Predicated region
      $region53: #{a3c_forward.1} parent=51 // pred_check
        %p8283 = pneg %p215
      $region54: #{a3c_forward.1} parent=51 // pred_check_branch
        %8285 = sbr.rel (%p8283) target = $region56
      $region55: #{a3c_forward.1} parent=51 // pred_region
        _
      $region56: #{a3c_forward.1} parent=51 // pred_fallthru
        _
    $region52: #{a3c_forward.1} parent=5 // pred_fallthru
      _
    %p8286 = scmp.le.s32.totalorder 2, %s14
    // Predicated region
    $region57: #{a3c_forward.1} parent=5 // pred_check
      %p8287 = pneg %p8286
    $region58: #{a3c_forward.1} parent=5 // pred_check_branch
      %8289 = sbr.rel (%p8287) target = $region60
    $region59: #{a3c_forward.1} parent=5 // pred_region
      %s8290 = ssub.s32 %s14, 2
      // Predicated region
      $region61: #{a3c_forward.1} parent=59 // pred_check
        %p8291 = pneg %p221
      $region62: #{a3c_forward.1} parent=59 // pred_check_branch
        %8293 = sbr.rel (%p8291) target = $region64
      $region63: #{a3c_forward.1} parent=59 // pred_region
        %p8294 = scmp.lt.s32.totalorder %s20, 1
        %s8295 = scalar_select %p8294, %s20, 1
        %s8296 = scalar_lea.vmem %s8, %s8295
      $region64: #{a3c_forward.1} parent=59 // pred_fallthru
        _
    $region60: #{a3c_forward.1} parent=5 // pred_fallthru
      _
  $region6: #{a3c_forward.1} parent=0 // loop_footer
    %s18 = sadd.s32 1, %s14
  $region7: #{a3c_forward.1} parent=0 // loop_footer_branch
    %13 = sbr.rel target = $region3
  $region8: #{a3c_forward.1} parent=0 // loop_exit
    _

</llo_original>
